<compile_context>
chip_gen: v7x
topology: tpu7x:2x2x1
jax: 0.10.0
libtpu: 0.0.40
codegen_flags: <defaults>
</compile_context>

<pallas_src>
import functools
import math

import jax
import jax.numpy as jnp
from jax.experimental import pallas as pl
from jax.experimental.pallas import tpu as pltpu  # noqa: F401  (no grid -> no compiler_params needed)


# ------------------------- fused forward kernel -----------------------------

def _fused_tiny_conformer_kernel(
    x_ref,
    emb_w_ref, emb_b_ref,
    in_proj_w_ref, in_proj_b_ref,
    out_proj_w_ref, out_proj_b_ref,
    ln1_g_ref, ln1_b_ref,
    ff1_w_ref, ff1_b_ref,
    ff2_w_ref, ff2_b_ref,
    ln2_g_ref, ln2_b_ref,
    cls_w_ref, cls_b_ref,
    out_ref,
    *, num_layers, num_heads, batch, seq, compute_dtype,
):
    hidden = emb_w_ref.shape[1]
    head_dim = hidden // num_heads
    scale = 1.0 / math.sqrt(head_dim)
    cd = compute_dtype

    def matmul(a, w, b):
        # MXU matmul in compute_dtype (bf16 by default), f32 accumulation,
        # f32 bias add.  astype is a no-op when already in compute_dtype.
        return jnp.dot(a.astype(cd), w.astype(cd),
                       preferred_element_type=jnp.float32) + b

    def layernorm(h, g, b):
        mu = jnp.mean(h, axis=-1, keepdims=True)
        var = jnp.mean((h - mu) * (h - mu), axis=-1, keepdims=True)
        return (h - mu) * jax.lax.rsqrt(var + 1e-5) * g + b

    # ---- embedding ----
    h = matmul(x_ref[...], emb_w_ref[...], emb_b_ref[...])            # (B*S, H) f32

    # ---- encoder layers (post-LN, relu; dropout = identity at inference) ----
    for l in range(num_layers):
        qkv = matmul(h, in_proj_w_ref[l], in_proj_b_ref[l])           # (B*S, 3H) f32

        batch_rows = []
        for b in range(batch):
            r0 = b * seq
            head_outs = []
            for hh in range(num_heads):
                c0 = hh * head_dim
                # Scale in f32, then cast operands to bf16 for the MXU.
                q = (qkv[r0:r0 + seq, c0:c0 + head_dim] * scale).astype(cd)
                k = qkv[r0:r0 + seq,
                        hidden + c0:hidden + c0 + head_dim].astype(cd)
                v = qkv[r0:r0 + seq,
                        2 * hidden + c0:2 * hidden + c0 + head_dim].astype(cd)
                s = jnp.dot(q, k.T, preferred_element_type=jnp.float32)  # (S, S)
                s = s - jnp.max(s, axis=-1, keepdims=True)
                p = jnp.exp(s)
                p = p * pl.reciprocal(jnp.sum(p, axis=-1, keepdims=True),
                                      approx=True)
                head_outs.append(jnp.dot(p.astype(cd), v,
                                         preferred_element_type=jnp.float32))
            batch_rows.append(jnp.concatenate(head_outs, axis=-1))    # (S, H)
        attn = jnp.concatenate(batch_rows, axis=0)                    # (B*S, H)

        attn = matmul(attn, out_proj_w_ref[l], out_proj_b_ref[l])     # (B*S, H)
        h = layernorm(h + attn, ln1_g_ref[l], ln1_b_ref[l])           # post-LN 1

        ff = matmul(h, ff1_w_ref[l], ff1_b_ref[l])                    # (B*S, 4H)
        ff = jnp.maximum(ff, 0.0)                                     # relu
        ff = matmul(ff, ff2_w_ref[l], ff2_b_ref[l])                   # (B*S, H)
        h = layernorm(h + ff, ln2_g_ref[l], ln2_b_ref[l])             # post-LN 2

    # ---- mean over seq + classifier (fused tail) ----
    # Pooling as an MXU matmul with a (B, B*S) block-pooling matrix: avoids
    # per-batch cross-sublane reductions, stays lane-dense.
    rows = jax.lax.broadcasted_iota(jnp.int32, (batch, batch * seq), 0)
    cols = jax.lax.broadcasted_iota(jnp.int32, (batch, batch * seq), 1)
    in_block = (cols >= rows * seq) & (cols < (rows + 1) * seq)
    pool = jnp.where(in_block, 1.0 / seq, 0.0).astype(cd)             # (B, B*S)
    pooled = jnp.dot(pool, h.astype(cd),
                     preferred_element_type=jnp.float32)              # (B, H)
    out_ref[...] = matmul(pooled, cls_w_ref[...], cls_b_ref[...])     # (B, C)


# ------------------------------ wrapper --------------------------------------

_MATMUL_WEIGHT_KEYS = ("emb_w", "in_proj_w", "out_proj_w", "ff1_w", "ff2_w",
                       "cls_w")


def prepare_params(params, compute_dtype=jnp.bfloat16):
    """One-time cast of all MXU-bound weights to the compute dtype (bf16).

    Call once outside jit so the per-forward path carries no cast ops and only
    half the weight bytes over HBM->VMEM DMA.  LayerNorm params and biases stay
    f32 (they feed VPU adds, not the MXU)."""
    return {k: (v.astype(compute_dtype) if k in _MATMUL_WEIGHT_KEYS else v)
            for k, v in params.items()}


def tiny_conformer_forward(params, x, *, num_heads, compute_dtype=jnp.bfloat16):
    """x: (B, S, input_dim) f32 -> logits (B, num_classes) f32."""
    B, S, _ = x.shape
    L = params["in_proj_w"].shape[0]
    C = params["cls_w"].shape[1]
    cd = compute_dtype

    kernel = functools.partial(
        _fused_tiny_conformer_kernel,
        num_layers=L, num_heads=num_heads, batch=B, seq=S, compute_dtype=cd)

    # Single grid step, no BlockSpecs: every operand is placed whole in VMEM.
    # Weights ~1.6 MB (bf16) + KB-scale activations fit with large margin even
    # under v7x's 64 MiB VMEM / default scoped limits, so no tiling needed.
    return pl.pallas_call(
        kernel,
        out_shape=jax.ShapeDtypeStruct((B, C), jnp.float32),
    )(
        x.reshape(B * S, -1).astype(cd),
        params["emb_w"], params["emb_b"],
        params["in_proj_w"], params["in_proj_b"],
        params["out_proj_w"], params["out_proj_b"],
        params["ln1_g"], params["ln1_b"],
        params["ff1_w"], params["ff1_b"],
        params["ff2_w"], params["ff2_b"],
        params["ln2_g"], params["ln2_b"],
        params["cls_w"], params["cls_b"],
    )


def init_params(key, input_dim, hidden_dim, num_classes, num_layers):
    """Per-layer weights are stacked along a leading num_layers axis so the
    fused kernel can statically index layer l with ref[l]."""
    s = 0.02
    ffn = 4 * hidden_dim
    keys = jax.random.split(key, 10)

    def rnd(k, shape):
        return jax.random.normal(k, shape, jnp.float32) * s

    return {
        "emb_w": rnd(keys[0], (input_dim, hidden_dim)),
        "emb_b": rnd(keys[1], (1, hidden_dim)),
        "in_proj_w": rnd(keys[2], (num_layers, hidden_dim, 3 * hidden_dim)),
        "in_proj_b": rnd(keys[3], (num_layers, 1, 3 * hidden_dim)),
        "out_proj_w": rnd(keys[4], (num_layers, hidden_dim, hidden_dim)),
        "out_proj_b": jnp.zeros((num_layers, 1, hidden_dim), jnp.float32),
        "ln1_g": jnp.ones((num_layers, 1, hidden_dim), jnp.float32),
        "ln1_b": jnp.zeros((num_layers, 1, hidden_dim), jnp.float32),
        "ff1_w": rnd(keys[5], (num_layers, hidden_dim, ffn)),
        "ff1_b": rnd(keys[6], (num_layers, 1, ffn)),
        "ff2_w": rnd(keys[7], (num_layers, ffn, hidden_dim)),
        "ff2_b": jnp.zeros((num_layers, 1, hidden_dim), jnp.float32),
        "ln2_g": jnp.ones((num_layers, 1, hidden_dim), jnp.float32),
        "ln2_b": jnp.zeros((num_layers, 1, hidden_dim), jnp.float32),
        "cls_w": rnd(keys[8], (hidden_dim, num_classes)),
        "cls_b": rnd(keys[9], (1, num_classes)),
    }


# -------------------------------- main ---------------------------------------

if __name__ == "__main__":
    INPUT_DIM = 64
    HIDDEN_DIM = 128
    NUM_CLASSES = 10
    NUM_LAYERS = 4
    NUM_HEADS = 4
    B, S = 2, 8

    key = jax.random.PRNGKey(0)
    pk, xk = jax.random.split(key)
    params = init_params(pk, INPUT_DIM, HIDDEN_DIM, NUM_CLASSES, NUM_LAYERS)
    params = prepare_params(params)   # one-time bf16 cast of matmul weights
    x = jax.random.normal(xk, (B, S, INPUT_DIM), jnp.float32)

    fwd = jax.jit(functools.partial(tiny_conformer_forward, num_heads=NUM_HEADS))
    logits = fwd(params, x)
    jax.block_until_ready(logits)
    assert logits.shape == (B, NUM_CLASSES) and logits.dtype == jnp.float32
    print("KERNEL_OK")
</pallas_src>

<mosaic_0001>
module attributes {stable_mosaic.version = 11 : i64} {
  func.func @_fused_tiny_conformer_kernel(%arg0: memref<16x64xbf16, #tpu.memory_space<vmem>>, %arg1: memref<64x128xbf16, #tpu.memory_space<vmem>>, %arg2: memref<1x128xf32, #tpu.memory_space<vmem>>, %arg3: memref<4x128x384xbf16, #tpu.memory_space<vmem>>, %arg4: memref<4x1x384xf32, #tpu.memory_space<vmem>>, %arg5: memref<4x128x128xbf16, #tpu.memory_space<vmem>>, %arg6: memref<4x1x128xf32, #tpu.memory_space<vmem>>, %arg7: memref<4x1x128xf32, #tpu.memory_space<vmem>>, %arg8: memref<4x1x128xf32, #tpu.memory_space<vmem>>, %arg9: memref<4x128x512xbf16, #tpu.memory_space<vmem>>, %arg10: memref<4x1x512xf32, #tpu.memory_space<vmem>>, %arg11: memref<4x512x128xbf16, #tpu.memory_space<vmem>>, %arg12: memref<4x1x128xf32, #tpu.memory_space<vmem>>, %arg13: memref<4x1x128xf32, #tpu.memory_space<vmem>>, %arg14: memref<4x1x128xf32, #tpu.memory_space<vmem>>, %arg15: memref<128x10xbf16, #tpu.memory_space<vmem>>, %arg16: memref<1x10xf32, #tpu.memory_space<vmem>>, %arg17: memref<2x10xf32, #tpu.memory_space<vmem>>) attributes {dimension_semantics = [], scalar_prefetch = 0 : i64, scratch_operands = 0 : i64, tpu.core_type = #tpu.core_type<tc>} {
    %c0 = arith.constant 0 : index
    %c0_0 = arith.constant 0 : index
    %0 = vector.load %arg0[%c0, %c0_0] : memref<16x64xbf16, #tpu.memory_space<vmem>>, vector<16x64xbf16>
    %c0_1 = arith.constant 0 : index
    %c0_2 = arith.constant 0 : index
    %1 = vector.load %arg1[%c0_1, %c0_2] : memref<64x128xbf16, #tpu.memory_space<vmem>>, vector<64x128xbf16>
    %c0_3 = arith.constant 0 : index
    %c0_4 = arith.constant 0 : index
    %2 = vector.load %arg2[%c0_3, %c0_4] : memref<1x128xf32, #tpu.memory_space<vmem>>, vector<1x128xf32>
    %cst = arith.constant dense<0.000000e+00> : vector<16x128xf32>
    %3 = tpu.matmul %0, %1, %cst {dimension_numbers = #tpu.dot_dimension_numbers<[1], [0], [0], [1], [0, 0, 1, 1], [], []>} : vector<16x64xbf16>, vector<64x128xbf16>, vector<16x128xf32> -> vector<16x128xf32>
    %4 = vector.broadcast %2 : vector<1x128xf32> to vector<16x128xf32>
    %5 = arith.addf %3, %4 : vector<16x128xf32>
    %c0_5 = arith.constant 0 : index
    %c0_6 = arith.constant 0 : index
    %c0_7 = arith.constant 0 : index
    %6 = vector.load %arg3[%c0_5, %c0_6, %c0_7] : memref<4x128x384xbf16, #tpu.memory_space<vmem>>, vector<1x128x384xbf16>
    %7 = vector.shape_cast %6 : vector<1x128x384xbf16> to vector<128x384xbf16>
    %c0_8 = arith.constant 0 : index
    %c0_9 = arith.constant 0 : index
    %c0_10 = arith.constant 0 : index
    %8 = vector.load %arg4[%c0_8, %c0_9, %c0_10] : memref<4x1x384xf32, #tpu.memory_space<vmem>>, vector<1x1x384xf32>
    %9 = vector.shape_cast %8 : vector<1x1x384xf32> to vector<1x384xf32>
    %10 = arith.truncf %5 : vector<16x128xf32> to vector<16x128xbf16>
    %cst_11 = arith.constant dense<0.000000e+00> : vector<16x384xf32>
    %11 = tpu.matmul %10, %7, %cst_11 {dimension_numbers = #tpu.dot_dimension_numbers<[1], [0], [0], [1], [0, 0, 1, 1], [], []>} : vector<16x128xbf16>, vector<128x384xbf16>, vector<16x384xf32> -> vector<16x384xf32>
    %12 = vector.broadcast %9 : vector<1x384xf32> to vector<16x384xf32>
    %13 = arith.addf %11, %12 : vector<16x384xf32>
    %14 = vector.extract_strided_slice %13 {offsets = [0, 0], sizes = [8, 32], strides = [1, 1]} : vector<16x384xf32> to vector<8x32xf32>
    %cst_12 = arith.constant 0.176776692 : f32
    %15 = vector.broadcast %cst_12 : f32 to vector<8x32xf32>
    %16 = arith.mulf %14, %15 : vector<8x32xf32>
    %17 = arith.truncf %16 : vector<8x32xf32> to vector<8x32xbf16>
    %18 = vector.extract_strided_slice %13 {offsets = [0, 128], sizes = [8, 32], strides = [1, 1]} : vector<16x384xf32> to vector<8x32xf32>
    %19 = arith.truncf %18 : vector<8x32xf32> to vector<8x32xbf16>
    %20 = vector.extract_strided_slice %13 {offsets = [0, 256], sizes = [8, 32], strides = [1, 1]} : vector<16x384xf32> to vector<8x32xf32>
    %21 = arith.truncf %20 : vector<8x32xf32> to vector<8x32xbf16>
    %22 = tpu.transpose %19, [1, 0] : vector<8x32xbf16> -> vector<32x8xbf16>
    %cst_13 = arith.constant dense<0.000000e+00> : vector<8x8xf32>
    %23 = tpu.matmul %17, %22, %cst_13 {dimension_numbers = #tpu.dot_dimension_numbers<[1], [0], [0], [1], [0, 0, 1, 1], [], []>} : vector<8x32xbf16>, vector<32x8xbf16>, vector<8x8xf32> -> vector<8x8xf32>
    %cst_14 = arith.constant dense<0xFF800000> : vector<8xf32>
    %24 = vector.multi_reduction <maximumf>, %23, %cst_14 [1] : vector<8x8xf32> to vector<8xf32>
    %25 = vector.shape_cast %24 : vector<8xf32> to vector<8x1xf32>
    %26 = vector.broadcast %25 : vector<8x1xf32> to vector<8x8xf32>
    %27 = arith.subf %23, %26 : vector<8x8xf32>
    %28 = math.exp %27 : vector<8x8xf32>
    %cst_15 = arith.constant dense<0.000000e+00> : vector<8xf32>
    %29 = vector.multi_reduction <add>, %28, %cst_15 [1] : vector<8x8xf32> to vector<8xf32>
    %30 = vector.shape_cast %29 : vector<8xf32> to vector<8x1xf32>
    %31 = tpu.reciprocal %30 {approx = true} : vector<8x1xf32> -> vector<8x1xf32>
    %32 = vector.broadcast %31 : vector<8x1xf32> to vector<8x8xf32>
    %33 = arith.mulf %28, %32 : vector<8x8xf32>
    %34 = arith.truncf %33 : vector<8x8xf32> to vector<8x8xbf16>
    %cst_16 = arith.constant dense<0.000000e+00> : vector<8x32xf32>
    %35 = tpu.matmul %34, %21, %cst_16 {dimension_numbers = #tpu.dot_dimension_numbers<[1], [0], [0], [1], [0, 0, 1, 1], [], []>} : vector<8x8xbf16>, vector<8x32xbf16>, vector<8x32xf32> -> vector<8x32xf32>
    %36 = vector.extract_strided_slice %13 {offsets = [0, 32], sizes = [8, 32], strides = [1, 1]} : vector<16x384xf32> to vector<8x32xf32>
    %cst_17 = arith.constant 0.176776692 : f32
    %37 = vector.broadcast %cst_17 : f32 to vector<8x32xf32>
    %38 = arith.mulf %36, %37 : vector<8x32xf32>
    %39 = arith.truncf %38 : vector<8x32xf32> to vector<8x32xbf16>
    %40 = vector.extract_strided_slice %13 {offsets = [0, 160], sizes = [8, 32], strides = [1, 1]} : vector<16x384xf32> to vector<8x32xf32>
    %41 = arith.truncf %40 : vector<8x32xf32> to vector<8x32xbf16>
    %42 = vector.extract_strided_slice %13 {offsets = [0, 288], sizes = [8, 32], strides = [1, 1]} : vector<16x384xf32> to vector<8x32xf32>
    %43 = arith.truncf %42 : vector<8x32xf32> to vector<8x32xbf16>
    %44 = tpu.transpose %41, [1, 0] : vector<8x32xbf16> -> vector<32x8xbf16>
    %cst_18 = arith.constant dense<0.000000e+00> : vector<8x8xf32>
    %45 = tpu.matmul %39, %44, %cst_18 {dimension_numbers = #tpu.dot_dimension_numbers<[1], [0], [0], [1], [0, 0, 1, 1], [], []>} : vector<8x32xbf16>, vector<32x8xbf16>, vector<8x8xf32> -> vector<8x8xf32>
    %cst_19 = arith.constant dense<0xFF800000> : vector<8xf32>
    %46 = vector.multi_reduction <maximumf>, %45, %cst_19 [1] : vector<8x8xf32> to vector<8xf32>
    %47 = vector.shape_cast %46 : vector<8xf32> to vector<8x1xf32>
    %48 = vector.broadcast %47 : vector<8x1xf32> to vector<8x8xf32>
    %49 = arith.subf %45, %48 : vector<8x8xf32>
    %50 = math.exp %49 : vector<8x8xf32>
    %cst_20 = arith.constant dense<0.000000e+00> : vector<8xf32>
    %51 = vector.multi_reduction <add>, %50, %cst_20 [1] : vector<8x8xf32> to vector<8xf32>
    %52 = vector.shape_cast %51 : vector<8xf32> to vector<8x1xf32>
    %53 = tpu.reciprocal %52 {approx = true} : vector<8x1xf32> -> vector<8x1xf32>
    %54 = vector.broadcast %53 : vector<8x1xf32> to vector<8x8xf32>
    %55 = arith.mulf %50, %54 : vector<8x8xf32>
    %56 = arith.truncf %55 : vector<8x8xf32> to vector<8x8xbf16>
    %cst_21 = arith.constant dense<0.000000e+00> : vector<8x32xf32>
    %57 = tpu.matmul %56, %43, %cst_21 {dimension_numbers = #tpu.dot_dimension_numbers<[1], [0], [0], [1], [0, 0, 1, 1], [], []>} : vector<8x8xbf16>, vector<8x32xbf16>, vector<8x32xf32> -> vector<8x32xf32>
    %58 = vector.extract_strided_slice %13 {offsets = [0, 64], sizes = [8, 32], strides = [1, 1]} : vector<16x384xf32> to vector<8x32xf32>
    %cst_22 = arith.constant 0.176776692 : f32
    %59 = vector.broadcast %cst_22 : f32 to vector<8x32xf32>
    %60 = arith.mulf %58, %59 : vector<8x32xf32>
    %61 = arith.truncf %60 : vector<8x32xf32> to vector<8x32xbf16>
    %62 = vector.extract_strided_slice %13 {offsets = [0, 192], sizes = [8, 32], strides = [1, 1]} : vector<16x384xf32> to vector<8x32xf32>
    %63 = arith.truncf %62 : vector<8x32xf32> to vector<8x32xbf16>
    %64 = vector.extract_strided_slice %13 {offsets = [0, 320], sizes = [8, 32], strides = [1, 1]} : vector<16x384xf32> to vector<8x32xf32>
    %65 = arith.truncf %64 : vector<8x32xf32> to vector<8x32xbf16>
    %66 = tpu.transpose %63, [1, 0] : vector<8x32xbf16> -> vector<32x8xbf16>
    %cst_23 = arith.constant dense<0.000000e+00> : vector<8x8xf32>
    %67 = tpu.matmul %61, %66, %cst_23 {dimension_numbers = #tpu.dot_dimension_numbers<[1], [0], [0], [1], [0, 0, 1, 1], [], []>} : vector<8x32xbf16>, vector<32x8xbf16>, vector<8x8xf32> -> vector<8x8xf32>
    %cst_24 = arith.constant dense<0xFF800000> : vector<8xf32>
    %68 = vector.multi_reduction <maximumf>, %67, %cst_24 [1] : vector<8x8xf32> to vector<8xf32>
    %69 = vector.shape_cast %68 : vector<8xf32> to vector<8x1xf32>
    %70 = vector.broadcast %69 : vector<8x1xf32> to vector<8x8xf32>
    %71 = arith.subf %67, %70 : vector<8x8xf32>
    %72 = math.exp %71 : vector<8x8xf32>
    %cst_25 = arith.constant dense<0.000000e+00> : vector<8xf32>
    %73 = vector.multi_reduction <add>, %72, %cst_25 [1] : vector<8x8xf32> to vector<8xf32>
    %74 = vector.shape_cast %73 : vector<8xf32> to vector<8x1xf32>
    %75 = tpu.reciprocal %74 {approx = true} : vector<8x1xf32> -> vector<8x1xf32>
    %76 = vector.broadcast %75 : vector<8x1xf32> to vector<8x8xf32>
    %77 = arith.mulf %72, %76 : vector<8x8xf32>
    %78 = arith.truncf %77 : vector<8x8xf32> to vector<8x8xbf16>
    %cst_26 = arith.constant dense<0.000000e+00> : vector<8x32xf32>
    %79 = tpu.matmul %78, %65, %cst_26 {dimension_numbers = #tpu.dot_dimension_numbers<[1], [0], [0], [1], [0, 0, 1, 1], [], []>} : vector<8x8xbf16>, vector<8x32xbf16>, vector<8x32xf32> -> vector<8x32xf32>
    %80 = vector.extract_strided_slice %13 {offsets = [0, 96], sizes = [8, 32], strides = [1, 1]} : vector<16x384xf32> to vector<8x32xf32>
    %cst_27 = arith.constant 0.176776692 : f32
    %81 = vector.broadcast %cst_27 : f32 to vector<8x32xf32>
    %82 = arith.mulf %80, %81 : vector<8x32xf32>
    %83 = arith.truncf %82 : vector<8x32xf32> to vector<8x32xbf16>
    %84 = vector.extract_strided_slice %13 {offsets = [0, 224], sizes = [8, 32], strides = [1, 1]} : vector<16x384xf32> to vector<8x32xf32>
    %85 = arith.truncf %84 : vector<8x32xf32> to vector<8x32xbf16>
    %86 = vector.extract_strided_slice %13 {offsets = [0, 352], sizes = [8, 32], strides = [1, 1]} : vector<16x384xf32> to vector<8x32xf32>
    %87 = arith.truncf %86 : vector<8x32xf32> to vector<8x32xbf16>
    %88 = tpu.transpose %85, [1, 0] : vector<8x32xbf16> -> vector<32x8xbf16>
    %cst_28 = arith.constant dense<0.000000e+00> : vector<8x8xf32>
    %89 = tpu.matmul %83, %88, %cst_28 {dimension_numbers = #tpu.dot_dimension_numbers<[1], [0], [0], [1], [0, 0, 1, 1], [], []>} : vector<8x32xbf16>, vector<32x8xbf16>, vector<8x8xf32> -> vector<8x8xf32>
    %cst_29 = arith.constant dense<0xFF800000> : vector<8xf32>
    %90 = vector.multi_reduction <maximumf>, %89, %cst_29 [1] : vector<8x8xf32> to vector<8xf32>
    %91 = vector.shape_cast %90 : vector<8xf32> to vector<8x1xf32>
    %92 = vector.broadcast %91 : vector<8x1xf32> to vector<8x8xf32>
    %93 = arith.subf %89, %92 : vector<8x8xf32>
    %94 = math.exp %93 : vector<8x8xf32>
    %cst_30 = arith.constant dense<0.000000e+00> : vector<8xf32>
    %95 = vector.multi_reduction <add>, %94, %cst_30 [1] : vector<8x8xf32> to vector<8xf32>
    %96 = vector.shape_cast %95 : vector<8xf32> to vector<8x1xf32>
    %97 = tpu.reciprocal %96 {approx = true} : vector<8x1xf32> -> vector<8x1xf32>
    %98 = vector.broadcast %97 : vector<8x1xf32> to vector<8x8xf32>
    %99 = arith.mulf %94, %98 : vector<8x8xf32>
    %100 = arith.truncf %99 : vector<8x8xf32> to vector<8x8xbf16>
    %cst_31 = arith.constant dense<0.000000e+00> : vector<8x32xf32>
    %101 = tpu.matmul %100, %87, %cst_31 {dimension_numbers = #tpu.dot_dimension_numbers<[1], [0], [0], [1], [0, 0, 1, 1], [], []>} : vector<8x8xbf16>, vector<8x32xbf16>, vector<8x32xf32> -> vector<8x32xf32>
    %102 = tpu.concatenate %35, %57, %79, %101 in 1 : vector<8x32xf32>, vector<8x32xf32>, vector<8x32xf32>, vector<8x32xf32> -> vector<8x128xf32>
    %103 = vector.extract_strided_slice %13 {offsets = [8, 0], sizes = [8, 32], strides = [1, 1]} : vector<16x384xf32> to vector<8x32xf32>
    %cst_32 = arith.constant 0.176776692 : f32
    %104 = vector.broadcast %cst_32 : f32 to vector<8x32xf32>
    %105 = arith.mulf %103, %104 : vector<8x32xf32>
    %106 = arith.truncf %105 : vector<8x32xf32> to vector<8x32xbf16>
    %107 = vector.extract_strided_slice %13 {offsets = [8, 128], sizes = [8, 32], strides = [1, 1]} : vector<16x384xf32> to vector<8x32xf32>
    %108 = arith.truncf %107 : vector<8x32xf32> to vector<8x32xbf16>
    %109 = vector.extract_strided_slice %13 {offsets = [8, 256], sizes = [8, 32], strides = [1, 1]} : vector<16x384xf32> to vector<8x32xf32>
    %110 = arith.truncf %109 : vector<8x32xf32> to vector<8x32xbf16>
    %111 = tpu.transpose %108, [1, 0] : vector<8x32xbf16> -> vector<32x8xbf16>
    %cst_33 = arith.constant dense<0.000000e+00> : vector<8x8xf32>
    %112 = tpu.matmul %106, %111, %cst_33 {dimension_numbers = #tpu.dot_dimension_numbers<[1], [0], [0], [1], [0, 0, 1, 1], [], []>} : vector<8x32xbf16>, vector<32x8xbf16>, vector<8x8xf32> -> vector<8x8xf32>
    %cst_34 = arith.constant dense<0xFF800000> : vector<8xf32>
    %113 = vector.multi_reduction <maximumf>, %112, %cst_34 [1] : vector<8x8xf32> to vector<8xf32>
    %114 = vector.shape_cast %113 : vector<8xf32> to vector<8x1xf32>
    %115 = vector.broadcast %114 : vector<8x1xf32> to vector<8x8xf32>
    %116 = arith.subf %112, %115 : vector<8x8xf32>
    %117 = math.exp %116 : vector<8x8xf32>
    %cst_35 = arith.constant dense<0.000000e+00> : vector<8xf32>
    %118 = vector.multi_reduction <add>, %117, %cst_35 [1] : vector<8x8xf32> to vector<8xf32>
    %119 = vector.shape_cast %118 : vector<8xf32> to vector<8x1xf32>
    %120 = tpu.reciprocal %119 {approx = true} : vector<8x1xf32> -> vector<8x1xf32>
    %121 = vector.broadcast %120 : vector<8x1xf32> to vector<8x8xf32>
    %122 = arith.mulf %117, %121 : vector<8x8xf32>
    %123 = arith.truncf %122 : vector<8x8xf32> to vector<8x8xbf16>
    %cst_36 = arith.constant dense<0.000000e+00> : vector<8x32xf32>
    %124 = tpu.matmul %123, %110, %cst_36 {dimension_numbers = #tpu.dot_dimension_numbers<[1], [0], [0], [1], [0, 0, 1, 1], [], []>} : vector<8x8xbf16>, vector<8x32xbf16>, vector<8x32xf32> -> vector<8x32xf32>
    %125 = vector.extract_strided_slice %13 {offsets = [8, 32], sizes = [8, 32], strides = [1, 1]} : vector<16x384xf32> to vector<8x32xf32>
    %cst_37 = arith.constant 0.176776692 : f32
    %126 = vector.broadcast %cst_37 : f32 to vector<8x32xf32>
    %127 = arith.mulf %125, %126 : vector<8x32xf32>
    %128 = arith.truncf %127 : vector<8x32xf32> to vector<8x32xbf16>
    %129 = vector.extract_strided_slice %13 {offsets = [8, 160], sizes = [8, 32], strides = [1, 1]} : vector<16x384xf32> to vector<8x32xf32>
    %130 = arith.truncf %129 : vector<8x32xf32> to vector<8x32xbf16>
    %131 = vector.extract_strided_slice %13 {offsets = [8, 288], sizes = [8, 32], strides = [1, 1]} : vector<16x384xf32> to vector<8x32xf32>
    %132 = arith.truncf %131 : vector<8x32xf32> to vector<8x32xbf16>
    %133 = tpu.transpose %130, [1, 0] : vector<8x32xbf16> -> vector<32x8xbf16>
    %cst_38 = arith.constant dense<0.000000e+00> : vector<8x8xf32>
    %134 = tpu.matmul %128, %133, %cst_38 {dimension_numbers = #tpu.dot_dimension_numbers<[1], [0], [0], [1], [0, 0, 1, 1], [], []>} : vector<8x32xbf16>, vector<32x8xbf16>, vector<8x8xf32> -> vector<8x8xf32>
    %cst_39 = arith.constant dense<0xFF800000> : vector<8xf32>
    %135 = vector.multi_reduction <maximumf>, %134, %cst_39 [1] : vector<8x8xf32> to vector<8xf32>
    %136 = vector.shape_cast %135 : vector<8xf32> to vector<8x1xf32>
    %137 = vector.broadcast %136 : vector<8x1xf32> to vector<8x8xf32>
    %138 = arith.subf %134, %137 : vector<8x8xf32>
    %139 = math.exp %138 : vector<8x8xf32>
    %cst_40 = arith.constant dense<0.000000e+00> : vector<8xf32>
    %140 = vector.multi_reduction <add>, %139, %cst_40 [1] : vector<8x8xf32> to vector<8xf32>
    %141 = vector.shape_cast %140 : vector<8xf32> to vector<8x1xf32>
    %142 = tpu.reciprocal %141 {approx = true} : vector<8x1xf32> -> vector<8x1xf32>
    %143 = vector.broadcast %142 : vector<8x1xf32> to vector<8x8xf32>
    %144 = arith.mulf %139, %143 : vector<8x8xf32>
    %145 = arith.truncf %144 : vector<8x8xf32> to vector<8x8xbf16>
    %cst_41 = arith.constant dense<0.000000e+00> : vector<8x32xf32>
    %146 = tpu.matmul %145, %132, %cst_41 {dimension_numbers = #tpu.dot_dimension_numbers<[1], [0], [0], [1], [0, 0, 1, 1], [], []>} : vector<8x8xbf16>, vector<8x32xbf16>, vector<8x32xf32> -> vector<8x32xf32>
    %147 = vector.extract_strided_slice %13 {offsets = [8, 64], sizes = [8, 32], strides = [1, 1]} : vector<16x384xf32> to vector<8x32xf32>
    %cst_42 = arith.constant 0.176776692 : f32
    %148 = vector.broadcast %cst_42 : f32 to vector<8x32xf32>
    %149 = arith.mulf %147, %148 : vector<8x32xf32>
    %150 = arith.truncf %149 : vector<8x32xf32> to vector<8x32xbf16>
    %151 = vector.extract_strided_slice %13 {offsets = [8, 192], sizes = [8, 32], strides = [1, 1]} : vector<16x384xf32> to vector<8x32xf32>
    %152 = arith.truncf %151 : vector<8x32xf32> to vector<8x32xbf16>
    %153 = vector.extract_strided_slice %13 {offsets = [8, 320], sizes = [8, 32], strides = [1, 1]} : vector<16x384xf32> to vector<8x32xf32>
    %154 = arith.truncf %153 : vector<8x32xf32> to vector<8x32xbf16>
    %155 = tpu.transpose %152, [1, 0] : vector<8x32xbf16> -> vector<32x8xbf16>
    %cst_43 = arith.constant dense<0.000000e+00> : vector<8x8xf32>
    %156 = tpu.matmul %150, %155, %cst_43 {dimension_numbers = #tpu.dot_dimension_numbers<[1], [0], [0], [1], [0, 0, 1, 1], [], []>} : vector<8x32xbf16>, vector<32x8xbf16>, vector<8x8xf32> -> vector<8x8xf32>
    %cst_44 = arith.constant dense<0xFF800000> : vector<8xf32>
    %157 = vector.multi_reduction <maximumf>, %156, %cst_44 [1] : vector<8x8xf32> to vector<8xf32>
    %158 = vector.shape_cast %157 : vector<8xf32> to vector<8x1xf32>
    %159 = vector.broadcast %158 : vector<8x1xf32> to vector<8x8xf32>
    %160 = arith.subf %156, %159 : vector<8x8xf32>
    %161 = math.exp %160 : vector<8x8xf32>
    %cst_45 = arith.constant dense<0.000000e+00> : vector<8xf32>
    %162 = vector.multi_reduction <add>, %161, %cst_45 [1] : vector<8x8xf32> to vector<8xf32>
    %163 = vector.shape_cast %162 : vector<8xf32> to vector<8x1xf32>
    %164 = tpu.reciprocal %163 {approx = true} : vector<8x1xf32> -> vector<8x1xf32>
    %165 = vector.broadcast %164 : vector<8x1xf32> to vector<8x8xf32>
    %166 = arith.mulf %161, %165 : vector<8x8xf32>
    %167 = arith.truncf %166 : vector<8x8xf32> to vector<8x8xbf16>
    %cst_46 = arith.constant dense<0.000000e+00> : vector<8x32xf32>
    %168 = tpu.matmul %167, %154, %cst_46 {dimension_numbers = #tpu.dot_dimension_numbers<[1], [0], [0], [1], [0, 0, 1, 1], [], []>} : vector<8x8xbf16>, vector<8x32xbf16>, vector<8x32xf32> -> vector<8x32xf32>
    %169 = vector.extract_strided_slice %13 {offsets = [8, 96], sizes = [8, 32], strides = [1, 1]} : vector<16x384xf32> to vector<8x32xf32>
    %cst_47 = arith.constant 0.176776692 : f32
    %170 = vector.broadcast %cst_47 : f32 to vector<8x32xf32>
    %171 = arith.mulf %169, %170 : vector<8x32xf32>
    %172 = arith.truncf %171 : vector<8x32xf32> to vector<8x32xbf16>
    %173 = vector.extract_strided_slice %13 {offsets = [8, 224], sizes = [8, 32], strides = [1, 1]} : vector<16x384xf32> to vector<8x32xf32>
    %174 = arith.truncf %173 : vector<8x32xf32> to vector<8x32xbf16>
    %175 = vector.extract_strided_slice %13 {offsets = [8, 352], sizes = [8, 32], strides = [1, 1]} : vector<16x384xf32> to vector<8x32xf32>
    %176 = arith.truncf %175 : vector<8x32xf32> to vector<8x32xbf16>
    %177 = tpu.transpose %174, [1, 0] : vector<8x32xbf16> -> vector<32x8xbf16>
    %cst_48 = arith.constant dense<0.000000e+00> : vector<8x8xf32>
    %178 = tpu.matmul %172, %177, %cst_48 {dimension_numbers = #tpu.dot_dimension_numbers<[1], [0], [0], [1], [0, 0, 1, 1], [], []>} : vector<8x32xbf16>, vector<32x8xbf16>, vector<8x8xf32> -> vector<8x8xf32>
    %cst_49 = arith.constant dense<0xFF800000> : vector<8xf32>
    %179 = vector.multi_reduction <maximumf>, %178, %cst_49 [1] : vector<8x8xf32> to vector<8xf32>
    %180 = vector.shape_cast %179 : vector<8xf32> to vector<8x1xf32>
    %181 = vector.broadcast %180 : vector<8x1xf32> to vector<8x8xf32>
    %182 = arith.subf %178, %181 : vector<8x8xf32>
    %183 = math.exp %182 : vector<8x8xf32>
    %cst_50 = arith.constant dense<0.000000e+00> : vector<8xf32>
    %184 = vector.multi_reduction <add>, %183, %cst_50 [1] : vector<8x8xf32> to vector<8xf32>
    %185 = vector.shape_cast %184 : vector<8xf32> to vector<8x1xf32>
    %186 = tpu.reciprocal %185 {approx = true} : vector<8x1xf32> -> vector<8x1xf32>
    %187 = vector.broadcast %186 : vector<8x1xf32> to vector<8x8xf32>
    %188 = arith.mulf %183, %187 : vector<8x8xf32>
    %189 = arith.truncf %188 : vector<8x8xf32> to vector<8x8xbf16>
    %cst_51 = arith.constant dense<0.000000e+00> : vector<8x32xf32>
    %190 = tpu.matmul %189, %176, %cst_51 {dimension_numbers = #tpu.dot_dimension_numbers<[1], [0], [0], [1], [0, 0, 1, 1], [], []>} : vector<8x8xbf16>, vector<8x32xbf16>, vector<8x32xf32> -> vector<8x32xf32>
    %191 = tpu.concatenate %124, %146, %168, %190 in 1 : vector<8x32xf32>, vector<8x32xf32>, vector<8x32xf32>, vector<8x32xf32> -> vector<8x128xf32>
    %192 = tpu.concatenate %102, %191 in 0 : vector<8x128xf32>, vector<8x128xf32> -> vector<16x128xf32>
    %c0_52 = arith.constant 0 : index
    %c0_53 = arith.constant 0 : index
    %c0_54 = arith.constant 0 : index
    %193 = vector.load %arg5[%c0_52, %c0_53, %c0_54] : memref<4x128x128xbf16, #tpu.memory_space<vmem>>, vector<1x128x128xbf16>
    %194 = vector.shape_cast %193 : vector<1x128x128xbf16> to vector<128x128xbf16>
    %c0_55 = arith.constant 0 : index
    %c0_56 = arith.constant 0 : index
    %c0_57 = arith.constant 0 : index
    %195 = vector.load %arg6[%c0_55, %c0_56, %c0_57] : memref<4x1x128xf32, #tpu.memory_space<vmem>>, vector<1x1x128xf32>
    %196 = vector.shape_cast %195 : vector<1x1x128xf32> to vector<1x128xf32>
    %197 = arith.truncf %192 : vector<16x128xf32> to vector<16x128xbf16>
    %cst_58 = arith.constant dense<0.000000e+00> : vector<16x128xf32>
    %198 = tpu.matmul %197, %194, %cst_58 {dimension_numbers = #tpu.dot_dimension_numbers<[1], [0], [0], [1], [0, 0, 1, 1], [], []>} : vector<16x128xbf16>, vector<128x128xbf16>, vector<16x128xf32> -> vector<16x128xf32>
    %199 = vector.broadcast %196 : vector<1x128xf32> to vector<16x128xf32>
    %200 = arith.addf %198, %199 : vector<16x128xf32>
    %201 = arith.addf %5, %200 : vector<16x128xf32>
    %c0_59 = arith.constant 0 : index
    %c0_60 = arith.constant 0 : index
    %c0_61 = arith.constant 0 : index
    %202 = vector.load %arg7[%c0_59, %c0_60, %c0_61] : memref<4x1x128xf32, #tpu.memory_space<vmem>>, vector<1x1x128xf32>
    %203 = vector.shape_cast %202 : vector<1x1x128xf32> to vector<1x128xf32>
    %c0_62 = arith.constant 0 : index
    %c0_63 = arith.constant 0 : index
    %c0_64 = arith.constant 0 : index
    %204 = vector.load %arg8[%c0_62, %c0_63, %c0_64] : memref<4x1x128xf32, #tpu.memory_space<vmem>>, vector<1x1x128xf32>
    %205 = vector.shape_cast %204 : vector<1x1x128xf32> to vector<1x128xf32>
    %cst_65 = arith.constant dense<0.000000e+00> : vector<16xf32>
    %206 = vector.multi_reduction <add>, %201, %cst_65 [1] : vector<16x128xf32> to vector<16xf32>
    %207 = vector.shape_cast %206 : vector<16xf32> to vector<16x1xf32>
    %cst_66 = arith.constant 1.280000e+02 : f32
    %208 = vector.broadcast %cst_66 : f32 to vector<16x1xf32>
    %209 = arith.divf %207, %208 : vector<16x1xf32>
    %210 = vector.broadcast %209 : vector<16x1xf32> to vector<16x128xf32>
    %211 = arith.subf %201, %210 : vector<16x128xf32>
    %212 = vector.broadcast %209 : vector<16x1xf32> to vector<16x128xf32>
    %213 = arith.subf %201, %212 : vector<16x128xf32>
    %214 = arith.mulf %211, %213 : vector<16x128xf32>
    %cst_67 = arith.constant dense<0.000000e+00> : vector<16xf32>
    %215 = vector.multi_reduction <add>, %214, %cst_67 [1] : vector<16x128xf32> to vector<16xf32>
    %216 = vector.shape_cast %215 : vector<16xf32> to vector<16x1xf32>
    %cst_68 = arith.constant 1.280000e+02 : f32
    %217 = vector.broadcast %cst_68 : f32 to vector<16x1xf32>
    %218 = arith.divf %216, %217 : vector<16x1xf32>
    %219 = vector.broadcast %209 : vector<16x1xf32> to vector<16x128xf32>
    %220 = arith.subf %201, %219 : vector<16x128xf32>
    %cst_69 = arith.constant 9.99999974E-6 : f32
    %221 = vector.broadcast %cst_69 : f32 to vector<16x1xf32>
    %222 = arith.addf %218, %221 : vector<16x1xf32>
    %223 = math.rsqrt %222 : vector<16x1xf32>
    %224 = vector.broadcast %223 : vector<16x1xf32> to vector<16x128xf32>
    %225 = arith.mulf %220, %224 : vector<16x128xf32>
    %226 = vector.broadcast %203 : vector<1x128xf32> to vector<16x128xf32>
    %227 = arith.mulf %225, %226 : vector<16x128xf32>
    %228 = vector.broadcast %205 : vector<1x128xf32> to vector<16x128xf32>
    %229 = arith.addf %227, %228 : vector<16x128xf32>
    %c0_70 = arith.constant 0 : index
    %c0_71 = arith.constant 0 : index
    %c0_72 = arith.constant 0 : index
    %230 = vector.load %arg9[%c0_70, %c0_71, %c0_72] : memref<4x128x512xbf16, #tpu.memory_space<vmem>>, vector<1x128x512xbf16>
    %231 = vector.shape_cast %230 : vector<1x128x512xbf16> to vector<128x512xbf16>
    %c0_73 = arith.constant 0 : index
    %c0_74 = arith.constant 0 : index
    %c0_75 = arith.constant 0 : index
    %232 = vector.load %arg10[%c0_73, %c0_74, %c0_75] : memref<4x1x512xf32, #tpu.memory_space<vmem>>, vector<1x1x512xf32>
    %233 = vector.shape_cast %232 : vector<1x1x512xf32> to vector<1x512xf32>
    %234 = arith.truncf %229 : vector<16x128xf32> to vector<16x128xbf16>
    %cst_76 = arith.constant dense<0.000000e+00> : vector<16x512xf32>
    %235 = tpu.matmul %234, %231, %cst_76 {dimension_numbers = #tpu.dot_dimension_numbers<[1], [0], [0], [1], [0, 0, 1, 1], [], []>} : vector<16x128xbf16>, vector<128x512xbf16>, vector<16x512xf32> -> vector<16x512xf32>
    %236 = vector.broadcast %233 : vector<1x512xf32> to vector<16x512xf32>
    %237 = arith.addf %235, %236 : vector<16x512xf32>
    %cst_77 = arith.constant 0.000000e+00 : f32
    %238 = vector.broadcast %cst_77 : f32 to vector<16x512xf32>
    %239 = arith.maximumf %237, %238 : vector<16x512xf32>
    %c0_78 = arith.constant 0 : index
    %c0_79 = arith.constant 0 : index
    %c0_80 = arith.constant 0 : index
    %240 = vector.load %arg11[%c0_78, %c0_79, %c0_80] : memref<4x512x128xbf16, #tpu.memory_space<vmem>>, vector<1x512x128xbf16>
    %241 = vector.shape_cast %240 : vector<1x512x128xbf16> to vector<512x128xbf16>
    %c0_81 = arith.constant 0 : index
    %c0_82 = arith.constant 0 : index
    %c0_83 = arith.constant 0 : index
    %242 = vector.load %arg12[%c0_81, %c0_82, %c0_83] : memref<4x1x128xf32, #tpu.memory_space<vmem>>, vector<1x1x128xf32>
    %243 = vector.shape_cast %242 : vector<1x1x128xf32> to vector<1x128xf32>
    %244 = arith.truncf %239 : vector<16x512xf32> to vector<16x512xbf16>
    %cst_84 = arith.constant dense<0.000000e+00> : vector<16x128xf32>
    %245 = tpu.matmul %244, %241, %cst_84 {dimension_numbers = #tpu.dot_dimension_numbers<[1], [0], [0], [1], [0, 0, 1, 1], [], []>} : vector<16x512xbf16>, vector<512x128xbf16>, vector<16x128xf32> -> vector<16x128xf32>
    %246 = vector.broadcast %243 : vector<1x128xf32> to vector<16x128xf32>
    %247 = arith.addf %245, %246 : vector<16x128xf32>
    %248 = arith.addf %229, %247 : vector<16x128xf32>
    %c0_85 = arith.constant 0 : index
    %c0_86 = arith.constant 0 : index
    %c0_87 = arith.constant 0 : index
    %249 = vector.load %arg13[%c0_85, %c0_86, %c0_87] : memref<4x1x128xf32, #tpu.memory_space<vmem>>, vector<1x1x128xf32>
    %250 = vector.shape_cast %249 : vector<1x1x128xf32> to vector<1x128xf32>
    %c0_88 = arith.constant 0 : index
    %c0_89 = arith.constant 0 : index
    %c0_90 = arith.constant 0 : index
    %251 = vector.load %arg14[%c0_88, %c0_89, %c0_90] : memref<4x1x128xf32, #tpu.memory_space<vmem>>, vector<1x1x128xf32>
    %252 = vector.shape_cast %251 : vector<1x1x128xf32> to vector<1x128xf32>
    %cst_91 = arith.constant dense<0.000000e+00> : vector<16xf32>
    %253 = vector.multi_reduction <add>, %248, %cst_91 [1] : vector<16x128xf32> to vector<16xf32>
    %254 = vector.shape_cast %253 : vector<16xf32> to vector<16x1xf32>
    %cst_92 = arith.constant 1.280000e+02 : f32
    %255 = vector.broadcast %cst_92 : f32 to vector<16x1xf32>
    %256 = arith.divf %254, %255 : vector<16x1xf32>
    %257 = vector.broadcast %256 : vector<16x1xf32> to vector<16x128xf32>
    %258 = arith.subf %248, %257 : vector<16x128xf32>
    %259 = vector.broadcast %256 : vector<16x1xf32> to vector<16x128xf32>
    %260 = arith.subf %248, %259 : vector<16x128xf32>
    %261 = arith.mulf %258, %260 : vector<16x128xf32>
    %cst_93 = arith.constant dense<0.000000e+00> : vector<16xf32>
    %262 = vector.multi_reduction <add>, %261, %cst_93 [1] : vector<16x128xf32> to vector<16xf32>
    %263 = vector.shape_cast %262 : vector<16xf32> to vector<16x1xf32>
    %cst_94 = arith.constant 1.280000e+02 : f32
    %264 = vector.broadcast %cst_94 : f32 to vector<16x1xf32>
    %265 = arith.divf %263, %264 : vector<16x1xf32>
    %266 = vector.broadcast %256 : vector<16x1xf32> to vector<16x128xf32>
    %267 = arith.subf %248, %266 : vector<16x128xf32>
    %cst_95 = arith.constant 9.99999974E-6 : f32
    %268 = vector.broadcast %cst_95 : f32 to vector<16x1xf32>
    %269 = arith.addf %265, %268 : vector<16x1xf32>
    %270 = math.rsqrt %269 : vector<16x1xf32>
    %271 = vector.broadcast %270 : vector<16x1xf32> to vector<16x128xf32>
    %272 = arith.mulf %267, %271 : vector<16x128xf32>
    %273 = vector.broadcast %250 : vector<1x128xf32> to vector<16x128xf32>
    %274 = arith.mulf %272, %273 : vector<16x128xf32>
    %275 = vector.broadcast %252 : vector<1x128xf32> to vector<16x128xf32>
    %276 = arith.addf %274, %275 : vector<16x128xf32>
    %c1 = arith.constant 1 : index
    %c0_96 = arith.constant 0 : index
    %c0_97 = arith.constant 0 : index
    %277 = vector.load %arg3[%c1, %c0_96, %c0_97] : memref<4x128x384xbf16, #tpu.memory_space<vmem>>, vector<1x128x384xbf16>
    %278 = vector.shape_cast %277 : vector<1x128x384xbf16> to vector<128x384xbf16>
    %c1_98 = arith.constant 1 : index
    %c0_99 = arith.constant 0 : index
    %c0_100 = arith.constant 0 : index
    %279 = vector.load %arg4[%c1_98, %c0_99, %c0_100] : memref<4x1x384xf32, #tpu.memory_space<vmem>>, vector<1x1x384xf32>
    %280 = vector.shape_cast %279 : vector<1x1x384xf32> to vector<1x384xf32>
    %281 = arith.truncf %276 : vector<16x128xf32> to vector<16x128xbf16>
    %cst_101 = arith.constant dense<0.000000e+00> : vector<16x384xf32>
    %282 = tpu.matmul %281, %278, %cst_101 {dimension_numbers = #tpu.dot_dimension_numbers<[1], [0], [0], [1], [0, 0, 1, 1], [], []>} : vector<16x128xbf16>, vector<128x384xbf16>, vector<16x384xf32> -> vector<16x384xf32>
    %283 = vector.broadcast %280 : vector<1x384xf32> to vector<16x384xf32>
    %284 = arith.addf %282, %283 : vector<16x384xf32>
    %285 = vector.extract_strided_slice %284 {offsets = [0, 0], sizes = [8, 32], strides = [1, 1]} : vector<16x384xf32> to vector<8x32xf32>
    %cst_102 = arith.constant 0.176776692 : f32
    %286 = vector.broadcast %cst_102 : f32 to vector<8x32xf32>
    %287 = arith.mulf %285, %286 : vector<8x32xf32>
    %288 = arith.truncf %287 : vector<8x32xf32> to vector<8x32xbf16>
    %289 = vector.extract_strided_slice %284 {offsets = [0, 128], sizes = [8, 32], strides = [1, 1]} : vector<16x384xf32> to vector<8x32xf32>
    %290 = arith.truncf %289 : vector<8x32xf32> to vector<8x32xbf16>
    %291 = vector.extract_strided_slice %284 {offsets = [0, 256], sizes = [8, 32], strides = [1, 1]} : vector<16x384xf32> to vector<8x32xf32>
    %292 = arith.truncf %291 : vector<8x32xf32> to vector<8x32xbf16>
    %293 = tpu.transpose %290, [1, 0] : vector<8x32xbf16> -> vector<32x8xbf16>
    %cst_103 = arith.constant dense<0.000000e+00> : vector<8x8xf32>
    %294 = tpu.matmul %288, %293, %cst_103 {dimension_numbers = #tpu.dot_dimension_numbers<[1], [0], [0], [1], [0, 0, 1, 1], [], []>} : vector<8x32xbf16>, vector<32x8xbf16>, vector<8x8xf32> -> vector<8x8xf32>
    %cst_104 = arith.constant dense<0xFF800000> : vector<8xf32>
    %295 = vector.multi_reduction <maximumf>, %294, %cst_104 [1] : vector<8x8xf32> to vector<8xf32>
    %296 = vector.shape_cast %295 : vector<8xf32> to vector<8x1xf32>
    %297 = vector.broadcast %296 : vector<8x1xf32> to vector<8x8xf32>
    %298 = arith.subf %294, %297 : vector<8x8xf32>
    %299 = math.exp %298 : vector<8x8xf32>
    %cst_105 = arith.constant dense<0.000000e+00> : vector<8xf32>
    %300 = vector.multi_reduction <add>, %299, %cst_105 [1] : vector<8x8xf32> to vector<8xf32>
    %301 = vector.shape_cast %300 : vector<8xf32> to vector<8x1xf32>
    %302 = tpu.reciprocal %301 {approx = true} : vector<8x1xf32> -> vector<8x1xf32>
    %303 = vector.broadcast %302 : vector<8x1xf32> to vector<8x8xf32>
    %304 = arith.mulf %299, %303 : vector<8x8xf32>
    %305 = arith.truncf %304 : vector<8x8xf32> to vector<8x8xbf16>
    %cst_106 = arith.constant dense<0.000000e+00> : vector<8x32xf32>
    %306 = tpu.matmul %305, %292, %cst_106 {dimension_numbers = #tpu.dot_dimension_numbers<[1], [0], [0], [1], [0, 0, 1, 1], [], []>} : vector<8x8xbf16>, vector<8x32xbf16>, vector<8x32xf32> -> vector<8x32xf32>
    %307 = vector.extract_strided_slice %284 {offsets = [0, 32], sizes = [8, 32], strides = [1, 1]} : vector<16x384xf32> to vector<8x32xf32>
    %cst_107 = arith.constant 0.176776692 : f32
    %308 = vector.broadcast %cst_107 : f32 to vector<8x32xf32>
    %309 = arith.mulf %307, %308 : vector<8x32xf32>
    %310 = arith.truncf %309 : vector<8x32xf32> to vector<8x32xbf16>
    %311 = vector.extract_strided_slice %284 {offsets = [0, 160], sizes = [8, 32], strides = [1, 1]} : vector<16x384xf32> to vector<8x32xf32>
    %312 = arith.truncf %311 : vector<8x32xf32> to vector<8x32xbf16>
    %313 = vector.extract_strided_slice %284 {offsets = [0, 288], sizes = [8, 32], strides = [1, 1]} : vector<16x384xf32> to vector<8x32xf32>
    %314 = arith.truncf %313 : vector<8x32xf32> to vector<8x32xbf16>
    %315 = tpu.transpose %312, [1, 0] : vector<8x32xbf16> -> vector<32x8xbf16>
    %cst_108 = arith.constant dense<0.000000e+00> : vector<8x8xf32>
    %316 = tpu.matmul %310, %315, %cst_108 {dimension_numbers = #tpu.dot_dimension_numbers<[1], [0], [0], [1], [0, 0, 1, 1], [], []>} : vector<8x32xbf16>, vector<32x8xbf16>, vector<8x8xf32> -> vector<8x8xf32>
    %cst_109 = arith.constant dense<0xFF800000> : vector<8xf32>
    %317 = vector.multi_reduction <maximumf>, %316, %cst_109 [1] : vector<8x8xf32> to vector<8xf32>
    %318 = vector.shape_cast %317 : vector<8xf32> to vector<8x1xf32>
    %319 = vector.broadcast %318 : vector<8x1xf32> to vector<8x8xf32>
    %320 = arith.subf %316, %319 : vector<8x8xf32>
    %321 = math.exp %320 : vector<8x8xf32>
    %cst_110 = arith.constant dense<0.000000e+00> : vector<8xf32>
    %322 = vector.multi_reduction <add>, %321, %cst_110 [1] : vector<8x8xf32> to vector<8xf32>
    %323 = vector.shape_cast %322 : vector<8xf32> to vector<8x1xf32>
    %324 = tpu.reciprocal %323 {approx = true} : vector<8x1xf32> -> vector<8x1xf32>
    %325 = vector.broadcast %324 : vector<8x1xf32> to vector<8x8xf32>
    %326 = arith.mulf %321, %325 : vector<8x8xf32>
    %327 = arith.truncf %326 : vector<8x8xf32> to vector<8x8xbf16>
    %cst_111 = arith.constant dense<0.000000e+00> : vector<8x32xf32>
    %328 = tpu.matmul %327, %314, %cst_111 {dimension_numbers = #tpu.dot_dimension_numbers<[1], [0], [0], [1], [0, 0, 1, 1], [], []>} : vector<8x8xbf16>, vector<8x32xbf16>, vector<8x32xf32> -> vector<8x32xf32>
    %329 = vector.extract_strided_slice %284 {offsets = [0, 64], sizes = [8, 32], strides = [1, 1]} : vector<16x384xf32> to vector<8x32xf32>
    %cst_112 = arith.constant 0.176776692 : f32
    %330 = vector.broadcast %cst_112 : f32 to vector<8x32xf32>
    %331 = arith.mulf %329, %330 : vector<8x32xf32>
    %332 = arith.truncf %331 : vector<8x32xf32> to vector<8x32xbf16>
    %333 = vector.extract_strided_slice %284 {offsets = [0, 192], sizes = [8, 32], strides = [1, 1]} : vector<16x384xf32> to vector<8x32xf32>
    %334 = arith.truncf %333 : vector<8x32xf32> to vector<8x32xbf16>
    %335 = vector.extract_strided_slice %284 {offsets = [0, 320], sizes = [8, 32], strides = [1, 1]} : vector<16x384xf32> to vector<8x32xf32>
    %336 = arith.truncf %335 : vector<8x32xf32> to vector<8x32xbf16>
    %337 = tpu.transpose %334, [1, 0] : vector<8x32xbf16> -> vector<32x8xbf16>
    %cst_113 = arith.constant dense<0.000000e+00> : vector<8x8xf32>
    %338 = tpu.matmul %332, %337, %cst_113 {dimension_numbers = #tpu.dot_dimension_numbers<[1], [0], [0], [1], [0, 0, 1, 1], [], []>} : vector<8x32xbf16>, vector<32x8xbf16>, vector<8x8xf32> -> vector<8x8xf32>
    %cst_114 = arith.constant dense<0xFF800000> : vector<8xf32>
    %339 = vector.multi_reduction <maximumf>, %338, %cst_114 [1] : vector<8x8xf32> to vector<8xf32>
    %340 = vector.shape_cast %339 : vector<8xf32> to vector<8x1xf32>
    %341 = vector.broadcast %340 : vector<8x1xf32> to vector<8x8xf32>
    %342 = arith.subf %338, %341 : vector<8x8xf32>
    %343 = math.exp %342 : vector<8x8xf32>
    %cst_115 = arith.constant dense<0.000000e+00> : vector<8xf32>
    %344 = vector.multi_reduction <add>, %343, %cst_115 [1] : vector<8x8xf32> to vector<8xf32>
    %345 = vector.shape_cast %344 : vector<8xf32> to vector<8x1xf32>
    %346 = tpu.reciprocal %345 {approx = true} : vector<8x1xf32> -> vector<8x1xf32>
    %347 = vector.broadcast %346 : vector<8x1xf32> to vector<8x8xf32>
    %348 = arith.mulf %343, %347 : vector<8x8xf32>
    %349 = arith.truncf %348 : vector<8x8xf32> to vector<8x8xbf16>
    %cst_116 = arith.constant dense<0.000000e+00> : vector<8x32xf32>
    %350 = tpu.matmul %349, %336, %cst_116 {dimension_numbers = #tpu.dot_dimension_numbers<[1], [0], [0], [1], [0, 0, 1, 1], [], []>} : vector<8x8xbf16>, vector<8x32xbf16>, vector<8x32xf32> -> vector<8x32xf32>
    %351 = vector.extract_strided_slice %284 {offsets = [0, 96], sizes = [8, 32], strides = [1, 1]} : vector<16x384xf32> to vector<8x32xf32>
    %cst_117 = arith.constant 0.176776692 : f32
    %352 = vector.broadcast %cst_117 : f32 to vector<8x32xf32>
    %353 = arith.mulf %351, %352 : vector<8x32xf32>
    %354 = arith.truncf %353 : vector<8x32xf32> to vector<8x32xbf16>
    %355 = vector.extract_strided_slice %284 {offsets = [0, 224], sizes = [8, 32], strides = [1, 1]} : vector<16x384xf32> to vector<8x32xf32>
    %356 = arith.truncf %355 : vector<8x32xf32> to vector<8x32xbf16>
    %357 = vector.extract_strided_slice %284 {offsets = [0, 352], sizes = [8, 32], strides = [1, 1]} : vector<16x384xf32> to vector<8x32xf32>
    %358 = arith.truncf %357 : vector<8x32xf32> to vector<8x32xbf16>
    %359 = tpu.transpose %356, [1, 0] : vector<8x32xbf16> -> vector<32x8xbf16>
    %cst_118 = arith.constant dense<0.000000e+00> : vector<8x8xf32>
    %360 = tpu.matmul %354, %359, %cst_118 {dimension_numbers = #tpu.dot_dimension_numbers<[1], [0], [0], [1], [0, 0, 1, 1], [], []>} : vector<8x32xbf16>, vector<32x8xbf16>, vector<8x8xf32> -> vector<8x8xf32>
    %cst_119 = arith.constant dense<0xFF800000> : vector<8xf32>
    %361 = vector.multi_reduction <maximumf>, %360, %cst_119 [1] : vector<8x8xf32> to vector<8xf32>
    %362 = vector.shape_cast %361 : vector<8xf32> to vector<8x1xf32>
    %363 = vector.broadcast %362 : vector<8x1xf32> to vector<8x8xf32>
    %364 = arith.subf %360, %363 : vector<8x8xf32>
    %365 = math.exp %364 : vector<8x8xf32>
    %cst_120 = arith.constant dense<0.000000e+00> : vector<8xf32>
    %366 = vector.multi_reduction <add>, %365, %cst_120 [1] : vector<8x8xf32> to vector<8xf32>
    %367 = vector.shape_cast %366 : vector<8xf32> to vector<8x1xf32>
    %368 = tpu.reciprocal %367 {approx = true} : vector<8x1xf32> -> vector<8x1xf32>
    %369 = vector.broadcast %368 : vector<8x1xf32> to vector<8x8xf32>
    %370 = arith.mulf %365, %369 : vector<8x8xf32>
    %371 = arith.truncf %370 : vector<8x8xf32> to vector<8x8xbf16>
    %cst_121 = arith.constant dense<0.000000e+00> : vector<8x32xf32>
    %372 = tpu.matmul %371, %358, %cst_121 {dimension_numbers = #tpu.dot_dimension_numbers<[1], [0], [0], [1], [0, 0, 1, 1], [], []>} : vector<8x8xbf16>, vector<8x32xbf16>, vector<8x32xf32> -> vector<8x32xf32>
    %373 = tpu.concatenate %306, %328, %350, %372 in 1 : vector<8x32xf32>, vector<8x32xf32>, vector<8x32xf32>, vector<8x32xf32> -> vector<8x128xf32>
    %374 = vector.extract_strided_slice %284 {offsets = [8, 0], sizes = [8, 32], strides = [1, 1]} : vector<16x384xf32> to vector<8x32xf32>
    %cst_122 = arith.constant 0.176776692 : f32
    %375 = vector.broadcast %cst_122 : f32 to vector<8x32xf32>
    %376 = arith.mulf %374, %375 : vector<8x32xf32>
    %377 = arith.truncf %376 : vector<8x32xf32> to vector<8x32xbf16>
    %378 = vector.extract_strided_slice %284 {offsets = [8, 128], sizes = [8, 32], strides = [1, 1]} : vector<16x384xf32> to vector<8x32xf32>
    %379 = arith.truncf %378 : vector<8x32xf32> to vector<8x32xbf16>
    %380 = vector.extract_strided_slice %284 {offsets = [8, 256], sizes = [8, 32], strides = [1, 1]} : vector<16x384xf32> to vector<8x32xf32>
    %381 = arith.truncf %380 : vector<8x32xf32> to vector<8x32xbf16>
    %382 = tpu.transpose %379, [1, 0] : vector<8x32xbf16> -> vector<32x8xbf16>
    %cst_123 = arith.constant dense<0.000000e+00> : vector<8x8xf32>
    %383 = tpu.matmul %377, %382, %cst_123 {dimension_numbers = #tpu.dot_dimension_numbers<[1], [0], [0], [1], [0, 0, 1, 1], [], []>} : vector<8x32xbf16>, vector<32x8xbf16>, vector<8x8xf32> -> vector<8x8xf32>
    %cst_124 = arith.constant dense<0xFF800000> : vector<8xf32>
    %384 = vector.multi_reduction <maximumf>, %383, %cst_124 [1] : vector<8x8xf32> to vector<8xf32>
    %385 = vector.shape_cast %384 : vector<8xf32> to vector<8x1xf32>
    %386 = vector.broadcast %385 : vector<8x1xf32> to vector<8x8xf32>
    %387 = arith.subf %383, %386 : vector<8x8xf32>
    %388 = math.exp %387 : vector<8x8xf32>
    %cst_125 = arith.constant dense<0.000000e+00> : vector<8xf32>
    %389 = vector.multi_reduction <add>, %388, %cst_125 [1] : vector<8x8xf32> to vector<8xf32>
    %390 = vector.shape_cast %389 : vector<8xf32> to vector<8x1xf32>
    %391 = tpu.reciprocal %390 {approx = true} : vector<8x1xf32> -> vector<8x1xf32>
    %392 = vector.broadcast %391 : vector<8x1xf32> to vector<8x8xf32>
    %393 = arith.mulf %388, %392 : vector<8x8xf32>
    %394 = arith.truncf %393 : vector<8x8xf32> to vector<8x8xbf16>
    %cst_126 = arith.constant dense<0.000000e+00> : vector<8x32xf32>
    %395 = tpu.matmul %394, %381, %cst_126 {dimension_numbers = #tpu.dot_dimension_numbers<[1], [0], [0], [1], [0, 0, 1, 1], [], []>} : vector<8x8xbf16>, vector<8x32xbf16>, vector<8x32xf32> -> vector<8x32xf32>
    %396 = vector.extract_strided_slice %284 {offsets = [8, 32], sizes = [8, 32], strides = [1, 1]} : vector<16x384xf32> to vector<8x32xf32>
    %cst_127 = arith.constant 0.176776692 : f32
    %397 = vector.broadcast %cst_127 : f32 to vector<8x32xf32>
    %398 = arith.mulf %396, %397 : vector<8x32xf32>
    %399 = arith.truncf %398 : vector<8x32xf32> to vector<8x32xbf16>
    %400 = vector.extract_strided_slice %284 {offsets = [8, 160], sizes = [8, 32], strides = [1, 1]} : vector<16x384xf32> to vector<8x32xf32>
    %401 = arith.truncf %400 : vector<8x32xf32> to vector<8x32xbf16>
    %402 = vector.extract_strided_slice %284 {offsets = [8, 288], sizes = [8, 32], strides = [1, 1]} : vector<16x384xf32> to vector<8x32xf32>
    %403 = arith.truncf %402 : vector<8x32xf32> to vector<8x32xbf16>
    %404 = tpu.transpose %401, [1, 0] : vector<8x32xbf16> -> vector<32x8xbf16>
    %cst_128 = arith.constant dense<0.000000e+00> : vector<8x8xf32>
    %405 = tpu.matmul %399, %404, %cst_128 {dimension_numbers = #tpu.dot_dimension_numbers<[1], [0], [0], [1], [0, 0, 1, 1], [], []>} : vector<8x32xbf16>, vector<32x8xbf16>, vector<8x8xf32> -> vector<8x8xf32>
    %cst_129 = arith.constant dense<0xFF800000> : vector<8xf32>
    %406 = vector.multi_reduction <maximumf>, %405, %cst_129 [1] : vector<8x8xf32> to vector<8xf32>
    %407 = vector.shape_cast %406 : vector<8xf32> to vector<8x1xf32>
    %408 = vector.broadcast %407 : vector<8x1xf32> to vector<8x8xf32>
    %409 = arith.subf %405, %408 : vector<8x8xf32>
    %410 = math.exp %409 : vector<8x8xf32>
    %cst_130 = arith.constant dense<0.000000e+00> : vector<8xf32>
    %411 = vector.multi_reduction <add>, %410, %cst_130 [1] : vector<8x8xf32> to vector<8xf32>
    %412 = vector.shape_cast %411 : vector<8xf32> to vector<8x1xf32>
    %413 = tpu.reciprocal %412 {approx = true} : vector<8x1xf32> -> vector<8x1xf32>
    %414 = vector.broadcast %413 : vector<8x1xf32> to vector<8x8xf32>
    %415 = arith.mulf %410, %414 : vector<8x8xf32>
    %416 = arith.truncf %415 : vector<8x8xf32> to vector<8x8xbf16>
    %cst_131 = arith.constant dense<0.000000e+00> : vector<8x32xf32>
    %417 = tpu.matmul %416, %403, %cst_131 {dimension_numbers = #tpu.dot_dimension_numbers<[1], [0], [0], [1], [0, 0, 1, 1], [], []>} : vector<8x8xbf16>, vector<8x32xbf16>, vector<8x32xf32> -> vector<8x32xf32>
    %418 = vector.extract_strided_slice %284 {offsets = [8, 64], sizes = [8, 32], strides = [1, 1]} : vector<16x384xf32> to vector<8x32xf32>
    %cst_132 = arith.constant 0.176776692 : f32
    %419 = vector.broadcast %cst_132 : f32 to vector<8x32xf32>
    %420 = arith.mulf %418, %419 : vector<8x32xf32>
    %421 = arith.truncf %420 : vector<8x32xf32> to vector<8x32xbf16>
    %422 = vector.extract_strided_slice %284 {offsets = [8, 192], sizes = [8, 32], strides = [1, 1]} : vector<16x384xf32> to vector<8x32xf32>
    %423 = arith.truncf %422 : vector<8x32xf32> to vector<8x32xbf16>
    %424 = vector.extract_strided_slice %284 {offsets = [8, 320], sizes = [8, 32], strides = [1, 1]} : vector<16x384xf32> to vector<8x32xf32>
    %425 = arith.truncf %424 : vector<8x32xf32> to vector<8x32xbf16>
    %426 = tpu.transpose %423, [1, 0] : vector<8x32xbf16> -> vector<32x8xbf16>
    %cst_133 = arith.constant dense<0.000000e+00> : vector<8x8xf32>
    %427 = tpu.matmul %421, %426, %cst_133 {dimension_numbers = #tpu.dot_dimension_numbers<[1], [0], [0], [1], [0, 0, 1, 1], [], []>} : vector<8x32xbf16>, vector<32x8xbf16>, vector<8x8xf32> -> vector<8x8xf32>
    %cst_134 = arith.constant dense<0xFF800000> : vector<8xf32>
    %428 = vector.multi_reduction <maximumf>, %427, %cst_134 [1] : vector<8x8xf32> to vector<8xf32>
    %429 = vector.shape_cast %428 : vector<8xf32> to vector<8x1xf32>
    %430 = vector.broadcast %429 : vector<8x1xf32> to vector<8x8xf32>
    %431 = arith.subf %427, %430 : vector<8x8xf32>
    %432 = math.exp %431 : vector<8x8xf32>
    %cst_135 = arith.constant dense<0.000000e+00> : vector<8xf32>
    %433 = vector.multi_reduction <add>, %432, %cst_135 [1] : vector<8x8xf32> to vector<8xf32>
    %434 = vector.shape_cast %433 : vector<8xf32> to vector<8x1xf32>
    %435 = tpu.reciprocal %434 {approx = true} : vector<8x1xf32> -> vector<8x1xf32>
    %436 = vector.broadcast %435 : vector<8x1xf32> to vector<8x8xf32>
    %437 = arith.mulf %432, %436 : vector<8x8xf32>
    %438 = arith.truncf %437 : vector<8x8xf32> to vector<8x8xbf16>
    %cst_136 = arith.constant dense<0.000000e+00> : vector<8x32xf32>
    %439 = tpu.matmul %438, %425, %cst_136 {dimension_numbers = #tpu.dot_dimension_numbers<[1], [0], [0], [1], [0, 0, 1, 1], [], []>} : vector<8x8xbf16>, vector<8x32xbf16>, vector<8x32xf32> -> vector<8x32xf32>
    %440 = vector.extract_strided_slice %284 {offsets = [8, 96], sizes = [8, 32], strides = [1, 1]} : vector<16x384xf32> to vector<8x32xf32>
    %cst_137 = arith.constant 0.176776692 : f32
    %441 = vector.broadcast %cst_137 : f32 to vector<8x32xf32>
    %442 = arith.mulf %440, %441 : vector<8x32xf32>
    %443 = arith.truncf %442 : vector<8x32xf32> to vector<8x32xbf16>
    %444 = vector.extract_strided_slice %284 {offsets = [8, 224], sizes = [8, 32], strides = [1, 1]} : vector<16x384xf32> to vector<8x32xf32>
    %445 = arith.truncf %444 : vector<8x32xf32> to vector<8x32xbf16>
    %446 = vector.extract_strided_slice %284 {offsets = [8, 352], sizes = [8, 32], strides = [1, 1]} : vector<16x384xf32> to vector<8x32xf32>
    %447 = arith.truncf %446 : vector<8x32xf32> to vector<8x32xbf16>
    %448 = tpu.transpose %445, [1, 0] : vector<8x32xbf16> -> vector<32x8xbf16>
    %cst_138 = arith.constant dense<0.000000e+00> : vector<8x8xf32>
    %449 = tpu.matmul %443, %448, %cst_138 {dimension_numbers = #tpu.dot_dimension_numbers<[1], [0], [0], [1], [0, 0, 1, 1], [], []>} : vector<8x32xbf16>, vector<32x8xbf16>, vector<8x8xf32> -> vector<8x8xf32>
    %cst_139 = arith.constant dense<0xFF800000> : vector<8xf32>
    %450 = vector.multi_reduction <maximumf>, %449, %cst_139 [1] : vector<8x8xf32> to vector<8xf32>
    %451 = vector.shape_cast %450 : vector<8xf32> to vector<8x1xf32>
    %452 = vector.broadcast %451 : vector<8x1xf32> to vector<8x8xf32>
    %453 = arith.subf %449, %452 : vector<8x8xf32>
    %454 = math.exp %453 : vector<8x8xf32>
    %cst_140 = arith.constant dense<0.000000e+00> : vector<8xf32>
    %455 = vector.multi_reduction <add>, %454, %cst_140 [1] : vector<8x8xf32> to vector<8xf32>
    %456 = vector.shape_cast %455 : vector<8xf32> to vector<8x1xf32>
    %457 = tpu.reciprocal %456 {approx = true} : vector<8x1xf32> -> vector<8x1xf32>
    %458 = vector.broadcast %457 : vector<8x1xf32> to vector<8x8xf32>
    %459 = arith.mulf %454, %458 : vector<8x8xf32>
    %460 = arith.truncf %459 : vector<8x8xf32> to vector<8x8xbf16>
    %cst_141 = arith.constant dense<0.000000e+00> : vector<8x32xf32>
    %461 = tpu.matmul %460, %447, %cst_141 {dimension_numbers = #tpu.dot_dimension_numbers<[1], [0], [0], [1], [0, 0, 1, 1], [], []>} : vector<8x8xbf16>, vector<8x32xbf16>, vector<8x32xf32> -> vector<8x32xf32>
    %462 = tpu.concatenate %395, %417, %439, %461 in 1 : vector<8x32xf32>, vector<8x32xf32>, vector<8x32xf32>, vector<8x32xf32> -> vector<8x128xf32>
    %463 = tpu.concatenate %373, %462 in 0 : vector<8x128xf32>, vector<8x128xf32> -> vector<16x128xf32>
    %c1_142 = arith.constant 1 : index
    %c0_143 = arith.constant 0 : index
    %c0_144 = arith.constant 0 : index
    %464 = vector.load %arg5[%c1_142, %c0_143, %c0_144] : memref<4x128x128xbf16, #tpu.memory_space<vmem>>, vector<1x128x128xbf16>
    %465 = vector.shape_cast %464 : vector<1x128x128xbf16> to vector<128x128xbf16>
    %c1_145 = arith.constant 1 : index
    %c0_146 = arith.constant 0 : index
    %c0_147 = arith.constant 0 : index
    %466 = vector.load %arg6[%c1_145, %c0_146, %c0_147] : memref<4x1x128xf32, #tpu.memory_space<vmem>>, vector<1x1x128xf32>
    %467 = vector.shape_cast %466 : vector<1x1x128xf32> to vector<1x128xf32>
    %468 = arith.truncf %463 : vector<16x128xf32> to vector<16x128xbf16>
    %cst_148 = arith.constant dense<0.000000e+00> : vector<16x128xf32>
    %469 = tpu.matmul %468, %465, %cst_148 {dimension_numbers = #tpu.dot_dimension_numbers<[1], [0], [0], [1], [0, 0, 1, 1], [], []>} : vector<16x128xbf16>, vector<128x128xbf16>, vector<16x128xf32> -> vector<16x128xf32>
    %470 = vector.broadcast %467 : vector<1x128xf32> to vector<16x128xf32>
    %471 = arith.addf %469, %470 : vector<16x128xf32>
    %472 = arith.addf %276, %471 : vector<16x128xf32>
    %c1_149 = arith.constant 1 : index
    %c0_150 = arith.constant 0 : index
    %c0_151 = arith.constant 0 : index
    %473 = vector.load %arg7[%c1_149, %c0_150, %c0_151] : memref<4x1x128xf32, #tpu.memory_space<vmem>>, vector<1x1x128xf32>
    %474 = vector.shape_cast %473 : vector<1x1x128xf32> to vector<1x128xf32>
    %c1_152 = arith.constant 1 : index
    %c0_153 = arith.constant 0 : index
    %c0_154 = arith.constant 0 : index
    %475 = vector.load %arg8[%c1_152, %c0_153, %c0_154] : memref<4x1x128xf32, #tpu.memory_space<vmem>>, vector<1x1x128xf32>
    %476 = vector.shape_cast %475 : vector<1x1x128xf32> to vector<1x128xf32>
    %cst_155 = arith.constant dense<0.000000e+00> : vector<16xf32>
    %477 = vector.multi_reduction <add>, %472, %cst_155 [1] : vector<16x128xf32> to vector<16xf32>
    %478 = vector.shape_cast %477 : vector<16xf32> to vector<16x1xf32>
    %cst_156 = arith.constant 1.280000e+02 : f32
    %479 = vector.broadcast %cst_156 : f32 to vector<16x1xf32>
    %480 = arith.divf %478, %479 : vector<16x1xf32>
    %481 = vector.broadcast %480 : vector<16x1xf32> to vector<16x128xf32>
    %482 = arith.subf %472, %481 : vector<16x128xf32>
    %483 = vector.broadcast %480 : vector<16x1xf32> to vector<16x128xf32>
    %484 = arith.subf %472, %483 : vector<16x128xf32>
    %485 = arith.mulf %482, %484 : vector<16x128xf32>
    %cst_157 = arith.constant dense<0.000000e+00> : vector<16xf32>
    %486 = vector.multi_reduction <add>, %485, %cst_157 [1] : vector<16x128xf32> to vector<16xf32>
    %487 = vector.shape_cast %486 : vector<16xf32> to vector<16x1xf32>
    %cst_158 = arith.constant 1.280000e+02 : f32
    %488 = vector.broadcast %cst_158 : f32 to vector<16x1xf32>
    %489 = arith.divf %487, %488 : vector<16x1xf32>
    %490 = vector.broadcast %480 : vector<16x1xf32> to vector<16x128xf32>
    %491 = arith.subf %472, %490 : vector<16x128xf32>
    %cst_159 = arith.constant 9.99999974E-6 : f32
    %492 = vector.broadcast %cst_159 : f32 to vector<16x1xf32>
    %493 = arith.addf %489, %492 : vector<16x1xf32>
    %494 = math.rsqrt %493 : vector<16x1xf32>
    %495 = vector.broadcast %494 : vector<16x1xf32> to vector<16x128xf32>
    %496 = arith.mulf %491, %495 : vector<16x128xf32>
    %497 = vector.broadcast %474 : vector<1x128xf32> to vector<16x128xf32>
    %498 = arith.mulf %496, %497 : vector<16x128xf32>
    %499 = vector.broadcast %476 : vector<1x128xf32> to vector<16x128xf32>
    %500 = arith.addf %498, %499 : vector<16x128xf32>
    %c1_160 = arith.constant 1 : index
    %c0_161 = arith.constant 0 : index
    %c0_162 = arith.constant 0 : index
    %501 = vector.load %arg9[%c1_160, %c0_161, %c0_162] : memref<4x128x512xbf16, #tpu.memory_space<vmem>>, vector<1x128x512xbf16>
    %502 = vector.shape_cast %501 : vector<1x128x512xbf16> to vector<128x512xbf16>
    %c1_163 = arith.constant 1 : index
    %c0_164 = arith.constant 0 : index
    %c0_165 = arith.constant 0 : index
    %503 = vector.load %arg10[%c1_163, %c0_164, %c0_165] : memref<4x1x512xf32, #tpu.memory_space<vmem>>, vector<1x1x512xf32>
    %504 = vector.shape_cast %503 : vector<1x1x512xf32> to vector<1x512xf32>
    %505 = arith.truncf %500 : vector<16x128xf32> to vector<16x128xbf16>
    %cst_166 = arith.constant dense<0.000000e+00> : vector<16x512xf32>
    %506 = tpu.matmul %505, %502, %cst_166 {dimension_numbers = #tpu.dot_dimension_numbers<[1], [0], [0], [1], [0, 0, 1, 1], [], []>} : vector<16x128xbf16>, vector<128x512xbf16>, vector<16x512xf32> -> vector<16x512xf32>
    %507 = vector.broadcast %504 : vector<1x512xf32> to vector<16x512xf32>
    %508 = arith.addf %506, %507 : vector<16x512xf32>
    %cst_167 = arith.constant 0.000000e+00 : f32
    %509 = vector.broadcast %cst_167 : f32 to vector<16x512xf32>
    %510 = arith.maximumf %508, %509 : vector<16x512xf32>
    %c1_168 = arith.constant 1 : index
    %c0_169 = arith.constant 0 : index
    %c0_170 = arith.constant 0 : index
    %511 = vector.load %arg11[%c1_168, %c0_169, %c0_170] : memref<4x512x128xbf16, #tpu.memory_space<vmem>>, vector<1x512x128xbf16>
    %512 = vector.shape_cast %511 : vector<1x512x128xbf16> to vector<512x128xbf16>
    %c1_171 = arith.constant 1 : index
    %c0_172 = arith.constant 0 : index
    %c0_173 = arith.constant 0 : index
    %513 = vector.load %arg12[%c1_171, %c0_172, %c0_173] : memref<4x1x128xf32, #tpu.memory_space<vmem>>, vector<1x1x128xf32>
    %514 = vector.shape_cast %513 : vector<1x1x128xf32> to vector<1x128xf32>
    %515 = arith.truncf %510 : vector<16x512xf32> to vector<16x512xbf16>
    %cst_174 = arith.constant dense<0.000000e+00> : vector<16x128xf32>
    %516 = tpu.matmul %515, %512, %cst_174 {dimension_numbers = #tpu.dot_dimension_numbers<[1], [0], [0], [1], [0, 0, 1, 1], [], []>} : vector<16x512xbf16>, vector<512x128xbf16>, vector<16x128xf32> -> vector<16x128xf32>
    %517 = vector.broadcast %514 : vector<1x128xf32> to vector<16x128xf32>
    %518 = arith.addf %516, %517 : vector<16x128xf32>
    %519 = arith.addf %500, %518 : vector<16x128xf32>
    %c1_175 = arith.constant 1 : index
    %c0_176 = arith.constant 0 : index
    %c0_177 = arith.constant 0 : index
    %520 = vector.load %arg13[%c1_175, %c0_176, %c0_177] : memref<4x1x128xf32, #tpu.memory_space<vmem>>, vector<1x1x128xf32>
    %521 = vector.shape_cast %520 : vector<1x1x128xf32> to vector<1x128xf32>
    %c1_178 = arith.constant 1 : index
    %c0_179 = arith.constant 0 : index
    %c0_180 = arith.constant 0 : index
    %522 = vector.load %arg14[%c1_178, %c0_179, %c0_180] : memref<4x1x128xf32, #tpu.memory_space<vmem>>, vector<1x1x128xf32>
    %523 = vector.shape_cast %522 : vector<1x1x128xf32> to vector<1x128xf32>
    %cst_181 = arith.constant dense<0.000000e+00> : vector<16xf32>
    %524 = vector.multi_reduction <add>, %519, %cst_181 [1] : vector<16x128xf32> to vector<16xf32>
    %525 = vector.shape_cast %524 : vector<16xf32> to vector<16x1xf32>
    %cst_182 = arith.constant 1.280000e+02 : f32
    %526 = vector.broadcast %cst_182 : f32 to vector<16x1xf32>
    %527 = arith.divf %525, %526 : vector<16x1xf32>
    %528 = vector.broadcast %527 : vector<16x1xf32> to vector<16x128xf32>
    %529 = arith.subf %519, %528 : vector<16x128xf32>
    %530 = vector.broadcast %527 : vector<16x1xf32> to vector<16x128xf32>
    %531 = arith.subf %519, %530 : vector<16x128xf32>
    %532 = arith.mulf %529, %531 : vector<16x128xf32>
    %cst_183 = arith.constant dense<0.000000e+00> : vector<16xf32>
    %533 = vector.multi_reduction <add>, %532, %cst_183 [1] : vector<16x128xf32> to vector<16xf32>
    %534 = vector.shape_cast %533 : vector<16xf32> to vector<16x1xf32>
    %cst_184 = arith.constant 1.280000e+02 : f32
    %535 = vector.broadcast %cst_184 : f32 to vector<16x1xf32>
    %536 = arith.divf %534, %535 : vector<16x1xf32>
    %537 = vector.broadcast %527 : vector<16x1xf32> to vector<16x128xf32>
    %538 = arith.subf %519, %537 : vector<16x128xf32>
    %cst_185 = arith.constant 9.99999974E-6 : f32
    %539 = vector.broadcast %cst_185 : f32 to vector<16x1xf32>
    %540 = arith.addf %536, %539 : vector<16x1xf32>
    %541 = math.rsqrt %540 : vector<16x1xf32>
    %542 = vector.broadcast %541 : vector<16x1xf32> to vector<16x128xf32>
    %543 = arith.mulf %538, %542 : vector<16x128xf32>
    %544 = vector.broadcast %521 : vector<1x128xf32> to vector<16x128xf32>
    %545 = arith.mulf %543, %544 : vector<16x128xf32>
    %546 = vector.broadcast %523 : vector<1x128xf32> to vector<16x128xf32>
    %547 = arith.addf %545, %546 : vector<16x128xf32>
    %c2 = arith.constant 2 : index
    %c0_186 = arith.constant 0 : index
    %c0_187 = arith.constant 0 : index
    %548 = vector.load %arg3[%c2, %c0_186, %c0_187] : memref<4x128x384xbf16, #tpu.memory_space<vmem>>, vector<1x128x384xbf16>
    %549 = vector.shape_cast %548 : vector<1x128x384xbf16> to vector<128x384xbf16>
    %c2_188 = arith.constant 2 : index
    %c0_189 = arith.constant 0 : index
    %c0_190 = arith.constant 0 : index
    %550 = vector.load %arg4[%c2_188, %c0_189, %c0_190] : memref<4x1x384xf32, #tpu.memory_space<vmem>>, vector<1x1x384xf32>
    %551 = vector.shape_cast %550 : vector<1x1x384xf32> to vector<1x384xf32>
    %552 = arith.truncf %547 : vector<16x128xf32> to vector<16x128xbf16>
    %cst_191 = arith.constant dense<0.000000e+00> : vector<16x384xf32>
    %553 = tpu.matmul %552, %549, %cst_191 {dimension_numbers = #tpu.dot_dimension_numbers<[1], [0], [0], [1], [0, 0, 1, 1], [], []>} : vector<16x128xbf16>, vector<128x384xbf16>, vector<16x384xf32> -> vector<16x384xf32>
    %554 = vector.broadcast %551 : vector<1x384xf32> to vector<16x384xf32>
    %555 = arith.addf %553, %554 : vector<16x384xf32>
    %556 = vector.extract_strided_slice %555 {offsets = [0, 0], sizes = [8, 32], strides = [1, 1]} : vector<16x384xf32> to vector<8x32xf32>
    %cst_192 = arith.constant 0.176776692 : f32
    %557 = vector.broadcast %cst_192 : f32 to vector<8x32xf32>
    %558 = arith.mulf %556, %557 : vector<8x32xf32>
    %559 = arith.truncf %558 : vector<8x32xf32> to vector<8x32xbf16>
    %560 = vector.extract_strided_slice %555 {offsets = [0, 128], sizes = [8, 32], strides = [1, 1]} : vector<16x384xf32> to vector<8x32xf32>
    %561 = arith.truncf %560 : vector<8x32xf32> to vector<8x32xbf16>
    %562 = vector.extract_strided_slice %555 {offsets = [0, 256], sizes = [8, 32], strides = [1, 1]} : vector<16x384xf32> to vector<8x32xf32>
    %563 = arith.truncf %562 : vector<8x32xf32> to vector<8x32xbf16>
    %564 = tpu.transpose %561, [1, 0] : vector<8x32xbf16> -> vector<32x8xbf16>
    %cst_193 = arith.constant dense<0.000000e+00> : vector<8x8xf32>
    %565 = tpu.matmul %559, %564, %cst_193 {dimension_numbers = #tpu.dot_dimension_numbers<[1], [0], [0], [1], [0, 0, 1, 1], [], []>} : vector<8x32xbf16>, vector<32x8xbf16>, vector<8x8xf32> -> vector<8x8xf32>
    %cst_194 = arith.constant dense<0xFF800000> : vector<8xf32>
    %566 = vector.multi_reduction <maximumf>, %565, %cst_194 [1] : vector<8x8xf32> to vector<8xf32>
    %567 = vector.shape_cast %566 : vector<8xf32> to vector<8x1xf32>
    %568 = vector.broadcast %567 : vector<8x1xf32> to vector<8x8xf32>
    %569 = arith.subf %565, %568 : vector<8x8xf32>
    %570 = math.exp %569 : vector<8x8xf32>
    %cst_195 = arith.constant dense<0.000000e+00> : vector<8xf32>
    %571 = vector.multi_reduction <add>, %570, %cst_195 [1] : vector<8x8xf32> to vector<8xf32>
    %572 = vector.shape_cast %571 : vector<8xf32> to vector<8x1xf32>
    %573 = tpu.reciprocal %572 {approx = true} : vector<8x1xf32> -> vector<8x1xf32>
    %574 = vector.broadcast %573 : vector<8x1xf32> to vector<8x8xf32>
    %575 = arith.mulf %570, %574 : vector<8x8xf32>
    %576 = arith.truncf %575 : vector<8x8xf32> to vector<8x8xbf16>
    %cst_196 = arith.constant dense<0.000000e+00> : vector<8x32xf32>
    %577 = tpu.matmul %576, %563, %cst_196 {dimension_numbers = #tpu.dot_dimension_numbers<[1], [0], [0], [1], [0, 0, 1, 1], [], []>} : vector<8x8xbf16>, vector<8x32xbf16>, vector<8x32xf32> -> vector<8x32xf32>
    %578 = vector.extract_strided_slice %555 {offsets = [0, 32], sizes = [8, 32], strides = [1, 1]} : vector<16x384xf32> to vector<8x32xf32>
    %cst_197 = arith.constant 0.176776692 : f32
    %579 = vector.broadcast %cst_197 : f32 to vector<8x32xf32>
    %580 = arith.mulf %578, %579 : vector<8x32xf32>
    %581 = arith.truncf %580 : vector<8x32xf32> to vector<8x32xbf16>
    %582 = vector.extract_strided_slice %555 {offsets = [0, 160], sizes = [8, 32], strides = [1, 1]} : vector<16x384xf32> to vector<8x32xf32>
    %583 = arith.truncf %582 : vector<8x32xf32> to vector<8x32xbf16>
    %584 = vector.extract_strided_slice %555 {offsets = [0, 288], sizes = [8, 32], strides = [1, 1]} : vector<16x384xf32> to vector<8x32xf32>
    %585 = arith.truncf %584 : vector<8x32xf32> to vector<8x32xbf16>
    %586 = tpu.transpose %583, [1, 0] : vector<8x32xbf16> -> vector<32x8xbf16>
    %cst_198 = arith.constant dense<0.000000e+00> : vector<8x8xf32>
    %587 = tpu.matmul %581, %586, %cst_198 {dimension_numbers = #tpu.dot_dimension_numbers<[1], [0], [0], [1], [0, 0, 1, 1], [], []>} : vector<8x32xbf16>, vector<32x8xbf16>, vector<8x8xf32> -> vector<8x8xf32>
    %cst_199 = arith.constant dense<0xFF800000> : vector<8xf32>
    %588 = vector.multi_reduction <maximumf>, %587, %cst_199 [1] : vector<8x8xf32> to vector<8xf32>
    %589 = vector.shape_cast %588 : vector<8xf32> to vector<8x1xf32>
    %590 = vector.broadcast %589 : vector<8x1xf32> to vector<8x8xf32>
    %591 = arith.subf %587, %590 : vector<8x8xf32>
    %592 = math.exp %591 : vector<8x8xf32>
    %cst_200 = arith.constant dense<0.000000e+00> : vector<8xf32>
    %593 = vector.multi_reduction <add>, %592, %cst_200 [1] : vector<8x8xf32> to vector<8xf32>
    %594 = vector.shape_cast %593 : vector<8xf32> to vector<8x1xf32>
    %595 = tpu.reciprocal %594 {approx = true} : vector<8x1xf32> -> vector<8x1xf32>
    %596 = vector.broadcast %595 : vector<8x1xf32> to vector<8x8xf32>
    %597 = arith.mulf %592, %596 : vector<8x8xf32>
    %598 = arith.truncf %597 : vector<8x8xf32> to vector<8x8xbf16>
    %cst_201 = arith.constant dense<0.000000e+00> : vector<8x32xf32>
    %599 = tpu.matmul %598, %585, %cst_201 {dimension_numbers = #tpu.dot_dimension_numbers<[1], [0], [0], [1], [0, 0, 1, 1], [], []>} : vector<8x8xbf16>, vector<8x32xbf16>, vector<8x32xf32> -> vector<8x32xf32>
    %600 = vector.extract_strided_slice %555 {offsets = [0, 64], sizes = [8, 32], strides = [1, 1]} : vector<16x384xf32> to vector<8x32xf32>
    %cst_202 = arith.constant 0.176776692 : f32
    %601 = vector.broadcast %cst_202 : f32 to vector<8x32xf32>
    %602 = arith.mulf %600, %601 : vector<8x32xf32>
    %603 = arith.truncf %602 : vector<8x32xf32> to vector<8x32xbf16>
    %604 = vector.extract_strided_slice %555 {offsets = [0, 192], sizes = [8, 32], strides = [1, 1]} : vector<16x384xf32> to vector<8x32xf32>
    %605 = arith.truncf %604 : vector<8x32xf32> to vector<8x32xbf16>
    %606 = vector.extract_strided_slice %555 {offsets = [0, 320], sizes = [8, 32], strides = [1, 1]} : vector<16x384xf32> to vector<8x32xf32>
    %607 = arith.truncf %606 : vector<8x32xf32> to vector<8x32xbf16>
    %608 = tpu.transpose %605, [1, 0] : vector<8x32xbf16> -> vector<32x8xbf16>
    %cst_203 = arith.constant dense<0.000000e+00> : vector<8x8xf32>
    %609 = tpu.matmul %603, %608, %cst_203 {dimension_numbers = #tpu.dot_dimension_numbers<[1], [0], [0], [1], [0, 0, 1, 1], [], []>} : vector<8x32xbf16>, vector<32x8xbf16>, vector<8x8xf32> -> vector<8x8xf32>
    %cst_204 = arith.constant dense<0xFF800000> : vector<8xf32>
    %610 = vector.multi_reduction <maximumf>, %609, %cst_204 [1] : vector<8x8xf32> to vector<8xf32>
    %611 = vector.shape_cast %610 : vector<8xf32> to vector<8x1xf32>
    %612 = vector.broadcast %611 : vector<8x1xf32> to vector<8x8xf32>
    %613 = arith.subf %609, %612 : vector<8x8xf32>
    %614 = math.exp %613 : vector<8x8xf32>
    %cst_205 = arith.constant dense<0.000000e+00> : vector<8xf32>
    %615 = vector.multi_reduction <add>, %614, %cst_205 [1] : vector<8x8xf32> to vector<8xf32>
    %616 = vector.shape_cast %615 : vector<8xf32> to vector<8x1xf32>
    %617 = tpu.reciprocal %616 {approx = true} : vector<8x1xf32> -> vector<8x1xf32>
    %618 = vector.broadcast %617 : vector<8x1xf32> to vector<8x8xf32>
    %619 = arith.mulf %614, %618 : vector<8x8xf32>
    %620 = arith.truncf %619 : vector<8x8xf32> to vector<8x8xbf16>
    %cst_206 = arith.constant dense<0.000000e+00> : vector<8x32xf32>
    %621 = tpu.matmul %620, %607, %cst_206 {dimension_numbers = #tpu.dot_dimension_numbers<[1], [0], [0], [1], [0, 0, 1, 1], [], []>} : vector<8x8xbf16>, vector<8x32xbf16>, vector<8x32xf32> -> vector<8x32xf32>
    %622 = vector.extract_strided_slice %555 {offsets = [0, 96], sizes = [8, 32], strides = [1, 1]} : vector<16x384xf32> to vector<8x32xf32>
    %cst_207 = arith.constant 0.176776692 : f32
    %623 = vector.broadcast %cst_207 : f32 to vector<8x32xf32>
    %624 = arith.mulf %622, %623 : vector<8x32xf32>
    %625 = arith.truncf %624 : vector<8x32xf32> to vector<8x32xbf16>
    %626 = vector.extract_strided_slice %555 {offsets = [0, 224], sizes = [8, 32], strides = [1, 1]} : vector<16x384xf32> to vector<8x32xf32>
    %627 = arith.truncf %626 : vector<8x32xf32> to vector<8x32xbf16>
    %628 = vector.extract_strided_slice %555 {offsets = [0, 352], sizes = [8, 32], strides = [1, 1]} : vector<16x384xf32> to vector<8x32xf32>
    %629 = arith.truncf %628 : vector<8x32xf32> to vector<8x32xbf16>
    %630 = tpu.transpose %627, [1, 0] : vector<8x32xbf16> -> vector<32x8xbf16>
    %cst_208 = arith.constant dense<0.000000e+00> : vector<8x8xf32>
    %631 = tpu.matmul %625, %630, %cst_208 {dimension_numbers = #tpu.dot_dimension_numbers<[1], [0], [0], [1], [0, 0, 1, 1], [], []>} : vector<8x32xbf16>, vector<32x8xbf16>, vector<8x8xf32> -> vector<8x8xf32>
    %cst_209 = arith.constant dense<0xFF800000> : vector<8xf32>
    %632 = vector.multi_reduction <maximumf>, %631, %cst_209 [1] : vector<8x8xf32> to vector<8xf32>
    %633 = vector.shape_cast %632 : vector<8xf32> to vector<8x1xf32>
    %634 = vector.broadcast %633 : vector<8x1xf32> to vector<8x8xf32>
    %635 = arith.subf %631, %634 : vector<8x8xf32>
    %636 = math.exp %635 : vector<8x8xf32>
    %cst_210 = arith.constant dense<0.000000e+00> : vector<8xf32>
    %637 = vector.multi_reduction <add>, %636, %cst_210 [1] : vector<8x8xf32> to vector<8xf32>
    %638 = vector.shape_cast %637 : vector<8xf32> to vector<8x1xf32>
    %639 = tpu.reciprocal %638 {approx = true} : vector<8x1xf32> -> vector<8x1xf32>
    %640 = vector.broadcast %639 : vector<8x1xf32> to vector<8x8xf32>
    %641 = arith.mulf %636, %640 : vector<8x8xf32>
    %642 = arith.truncf %641 : vector<8x8xf32> to vector<8x8xbf16>
    %cst_211 = arith.constant dense<0.000000e+00> : vector<8x32xf32>
    %643 = tpu.matmul %642, %629, %cst_211 {dimension_numbers = #tpu.dot_dimension_numbers<[1], [0], [0], [1], [0, 0, 1, 1], [], []>} : vector<8x8xbf16>, vector<8x32xbf16>, vector<8x32xf32> -> vector<8x32xf32>
    %644 = tpu.concatenate %577, %599, %621, %643 in 1 : vector<8x32xf32>, vector<8x32xf32>, vector<8x32xf32>, vector<8x32xf32> -> vector<8x128xf32>
    %645 = vector.extract_strided_slice %555 {offsets = [8, 0], sizes = [8, 32], strides = [1, 1]} : vector<16x384xf32> to vector<8x32xf32>
    %cst_212 = arith.constant 0.176776692 : f32
    %646 = vector.broadcast %cst_212 : f32 to vector<8x32xf32>
    %647 = arith.mulf %645, %646 : vector<8x32xf32>
    %648 = arith.truncf %647 : vector<8x32xf32> to vector<8x32xbf16>
    %649 = vector.extract_strided_slice %555 {offsets = [8, 128], sizes = [8, 32], strides = [1, 1]} : vector<16x384xf32> to vector<8x32xf32>
    %650 = arith.truncf %649 : vector<8x32xf32> to vector<8x32xbf16>
    %651 = vector.extract_strided_slice %555 {offsets = [8, 256], sizes = [8, 32], strides = [1, 1]} : vector<16x384xf32> to vector<8x32xf32>
    %652 = arith.truncf %651 : vector<8x32xf32> to vector<8x32xbf16>
    %653 = tpu.transpose %650, [1, 0] : vector<8x32xbf16> -> vector<32x8xbf16>
    %cst_213 = arith.constant dense<0.000000e+00> : vector<8x8xf32>
    %654 = tpu.matmul %648, %653, %cst_213 {dimension_numbers = #tpu.dot_dimension_numbers<[1], [0], [0], [1], [0, 0, 1, 1], [], []>} : vector<8x32xbf16>, vector<32x8xbf16>, vector<8x8xf32> -> vector<8x8xf32>
    %cst_214 = arith.constant dense<0xFF800000> : vector<8xf32>
    %655 = vector.multi_reduction <maximumf>, %654, %cst_214 [1] : vector<8x8xf32> to vector<8xf32>
    %656 = vector.shape_cast %655 : vector<8xf32> to vector<8x1xf32>
    %657 = vector.broadcast %656 : vector<8x1xf32> to vector<8x8xf32>
    %658 = arith.subf %654, %657 : vector<8x8xf32>
    %659 = math.exp %658 : vector<8x8xf32>
    %cst_215 = arith.constant dense<0.000000e+00> : vector<8xf32>
    %660 = vector.multi_reduction <add>, %659, %cst_215 [1] : vector<8x8xf32> to vector<8xf32>
    %661 = vector.shape_cast %660 : vector<8xf32> to vector<8x1xf32>
    %662 = tpu.reciprocal %661 {approx = true} : vector<8x1xf32> -> vector<8x1xf32>
    %663 = vector.broadcast %662 : vector<8x1xf32> to vector<8x8xf32>
    %664 = arith.mulf %659, %663 : vector<8x8xf32>
    %665 = arith.truncf %664 : vector<8x8xf32> to vector<8x8xbf16>
    %cst_216 = arith.constant dense<0.000000e+00> : vector<8x32xf32>
    %666 = tpu.matmul %665, %652, %cst_216 {dimension_numbers = #tpu.dot_dimension_numbers<[1], [0], [0], [1], [0, 0, 1, 1], [], []>} : vector<8x8xbf16>, vector<8x32xbf16>, vector<8x32xf32> -> vector<8x32xf32>
    %667 = vector.extract_strided_slice %555 {offsets = [8, 32], sizes = [8, 32], strides = [1, 1]} : vector<16x384xf32> to vector<8x32xf32>
    %cst_217 = arith.constant 0.176776692 : f32
    %668 = vector.broadcast %cst_217 : f32 to vector<8x32xf32>
    %669 = arith.mulf %667, %668 : vector<8x32xf32>
    %670 = arith.truncf %669 : vector<8x32xf32> to vector<8x32xbf16>
    %671 = vector.extract_strided_slice %555 {offsets = [8, 160], sizes = [8, 32], strides = [1, 1]} : vector<16x384xf32> to vector<8x32xf32>
    %672 = arith.truncf %671 : vector<8x32xf32> to vector<8x32xbf16>
    %673 = vector.extract_strided_slice %555 {offsets = [8, 288], sizes = [8, 32], strides = [1, 1]} : vector<16x384xf32> to vector<8x32xf32>
    %674 = arith.truncf %673 : vector<8x32xf32> to vector<8x32xbf16>
    %675 = tpu.transpose %672, [1, 0] : vector<8x32xbf16> -> vector<32x8xbf16>
    %cst_218 = arith.constant dense<0.000000e+00> : vector<8x8xf32>
    %676 = tpu.matmul %670, %675, %cst_218 {dimension_numbers = #tpu.dot_dimension_numbers<[1], [0], [0], [1], [0, 0, 1, 1], [], []>} : vector<8x32xbf16>, vector<32x8xbf16>, vector<8x8xf32> -> vector<8x8xf32>
    %cst_219 = arith.constant dense<0xFF800000> : vector<8xf32>
    %677 = vector.multi_reduction <maximumf>, %676, %cst_219 [1] : vector<8x8xf32> to vector<8xf32>
    %678 = vector.shape_cast %677 : vector<8xf32> to vector<8x1xf32>
    %679 = vector.broadcast %678 : vector<8x1xf32> to vector<8x8xf32>
    %680 = arith.subf %676, %679 : vector<8x8xf32>
    %681 = math.exp %680 : vector<8x8xf32>
    %cst_220 = arith.constant dense<0.000000e+00> : vector<8xf32>
    %682 = vector.multi_reduction <add>, %681, %cst_220 [1] : vector<8x8xf32> to vector<8xf32>
    %683 = vector.shape_cast %682 : vector<8xf32> to vector<8x1xf32>
    %684 = tpu.reciprocal %683 {approx = true} : vector<8x1xf32> -> vector<8x1xf32>
    %685 = vector.broadcast %684 : vector<8x1xf32> to vector<8x8xf32>
    %686 = arith.mulf %681, %685 : vector<8x8xf32>
    %687 = arith.truncf %686 : vector<8x8xf32> to vector<8x8xbf16>
    %cst_221 = arith.constant dense<0.000000e+00> : vector<8x32xf32>
    %688 = tpu.matmul %687, %674, %cst_221 {dimension_numbers = #tpu.dot_dimension_numbers<[1], [0], [0], [1], [0, 0, 1, 1], [], []>} : vector<8x8xbf16>, vector<8x32xbf16>, vector<8x32xf32> -> vector<8x32xf32>
    %689 = vector.extract_strided_slice %555 {offsets = [8, 64], sizes = [8, 32], strides = [1, 1]} : vector<16x384xf32> to vector<8x32xf32>
    %cst_222 = arith.constant 0.176776692 : f32
    %690 = vector.broadcast %cst_222 : f32 to vector<8x32xf32>
    %691 = arith.mulf %689, %690 : vector<8x32xf32>
    %692 = arith.truncf %691 : vector<8x32xf32> to vector<8x32xbf16>
    %693 = vector.extract_strided_slice %555 {offsets = [8, 192], sizes = [8, 32], strides = [1, 1]} : vector<16x384xf32> to vector<8x32xf32>
    %694 = arith.truncf %693 : vector<8x32xf32> to vector<8x32xbf16>
    %695 = vector.extract_strided_slice %555 {offsets = [8, 320], sizes = [8, 32], strides = [1, 1]} : vector<16x384xf32> to vector<8x32xf32>
    %696 = arith.truncf %695 : vector<8x32xf32> to vector<8x32xbf16>
    %697 = tpu.transpose %694, [1, 0] : vector<8x32xbf16> -> vector<32x8xbf16>
    %cst_223 = arith.constant dense<0.000000e+00> : vector<8x8xf32>
    %698 = tpu.matmul %692, %697, %cst_223 {dimension_numbers = #tpu.dot_dimension_numbers<[1], [0], [0], [1], [0, 0, 1, 1], [], []>} : vector<8x32xbf16>, vector<32x8xbf16>, vector<8x8xf32> -> vector<8x8xf32>
    %cst_224 = arith.constant dense<0xFF800000> : vector<8xf32>
    %699 = vector.multi_reduction <maximumf>, %698, %cst_224 [1] : vector<8x8xf32> to vector<8xf32>
    %700 = vector.shape_cast %699 : vector<8xf32> to vector<8x1xf32>
    %701 = vector.broadcast %700 : vector<8x1xf32> to vector<8x8xf32>
    %702 = arith.subf %698, %701 : vector<8x8xf32>
    %703 = math.exp %702 : vector<8x8xf32>
    %cst_225 = arith.constant dense<0.000000e+00> : vector<8xf32>
    %704 = vector.multi_reduction <add>, %703, %cst_225 [1] : vector<8x8xf32> to vector<8xf32>
    %705 = vector.shape_cast %704 : vector<8xf32> to vector<8x1xf32>
    %706 = tpu.reciprocal %705 {approx = true} : vector<8x1xf32> -> vector<8x1xf32>
    %707 = vector.broadcast %706 : vector<8x1xf32> to vector<8x8xf32>
    %708 = arith.mulf %703, %707 : vector<8x8xf32>
    %709 = arith.truncf %708 : vector<8x8xf32> to vector<8x8xbf16>
    %cst_226 = arith.constant dense<0.000000e+00> : vector<8x32xf32>
    %710 = tpu.matmul %709, %696, %cst_226 {dimension_numbers = #tpu.dot_dimension_numbers<[1], [0], [0], [1], [0, 0, 1, 1], [], []>} : vector<8x8xbf16>, vector<8x32xbf16>, vector<8x32xf32> -> vector<8x32xf32>
    %711 = vector.extract_strided_slice %555 {offsets = [8, 96], sizes = [8, 32], strides = [1, 1]} : vector<16x384xf32> to vector<8x32xf32>
    %cst_227 = arith.constant 0.176776692 : f32
    %712 = vector.broadcast %cst_227 : f32 to vector<8x32xf32>
    %713 = arith.mulf %711, %712 : vector<8x32xf32>
    %714 = arith.truncf %713 : vector<8x32xf32> to vector<8x32xbf16>
    %715 = vector.extract_strided_slice %555 {offsets = [8, 224], sizes = [8, 32], strides = [1, 1]} : vector<16x384xf32> to vector<8x32xf32>
    %716 = arith.truncf %715 : vector<8x32xf32> to vector<8x32xbf16>
    %717 = vector.extract_strided_slice %555 {offsets = [8, 352], sizes = [8, 32], strides = [1, 1]} : vector<16x384xf32> to vector<8x32xf32>
    %718 = arith.truncf %717 : vector<8x32xf32> to vector<8x32xbf16>
    %719 = tpu.transpose %716, [1, 0] : vector<8x32xbf16> -> vector<32x8xbf16>
    %cst_228 = arith.constant dense<0.000000e+00> : vector<8x8xf32>
    %720 = tpu.matmul %714, %719, %cst_228 {dimension_numbers = #tpu.dot_dimension_numbers<[1], [0], [0], [1], [0, 0, 1, 1], [], []>} : vector<8x32xbf16>, vector<32x8xbf16>, vector<8x8xf32> -> vector<8x8xf32>
    %cst_229 = arith.constant dense<0xFF800000> : vector<8xf32>
    %721 = vector.multi_reduction <maximumf>, %720, %cst_229 [1] : vector<8x8xf32> to vector<8xf32>
    %722 = vector.shape_cast %721 : vector<8xf32> to vector<8x1xf32>
    %723 = vector.broadcast %722 : vector<8x1xf32> to vector<8x8xf32>
    %724 = arith.subf %720, %723 : vector<8x8xf32>
    %725 = math.exp %724 : vector<8x8xf32>
    %cst_230 = arith.constant dense<0.000000e+00> : vector<8xf32>
    %726 = vector.multi_reduction <add>, %725, %cst_230 [1] : vector<8x8xf32> to vector<8xf32>
    %727 = vector.shape_cast %726 : vector<8xf32> to vector<8x1xf32>
    %728 = tpu.reciprocal %727 {approx = true} : vector<8x1xf32> -> vector<8x1xf32>
    %729 = vector.broadcast %728 : vector<8x1xf32> to vector<8x8xf32>
    %730 = arith.mulf %725, %729 : vector<8x8xf32>
    %731 = arith.truncf %730 : vector<8x8xf32> to vector<8x8xbf16>
    %cst_231 = arith.constant dense<0.000000e+00> : vector<8x32xf32>
    %732 = tpu.matmul %731, %718, %cst_231 {dimension_numbers = #tpu.dot_dimension_numbers<[1], [0], [0], [1], [0, 0, 1, 1], [], []>} : vector<8x8xbf16>, vector<8x32xbf16>, vector<8x32xf32> -> vector<8x32xf32>
    %733 = tpu.concatenate %666, %688, %710, %732 in 1 : vector<8x32xf32>, vector<8x32xf32>, vector<8x32xf32>, vector<8x32xf32> -> vector<8x128xf32>
    %734 = tpu.concatenate %644, %733 in 0 : vector<8x128xf32>, vector<8x128xf32> -> vector<16x128xf32>
    %c2_232 = arith.constant 2 : index
    %c0_233 = arith.constant 0 : index
    %c0_234 = arith.constant 0 : index
    %735 = vector.load %arg5[%c2_232, %c0_233, %c0_234] : memref<4x128x128xbf16, #tpu.memory_space<vmem>>, vector<1x128x128xbf16>
    %736 = vector.shape_cast %735 : vector<1x128x128xbf16> to vector<128x128xbf16>
    %c2_235 = arith.constant 2 : index
    %c0_236 = arith.constant 0 : index
    %c0_237 = arith.constant 0 : index
    %737 = vector.load %arg6[%c2_235, %c0_236, %c0_237] : memref<4x1x128xf32, #tpu.memory_space<vmem>>, vector<1x1x128xf32>
    %738 = vector.shape_cast %737 : vector<1x1x128xf32> to vector<1x128xf32>
    %739 = arith.truncf %734 : vector<16x128xf32> to vector<16x128xbf16>
    %cst_238 = arith.constant dense<0.000000e+00> : vector<16x128xf32>
    %740 = tpu.matmul %739, %736, %cst_238 {dimension_numbers = #tpu.dot_dimension_numbers<[1], [0], [0], [1], [0, 0, 1, 1], [], []>} : vector<16x128xbf16>, vector<128x128xbf16>, vector<16x128xf32> -> vector<16x128xf32>
    %741 = vector.broadcast %738 : vector<1x128xf32> to vector<16x128xf32>
    %742 = arith.addf %740, %741 : vector<16x128xf32>
    %743 = arith.addf %547, %742 : vector<16x128xf32>
    %c2_239 = arith.constant 2 : index
    %c0_240 = arith.constant 0 : index
    %c0_241 = arith.constant 0 : index
    %744 = vector.load %arg7[%c2_239, %c0_240, %c0_241] : memref<4x1x128xf32, #tpu.memory_space<vmem>>, vector<1x1x128xf32>
    %745 = vector.shape_cast %744 : vector<1x1x128xf32> to vector<1x128xf32>
    %c2_242 = arith.constant 2 : index
    %c0_243 = arith.constant 0 : index
    %c0_244 = arith.constant 0 : index
    %746 = vector.load %arg8[%c2_242, %c0_243, %c0_244] : memref<4x1x128xf32, #tpu.memory_space<vmem>>, vector<1x1x128xf32>
    %747 = vector.shape_cast %746 : vector<1x1x128xf32> to vector<1x128xf32>
    %cst_245 = arith.constant dense<0.000000e+00> : vector<16xf32>
    %748 = vector.multi_reduction <add>, %743, %cst_245 [1] : vector<16x128xf32> to vector<16xf32>
    %749 = vector.shape_cast %748 : vector<16xf32> to vector<16x1xf32>
    %cst_246 = arith.constant 1.280000e+02 : f32
    %750 = vector.broadcast %cst_246 : f32 to vector<16x1xf32>
    %751 = arith.divf %749, %750 : vector<16x1xf32>
    %752 = vector.broadcast %751 : vector<16x1xf32> to vector<16x128xf32>
    %753 = arith.subf %743, %752 : vector<16x128xf32>
    %754 = vector.broadcast %751 : vector<16x1xf32> to vector<16x128xf32>
    %755 = arith.subf %743, %754 : vector<16x128xf32>
    %756 = arith.mulf %753, %755 : vector<16x128xf32>
    %cst_247 = arith.constant dense<0.000000e+00> : vector<16xf32>
    %757 = vector.multi_reduction <add>, %756, %cst_247 [1] : vector<16x128xf32> to vector<16xf32>
    %758 = vector.shape_cast %757 : vector<16xf32> to vector<16x1xf32>
    %cst_248 = arith.constant 1.280000e+02 : f32
    %759 = vector.broadcast %cst_248 : f32 to vector<16x1xf32>
    %760 = arith.divf %758, %759 : vector<16x1xf32>
    %761 = vector.broadcast %751 : vector<16x1xf32> to vector<16x128xf32>
    %762 = arith.subf %743, %761 : vector<16x128xf32>
    %cst_249 = arith.constant 9.99999974E-6 : f32
    %763 = vector.broadcast %cst_249 : f32 to vector<16x1xf32>
    %764 = arith.addf %760, %763 : vector<16x1xf32>
    %765 = math.rsqrt %764 : vector<16x1xf32>
    %766 = vector.broadcast %765 : vector<16x1xf32> to vector<16x128xf32>
    %767 = arith.mulf %762, %766 : vector<16x128xf32>
    %768 = vector.broadcast %745 : vector<1x128xf32> to vector<16x128xf32>
    %769 = arith.mulf %767, %768 : vector<16x128xf32>
    %770 = vector.broadcast %747 : vector<1x128xf32> to vector<16x128xf32>
    %771 = arith.addf %769, %770 : vector<16x128xf32>
    %c2_250 = arith.constant 2 : index
    %c0_251 = arith.constant 0 : index
    %c0_252 = arith.constant 0 : index
    %772 = vector.load %arg9[%c2_250, %c0_251, %c0_252] : memref<4x128x512xbf16, #tpu.memory_space<vmem>>, vector<1x128x512xbf16>
    %773 = vector.shape_cast %772 : vector<1x128x512xbf16> to vector<128x512xbf16>
    %c2_253 = arith.constant 2 : index
    %c0_254 = arith.constant 0 : index
    %c0_255 = arith.constant 0 : index
    %774 = vector.load %arg10[%c2_253, %c0_254, %c0_255] : memref<4x1x512xf32, #tpu.memory_space<vmem>>, vector<1x1x512xf32>
    %775 = vector.shape_cast %774 : vector<1x1x512xf32> to vector<1x512xf32>
    %776 = arith.truncf %771 : vector<16x128xf32> to vector<16x128xbf16>
    %cst_256 = arith.constant dense<0.000000e+00> : vector<16x512xf32>
    %777 = tpu.matmul %776, %773, %cst_256 {dimension_numbers = #tpu.dot_dimension_numbers<[1], [0], [0], [1], [0, 0, 1, 1], [], []>} : vector<16x128xbf16>, vector<128x512xbf16>, vector<16x512xf32> -> vector<16x512xf32>
    %778 = vector.broadcast %775 : vector<1x512xf32> to vector<16x512xf32>
    %779 = arith.addf %777, %778 : vector<16x512xf32>
    %cst_257 = arith.constant 0.000000e+00 : f32
    %780 = vector.broadcast %cst_257 : f32 to vector<16x512xf32>
    %781 = arith.maximumf %779, %780 : vector<16x512xf32>
    %c2_258 = arith.constant 2 : index
    %c0_259 = arith.constant 0 : index
    %c0_260 = arith.constant 0 : index
    %782 = vector.load %arg11[%c2_258, %c0_259, %c0_260] : memref<4x512x128xbf16, #tpu.memory_space<vmem>>, vector<1x512x128xbf16>
    %783 = vector.shape_cast %782 : vector<1x512x128xbf16> to vector<512x128xbf16>
    %c2_261 = arith.constant 2 : index
    %c0_262 = arith.constant 0 : index
    %c0_263 = arith.constant 0 : index
    %784 = vector.load %arg12[%c2_261, %c0_262, %c0_263] : memref<4x1x128xf32, #tpu.memory_space<vmem>>, vector<1x1x128xf32>
    %785 = vector.shape_cast %784 : vector<1x1x128xf32> to vector<1x128xf32>
    %786 = arith.truncf %781 : vector<16x512xf32> to vector<16x512xbf16>
    %cst_264 = arith.constant dense<0.000000e+00> : vector<16x128xf32>
    %787 = tpu.matmul %786, %783, %cst_264 {dimension_numbers = #tpu.dot_dimension_numbers<[1], [0], [0], [1], [0, 0, 1, 1], [], []>} : vector<16x512xbf16>, vector<512x128xbf16>, vector<16x128xf32> -> vector<16x128xf32>
    %788 = vector.broadcast %785 : vector<1x128xf32> to vector<16x128xf32>
    %789 = arith.addf %787, %788 : vector<16x128xf32>
    %790 = arith.addf %771, %789 : vector<16x128xf32>
    %c2_265 = arith.constant 2 : index
    %c0_266 = arith.constant 0 : index
    %c0_267 = arith.constant 0 : index
    %791 = vector.load %arg13[%c2_265, %c0_266, %c0_267] : memref<4x1x128xf32, #tpu.memory_space<vmem>>, vector<1x1x128xf32>
    %792 = vector.shape_cast %791 : vector<1x1x128xf32> to vector<1x128xf32>
    %c2_268 = arith.constant 2 : index
    %c0_269 = arith.constant 0 : index
    %c0_270 = arith.constant 0 : index
    %793 = vector.load %arg14[%c2_268, %c0_269, %c0_270] : memref<4x1x128xf32, #tpu.memory_space<vmem>>, vector<1x1x128xf32>
    %794 = vector.shape_cast %793 : vector<1x1x128xf32> to vector<1x128xf32>
    %cst_271 = arith.constant dense<0.000000e+00> : vector<16xf32>
    %795 = vector.multi_reduction <add>, %790, %cst_271 [1] : vector<16x128xf32> to vector<16xf32>
    %796 = vector.shape_cast %795 : vector<16xf32> to vector<16x1xf32>
    %cst_272 = arith.constant 1.280000e+02 : f32
    %797 = vector.broadcast %cst_272 : f32 to vector<16x1xf32>
    %798 = arith.divf %796, %797 : vector<16x1xf32>
    %799 = vector.broadcast %798 : vector<16x1xf32> to vector<16x128xf32>
    %800 = arith.subf %790, %799 : vector<16x128xf32>
    %801 = vector.broadcast %798 : vector<16x1xf32> to vector<16x128xf32>
    %802 = arith.subf %790, %801 : vector<16x128xf32>
    %803 = arith.mulf %800, %802 : vector<16x128xf32>
    %cst_273 = arith.constant dense<0.000000e+00> : vector<16xf32>
    %804 = vector.multi_reduction <add>, %803, %cst_273 [1] : vector<16x128xf32> to vector<16xf32>
    %805 = vector.shape_cast %804 : vector<16xf32> to vector<16x1xf32>
    %cst_274 = arith.constant 1.280000e+02 : f32
    %806 = vector.broadcast %cst_274 : f32 to vector<16x1xf32>
    %807 = arith.divf %805, %806 : vector<16x1xf32>
    %808 = vector.broadcast %798 : vector<16x1xf32> to vector<16x128xf32>
    %809 = arith.subf %790, %808 : vector<16x128xf32>
    %cst_275 = arith.constant 9.99999974E-6 : f32
    %810 = vector.broadcast %cst_275 : f32 to vector<16x1xf32>
    %811 = arith.addf %807, %810 : vector<16x1xf32>
    %812 = math.rsqrt %811 : vector<16x1xf32>
    %813 = vector.broadcast %812 : vector<16x1xf32> to vector<16x128xf32>
    %814 = arith.mulf %809, %813 : vector<16x128xf32>
    %815 = vector.broadcast %792 : vector<1x128xf32> to vector<16x128xf32>
    %816 = arith.mulf %814, %815 : vector<16x128xf32>
    %817 = vector.broadcast %794 : vector<1x128xf32> to vector<16x128xf32>
    %818 = arith.addf %816, %817 : vector<16x128xf32>
    %c3 = arith.constant 3 : index
    %c0_276 = arith.constant 0 : index
    %c0_277 = arith.constant 0 : index
    %819 = vector.load %arg3[%c3, %c0_276, %c0_277] : memref<4x128x384xbf16, #tpu.memory_space<vmem>>, vector<1x128x384xbf16>
    %820 = vector.shape_cast %819 : vector<1x128x384xbf16> to vector<128x384xbf16>
    %c3_278 = arith.constant 3 : index
    %c0_279 = arith.constant 0 : index
    %c0_280 = arith.constant 0 : index
    %821 = vector.load %arg4[%c3_278, %c0_279, %c0_280] : memref<4x1x384xf32, #tpu.memory_space<vmem>>, vector<1x1x384xf32>
    %822 = vector.shape_cast %821 : vector<1x1x384xf32> to vector<1x384xf32>
    %823 = arith.truncf %818 : vector<16x128xf32> to vector<16x128xbf16>
    %cst_281 = arith.constant dense<0.000000e+00> : vector<16x384xf32>
    %824 = tpu.matmul %823, %820, %cst_281 {dimension_numbers = #tpu.dot_dimension_numbers<[1], [0], [0], [1], [0, 0, 1, 1], [], []>} : vector<16x128xbf16>, vector<128x384xbf16>, vector<16x384xf32> -> vector<16x384xf32>
    %825 = vector.broadcast %822 : vector<1x384xf32> to vector<16x384xf32>
    %826 = arith.addf %824, %825 : vector<16x384xf32>
    %827 = vector.extract_strided_slice %826 {offsets = [0, 0], sizes = [8, 32], strides = [1, 1]} : vector<16x384xf32> to vector<8x32xf32>
    %cst_282 = arith.constant 0.176776692 : f32
    %828 = vector.broadcast %cst_282 : f32 to vector<8x32xf32>
    %829 = arith.mulf %827, %828 : vector<8x32xf32>
    %830 = arith.truncf %829 : vector<8x32xf32> to vector<8x32xbf16>
    %831 = vector.extract_strided_slice %826 {offsets = [0, 128], sizes = [8, 32], strides = [1, 1]} : vector<16x384xf32> to vector<8x32xf32>
    %832 = arith.truncf %831 : vector<8x32xf32> to vector<8x32xbf16>
    %833 = vector.extract_strided_slice %826 {offsets = [0, 256], sizes = [8, 32], strides = [1, 1]} : vector<16x384xf32> to vector<8x32xf32>
    %834 = arith.truncf %833 : vector<8x32xf32> to vector<8x32xbf16>
    %835 = tpu.transpose %832, [1, 0] : vector<8x32xbf16> -> vector<32x8xbf16>
    %cst_283 = arith.constant dense<0.000000e+00> : vector<8x8xf32>
    %836 = tpu.matmul %830, %835, %cst_283 {dimension_numbers = #tpu.dot_dimension_numbers<[1], [0], [0], [1], [0, 0, 1, 1], [], []>} : vector<8x32xbf16>, vector<32x8xbf16>, vector<8x8xf32> -> vector<8x8xf32>
    %cst_284 = arith.constant dense<0xFF800000> : vector<8xf32>
    %837 = vector.multi_reduction <maximumf>, %836, %cst_284 [1] : vector<8x8xf32> to vector<8xf32>
    %838 = vector.shape_cast %837 : vector<8xf32> to vector<8x1xf32>
    %839 = vector.broadcast %838 : vector<8x1xf32> to vector<8x8xf32>
    %840 = arith.subf %836, %839 : vector<8x8xf32>
    %841 = math.exp %840 : vector<8x8xf32>
    %cst_285 = arith.constant dense<0.000000e+00> : vector<8xf32>
    %842 = vector.multi_reduction <add>, %841, %cst_285 [1] : vector<8x8xf32> to vector<8xf32>
    %843 = vector.shape_cast %842 : vector<8xf32> to vector<8x1xf32>
    %844 = tpu.reciprocal %843 {approx = true} : vector<8x1xf32> -> vector<8x1xf32>
    %845 = vector.broadcast %844 : vector<8x1xf32> to vector<8x8xf32>
    %846 = arith.mulf %841, %845 : vector<8x8xf32>
    %847 = arith.truncf %846 : vector<8x8xf32> to vector<8x8xbf16>
    %cst_286 = arith.constant dense<0.000000e+00> : vector<8x32xf32>
    %848 = tpu.matmul %847, %834, %cst_286 {dimension_numbers = #tpu.dot_dimension_numbers<[1], [0], [0], [1], [0, 0, 1, 1], [], []>} : vector<8x8xbf16>, vector<8x32xbf16>, vector<8x32xf32> -> vector<8x32xf32>
    %849 = vector.extract_strided_slice %826 {offsets = [0, 32], sizes = [8, 32], strides = [1, 1]} : vector<16x384xf32> to vector<8x32xf32>
    %cst_287 = arith.constant 0.176776692 : f32
    %850 = vector.broadcast %cst_287 : f32 to vector<8x32xf32>
    %851 = arith.mulf %849, %850 : vector<8x32xf32>
    %852 = arith.truncf %851 : vector<8x32xf32> to vector<8x32xbf16>
    %853 = vector.extract_strided_slice %826 {offsets = [0, 160], sizes = [8, 32], strides = [1, 1]} : vector<16x384xf32> to vector<8x32xf32>
    %854 = arith.truncf %853 : vector<8x32xf32> to vector<8x32xbf16>
    %855 = vector.extract_strided_slice %826 {offsets = [0, 288], sizes = [8, 32], strides = [1, 1]} : vector<16x384xf32> to vector<8x32xf32>
    %856 = arith.truncf %855 : vector<8x32xf32> to vector<8x32xbf16>
    %857 = tpu.transpose %854, [1, 0] : vector<8x32xbf16> -> vector<32x8xbf16>
    %cst_288 = arith.constant dense<0.000000e+00> : vector<8x8xf32>
    %858 = tpu.matmul %852, %857, %cst_288 {dimension_numbers = #tpu.dot_dimension_numbers<[1], [0], [0], [1], [0, 0, 1, 1], [], []>} : vector<8x32xbf16>, vector<32x8xbf16>, vector<8x8xf32> -> vector<8x8xf32>
    %cst_289 = arith.constant dense<0xFF800000> : vector<8xf32>
    %859 = vector.multi_reduction <maximumf>, %858, %cst_289 [1] : vector<8x8xf32> to vector<8xf32>
    %860 = vector.shape_cast %859 : vector<8xf32> to vector<8x1xf32>
    %861 = vector.broadcast %860 : vector<8x1xf32> to vector<8x8xf32>
    %862 = arith.subf %858, %861 : vector<8x8xf32>
    %863 = math.exp %862 : vector<8x8xf32>
    %cst_290 = arith.constant dense<0.000000e+00> : vector<8xf32>
    %864 = vector.multi_reduction <add>, %863, %cst_290 [1] : vector<8x8xf32> to vector<8xf32>
    %865 = vector.shape_cast %864 : vector<8xf32> to vector<8x1xf32>
    %866 = tpu.reciprocal %865 {approx = true} : vector<8x1xf32> -> vector<8x1xf32>
    %867 = vector.broadcast %866 : vector<8x1xf32> to vector<8x8xf32>
    %868 = arith.mulf %863, %867 : vector<8x8xf32>
    %869 = arith.truncf %868 : vector<8x8xf32> to vector<8x8xbf16>
    %cst_291 = arith.constant dense<0.000000e+00> : vector<8x32xf32>
    %870 = tpu.matmul %869, %856, %cst_291 {dimension_numbers = #tpu.dot_dimension_numbers<[1], [0], [0], [1], [0, 0, 1, 1], [], []>} : vector<8x8xbf16>, vector<8x32xbf16>, vector<8x32xf32> -> vector<8x32xf32>
    %871 = vector.extract_strided_slice %826 {offsets = [0, 64], sizes = [8, 32], strides = [1, 1]} : vector<16x384xf32> to vector<8x32xf32>
    %cst_292 = arith.constant 0.176776692 : f32
    %872 = vector.broadcast %cst_292 : f32 to vector<8x32xf32>
    %873 = arith.mulf %871, %872 : vector<8x32xf32>
    %874 = arith.truncf %873 : vector<8x32xf32> to vector<8x32xbf16>
    %875 = vector.extract_strided_slice %826 {offsets = [0, 192], sizes = [8, 32], strides = [1, 1]} : vector<16x384xf32> to vector<8x32xf32>
    %876 = arith.truncf %875 : vector<8x32xf32> to vector<8x32xbf16>
    %877 = vector.extract_strided_slice %826 {offsets = [0, 320], sizes = [8, 32], strides = [1, 1]} : vector<16x384xf32> to vector<8x32xf32>
    %878 = arith.truncf %877 : vector<8x32xf32> to vector<8x32xbf16>
    %879 = tpu.transpose %876, [1, 0] : vector<8x32xbf16> -> vector<32x8xbf16>
    %cst_293 = arith.constant dense<0.000000e+00> : vector<8x8xf32>
    %880 = tpu.matmul %874, %879, %cst_293 {dimension_numbers = #tpu.dot_dimension_numbers<[1], [0], [0], [1], [0, 0, 1, 1], [], []>} : vector<8x32xbf16>, vector<32x8xbf16>, vector<8x8xf32> -> vector<8x8xf32>
    %cst_294 = arith.constant dense<0xFF800000> : vector<8xf32>
    %881 = vector.multi_reduction <maximumf>, %880, %cst_294 [1] : vector<8x8xf32> to vector<8xf32>
    %882 = vector.shape_cast %881 : vector<8xf32> to vector<8x1xf32>
    %883 = vector.broadcast %882 : vector<8x1xf32> to vector<8x8xf32>
    %884 = arith.subf %880, %883 : vector<8x8xf32>
    %885 = math.exp %884 : vector<8x8xf32>
    %cst_295 = arith.constant dense<0.000000e+00> : vector<8xf32>
    %886 = vector.multi_reduction <add>, %885, %cst_295 [1] : vector<8x8xf32> to vector<8xf32>
    %887 = vector.shape_cast %886 : vector<8xf32> to vector<8x1xf32>
    %888 = tpu.reciprocal %887 {approx = true} : vector<8x1xf32> -> vector<8x1xf32>
    %889 = vector.broadcast %888 : vector<8x1xf32> to vector<8x8xf32>
    %890 = arith.mulf %885, %889 : vector<8x8xf32>
    %891 = arith.truncf %890 : vector<8x8xf32> to vector<8x8xbf16>
    %cst_296 = arith.constant dense<0.000000e+00> : vector<8x32xf32>
    %892 = tpu.matmul %891, %878, %cst_296 {dimension_numbers = #tpu.dot_dimension_numbers<[1], [0], [0], [1], [0, 0, 1, 1], [], []>} : vector<8x8xbf16>, vector<8x32xbf16>, vector<8x32xf32> -> vector<8x32xf32>
    %893 = vector.extract_strided_slice %826 {offsets = [0, 96], sizes = [8, 32], strides = [1, 1]} : vector<16x384xf32> to vector<8x32xf32>
    %cst_297 = arith.constant 0.176776692 : f32
    %894 = vector.broadcast %cst_297 : f32 to vector<8x32xf32>
    %895 = arith.mulf %893, %894 : vector<8x32xf32>
    %896 = arith.truncf %895 : vector<8x32xf32> to vector<8x32xbf16>
    %897 = vector.extract_strided_slice %826 {offsets = [0, 224], sizes = [8, 32], strides = [1, 1]} : vector<16x384xf32> to vector<8x32xf32>
    %898 = arith.truncf %897 : vector<8x32xf32> to vector<8x32xbf16>
    %899 = vector.extract_strided_slice %826 {offsets = [0, 352], sizes = [8, 32], strides = [1, 1]} : vector<16x384xf32> to vector<8x32xf32>
    %900 = arith.truncf %899 : vector<8x32xf32> to vector<8x32xbf16>
    %901 = tpu.transpose %898, [1, 0] : vector<8x32xbf16> -> vector<32x8xbf16>
    %cst_298 = arith.constant dense<0.000000e+00> : vector<8x8xf32>
    %902 = tpu.matmul %896, %901, %cst_298 {dimension_numbers = #tpu.dot_dimension_numbers<[1], [0], [0], [1], [0, 0, 1, 1], [], []>} : vector<8x32xbf16>, vector<32x8xbf16>, vector<8x8xf32> -> vector<8x8xf32>
    %cst_299 = arith.constant dense<0xFF800000> : vector<8xf32>
    %903 = vector.multi_reduction <maximumf>, %902, %cst_299 [1] : vector<8x8xf32> to vector<8xf32>
    %904 = vector.shape_cast %903 : vector<8xf32> to vector<8x1xf32>
    %905 = vector.broadcast %904 : vector<8x1xf32> to vector<8x8xf32>
    %906 = arith.subf %902, %905 : vector<8x8xf32>
    %907 = math.exp %906 : vector<8x8xf32>
    %cst_300 = arith.constant dense<0.000000e+00> : vector<8xf32>
    %908 = vector.multi_reduction <add>, %907, %cst_300 [1] : vector<8x8xf32> to vector<8xf32>
    %909 = vector.shape_cast %908 : vector<8xf32> to vector<8x1xf32>
    %910 = tpu.reciprocal %909 {approx = true} : vector<8x1xf32> -> vector<8x1xf32>
    %911 = vector.broadcast %910 : vector<8x1xf32> to vector<8x8xf32>
    %912 = arith.mulf %907, %911 : vector<8x8xf32>
    %913 = arith.truncf %912 : vector<8x8xf32> to vector<8x8xbf16>
    %cst_301 = arith.constant dense<0.000000e+00> : vector<8x32xf32>
    %914 = tpu.matmul %913, %900, %cst_301 {dimension_numbers = #tpu.dot_dimension_numbers<[1], [0], [0], [1], [0, 0, 1, 1], [], []>} : vector<8x8xbf16>, vector<8x32xbf16>, vector<8x32xf32> -> vector<8x32xf32>
    %915 = tpu.concatenate %848, %870, %892, %914 in 1 : vector<8x32xf32>, vector<8x32xf32>, vector<8x32xf32>, vector<8x32xf32> -> vector<8x128xf32>
    %916 = vector.extract_strided_slice %826 {offsets = [8, 0], sizes = [8, 32], strides = [1, 1]} : vector<16x384xf32> to vector<8x32xf32>
    %cst_302 = arith.constant 0.176776692 : f32
    %917 = vector.broadcast %cst_302 : f32 to vector<8x32xf32>
    %918 = arith.mulf %916, %917 : vector<8x32xf32>
    %919 = arith.truncf %918 : vector<8x32xf32> to vector<8x32xbf16>
    %920 = vector.extract_strided_slice %826 {offsets = [8, 128], sizes = [8, 32], strides = [1, 1]} : vector<16x384xf32> to vector<8x32xf32>
    %921 = arith.truncf %920 : vector<8x32xf32> to vector<8x32xbf16>
    %922 = vector.extract_strided_slice %826 {offsets = [8, 256], sizes = [8, 32], strides = [1, 1]} : vector<16x384xf32> to vector<8x32xf32>
    %923 = arith.truncf %922 : vector<8x32xf32> to vector<8x32xbf16>
    %924 = tpu.transpose %921, [1, 0] : vector<8x32xbf16> -> vector<32x8xbf16>
    %cst_303 = arith.constant dense<0.000000e+00> : vector<8x8xf32>
    %925 = tpu.matmul %919, %924, %cst_303 {dimension_numbers = #tpu.dot_dimension_numbers<[1], [0], [0], [1], [0, 0, 1, 1], [], []>} : vector<8x32xbf16>, vector<32x8xbf16>, vector<8x8xf32> -> vector<8x8xf32>
    %cst_304 = arith.constant dense<0xFF800000> : vector<8xf32>
    %926 = vector.multi_reduction <maximumf>, %925, %cst_304 [1] : vector<8x8xf32> to vector<8xf32>
    %927 = vector.shape_cast %926 : vector<8xf32> to vector<8x1xf32>
    %928 = vector.broadcast %927 : vector<8x1xf32> to vector<8x8xf32>
    %929 = arith.subf %925, %928 : vector<8x8xf32>
    %930 = math.exp %929 : vector<8x8xf32>
    %cst_305 = arith.constant dense<0.000000e+00> : vector<8xf32>
    %931 = vector.multi_reduction <add>, %930, %cst_305 [1] : vector<8x8xf32> to vector<8xf32>
    %932 = vector.shape_cast %931 : vector<8xf32> to vector<8x1xf32>
    %933 = tpu.reciprocal %932 {approx = true} : vector<8x1xf32> -> vector<8x1xf32>
    %934 = vector.broadcast %933 : vector<8x1xf32> to vector<8x8xf32>
    %935 = arith.mulf %930, %934 : vector<8x8xf32>
    %936 = arith.truncf %935 : vector<8x8xf32> to vector<8x8xbf16>
    %cst_306 = arith.constant dense<0.000000e+00> : vector<8x32xf32>
    %937 = tpu.matmul %936, %923, %cst_306 {dimension_numbers = #tpu.dot_dimension_numbers<[1], [0], [0], [1], [0, 0, 1, 1], [], []>} : vector<8x8xbf16>, vector<8x32xbf16>, vector<8x32xf32> -> vector<8x32xf32>
    %938 = vector.extract_strided_slice %826 {offsets = [8, 32], sizes = [8, 32], strides = [1, 1]} : vector<16x384xf32> to vector<8x32xf32>
    %cst_307 = arith.constant 0.176776692 : f32
    %939 = vector.broadcast %cst_307 : f32 to vector<8x32xf32>
    %940 = arith.mulf %938, %939 : vector<8x32xf32>
    %941 = arith.truncf %940 : vector<8x32xf32> to vector<8x32xbf16>
    %942 = vector.extract_strided_slice %826 {offsets = [8, 160], sizes = [8, 32], strides = [1, 1]} : vector<16x384xf32> to vector<8x32xf32>
    %943 = arith.truncf %942 : vector<8x32xf32> to vector<8x32xbf16>
    %944 = vector.extract_strided_slice %826 {offsets = [8, 288], sizes = [8, 32], strides = [1, 1]} : vector<16x384xf32> to vector<8x32xf32>
    %945 = arith.truncf %944 : vector<8x32xf32> to vector<8x32xbf16>
    %946 = tpu.transpose %943, [1, 0] : vector<8x32xbf16> -> vector<32x8xbf16>
    %cst_308 = arith.constant dense<0.000000e+00> : vector<8x8xf32>
    %947 = tpu.matmul %941, %946, %cst_308 {dimension_numbers = #tpu.dot_dimension_numbers<[1], [0], [0], [1], [0, 0, 1, 1], [], []>} : vector<8x32xbf16>, vector<32x8xbf16>, vector<8x8xf32> -> vector<8x8xf32>
    %cst_309 = arith.constant dense<0xFF800000> : vector<8xf32>
    %948 = vector.multi_reduction <maximumf>, %947, %cst_309 [1] : vector<8x8xf32> to vector<8xf32>
    %949 = vector.shape_cast %948 : vector<8xf32> to vector<8x1xf32>
    %950 = vector.broadcast %949 : vector<8x1xf32> to vector<8x8xf32>
    %951 = arith.subf %947, %950 : vector<8x8xf32>
    %952 = math.exp %951 : vector<8x8xf32>
    %cst_310 = arith.constant dense<0.000000e+00> : vector<8xf32>
    %953 = vector.multi_reduction <add>, %952, %cst_310 [1] : vector<8x8xf32> to vector<8xf32>
    %954 = vector.shape_cast %953 : vector<8xf32> to vector<8x1xf32>
    %955 = tpu.reciprocal %954 {approx = true} : vector<8x1xf32> -> vector<8x1xf32>
    %956 = vector.broadcast %955 : vector<8x1xf32> to vector<8x8xf32>
    %957 = arith.mulf %952, %956 : vector<8x8xf32>
    %958 = arith.truncf %957 : vector<8x8xf32> to vector<8x8xbf16>
    %cst_311 = arith.constant dense<0.000000e+00> : vector<8x32xf32>
    %959 = tpu.matmul %958, %945, %cst_311 {dimension_numbers = #tpu.dot_dimension_numbers<[1], [0], [0], [1], [0, 0, 1, 1], [], []>} : vector<8x8xbf16>, vector<8x32xbf16>, vector<8x32xf32> -> vector<8x32xf32>
    %960 = vector.extract_strided_slice %826 {offsets = [8, 64], sizes = [8, 32], strides = [1, 1]} : vector<16x384xf32> to vector<8x32xf32>
    %cst_312 = arith.constant 0.176776692 : f32
    %961 = vector.broadcast %cst_312 : f32 to vector<8x32xf32>
    %962 = arith.mulf %960, %961 : vector<8x32xf32>
    %963 = arith.truncf %962 : vector<8x32xf32> to vector<8x32xbf16>
    %964 = vector.extract_strided_slice %826 {offsets = [8, 192], sizes = [8, 32], strides = [1, 1]} : vector<16x384xf32> to vector<8x32xf32>
    %965 = arith.truncf %964 : vector<8x32xf32> to vector<8x32xbf16>
    %966 = vector.extract_strided_slice %826 {offsets = [8, 320], sizes = [8, 32], strides = [1, 1]} : vector<16x384xf32> to vector<8x32xf32>
    %967 = arith.truncf %966 : vector<8x32xf32> to vector<8x32xbf16>
    %968 = tpu.transpose %965, [1, 0] : vector<8x32xbf16> -> vector<32x8xbf16>
    %cst_313 = arith.constant dense<0.000000e+00> : vector<8x8xf32>
    %969 = tpu.matmul %963, %968, %cst_313 {dimension_numbers = #tpu.dot_dimension_numbers<[1], [0], [0], [1], [0, 0, 1, 1], [], []>} : vector<8x32xbf16>, vector<32x8xbf16>, vector<8x8xf32> -> vector<8x8xf32>
    %cst_314 = arith.constant dense<0xFF800000> : vector<8xf32>
    %970 = vector.multi_reduction <maximumf>, %969, %cst_314 [1] : vector<8x8xf32> to vector<8xf32>
    %971 = vector.shape_cast %970 : vector<8xf32> to vector<8x1xf32>
    %972 = vector.broadcast %971 : vector<8x1xf32> to vector<8x8xf32>
    %973 = arith.subf %969, %972 : vector<8x8xf32>
    %974 = math.exp %973 : vector<8x8xf32>
    %cst_315 = arith.constant dense<0.000000e+00> : vector<8xf32>
    %975 = vector.multi_reduction <add>, %974, %cst_315 [1] : vector<8x8xf32> to vector<8xf32>
    %976 = vector.shape_cast %975 : vector<8xf32> to vector<8x1xf32>
    %977 = tpu.reciprocal %976 {approx = true} : vector<8x1xf32> -> vector<8x1xf32>
    %978 = vector.broadcast %977 : vector<8x1xf32> to vector<8x8xf32>
    %979 = arith.mulf %974, %978 : vector<8x8xf32>
    %980 = arith.truncf %979 : vector<8x8xf32> to vector<8x8xbf16>
    %cst_316 = arith.constant dense<0.000000e+00> : vector<8x32xf32>
    %981 = tpu.matmul %980, %967, %cst_316 {dimension_numbers = #tpu.dot_dimension_numbers<[1], [0], [0], [1], [0, 0, 1, 1], [], []>} : vector<8x8xbf16>, vector<8x32xbf16>, vector<8x32xf32> -> vector<8x32xf32>
    %982 = vector.extract_strided_slice %826 {offsets = [8, 96], sizes = [8, 32], strides = [1, 1]} : vector<16x384xf32> to vector<8x32xf32>
    %cst_317 = arith.constant 0.176776692 : f32
    %983 = vector.broadcast %cst_317 : f32 to vector<8x32xf32>
    %984 = arith.mulf %982, %983 : vector<8x32xf32>
    %985 = arith.truncf %984 : vector<8x32xf32> to vector<8x32xbf16>
    %986 = vector.extract_strided_slice %826 {offsets = [8, 224], sizes = [8, 32], strides = [1, 1]} : vector<16x384xf32> to vector<8x32xf32>
    %987 = arith.truncf %986 : vector<8x32xf32> to vector<8x32xbf16>
    %988 = vector.extract_strided_slice %826 {offsets = [8, 352], sizes = [8, 32], strides = [1, 1]} : vector<16x384xf32> to vector<8x32xf32>
    %989 = arith.truncf %988 : vector<8x32xf32> to vector<8x32xbf16>
    %990 = tpu.transpose %987, [1, 0] : vector<8x32xbf16> -> vector<32x8xbf16>
    %cst_318 = arith.constant dense<0.000000e+00> : vector<8x8xf32>
    %991 = tpu.matmul %985, %990, %cst_318 {dimension_numbers = #tpu.dot_dimension_numbers<[1], [0], [0], [1], [0, 0, 1, 1], [], []>} : vector<8x32xbf16>, vector<32x8xbf16>, vector<8x8xf32> -> vector<8x8xf32>
    %cst_319 = arith.constant dense<0xFF800000> : vector<8xf32>
    %992 = vector.multi_reduction <maximumf>, %991, %cst_319 [1] : vector<8x8xf32> to vector<8xf32>
    %993 = vector.shape_cast %992 : vector<8xf32> to vector<8x1xf32>
    %994 = vector.broadcast %993 : vector<8x1xf32> to vector<8x8xf32>
    %995 = arith.subf %991, %994 : vector<8x8xf32>
    %996 = math.exp %995 : vector<8x8xf32>
    %cst_320 = arith.constant dense<0.000000e+00> : vector<8xf32>
    %997 = vector.multi_reduction <add>, %996, %cst_320 [1] : vector<8x8xf32> to vector<8xf32>
    %998 = vector.shape_cast %997 : vector<8xf32> to vector<8x1xf32>
    %999 = tpu.reciprocal %998 {approx = true} : vector<8x1xf32> -> vector<8x1xf32>
    %1000 = vector.broadcast %999 : vector<8x1xf32> to vector<8x8xf32>
    %1001 = arith.mulf %996, %1000 : vector<8x8xf32>
    %1002 = arith.truncf %1001 : vector<8x8xf32> to vector<8x8xbf16>
    %cst_321 = arith.constant dense<0.000000e+00> : vector<8x32xf32>
    %1003 = tpu.matmul %1002, %989, %cst_321 {dimension_numbers = #tpu.dot_dimension_numbers<[1], [0], [0], [1], [0, 0, 1, 1], [], []>} : vector<8x8xbf16>, vector<8x32xbf16>, vector<8x32xf32> -> vector<8x32xf32>
    %1004 = tpu.concatenate %937, %959, %981, %1003 in 1 : vector<8x32xf32>, vector<8x32xf32>, vector<8x32xf32>, vector<8x32xf32> -> vector<8x128xf32>
    %1005 = tpu.concatenate %915, %1004 in 0 : vector<8x128xf32>, vector<8x128xf32> -> vector<16x128xf32>
    %c3_322 = arith.constant 3 : index
    %c0_323 = arith.constant 0 : index
    %c0_324 = arith.constant 0 : index
    %1006 = vector.load %arg5[%c3_322, %c0_323, %c0_324] : memref<4x128x128xbf16, #tpu.memory_space<vmem>>, vector<1x128x128xbf16>
    %1007 = vector.shape_cast %1006 : vector<1x128x128xbf16> to vector<128x128xbf16>
    %c3_325 = arith.constant 3 : index
    %c0_326 = arith.constant 0 : index
    %c0_327 = arith.constant 0 : index
    %1008 = vector.load %arg6[%c3_325, %c0_326, %c0_327] : memref<4x1x128xf32, #tpu.memory_space<vmem>>, vector<1x1x128xf32>
    %1009 = vector.shape_cast %1008 : vector<1x1x128xf32> to vector<1x128xf32>
    %1010 = arith.truncf %1005 : vector<16x128xf32> to vector<16x128xbf16>
    %cst_328 = arith.constant dense<0.000000e+00> : vector<16x128xf32>
    %1011 = tpu.matmul %1010, %1007, %cst_328 {dimension_numbers = #tpu.dot_dimension_numbers<[1], [0], [0], [1], [0, 0, 1, 1], [], []>} : vector<16x128xbf16>, vector<128x128xbf16>, vector<16x128xf32> -> vector<16x128xf32>
    %1012 = vector.broadcast %1009 : vector<1x128xf32> to vector<16x128xf32>
    %1013 = arith.addf %1011, %1012 : vector<16x128xf32>
    %1014 = arith.addf %818, %1013 : vector<16x128xf32>
    %c3_329 = arith.constant 3 : index
    %c0_330 = arith.constant 0 : index
    %c0_331 = arith.constant 0 : index
    %1015 = vector.load %arg7[%c3_329, %c0_330, %c0_331] : memref<4x1x128xf32, #tpu.memory_space<vmem>>, vector<1x1x128xf32>
    %1016 = vector.shape_cast %1015 : vector<1x1x128xf32> to vector<1x128xf32>
    %c3_332 = arith.constant 3 : index
    %c0_333 = arith.constant 0 : index
    %c0_334 = arith.constant 0 : index
    %1017 = vector.load %arg8[%c3_332, %c0_333, %c0_334] : memref<4x1x128xf32, #tpu.memory_space<vmem>>, vector<1x1x128xf32>
    %1018 = vector.shape_cast %1017 : vector<1x1x128xf32> to vector<1x128xf32>
    %cst_335 = arith.constant dense<0.000000e+00> : vector<16xf32>
    %1019 = vector.multi_reduction <add>, %1014, %cst_335 [1] : vector<16x128xf32> to vector<16xf32>
    %1020 = vector.shape_cast %1019 : vector<16xf32> to vector<16x1xf32>
    %cst_336 = arith.constant 1.280000e+02 : f32
    %1021 = vector.broadcast %cst_336 : f32 to vector<16x1xf32>
    %1022 = arith.divf %1020, %1021 : vector<16x1xf32>
    %1023 = vector.broadcast %1022 : vector<16x1xf32> to vector<16x128xf32>
    %1024 = arith.subf %1014, %1023 : vector<16x128xf32>
    %1025 = vector.broadcast %1022 : vector<16x1xf32> to vector<16x128xf32>
    %1026 = arith.subf %1014, %1025 : vector<16x128xf32>
    %1027 = arith.mulf %1024, %1026 : vector<16x128xf32>
    %cst_337 = arith.constant dense<0.000000e+00> : vector<16xf32>
    %1028 = vector.multi_reduction <add>, %1027, %cst_337 [1] : vector<16x128xf32> to vector<16xf32>
    %1029 = vector.shape_cast %1028 : vector<16xf32> to vector<16x1xf32>
    %cst_338 = arith.constant 1.280000e+02 : f32
    %1030 = vector.broadcast %cst_338 : f32 to vector<16x1xf32>
    %1031 = arith.divf %1029, %1030 : vector<16x1xf32>
    %1032 = vector.broadcast %1022 : vector<16x1xf32> to vector<16x128xf32>
    %1033 = arith.subf %1014, %1032 : vector<16x128xf32>
    %cst_339 = arith.constant 9.99999974E-6 : f32
    %1034 = vector.broadcast %cst_339 : f32 to vector<16x1xf32>
    %1035 = arith.addf %1031, %1034 : vector<16x1xf32>
    %1036 = math.rsqrt %1035 : vector<16x1xf32>
    %1037 = vector.broadcast %1036 : vector<16x1xf32> to vector<16x128xf32>
    %1038 = arith.mulf %1033, %1037 : vector<16x128xf32>
    %1039 = vector.broadcast %1016 : vector<1x128xf32> to vector<16x128xf32>
    %1040 = arith.mulf %1038, %1039 : vector<16x128xf32>
    %1041 = vector.broadcast %1018 : vector<1x128xf32> to vector<16x128xf32>
    %1042 = arith.addf %1040, %1041 : vector<16x128xf32>
    %c3_340 = arith.constant 3 : index
    %c0_341 = arith.constant 0 : index
    %c0_342 = arith.constant 0 : index
    %1043 = vector.load %arg9[%c3_340, %c0_341, %c0_342] : memref<4x128x512xbf16, #tpu.memory_space<vmem>>, vector<1x128x512xbf16>
    %1044 = vector.shape_cast %1043 : vector<1x128x512xbf16> to vector<128x512xbf16>
    %c3_343 = arith.constant 3 : index
    %c0_344 = arith.constant 0 : index
    %c0_345 = arith.constant 0 : index
    %1045 = vector.load %arg10[%c3_343, %c0_344, %c0_345] : memref<4x1x512xf32, #tpu.memory_space<vmem>>, vector<1x1x512xf32>
    %1046 = vector.shape_cast %1045 : vector<1x1x512xf32> to vector<1x512xf32>
    %1047 = arith.truncf %1042 : vector<16x128xf32> to vector<16x128xbf16>
    %cst_346 = arith.constant dense<0.000000e+00> : vector<16x512xf32>
    %1048 = tpu.matmul %1047, %1044, %cst_346 {dimension_numbers = #tpu.dot_dimension_numbers<[1], [0], [0], [1], [0, 0, 1, 1], [], []>} : vector<16x128xbf16>, vector<128x512xbf16>, vector<16x512xf32> -> vector<16x512xf32>
    %1049 = vector.broadcast %1046 : vector<1x512xf32> to vector<16x512xf32>
    %1050 = arith.addf %1048, %1049 : vector<16x512xf32>
    %cst_347 = arith.constant 0.000000e+00 : f32
    %1051 = vector.broadcast %cst_347 : f32 to vector<16x512xf32>
    %1052 = arith.maximumf %1050, %1051 : vector<16x512xf32>
    %c3_348 = arith.constant 3 : index
    %c0_349 = arith.constant 0 : index
    %c0_350 = arith.constant 0 : index
    %1053 = vector.load %arg11[%c3_348, %c0_349, %c0_350] : memref<4x512x128xbf16, #tpu.memory_space<vmem>>, vector<1x512x128xbf16>
    %1054 = vector.shape_cast %1053 : vector<1x512x128xbf16> to vector<512x128xbf16>
    %c3_351 = arith.constant 3 : index
    %c0_352 = arith.constant 0 : index
    %c0_353 = arith.constant 0 : index
    %1055 = vector.load %arg12[%c3_351, %c0_352, %c0_353] : memref<4x1x128xf32, #tpu.memory_space<vmem>>, vector<1x1x128xf32>
    %1056 = vector.shape_cast %1055 : vector<1x1x128xf32> to vector<1x128xf32>
    %1057 = arith.truncf %1052 : vector<16x512xf32> to vector<16x512xbf16>
    %cst_354 = arith.constant dense<0.000000e+00> : vector<16x128xf32>
    %1058 = tpu.matmul %1057, %1054, %cst_354 {dimension_numbers = #tpu.dot_dimension_numbers<[1], [0], [0], [1], [0, 0, 1, 1], [], []>} : vector<16x512xbf16>, vector<512x128xbf16>, vector<16x128xf32> -> vector<16x128xf32>
    %1059 = vector.broadcast %1056 : vector<1x128xf32> to vector<16x128xf32>
    %1060 = arith.addf %1058, %1059 : vector<16x128xf32>
    %1061 = arith.addf %1042, %1060 : vector<16x128xf32>
    %c3_355 = arith.constant 3 : index
    %c0_356 = arith.constant 0 : index
    %c0_357 = arith.constant 0 : index
    %1062 = vector.load %arg13[%c3_355, %c0_356, %c0_357] : memref<4x1x128xf32, #tpu.memory_space<vmem>>, vector<1x1x128xf32>
    %1063 = vector.shape_cast %1062 : vector<1x1x128xf32> to vector<1x128xf32>
    %c3_358 = arith.constant 3 : index
    %c0_359 = arith.constant 0 : index
    %c0_360 = arith.constant 0 : index
    %1064 = vector.load %arg14[%c3_358, %c0_359, %c0_360] : memref<4x1x128xf32, #tpu.memory_space<vmem>>, vector<1x1x128xf32>
    %1065 = vector.shape_cast %1064 : vector<1x1x128xf32> to vector<1x128xf32>
    %cst_361 = arith.constant dense<0.000000e+00> : vector<16xf32>
    %1066 = vector.multi_reduction <add>, %1061, %cst_361 [1] : vector<16x128xf32> to vector<16xf32>
    %1067 = vector.shape_cast %1066 : vector<16xf32> to vector<16x1xf32>
    %cst_362 = arith.constant 1.280000e+02 : f32
    %1068 = vector.broadcast %cst_362 : f32 to vector<16x1xf32>
    %1069 = arith.divf %1067, %1068 : vector<16x1xf32>
    %1070 = vector.broadcast %1069 : vector<16x1xf32> to vector<16x128xf32>
    %1071 = arith.subf %1061, %1070 : vector<16x128xf32>
    %1072 = vector.broadcast %1069 : vector<16x1xf32> to vector<16x128xf32>
    %1073 = arith.subf %1061, %1072 : vector<16x128xf32>
    %1074 = arith.mulf %1071, %1073 : vector<16x128xf32>
    %cst_363 = arith.constant dense<0.000000e+00> : vector<16xf32>
    %1075 = vector.multi_reduction <add>, %1074, %cst_363 [1] : vector<16x128xf32> to vector<16xf32>
    %1076 = vector.shape_cast %1075 : vector<16xf32> to vector<16x1xf32>
    %cst_364 = arith.constant 1.280000e+02 : f32
    %1077 = vector.broadcast %cst_364 : f32 to vector<16x1xf32>
    %1078 = arith.divf %1076, %1077 : vector<16x1xf32>
    %1079 = vector.broadcast %1069 : vector<16x1xf32> to vector<16x128xf32>
    %1080 = arith.subf %1061, %1079 : vector<16x128xf32>
    %cst_365 = arith.constant 9.99999974E-6 : f32
    %1081 = vector.broadcast %cst_365 : f32 to vector<16x1xf32>
    %1082 = arith.addf %1078, %1081 : vector<16x1xf32>
    %1083 = math.rsqrt %1082 : vector<16x1xf32>
    %1084 = vector.broadcast %1083 : vector<16x1xf32> to vector<16x128xf32>
    %1085 = arith.mulf %1080, %1084 : vector<16x128xf32>
    %1086 = vector.broadcast %1063 : vector<1x128xf32> to vector<16x128xf32>
    %1087 = arith.mulf %1085, %1086 : vector<16x128xf32>
    %1088 = vector.broadcast %1065 : vector<1x128xf32> to vector<16x128xf32>
    %1089 = arith.addf %1087, %1088 : vector<16x128xf32>
    %1090 = tpu.iota {dimensions = array<i32: 0>} : vector<2x16xi32>
    %1091 = tpu.iota {dimensions = array<i32: 1>} : vector<2x16xi32>
    %c8_i32 = arith.constant 8 : i32
    %1092 = vector.broadcast %c8_i32 : i32 to vector<2x16xi32>
    %1093 = arith.muli %1090, %1092 : vector<2x16xi32>
    %1094 = arith.cmpi sge, %1091, %1093 : vector<2x16xi32>
    %c1_i32 = arith.constant 1 : i32
    %1095 = vector.broadcast %c1_i32 : i32 to vector<2x16xi32>
    %1096 = arith.addi %1090, %1095 : vector<2x16xi32>
    %c8_i32_366 = arith.constant 8 : i32
    %1097 = vector.broadcast %c8_i32_366 : i32 to vector<2x16xi32>
    %1098 = arith.muli %1096, %1097 : vector<2x16xi32>
    %1099 = arith.cmpi slt, %1091, %1098 : vector<2x16xi32>
    %1100 = arith.andi %1094, %1099 : vector<2x16xi1>
    %cst_367 = arith.constant 1.250000e-01 : f32
    %cst_368 = arith.constant 0.000000e+00 : f32
    %1101 = vector.broadcast %cst_367 : f32 to vector<2x16xf32>
    %1102 = vector.broadcast %cst_368 : f32 to vector<2x16xf32>
    %1103 = arith.select %1100, %1101, %1102 : vector<2x16xi1>, vector<2x16xf32>
    %1104 = arith.truncf %1103 : vector<2x16xf32> to vector<2x16xbf16>
    %1105 = arith.truncf %1089 : vector<16x128xf32> to vector<16x128xbf16>
    %cst_369 = arith.constant dense<0.000000e+00> : vector<2x128xf32>
    %1106 = tpu.matmul %1104, %1105, %cst_369 {dimension_numbers = #tpu.dot_dimension_numbers<[1], [0], [0], [1], [0, 0, 1, 1], [], []>} : vector<2x16xbf16>, vector<16x128xbf16>, vector<2x128xf32> -> vector<2x128xf32>
    %c0_370 = arith.constant 0 : index
    %c0_371 = arith.constant 0 : index
    %1107 = vector.load %arg15[%c0_370, %c0_371] : memref<128x10xbf16, #tpu.memory_space<vmem>>, vector<128x10xbf16>
    %c0_372 = arith.constant 0 : index
    %c0_373 = arith.constant 0 : index
    %1108 = vector.load %arg16[%c0_372, %c0_373] : memref<1x10xf32, #tpu.memory_space<vmem>>, vector<1x10xf32>
    %1109 = arith.truncf %1106 : vector<2x128xf32> to vector<2x128xbf16>
    %cst_374 = arith.constant dense<0.000000e+00> : vector<2x10xf32>
    %1110 = tpu.matmul %1109, %1107, %cst_374 {dimension_numbers = #tpu.dot_dimension_numbers<[1], [0], [0], [1], [0, 0, 1, 1], [], []>} : vector<2x128xbf16>, vector<128x10xbf16>, vector<2x10xf32> -> vector<2x10xf32>
    %1111 = vector.broadcast %1108 : vector<1x10xf32> to vector<2x10xf32>
    %1112 = arith.addf %1110, %1111 : vector<2x10xf32>
    %c0_375 = arith.constant 0 : index
    %c0_376 = arith.constant 0 : index
    %1113 = vector.load %arg17[%c0_375, %c0_376] : memref<2x10xf32, #tpu.memory_space<vmem>>, vector<2x10xf32>
    tpu.vector_store %arg17[%c0_375, %c0_376], %1112 {strides = array<i32>} : memref<2x10xf32, #tpu.memory_space<vmem>>, vector<2x10xf32>,
    return
  }
}

</mosaic_0001>

<llo_original>
// kernel: tiny_conformer_forward.1
$region0: #{tiny_conformer_forward.1}
  #allocation0 [shape = 'u32[]', space=smem, size = 0x4, offset = 0x4, fixed_abs, tag = 'smem constant byte address 0x4 - core index']
  #allocation1 [shape = 'u32[144,128]{1,0:T(1,128)}', space=vmem, size = 0x12000, scoped, tag = 'internal scratch']
  %s0 = inlined_call_operand.vmem [shape: bf16[16,64], index: 0, kind: input, shape index: {}]
  %s1 = inlined_call_operand.vmem [shape: bf16[64,128], index: 1, kind: input, shape index: {}]
  %s2 = inlined_call_operand.vmem [shape: f32[1,128], index: 2, kind: input, shape index: {}]
  %s3 = inlined_call_operand.hbm [shape: bf16[4,128,384], index: 3, kind: input, shape index: {}]
  %s4 = inlined_call_operand.vmem [shape: f32[4,1,384], index: 4, kind: input, shape index: {}]
  %s5 = inlined_call_operand.hbm [shape: bf16[4,128,128], index: 5, kind: input, shape index: {}]
  %s6 = inlined_call_operand.vmem [shape: f32[4,1,128], index: 6, kind: input, shape index: {}]
  %s7 = inlined_call_operand.vmem [shape: f32[4,1,128], index: 7, kind: input, shape index: {}]
  %s8 = inlined_call_operand.vmem [shape: f32[4,1,128], index: 8, kind: input, shape index: {}]
  %s9 = inlined_call_operand.hbm [shape: bf16[4,128,512], index: 9, kind: input, shape index: {}]
  %s10 = inlined_call_operand.vmem [shape: f32[4,1,512], index: 10, kind: input, shape index: {}]
  %s11 = inlined_call_operand.hbm [shape: bf16[4,512,128], index: 11, kind: input, shape index: {}]
  %s12 = inlined_call_operand.vmem [shape: f32[4,1,128], index: 12, kind: input, shape index: {}]
  %s13 = inlined_call_operand.vmem [shape: f32[4,1,128], index: 13, kind: input, shape index: {}]
  %s14 = inlined_call_operand.vmem [shape: f32[4,1,128], index: 14, kind: input, shape index: {}]
  %s15 = inlined_call_operand.vmem [shape: bf16[128,10], index: 15, kind: input, shape index: {}]
  %s16 = inlined_call_operand.vmem [shape: f32[1,10], index: 16, kind: input, shape index: {}]
  %s17 = inlined_call_operand.hbm [shape: f32[2,10], index: 17, kind: output, shape index: {}]
  %s18 = sld [smem:[#allocation0]]
  $region94: #{tiny_conformer_forward.1} parent=0
    _
  %s20 = ssub.s32 1, %s18
  %s21 = scalar_select 0, %s20, %s18
  $region1: #{tiny_conformer_forward.1} parent=0
    #allocation2 [shape = 'u8[393216]{0}', space=vmem, size = 0x60000, scoped, tag = 'input window, operand 3, single buffered']
    #allocation3 [shape = 's32[1]{0}', space=sflag, size = 0x4, scoped, tag = 'scoped memory for tiny_conformer_forward.1']
    #allocation4 [shape = 's32[1]{0}', space=sflag, size = 0x4, scoped, tag = 'scoped memory for tiny_conformer_forward.1']
    #allocation5 [shape = 'u8[131072]{0}', space=vmem, size = 0x20000, scoped, tag = 'input window, operand 5, single buffered']
    #allocation6 [shape = 's32[1]{0}', space=sflag, size = 0x4, scoped, tag = 'scoped memory for tiny_conformer_forward.1']
    #allocation7 [shape = 'u8[524288]{0}', space=vmem, size = 0x80000, scoped, tag = 'input window, operand 9, single buffered']
    #allocation8 [shape = 'u8[524288]{0}', space=vmem, size = 0x80000, scoped, tag = 'input window, operand 11, single buffered']
    #allocation9 [shape = 's32[1]{0}', space=sflag, size = 0x4, scoped, tag = 'scoped memory for tiny_conformer_forward.1']
    #allocation10 [shape = 'u8[1024]{0}', space=vmem, size = 0x400, scoped, tag = 'output window, operand 0, single buffered']
    %22 = vsyncpa [#allocation3], 0
    %23 = vsyncpa [#allocation6], 0
    %24 = vsyncpa [#allocation9], 0
    %25 = vsyncpa [#allocation4], 0
    // Predicated region
    $region2: #{tiny_conformer_forward.1} parent=1 // pred_check
      _
    $region3: #{tiny_conformer_forward.1} parent=1 // pred_check_branch
      %27 = sbr.rel (0) target = $region5
    $region4: #{tiny_conformer_forward.1} parent=1 // pred_region
      _
    $region5: #{tiny_conformer_forward.1} parent=1 // pred_fallthru
      _
    // Predicated region
    $region6: #{tiny_conformer_forward.1} parent=1 // pred_check
      _
    $region7: #{tiny_conformer_forward.1} parent=1 // pred_check_branch
      %29 = sbr.rel (0) target = $region9
    $region8: #{tiny_conformer_forward.1} parent=1 // pred_region
      _
    $region9: #{tiny_conformer_forward.1} parent=1 // pred_fallthru
      _
    // Predicated region
    $region10: #{tiny_conformer_forward.1} parent=1 // pred_check
      _
    $region11: #{tiny_conformer_forward.1} parent=1 // pred_check_branch
      %31 = sbr.rel (0) target = $region13
    $region12: #{tiny_conformer_forward.1} parent=1 // pred_region
      _
    $region13: #{tiny_conformer_forward.1} parent=1 // pred_fallthru
      _
    // Predicated region
    $region14: #{tiny_conformer_forward.1} parent=1 // pred_check
      _
    $region15: #{tiny_conformer_forward.1} parent=1 // pred_check_branch
      %33 = sbr.rel (0) target = $region17
    $region16: #{tiny_conformer_forward.1} parent=1 // pred_region
      %s35 = ssub.s32 12288, 12288
      %36 = vsyncadd [#allocation3], %s35
      %s37 = sshll.u32 [#allocation2], 4
      %s38 = int_to_ptr.vmem [resolvable:$true] %s37
      %43 = dma.hbm_to_vmem [thread:$0]  %s3, 12288, %s38, [#allocation3], 192, 192, 12
    $region17: #{tiny_conformer_forward.1} parent=1 // pred_fallthru
      _
    // Predicated region
    $region18: #{tiny_conformer_forward.1} parent=1 // pred_check
      _
    $region19: #{tiny_conformer_forward.1} parent=1 // pred_check_branch
      %45 = sbr.rel (0) target = $region21
    $region20: #{tiny_conformer_forward.1} parent=1 // pred_region
      _
    $region21: #{tiny_conformer_forward.1} parent=1 // pred_fallthru
      _
    // Predicated region
    $region22: #{tiny_conformer_forward.1} parent=1 // pred_check
      _
    $region23: #{tiny_conformer_forward.1} parent=1 // pred_check_branch
      %47 = sbr.rel (0) target = $region25
    $region24: #{tiny_conformer_forward.1} parent=1 // pred_region
      %s49 = ssub.s32 4096, 4096
      %50 = vsyncadd [#allocation6], %s49
      %s51 = sshll.u32 [#allocation5], 4
      %s52 = int_to_ptr.vmem [resolvable:$true] %s51
      %57 = dma.hbm_to_vmem [thread:$0]  %s5, 4096, %s52, [#allocation6], 64, 64, 4
    $region25: #{tiny_conformer_forward.1} parent=1 // pred_fallthru
      _
    // Predicated region
    $region26: #{tiny_conformer_forward.1} parent=1 // pred_check
      _
    $region27: #{tiny_conformer_forward.1} parent=1 // pred_check_branch
      %59 = sbr.rel (0) target = $region29
    $region28: #{tiny_conformer_forward.1} parent=1 // pred_region
      _
    $region29: #{tiny_conformer_forward.1} parent=1 // pred_fallthru
      _
    // Predicated region
    $region30: #{tiny_conformer_forward.1} parent=1 // pred_check
      _
    $region31: #{tiny_conformer_forward.1} parent=1 // pred_check_branch
      %61 = sbr.rel (0) target = $region33
    $region32: #{tiny_conformer_forward.1} parent=1 // pred_region
      _
    $region33: #{tiny_conformer_forward.1} parent=1 // pred_fallthru
      _
    // Predicated region
    $region34: #{tiny_conformer_forward.1} parent=1 // pred_check
      _
    $region35: #{tiny_conformer_forward.1} parent=1 // pred_check_branch
      %63 = sbr.rel (0) target = $region37
    $region36: #{tiny_conformer_forward.1} parent=1 // pred_region
      _
    $region37: #{tiny_conformer_forward.1} parent=1 // pred_fallthru
      _
    // Predicated region
    $region38: #{tiny_conformer_forward.1} parent=1 // pred_check
      _
    $region39: #{tiny_conformer_forward.1} parent=1 // pred_check_branch
      %65 = sbr.rel (0) target = $region41
    $region40: #{tiny_conformer_forward.1} parent=1 // pred_region
      %s67 = ssub.s32 16384, 16384
      %68 = vsyncadd [#allocation6], %s67
      %s69 = sshll.u32 [#allocation7], 4
      %s70 = int_to_ptr.vmem [resolvable:$true] %s69
      %75 = dma.hbm_to_vmem [thread:$0]  %s9, 16384, %s70, [#allocation6], 256, 256, 16
    $region41: #{tiny_conformer_forward.1} parent=1 // pred_fallthru
      _
    // Predicated region
    $region42: #{tiny_conformer_forward.1} parent=1 // pred_check
      _
    $region43: #{tiny_conformer_forward.1} parent=1 // pred_check_branch
      %77 = sbr.rel (0) target = $region45
    $region44: #{tiny_conformer_forward.1} parent=1 // pred_region
      _
    $region45: #{tiny_conformer_forward.1} parent=1 // pred_fallthru
      _
    // Predicated region
    $region46: #{tiny_conformer_forward.1} parent=1 // pred_check
      _
    $region47: #{tiny_conformer_forward.1} parent=1 // pred_check_branch
      %79 = sbr.rel (0) target = $region49
    $region48: #{tiny_conformer_forward.1} parent=1 // pred_region
      %s81 = ssub.s32 16384, 16384
      %82 = vsyncadd [#allocation9], %s81
      %s83 = sshll.u32 [#allocation8], 4
      %s84 = int_to_ptr.vmem [resolvable:$true] %s83
      %89 = dma.hbm_to_vmem [thread:$0]  %s11, 16384, %s84, [#allocation9], 64, 64, 4
    $region49: #{tiny_conformer_forward.1} parent=1 // pred_fallthru
      _
    // Predicated region
    $region50: #{tiny_conformer_forward.1} parent=1 // pred_check
      _
    $region51: #{tiny_conformer_forward.1} parent=1 // pred_check_branch
      %91 = sbr.rel (0) target = $region53
    $region52: #{tiny_conformer_forward.1} parent=1 // pred_region
      _
    $region53: #{tiny_conformer_forward.1} parent=1 // pred_fallthru
      _
    // Predicated region
    $region54: #{tiny_conformer_forward.1} parent=1 // pred_check
      _
    $region55: #{tiny_conformer_forward.1} parent=1 // pred_check_branch
      %93 = sbr.rel (0) target = $region57
    $region56: #{tiny_conformer_forward.1} parent=1 // pred_region
      _
    $region57: #{tiny_conformer_forward.1} parent=1 // pred_fallthru
      _
    // Predicated region
    $region58: #{tiny_conformer_forward.1} parent=1 // pred_check
      _
    $region59: #{tiny_conformer_forward.1} parent=1 // pred_check_branch
      %95 = sbr.rel (0) target = $region61
    $region60: #{tiny_conformer_forward.1} parent=1 // pred_region
      _
    $region61: #{tiny_conformer_forward.1} parent=1 // pred_fallthru
      _
    // Predicated region
    $region62: #{tiny_conformer_forward.1} parent=1 // pred_check
      _
    $region63: #{tiny_conformer_forward.1} parent=1 // pred_check_branch
      %97 = sbr.rel (0) target = $region65
    $region64: #{tiny_conformer_forward.1} parent=1 // pred_region
      _
    $region65: #{tiny_conformer_forward.1} parent=1 // pred_fallthru
      _
    // Predicated region
    $region66: #{tiny_conformer_forward.1} parent=1 // pred_check
      _
    $region67: #{tiny_conformer_forward.1} parent=1 // pred_check_branch
      %99 = sbr.rel (0) target = $region69
    $region68: #{tiny_conformer_forward.1} parent=1 // pred_region
      _
    $region69: #{tiny_conformer_forward.1} parent=1 // pred_fallthru
      _
    // Predicated region
    $region70: #{tiny_conformer_forward.1} parent=1 // pred_check
      _
    $region71: #{tiny_conformer_forward.1} parent=1 // pred_check_branch
      %101 = sbr.rel (0) target = $region73
    $region72: #{tiny_conformer_forward.1} parent=1 // pred_region
      %102 = dma.done [#allocation3], 12288
    $region73: #{tiny_conformer_forward.1} parent=1 // pred_fallthru
      _
    // Predicated region
    $region74: #{tiny_conformer_forward.1} parent=1 // pred_check
      _
    $region75: #{tiny_conformer_forward.1} parent=1 // pred_check_branch
      %104 = sbr.rel (0) target = $region77
    $region76: #{tiny_conformer_forward.1} parent=1 // pred_region
      %105 = dma.done [#allocation6], 4096
    $region77: #{tiny_conformer_forward.1} parent=1 // pred_fallthru
      _
    // Predicated region
    $region78: #{tiny_conformer_forward.1} parent=1 // pred_check
      _
    $region79: #{tiny_conformer_forward.1} parent=1 // pred_check_branch
      %107 = sbr.rel (0) target = $region81
    $region80: #{tiny_conformer_forward.1} parent=1 // pred_region
      %108 = dma.done [#allocation6], 16384
    $region81: #{tiny_conformer_forward.1} parent=1 // pred_fallthru
      _
    // Predicated region
    $region82: #{tiny_conformer_forward.1} parent=1 // pred_check
      _
    $region83: #{tiny_conformer_forward.1} parent=1 // pred_check_branch
      %110 = sbr.rel (0) target = $region85
    $region84: #{tiny_conformer_forward.1} parent=1 // pred_region
      %111 = dma.done [#allocation9], 16384
    $region85: #{tiny_conformer_forward.1} parent=1 // pred_fallthru
      _
    %v113 = vld [vmem:[%s0] sm:$0xf]
    %v114 = vld [vmem:[%s0 + $0x4] sm:$0xf]
    %v115 = vld [vmem:[%s1] sm:$0xf]
    %v116 = vld [vmem:[%s1 + $0x4] sm:$0xf]
    %v117 = vld [vmem:[%s1 + $0x8] sm:$0xf]
    %v118 = vld [vmem:[%s1 + $0xc] sm:$0xf]
    %v119 = vld [vmem:[%s1 + $0x10] sm:$0xf]
    %v120 = vld [vmem:[%s1 + $0x14] sm:$0xf]
    %v121 = vld [vmem:[%s1 + $0x18] sm:$0xf]
    %v122 = vld [vmem:[%s1 + $0x1c] sm:$0xf]
    %v123 = vld [vmem:[%s2] sm:$0x1]
    %v125 = vlaneseq
    %v126 = vshrl.u32 %v125, 7
    %v127 = vsub.s32 0, %v126
    %v128 = vrot.slane %v123, %v127
    %v132 = vunpack.c.l.b16 %v113
    %v133 = vunpack.c.l.b16 %v114
    %v134 = vpack.c.b16 %v133, %v132
    %v143 = vunpack.c.l.b16 %v115
    %v144 = vunpack.c.l.b16 %v116
    %v145 = vunpack.c.l.b16 %v117
    %v146 = vunpack.c.l.b16 %v118
    %v147 = vunpack.c.l.b16 %v119
    %v148 = vunpack.c.l.b16 %v120
    %v149 = vunpack.c.l.b16 %v121
    %v150 = vunpack.c.l.b16 %v122
    %v151 = vpack.c.b16 %v144, %v143
    %v152 = vpack.c.b16 %v146, %v145
    %v153 = vpack.c.b16 %v148, %v147
    %v154 = vpack.c.b16 %v150, %v149
    %vm159 = vcmask 523264
    %v161 = vsel %vm159, %v134, 0
    %163 = vmatprep.subr.bf16.mxu0 0
    %164 = vmatpush1.bf16.msra.mxu0 %v151
    %165 = vmatprep.subr.bf16.mxu0 0
    %166 = vmatpush1.bf16.msra.mxu0 %v152
    %167 = vmatprep.subr.bf16.mxu0 0
    %168 = vmatpush1.bf16.msra.mxu0 %v153
    %169 = vmatprep.subr.bf16.mxu0 0
    %170 = vmatpush1.bf16.msra.mxu0 %v154
    %171 = vmatprep.subr.bf16.mxu0 0
    %172 = vmatpush1.bf16.msra.mxu0 0
    %173 = vmatprep.subr.bf16.mxu0 0
    %174 = vmatpush1.bf16.msra.mxu0 0
    %175 = vmatprep.subr.bf16.mxu0 0
    %176 = vmatpush1.bf16.msra.mxu0 0
    %177 = vmatprep.subr.bf16.mxu0 0
    %178 = vmatpush1.bf16.msra.mxu0 0
    %179 = vmatprep.subr.bf16.mxu0 0
    %180 = vmatpush1.bf16.msra.mxu0 0
    %181 = vmatprep.subr.bf16.mxu0 0
    %182 = vmatpush1.bf16.msra.mxu0 0
    %183 = vmatprep.subr.bf16.mxu0 0
    %184 = vmatpush1.bf16.msra.mxu0 0
    %185 = vmatprep.subr.bf16.mxu0 0
    %186 = vmatpush1.bf16.msra.mxu0 0
    %187 = vmatprep.subr.bf16.mxu0 0
    %188 = vmatpush1.bf16.msra.mxu0 0
    %189 = vmatprep.subr.bf16.mxu0 0
    %190 = vmatpush1.bf16.msra.mxu0 0
    %191 = vmatprep.subr.bf16.mxu0 0
    %192 = vmatpush1.bf16.msra.mxu0 0
    %193 = vmatprep.subr.bf16.mxu0 0
    %194 = vmatpush1.bf16.msra.mxu0 0
    %195 = vmatprep.mubr.bf16.mxu0 0
    %196 = vmatmul.mubr.bf16.gmra.mrb[0].mxu0 %v161
    %v197 = vpop.f32.mrb[0].mxu0
    %v198 = vadd.f32 %v128, %v197
    %v199 = vpop.f32.mrb[0].mxu0
    %v200 = vpop.f32.mrb[0].mxu0
    %v201 = vadd.f32 %v128, %v200
    %v202 = vpop.f32.mrb[0].mxu0
    %203 = vdwg.mxu0
    %v204 = vld [vmem:[#allocation2] sm:$0xff]
    %v205 = vld [vmem:[#allocation2 + $0x8] sm:$0xf]
    %v206 = vld [vmem:[#allocation2 + $0xc] sm:$0xff]
    %v207 = vld [vmem:[#allocation2 + $0x14] sm:$0xf]
    %v208 = vld [vmem:[#allocation2 + $0x18] sm:$0xff]
    %v209 = vld [vmem:[#allocation2 + $0x20] sm:$0xf]
    %v210 = vld [vmem:[#allocation2 + $0x24] sm:$0xff]
    %v211 = vld [vmem:[#allocation2 + $0x2c] sm:$0xf]
    %v212 = vld [vmem:[#allocation2 + $0x30] sm:$0xff]
    %v213 = vld [vmem:[#allocation2 + $0x38] sm:$0xf]
    %v214 = vld [vmem:[#allocation2 + $0x3c] sm:$0xff]
    %v215 = vld [vmem:[#allocation2 + $0x44] sm:$0xf]
    %v216 = vld [vmem:[#allocation2 + $0x48] sm:$0xff]
    %v217 = vld [vmem:[#allocation2 + $0x50] sm:$0xf]
    %v218 = vld [vmem:[#allocation2 + $0x54] sm:$0xff]
    %v219 = vld [vmem:[#allocation2 + $0x5c] sm:$0xf]
    %v220 = vld [vmem:[#allocation2 + $0x60] sm:$0xff]
    %v221 = vld [vmem:[#allocation2 + $0x68] sm:$0xf]
    %v222 = vld [vmem:[#allocation2 + $0x6c] sm:$0xff]
    %v223 = vld [vmem:[#allocation2 + $0x74] sm:$0xf]
    %v224 = vld [vmem:[#allocation2 + $0x78] sm:$0xff]
    %v225 = vld [vmem:[#allocation2 + $0x80] sm:$0xf]
    %v226 = vld [vmem:[#allocation2 + $0x84] sm:$0xff]
    %v227 = vld [vmem:[#allocation2 + $0x8c] sm:$0xf]
    %v228 = vld [vmem:[#allocation2 + $0x90] sm:$0xff]
    %v229 = vld [vmem:[#allocation2 + $0x98] sm:$0xf]
    %v230 = vld [vmem:[#allocation2 + $0x9c] sm:$0xff]
    %v231 = vld [vmem:[#allocation2 + $0xa4] sm:$0xf]
    %v232 = vld [vmem:[#allocation2 + $0xa8] sm:$0xff]
    %v233 = vld [vmem:[#allocation2 + $0xb0] sm:$0xf]
    %v234 = vld [vmem:[#allocation2 + $0xb4] sm:$0xff]
    %v235 = vld [vmem:[#allocation2 + $0xbc] sm:$0xf]
    %v236 = vld [vmem:[%s4] sm:$0x7]
    %v237 = vpack.c.bf16 %v201, %v198
    %v239 = vlaneseq
    %v240 = vshrl.u32 %v239, 7
    %v241 = vsub.s32 0, %v240
    %v242 = vrot.slane %v236, %v241
    %v243 = vlaneseq
    %v244 = vshrl.u32 %v243, 7
    %v245 = vsub.s32 1, %v244
    %v246 = vrot.slane %v236, %v245
    %v247 = vlaneseq
    %v248 = vshrl.u32 %v247, 7
    %v249 = vsub.s32 2, %v248
    %v250 = vrot.slane %v236, %v249
    %v286 = vunpack.c.l.b16 %v204
    %v287 = vunpack.c.h.b16 %v204
    %v288 = vunpack.c.l.b16 %v205
    %v289 = vunpack.c.l.b16 %v206
    %v290 = vunpack.c.h.b16 %v206
    %v291 = vunpack.c.l.b16 %v207
    %v292 = vunpack.c.l.b16 %v208
    %v293 = vunpack.c.h.b16 %v208
    %v294 = vunpack.c.l.b16 %v209
    %v295 = vunpack.c.l.b16 %v210
    %v296 = vunpack.c.h.b16 %v210
    %v297 = vunpack.c.l.b16 %v211
    %v298 = vunpack.c.l.b16 %v212
    %v299 = vunpack.c.h.b16 %v212
    %v300 = vunpack.c.l.b16 %v213
    %v301 = vunpack.c.l.b16 %v214
    %v302 = vunpack.c.h.b16 %v214
    %v303 = vunpack.c.l.b16 %v215
    %v304 = vunpack.c.l.b16 %v216
    %v305 = vunpack.c.h.b16 %v216
    %v306 = vunpack.c.l.b16 %v217
    %v307 = vunpack.c.l.b16 %v218
    %v308 = vunpack.c.h.b16 %v218
    %v309 = vunpack.c.l.b16 %v219
    %v310 = vunpack.c.l.b16 %v220
    %v311 = vunpack.c.h.b16 %v220
    %v312 = vunpack.c.l.b16 %v221
    %v313 = vunpack.c.l.b16 %v222
    %v314 = vunpack.c.h.b16 %v222
    %v315 = vunpack.c.l.b16 %v223
    %v316 = vunpack.c.l.b16 %v224
    %v317 = vunpack.c.h.b16 %v224
    %v318 = vunpack.c.l.b16 %v225
    %v319 = vunpack.c.l.b16 %v226
    %v320 = vunpack.c.h.b16 %v226
    %v321 = vunpack.c.l.b16 %v227
    %v322 = vunpack.c.l.b16 %v228
    %v323 = vunpack.c.h.b16 %v228
    %v324 = vunpack.c.l.b16 %v229
    %v325 = vunpack.c.l.b16 %v230
    %v326 = vunpack.c.h.b16 %v230
    %v327 = vunpack.c.l.b16 %v231
    %v328 = vunpack.c.l.b16 %v232
    %v329 = vunpack.c.h.b16 %v232
    %v330 = vunpack.c.l.b16 %v233
    %v331 = vunpack.c.l.b16 %v234
    %v332 = vunpack.c.h.b16 %v234
    %v333 = vunpack.c.l.b16 %v235
    %v334 = vpack.c.b16 %v289, %v286
    %v335 = vpack.c.b16 %v290, %v287
    %v336 = vpack.c.b16 %v291, %v288
    %v337 = vpack.c.b16 %v295, %v292
    %v338 = vpack.c.b16 %v296, %v293
    %v339 = vpack.c.b16 %v297, %v294
    %v340 = vpack.c.b16 %v301, %v298
    %v341 = vpack.c.b16 %v302, %v299
    %v342 = vpack.c.b16 %v303, %v300
    %v343 = vpack.c.b16 %v307, %v304
    %v344 = vpack.c.b16 %v308, %v305
    %v345 = vpack.c.b16 %v309, %v306
    %v346 = vpack.c.b16 %v313, %v310
    %v347 = vpack.c.b16 %v314, %v311
    %v348 = vpack.c.b16 %v315, %v312
    %v349 = vpack.c.b16 %v319, %v316
    %v350 = vpack.c.b16 %v320, %v317
    %v351 = vpack.c.b16 %v321, %v318
    %v352 = vpack.c.b16 %v325, %v322
    %v353 = vpack.c.b16 %v326, %v323
    %v354 = vpack.c.b16 %v327, %v324
    %v355 = vpack.c.b16 %v331, %v328
    %v356 = vpack.c.b16 %v332, %v329
    %v357 = vpack.c.b16 %v333, %v330
    %382 = vmatprep.subr.bf16.mxu0 %v335
    %383 = vmatpush1.bf16.msra.mxu0 %v334
    %384 = vmatprep.subr.bf16.mxu0 %v338
    %385 = vmatpush1.bf16.msra.mxu0 %v337
    %386 = vmatprep.subr.bf16.mxu0 %v341
    %387 = vmatpush1.bf16.msra.mxu0 %v340
    %388 = vmatprep.subr.bf16.mxu0 %v344
    %389 = vmatpush1.bf16.msra.mxu0 %v343
    %390 = vmatprep.subr.bf16.mxu0 %v347
    %391 = vmatpush1.bf16.msra.mxu0 %v346
    %392 = vmatprep.subr.bf16.mxu0 %v350
    %393 = vmatpush1.bf16.msra.mxu0 %v349
    %394 = vmatprep.subr.bf16.mxu0 %v353
    %395 = vmatpush1.bf16.msra.mxu0 %v352
    %396 = vmatprep.subr.bf16.mxu0 %v356
    %397 = vmatpush1.bf16.msra.mxu0 %v355
    %398 = vmatprep.subr.bf16.mxu0 0
    %399 = vmatpush1.bf16.msra.mxu0 0
    %400 = vmatprep.subr.bf16.mxu0 0
    %401 = vmatpush1.bf16.msra.mxu0 0
    %402 = vmatprep.subr.bf16.mxu0 0
    %403 = vmatpush1.bf16.msra.mxu0 0
    %404 = vmatprep.subr.bf16.mxu0 0
    %405 = vmatpush1.bf16.msra.mxu0 0
    %406 = vmatprep.subr.bf16.mxu0 0
    %407 = vmatpush1.bf16.msra.mxu0 0
    %408 = vmatprep.subr.bf16.mxu0 0
    %409 = vmatpush1.bf16.msra.mxu0 0
    %410 = vmatprep.subr.bf16.mxu0 0
    %411 = vmatpush1.bf16.msra.mxu0 0
    %412 = vmatprep.subr.bf16.mxu0 0
    %413 = vmatpush1.bf16.msra.mxu0 0
    %414 = vmatprep.mubr.bf16.mxu0 0
    %415 = vmatmul.mubr.bf16.gmra.mrb[0].mxu0 %v237
    %v416 = vpop.f32.mrb[0].mxu0
    %v417 = vadd.f32 %v242, %v416
    %v418 = vpop.f32.mrb[0].mxu0
    %v419 = vadd.f32 %v246, %v418
    %v420 = vpop.f32.mrb[0].mxu0
    %v421 = vadd.f32 %v242, %v420
    %v422 = vpop.f32.mrb[0].mxu0
    %v423 = vadd.f32 %v246, %v422
    %424 = vdwg.mxu0
    %425 = vmatprep.subr.bf16.mxu0 0
    %426 = vmatpush1.bf16.msra.mxu0 %v336
    %427 = vmatprep.subr.bf16.mxu0 0
    %428 = vmatpush1.bf16.msra.mxu0 %v339
    %429 = vmatprep.subr.bf16.mxu0 0
    %430 = vmatpush1.bf16.msra.mxu0 %v342
    %431 = vmatprep.subr.bf16.mxu0 0
    %432 = vmatpush1.bf16.msra.mxu0 %v345
    %433 = vmatprep.subr.bf16.mxu0 0
    %434 = vmatpush1.bf16.msra.mxu0 %v348
    %435 = vmatprep.subr.bf16.mxu0 0
    %436 = vmatpush1.bf16.msra.mxu0 %v351
    %437 = vmatprep.subr.bf16.mxu0 0
    %438 = vmatpush1.bf16.msra.mxu0 %v354
    %439 = vmatprep.subr.bf16.mxu0 0
    %440 = vmatpush1.bf16.msra.mxu0 %v357
    %441 = vmatprep.subr.bf16.mxu0 0
    %442 = vmatpush1.bf16.msra.mxu0 0
    %443 = vmatprep.subr.bf16.mxu0 0
    %444 = vmatpush1.bf16.msra.mxu0 0
    %445 = vmatprep.subr.bf16.mxu0 0
    %446 = vmatpush1.bf16.msra.mxu0 0
    %447 = vmatprep.subr.bf16.mxu0 0
    %448 = vmatpush1.bf16.msra.mxu0 0
    %449 = vmatprep.subr.bf16.mxu0 0
    %450 = vmatpush1.bf16.msra.mxu0 0
    %451 = vmatprep.subr.bf16.mxu0 0
    %452 = vmatpush1.bf16.msra.mxu0 0
    %453 = vmatprep.subr.bf16.mxu0 0
    %454 = vmatpush1.bf16.msra.mxu0 0
    %455 = vmatprep.subr.bf16.mxu0 0
    %456 = vmatpush1.bf16.msra.mxu0 0
    %457 = vmatprep.mubr.bf16.mxu0 0
    %458 = vmatmul.mubr.bf16.gmra.mrb[0].mxu0 %v237
    %v459 = vpop.f32.mrb[0].mxu0
    %v460 = vadd.f32 %v250, %v459
    %v461 = vpop.f32.mrb[0].mxu0
    %v462 = vpop.f32.mrb[0].mxu0
    %v463 = vadd.f32 %v250, %v462
    %v464 = vpop.f32.mrb[0].mxu0
    %465 = vdwg.mxu0
    %v466 = vmul.f32 %v417, 0.17677669
    %v467 = vpack.c.bf16 %v466, %v466
    %v468 = vpack.c.bf16 %v419, %v419
    %v469 = vpack.c.bf16 %v460, %v460
    %vm470 = vcmask 261120
    %v472 = vsel %vm470, %v467, 0
    %v475 = vsel %vm470, %v468, 0
    %477 = vmatprep.subr.bf16.mxu0 0
    %478 = vmatpush1.bf16.xpose.msra.mxu0 %v475
    %479 = vmatprep.subr.bf16.mxu0 0
    %480 = vmatpush1.bf16.xpose.msra.mxu0 0
    %481 = vmatprep.subr.bf16.mxu0 0
    %482 = vmatpush1.bf16.xpose.msra.mxu0 0
    %483 = vmatprep.subr.bf16.mxu0 0
    %484 = vmatpush1.bf16.xpose.msra.mxu0 0
    %485 = vmatprep.subr.bf16.mxu0 0
    %486 = vmatpush1.bf16.xpose.msra.mxu0 0
    %487 = vmatprep.subr.bf16.mxu0 0
    %488 = vmatpush1.bf16.xpose.msra.mxu0 0
    %489 = vmatprep.subr.bf16.mxu0 0
    %490 = vmatpush1.bf16.xpose.msra.mxu0 0
    %491 = vmatprep.subr.bf16.mxu0 0
    %492 = vmatpush1.bf16.xpose.msra.mxu0 0
    %493 = vmatprep.subr.bf16.mxu0 0
    %494 = vmatpush1.bf16.xpose.msra.mxu0 0
    %495 = vmatprep.subr.bf16.mxu0 0
    %496 = vmatpush1.bf16.xpose.msra.mxu0 0
    %497 = vmatprep.subr.bf16.mxu0 0
    %498 = vmatpush1.bf16.xpose.msra.mxu0 0
    %499 = vmatprep.subr.bf16.mxu0 0
    %500 = vmatpush1.bf16.xpose.msra.mxu0 0
    %501 = vmatprep.subr.bf16.mxu0 0
    %502 = vmatpush1.bf16.xpose.msra.mxu0 0
    %503 = vmatprep.subr.bf16.mxu0 0
    %504 = vmatpush1.bf16.xpose.msra.mxu0 0
    %505 = vmatprep.subr.bf16.mxu0 0
    %506 = vmatpush1.bf16.xpose.msra.mxu0 0
    %507 = vmatprep.subr.bf16.mxu0 0
    %508 = vmatpush1.bf16.xpose.msra.mxu0 0
    %509 = vmatprep.mubr.bf16.mxu0 0
    %510 = vmatmul.mubr.bf16.gmra.mrb[0].mxu0 %v472
    %v511 = vpop.f32.mrb[0].mxu0
    %v512 = vadd.f32 0.0, %v511
    %v513 = vpop.f32.mrb[0].mxu0
    %v514 = vpop.f32.mrb[0].mxu0
    %v515 = vpop.f32.mrb[0].mxu0
    %516 = vdwg.mxu0
    %vm517 = vcmask 64512
    %v518 = vsel %vm517, %v512, -inf
    %519 = vmax.xlane.f32.xlu0 %v518
    %v520 = vpop.xlane.xlu0 %519
    %v521 = vsub.f32 %v512, %v520
    %v522 = vmul.f32 %v521, 1.442695
    %v523 = vpow.pop %v522
    %v524 = vsel %vm517, %v523, 0.0
    %525 = vadd.xlane.f32.xlu0 %v524
    %v526 = vpop.xlane.xlu0 %525
    %v527 = vrcp.pop %v526
    %v528 = vmul.f32 %v523, %v527
    %v529 = vpack.c.bf16 %v528, %v528
    %v531 = vsel %vm517, %v529, 0
    %vm533 = vcmask 1043456
    %v535 = vsel %vm533, %v469, 0
    %537 = vmatprep.subr.bf16.mxu0 0
    %538 = vmatpush1.bf16.msra.mxu0 %v535
    %539 = vmatprep.subr.bf16.mxu0 0
    %540 = vmatpush1.bf16.msra.mxu0 0
    %541 = vmatprep.subr.bf16.mxu0 0
    %542 = vmatpush1.bf16.msra.mxu0 0
    %543 = vmatprep.subr.bf16.mxu0 0
    %544 = vmatpush1.bf16.msra.mxu0 0
    %545 = vmatprep.subr.bf16.mxu0 0
    %546 = vmatpush1.bf16.msra.mxu0 0
    %547 = vmatprep.subr.bf16.mxu0 0
    %548 = vmatpush1.bf16.msra.mxu0 0
    %549 = vmatprep.subr.bf16.mxu0 0
    %550 = vmatpush1.bf16.msra.mxu0 0
    %551 = vmatprep.subr.bf16.mxu0 0
    %552 = vmatpush1.bf16.msra.mxu0 0
    %553 = vmatprep.subr.bf16.mxu0 0
    %554 = vmatpush1.bf16.msra.mxu0 0
    %555 = vmatprep.subr.bf16.mxu0 0
    %556 = vmatpush1.bf16.msra.mxu0 0
    %557 = vmatprep.subr.bf16.mxu0 0
    %558 = vmatpush1.bf16.msra.mxu0 0
    %559 = vmatprep.subr.bf16.mxu0 0
    %560 = vmatpush1.bf16.msra.mxu0 0
    %561 = vmatprep.subr.bf16.mxu0 0
    %562 = vmatpush1.bf16.msra.mxu0 0
    %563 = vmatprep.subr.bf16.mxu0 0
    %564 = vmatpush1.bf16.msra.mxu0 0
    %565 = vmatprep.subr.bf16.mxu0 0
    %566 = vmatpush1.bf16.msra.mxu0 0
    %567 = vmatprep.subr.bf16.mxu0 0
    %568 = vmatpush1.bf16.msra.mxu0 0
    %569 = vmatprep.mubr.bf16.mxu0 0
    %570 = vmatmul.mubr.bf16.gmra.mrb[0].mxu0 %v531
    %v571 = vpop.f32.mrb[0].mxu0
    %v572 = vadd.f32 0.0, %v571
    %v573 = vpop.f32.mrb[0].mxu0
    %v574 = vpop.f32.mrb[0].mxu0
    %v575 = vpop.f32.mrb[0].mxu0
    %576 = vdwg.mxu0
    %578 = vrot.lane.b32.xlu0 %v467, 96
    %v579 = vpop.permute.xlu0 %578
    %581 = vrot.lane.b32.xlu0 %v468, 96
    %v582 = vpop.permute.xlu0 %581
    %v584 = vsel %vm470, %v579, 0
    %v587 = vsel %vm470, %v582, 0
    %589 = vmatprep.subr.bf16.mxu0 0
    %590 = vmatpush1.bf16.xpose.msra.mxu0 %v587
    %591 = vmatprep.subr.bf16.mxu0 0
    %592 = vmatpush1.bf16.xpose.msra.mxu0 0
    %593 = vmatprep.subr.bf16.mxu0 0
    %594 = vmatpush1.bf16.xpose.msra.mxu0 0
    %595 = vmatprep.subr.bf16.mxu0 0
    %596 = vmatpush1.bf16.xpose.msra.mxu0 0
    %597 = vmatprep.subr.bf16.mxu0 0
    %598 = vmatpush1.bf16.xpose.msra.mxu0 0
    %599 = vmatprep.subr.bf16.mxu0 0
    %600 = vmatpush1.bf16.xpose.msra.mxu0 0
    %601 = vmatprep.subr.bf16.mxu0 0
    %602 = vmatpush1.bf16.xpose.msra.mxu0 0
    %603 = vmatprep.subr.bf16.mxu0 0
    %604 = vmatpush1.bf16.xpose.msra.mxu0 0
    %605 = vmatprep.subr.bf16.mxu0 0
    %606 = vmatpush1.bf16.xpose.msra.mxu0 0
    %607 = vmatprep.subr.bf16.mxu0 0
    %608 = vmatpush1.bf16.xpose.msra.mxu0 0
    %609 = vmatprep.subr.bf16.mxu0 0
    %610 = vmatpush1.bf16.xpose.msra.mxu0 0
    %611 = vmatprep.subr.bf16.mxu0 0
    %612 = vmatpush1.bf16.xpose.msra.mxu0 0
    %613 = vmatprep.subr.bf16.mxu0 0
    %614 = vmatpush1.bf16.xpose.msra.mxu0 0
    %615 = vmatprep.subr.bf16.mxu0 0
    %616 = vmatpush1.bf16.xpose.msra.mxu0 0
    %617 = vmatprep.subr.bf16.mxu0 0
    %618 = vmatpush1.bf16.xpose.msra.mxu0 0
    %619 = vmatprep.subr.bf16.mxu0 0
    %620 = vmatpush1.bf16.xpose.msra.mxu0 0
    %621 = vmatprep.mubr.bf16.mxu0 0
    %622 = vmatmul.mubr.bf16.gmra.mrb[0].mxu0 %v584
    %v623 = vpop.f32.mrb[0].mxu0
    %v624 = vadd.f32 0.0, %v623
    %v625 = vpop.f32.mrb[0].mxu0
    %v626 = vpop.f32.mrb[0].mxu0
    %v627 = vpop.f32.mrb[0].mxu0
    %628 = vdwg.mxu0
    %v629 = vsel %vm517, %v624, -inf
    %630 = vmax.xlane.f32.xlu0 %v629
    %v631 = vpop.xlane.xlu0 %630
    %v632 = vsub.f32 %v624, %v631
    %v633 = vmul.f32 %v632, 1.442695
    %v634 = vpow.pop %v633
    %v635 = vsel %vm517, %v634, 0.0
    %636 = vadd.xlane.f32.xlu0 %v635
    %v637 = vpop.xlane.xlu0 %636
    %v638 = vrcp.pop %v637
    %v639 = vmul.f32 %v634, %v638
    %v640 = vpack.c.bf16 %v639, %v639
    %642 = vrot.lane.b32.xlu0 %v469, 96
    %v643 = vpop.permute.xlu0 %642
    %v645 = vsel %vm517, %v640, 0
    %v648 = vsel %vm533, %v643, 0
    %650 = vmatprep.subr.bf16.mxu0 0
    %651 = vmatpush1.bf16.msra.mxu0 %v648
    %652 = vmatprep.subr.bf16.mxu0 0
    %653 = vmatpush1.bf16.msra.mxu0 0
    %654 = vmatprep.subr.bf16.mxu0 0
    %655 = vmatpush1.bf16.msra.mxu0 0
    %656 = vmatprep.subr.bf16.mxu0 0
    %657 = vmatpush1.bf16.msra.mxu0 0
    %658 = vmatprep.subr.bf16.mxu0 0
    %659 = vmatpush1.bf16.msra.mxu0 0
    %660 = vmatprep.subr.bf16.mxu0 0
    %661 = vmatpush1.bf16.msra.mxu0 0
    %662 = vmatprep.subr.bf16.mxu0 0
    %663 = vmatpush1.bf16.msra.mxu0 0
    %664 = vmatprep.subr.bf16.mxu0 0
    %665 = vmatpush1.bf16.msra.mxu0 0
    %666 = vmatprep.subr.bf16.mxu0 0
    %667 = vmatpush1.bf16.msra.mxu0 0
    %668 = vmatprep.subr.bf16.mxu0 0
    %669 = vmatpush1.bf16.msra.mxu0 0
    %670 = vmatprep.subr.bf16.mxu0 0
    %671 = vmatpush1.bf16.msra.mxu0 0
    %672 = vmatprep.subr.bf16.mxu0 0
    %673 = vmatpush1.bf16.msra.mxu0 0
    %674 = vmatprep.subr.bf16.mxu0 0
    %675 = vmatpush1.bf16.msra.mxu0 0
    %676 = vmatprep.subr.bf16.mxu0 0
    %677 = vmatpush1.bf16.msra.mxu0 0
    %678 = vmatprep.subr.bf16.mxu0 0
    %679 = vmatpush1.bf16.msra.mxu0 0
    %680 = vmatprep.subr.bf16.mxu0 0
    %681 = vmatpush1.bf16.msra.mxu0 0
    %682 = vmatprep.mubr.bf16.mxu0 0
    %683 = vmatmul.mubr.bf16.gmra.mrb[0].mxu0 %v645
    %v684 = vpop.f32.mrb[0].mxu0
    %v685 = vadd.f32 0.0, %v684
    %v686 = vpop.f32.mrb[0].mxu0
    %v687 = vpop.f32.mrb[0].mxu0
    %v688 = vpop.f32.mrb[0].mxu0
    %689 = vdwg.mxu0
    %690 = vrot.lane.b32.xlu0 %v467, 64
    %v691 = vpop.permute.xlu0 %690
    %692 = vrot.lane.b32.xlu0 %v468, 64
    %v693 = vpop.permute.xlu0 %692
    %v695 = vsel %vm470, %v691, 0
    %v698 = vsel %vm470, %v693, 0
    %700 = vmatprep.subr.bf16.mxu0 0
    %701 = vmatpush1.bf16.xpose.msra.mxu0 %v698
    %702 = vmatprep.subr.bf16.mxu0 0
    %703 = vmatpush1.bf16.xpose.msra.mxu0 0
    %704 = vmatprep.subr.bf16.mxu0 0
    %705 = vmatpush1.bf16.xpose.msra.mxu0 0
    %706 = vmatprep.subr.bf16.mxu0 0
    %707 = vmatpush1.bf16.xpose.msra.mxu0 0
    %708 = vmatprep.subr.bf16.mxu0 0
    %709 = vmatpush1.bf16.xpose.msra.mxu0 0
    %710 = vmatprep.subr.bf16.mxu0 0
    %711 = vmatpush1.bf16.xpose.msra.mxu0 0
    %712 = vmatprep.subr.bf16.mxu0 0
    %713 = vmatpush1.bf16.xpose.msra.mxu0 0
    %714 = vmatprep.subr.bf16.mxu0 0
    %715 = vmatpush1.bf16.xpose.msra.mxu0 0
    %716 = vmatprep.subr.bf16.mxu0 0
    %717 = vmatpush1.bf16.xpose.msra.mxu0 0
    %718 = vmatprep.subr.bf16.mxu0 0
    %719 = vmatpush1.bf16.xpose.msra.mxu0 0
    %720 = vmatprep.subr.bf16.mxu0 0
    %721 = vmatpush1.bf16.xpose.msra.mxu0 0
    %722 = vmatprep.subr.bf16.mxu0 0
    %723 = vmatpush1.bf16.xpose.msra.mxu0 0
    %724 = vmatprep.subr.bf16.mxu0 0
    %725 = vmatpush1.bf16.xpose.msra.mxu0 0
    %726 = vmatprep.subr.bf16.mxu0 0
    %727 = vmatpush1.bf16.xpose.msra.mxu0 0
    %728 = vmatprep.subr.bf16.mxu0 0
    %729 = vmatpush1.bf16.xpose.msra.mxu0 0
    %730 = vmatprep.subr.bf16.mxu0 0
    %731 = vmatpush1.bf16.xpose.msra.mxu0 0
    %732 = vmatprep.mubr.bf16.mxu0 0
    %733 = vmatmul.mubr.bf16.gmra.mrb[0].mxu0 %v695
    %v734 = vpop.f32.mrb[0].mxu0
    %v735 = vadd.f32 0.0, %v734
    %v736 = vpop.f32.mrb[0].mxu0
    %v737 = vpop.f32.mrb[0].mxu0
    %v738 = vpop.f32.mrb[0].mxu0
    %739 = vdwg.mxu0
    %v740 = vsel %vm517, %v735, -inf
    %741 = vmax.xlane.f32.xlu0 %v740
    %v742 = vpop.xlane.xlu0 %741
    %v743 = vsub.f32 %v735, %v742
    %v744 = vmul.f32 %v743, 1.442695
    %v745 = vpow.pop %v744
    %v746 = vsel %vm517, %v745, 0.0
    %747 = vadd.xlane.f32.xlu0 %v746
    %v748 = vpop.xlane.xlu0 %747
    %v749 = vrcp.pop %v748
    %v750 = vmul.f32 %v745, %v749
    %v751 = vpack.c.bf16 %v750, %v750
    %752 = vrot.lane.b32.xlu0 %v469, 64
    %v753 = vpop.permute.xlu0 %752
    %v755 = vsel %vm517, %v751, 0
    %v758 = vsel %vm533, %v753, 0
    %760 = vmatprep.subr.bf16.mxu0 0
    %761 = vmatpush1.bf16.msra.mxu0 %v758
    %762 = vmatprep.subr.bf16.mxu0 0
    %763 = vmatpush1.bf16.msra.mxu0 0
    %764 = vmatprep.subr.bf16.mxu0 0
    %765 = vmatpush1.bf16.msra.mxu0 0
    %766 = vmatprep.subr.bf16.mxu0 0
    %767 = vmatpush1.bf16.msra.mxu0 0
    %768 = vmatprep.subr.bf16.mxu0 0
    %769 = vmatpush1.bf16.msra.mxu0 0
    %770 = vmatprep.subr.bf16.mxu0 0
    %771 = vmatpush1.bf16.msra.mxu0 0
    %772 = vmatprep.subr.bf16.mxu0 0
    %773 = vmatpush1.bf16.msra.mxu0 0
    %774 = vmatprep.subr.bf16.mxu0 0
    %775 = vmatpush1.bf16.msra.mxu0 0
    %776 = vmatprep.subr.bf16.mxu0 0
    %777 = vmatpush1.bf16.msra.mxu0 0
    %778 = vmatprep.subr.bf16.mxu0 0
    %779 = vmatpush1.bf16.msra.mxu0 0
    %780 = vmatprep.subr.bf16.mxu0 0
    %781 = vmatpush1.bf16.msra.mxu0 0
    %782 = vmatprep.subr.bf16.mxu0 0
    %783 = vmatpush1.bf16.msra.mxu0 0
    %784 = vmatprep.subr.bf16.mxu0 0
    %785 = vmatpush1.bf16.msra.mxu0 0
    %786 = vmatprep.subr.bf16.mxu0 0
    %787 = vmatpush1.bf16.msra.mxu0 0
    %788 = vmatprep.subr.bf16.mxu0 0
    %789 = vmatpush1.bf16.msra.mxu0 0
    %790 = vmatprep.subr.bf16.mxu0 0
    %791 = vmatpush1.bf16.msra.mxu0 0
    %792 = vmatprep.mubr.bf16.mxu0 0
    %793 = vmatmul.mubr.bf16.gmra.mrb[0].mxu0 %v755
    %v794 = vpop.f32.mrb[0].mxu0
    %v795 = vadd.f32 0.0, %v794
    %v796 = vpop.f32.mrb[0].mxu0
    %v797 = vpop.f32.mrb[0].mxu0
    %v798 = vpop.f32.mrb[0].mxu0
    %799 = vdwg.mxu0
    %800 = vrot.lane.b32.xlu0 %v467, 32
    %v801 = vpop.permute.xlu0 %800
    %802 = vrot.lane.b32.xlu0 %v468, 32
    %v803 = vpop.permute.xlu0 %802
    %v805 = vsel %vm470, %v801, 0
    %v808 = vsel %vm470, %v803, 0
    %810 = vmatprep.subr.bf16.mxu0 0
    %811 = vmatpush1.bf16.xpose.msra.mxu0 %v808
    %812 = vmatprep.subr.bf16.mxu0 0
    %813 = vmatpush1.bf16.xpose.msra.mxu0 0
    %814 = vmatprep.subr.bf16.mxu0 0
    %815 = vmatpush1.bf16.xpose.msra.mxu0 0
    %816 = vmatprep.subr.bf16.mxu0 0
    %817 = vmatpush1.bf16.xpose.msra.mxu0 0
    %818 = vmatprep.subr.bf16.mxu0 0
    %819 = vmatpush1.bf16.xpose.msra.mxu0 0
    %820 = vmatprep.subr.bf16.mxu0 0
    %821 = vmatpush1.bf16.xpose.msra.mxu0 0
    %822 = vmatprep.subr.bf16.mxu0 0
    %823 = vmatpush1.bf16.xpose.msra.mxu0 0
    %824 = vmatprep.subr.bf16.mxu0 0
    %825 = vmatpush1.bf16.xpose.msra.mxu0 0
    %826 = vmatprep.subr.bf16.mxu0 0
    %827 = vmatpush1.bf16.xpose.msra.mxu0 0
    %828 = vmatprep.subr.bf16.mxu0 0
    %829 = vmatpush1.bf16.xpose.msra.mxu0 0
    %830 = vmatprep.subr.bf16.mxu0 0
    %831 = vmatpush1.bf16.xpose.msra.mxu0 0
    %832 = vmatprep.subr.bf16.mxu0 0
    %833 = vmatpush1.bf16.xpose.msra.mxu0 0
    %834 = vmatprep.subr.bf16.mxu0 0
    %835 = vmatpush1.bf16.xpose.msra.mxu0 0
    %836 = vmatprep.subr.bf16.mxu0 0
    %837 = vmatpush1.bf16.xpose.msra.mxu0 0
    %838 = vmatprep.subr.bf16.mxu0 0
    %839 = vmatpush1.bf16.xpose.msra.mxu0 0
    %840 = vmatprep.subr.bf16.mxu0 0
    %841 = vmatpush1.bf16.xpose.msra.mxu0 0
    %842 = vmatprep.mubr.bf16.mxu0 0
    %843 = vmatmul.mubr.bf16.gmra.mrb[0].mxu0 %v805
    %v844 = vpop.f32.mrb[0].mxu0
    %v845 = vadd.f32 0.0, %v844
    %v846 = vpop.f32.mrb[0].mxu0
    %v847 = vpop.f32.mrb[0].mxu0
    %v848 = vpop.f32.mrb[0].mxu0
    %849 = vdwg.mxu0
    %v850 = vsel %vm517, %v845, -inf
    %851 = vmax.xlane.f32.xlu0 %v850
    %v852 = vpop.xlane.xlu0 %851
    %v853 = vsub.f32 %v845, %v852
    %v854 = vmul.f32 %v853, 1.442695
    %v855 = vpow.pop %v854
    %v856 = vsel %vm517, %v855, 0.0
    %857 = vadd.xlane.f32.xlu0 %v856
    %v858 = vpop.xlane.xlu0 %857
    %v859 = vrcp.pop %v858
    %v860 = vmul.f32 %v855, %v859
    %v861 = vpack.c.bf16 %v860, %v860
    %862 = vrot.lane.b32.xlu0 %v469, 32
    %v863 = vpop.permute.xlu0 %862
    %v865 = vsel %vm517, %v861, 0
    %v868 = vsel %vm533, %v863, 0
    %870 = vmatprep.subr.bf16.mxu0 0
    %871 = vmatpush1.bf16.msra.mxu0 %v868
    %872 = vmatprep.subr.bf16.mxu0 0
    %873 = vmatpush1.bf16.msra.mxu0 0
    %874 = vmatprep.subr.bf16.mxu0 0
    %875 = vmatpush1.bf16.msra.mxu0 0
    %876 = vmatprep.subr.bf16.mxu0 0
    %877 = vmatpush1.bf16.msra.mxu0 0
    %878 = vmatprep.subr.bf16.mxu0 0
    %879 = vmatpush1.bf16.msra.mxu0 0
    %880 = vmatprep.subr.bf16.mxu0 0
    %881 = vmatpush1.bf16.msra.mxu0 0
    %882 = vmatprep.subr.bf16.mxu0 0
    %883 = vmatpush1.bf16.msra.mxu0 0
    %884 = vmatprep.subr.bf16.mxu0 0
    %885 = vmatpush1.bf16.msra.mxu0 0
    %886 = vmatprep.subr.bf16.mxu0 0
    %887 = vmatpush1.bf16.msra.mxu0 0
    %888 = vmatprep.subr.bf16.mxu0 0
    %889 = vmatpush1.bf16.msra.mxu0 0
    %890 = vmatprep.subr.bf16.mxu0 0
    %891 = vmatpush1.bf16.msra.mxu0 0
    %892 = vmatprep.subr.bf16.mxu0 0
    %893 = vmatpush1.bf16.msra.mxu0 0
    %894 = vmatprep.subr.bf16.mxu0 0
    %895 = vmatpush1.bf16.msra.mxu0 0
    %896 = vmatprep.subr.bf16.mxu0 0
    %897 = vmatpush1.bf16.msra.mxu0 0
    %898 = vmatprep.subr.bf16.mxu0 0
    %899 = vmatpush1.bf16.msra.mxu0 0
    %900 = vmatprep.subr.bf16.mxu0 0
    %901 = vmatpush1.bf16.msra.mxu0 0
    %902 = vmatprep.mubr.bf16.mxu0 0
    %903 = vmatmul.mubr.bf16.gmra.mrb[0].mxu0 %v865
    %v904 = vpop.f32.mrb[0].mxu0
    %v905 = vadd.f32 0.0, %v904
    %v906 = vpop.f32.mrb[0].mxu0
    %v907 = vpop.f32.mrb[0].mxu0
    %v908 = vpop.f32.mrb[0].mxu0
    %909 = vdwg.mxu0
    %911 = vrot.lane.b32.xlu0 %v685, 32
    %v912 = vpop.permute.xlu0 %911
    %915 = vrot.lane.b32.xlu0 %v795, 64
    %v916 = vpop.permute.xlu0 %915
    %919 = vrot.lane.b32.xlu0 %v905, 96
    %v920 = vpop.permute.xlu0 %919
    %v922 = vsel %vm470, %v572, %v912
    %v923 = vsel %vm159, %v922, %v916
    %vm924 = vcmask 785408
    %v925 = vsel %vm924, %v923, %v920
    %v926 = vmul.f32 %v421, 0.17677669
    %v927 = vpack.c.bf16 %v926, %v926
    %v928 = vpack.c.bf16 %v423, %v423
    %v929 = vpack.c.bf16 %v463, %v463
    %v931 = vsel %vm470, %v927, 0
    %v934 = vsel %vm470, %v928, 0
    %936 = vmatprep.subr.bf16.mxu0 0
    %937 = vmatpush1.bf16.xpose.msra.mxu0 %v934
    %938 = vmatprep.subr.bf16.mxu0 0
    %939 = vmatpush1.bf16.xpose.msra.mxu0 0
    %940 = vmatprep.subr.bf16.mxu0 0
    %941 = vmatpush1.bf16.xpose.msra.mxu0 0
    %942 = vmatprep.subr.bf16.mxu0 0
    %943 = vmatpush1.bf16.xpose.msra.mxu0 0
    %944 = vmatprep.subr.bf16.mxu0 0
    %945 = vmatpush1.bf16.xpose.msra.mxu0 0
    %946 = vmatprep.subr.bf16.mxu0 0
    %947 = vmatpush1.bf16.xpose.msra.mxu0 0
    %948 = vmatprep.subr.bf16.mxu0 0
    %949 = vmatpush1.bf16.xpose.msra.mxu0 0
    %950 = vmatprep.subr.bf16.mxu0 0
    %951 = vmatpush1.bf16.xpose.msra.mxu0 0
    %952 = vmatprep.subr.bf16.mxu0 0
    %953 = vmatpush1.bf16.xpose.msra.mxu0 0
    %954 = vmatprep.subr.bf16.mxu0 0
    %955 = vmatpush1.bf16.xpose.msra.mxu0 0
    %956 = vmatprep.subr.bf16.mxu0 0
    %957 = vmatpush1.bf16.xpose.msra.mxu0 0
    %958 = vmatprep.subr.bf16.mxu0 0
    %959 = vmatpush1.bf16.xpose.msra.mxu0 0
    %960 = vmatprep.subr.bf16.mxu0 0
    %961 = vmatpush1.bf16.xpose.msra.mxu0 0
    %962 = vmatprep.subr.bf16.mxu0 0
    %963 = vmatpush1.bf16.xpose.msra.mxu0 0
    %964 = vmatprep.subr.bf16.mxu0 0
    %965 = vmatpush1.bf16.xpose.msra.mxu0 0
    %966 = vmatprep.subr.bf16.mxu0 0
    %967 = vmatpush1.bf16.xpose.msra.mxu0 0
    %968 = vmatprep.mubr.bf16.mxu0 0
    %969 = vmatmul.mubr.bf16.gmra.mrb[0].mxu0 %v931
    %v970 = vpop.f32.mrb[0].mxu0
    %v971 = vadd.f32 0.0, %v970
    %v972 = vpop.f32.mrb[0].mxu0
    %v973 = vpop.f32.mrb[0].mxu0
    %v974 = vpop.f32.mrb[0].mxu0
    %975 = vdwg.mxu0
    %v976 = vsel %vm517, %v971, -inf
    %977 = vmax.xlane.f32.xlu0 %v976
    %v978 = vpop.xlane.xlu0 %977
    %v979 = vsub.f32 %v971, %v978
    %v980 = vmul.f32 %v979, 1.442695
    %v981 = vpow.pop %v980
    %v982 = vsel %vm517, %v981, 0.0
    %983 = vadd.xlane.f32.xlu0 %v982
    %v984 = vpop.xlane.xlu0 %983
    %v985 = vrcp.pop %v984
    %v986 = vmul.f32 %v981, %v985
    %v987 = vpack.c.bf16 %v986, %v986
    %v989 = vsel %vm517, %v987, 0
    %v992 = vsel %vm533, %v929, 0
    %994 = vmatprep.subr.bf16.mxu0 0
    %995 = vmatpush1.bf16.msra.mxu0 %v992
    %996 = vmatprep.subr.bf16.mxu0 0
    %997 = vmatpush1.bf16.msra.mxu0 0
    %998 = vmatprep.subr.bf16.mxu0 0
    %999 = vmatpush1.bf16.msra.mxu0 0
    %1000 = vmatprep.subr.bf16.mxu0 0
    %1001 = vmatpush1.bf16.msra.mxu0 0
    %1002 = vmatprep.subr.bf16.mxu0 0
    %1003 = vmatpush1.bf16.msra.mxu0 0
    %1004 = vmatprep.subr.bf16.mxu0 0
    %1005 = vmatpush1.bf16.msra.mxu0 0
    %1006 = vmatprep.subr.bf16.mxu0 0
    %1007 = vmatpush1.bf16.msra.mxu0 0
    %1008 = vmatprep.subr.bf16.mxu0 0
    %1009 = vmatpush1.bf16.msra.mxu0 0
    %1010 = vmatprep.subr.bf16.mxu0 0
    %1011 = vmatpush1.bf16.msra.mxu0 0
    %1012 = vmatprep.subr.bf16.mxu0 0
    %1013 = vmatpush1.bf16.msra.mxu0 0
    %1014 = vmatprep.subr.bf16.mxu0 0
    %1015 = vmatpush1.bf16.msra.mxu0 0
    %1016 = vmatprep.subr.bf16.mxu0 0
    %1017 = vmatpush1.bf16.msra.mxu0 0
    %1018 = vmatprep.subr.bf16.mxu0 0
    %1019 = vmatpush1.bf16.msra.mxu0 0
    %1020 = vmatprep.subr.bf16.mxu0 0
    %1021 = vmatpush1.bf16.msra.mxu0 0
    %1022 = vmatprep.subr.bf16.mxu0 0
    %1023 = vmatpush1.bf16.msra.mxu0 0
    %1024 = vmatprep.subr.bf16.mxu0 0
    %1025 = vmatpush1.bf16.msra.mxu0 0
    %1026 = vmatprep.mubr.bf16.mxu0 0
    %1027 = vmatmul.mubr.bf16.gmra.mrb[0].mxu0 %v989
    %v1028 = vpop.f32.mrb[0].mxu0
    %v1029 = vadd.f32 0.0, %v1028
    %v1030 = vpop.f32.mrb[0].mxu0
    %v1031 = vpop.f32.mrb[0].mxu0
    %v1032 = vpop.f32.mrb[0].mxu0
    %1033 = vdwg.mxu0
    %1035 = vrot.lane.b32.xlu0 %v927, 96
    %v1036 = vpop.permute.xlu0 %1035
    %1038 = vrot.lane.b32.xlu0 %v928, 96
    %v1039 = vpop.permute.xlu0 %1038
    %v1041 = vsel %vm470, %v1036, 0
    %v1044 = vsel %vm470, %v1039, 0
    %1046 = vmatprep.subr.bf16.mxu0 0
    %1047 = vmatpush1.bf16.xpose.msra.mxu0 %v1044
    %1048 = vmatprep.subr.bf16.mxu0 0
    %1049 = vmatpush1.bf16.xpose.msra.mxu0 0
    %1050 = vmatprep.subr.bf16.mxu0 0
    %1051 = vmatpush1.bf16.xpose.msra.mxu0 0
    %1052 = vmatprep.subr.bf16.mxu0 0
    %1053 = vmatpush1.bf16.xpose.msra.mxu0 0
    %1054 = vmatprep.subr.bf16.mxu0 0
    %1055 = vmatpush1.bf16.xpose.msra.mxu0 0
    %1056 = vmatprep.subr.bf16.mxu0 0
    %1057 = vmatpush1.bf16.xpose.msra.mxu0 0
    %1058 = vmatprep.subr.bf16.mxu0 0
    %1059 = vmatpush1.bf16.xpose.msra.mxu0 0
    %1060 = vmatprep.subr.bf16.mxu0 0
    %1061 = vmatpush1.bf16.xpose.msra.mxu0 0
    %1062 = vmatprep.subr.bf16.mxu0 0
    %1063 = vmatpush1.bf16.xpose.msra.mxu0 0
    %1064 = vmatprep.subr.bf16.mxu0 0
    %1065 = vmatpush1.bf16.xpose.msra.mxu0 0
    %1066 = vmatprep.subr.bf16.mxu0 0
    %1067 = vmatpush1.bf16.xpose.msra.mxu0 0
    %1068 = vmatprep.subr.bf16.mxu0 0
    %1069 = vmatpush1.bf16.xpose.msra.mxu0 0
    %1070 = vmatprep.subr.bf16.mxu0 0
    %1071 = vmatpush1.bf16.xpose.msra.mxu0 0
    %1072 = vmatprep.subr.bf16.mxu0 0
    %1073 = vmatpush1.bf16.xpose.msra.mxu0 0
    %1074 = vmatprep.subr.bf16.mxu0 0
    %1075 = vmatpush1.bf16.xpose.msra.mxu0 0
    %1076 = vmatprep.subr.bf16.mxu0 0
    %1077 = vmatpush1.bf16.xpose.msra.mxu0 0
    %1078 = vmatprep.mubr.bf16.mxu0 0
    %1079 = vmatmul.mubr.bf16.gmra.mrb[0].mxu0 %v1041
    %v1080 = vpop.f32.mrb[0].mxu0
    %v1081 = vadd.f32 0.0, %v1080
    %v1082 = vpop.f32.mrb[0].mxu0
    %v1083 = vpop.f32.mrb[0].mxu0
    %v1084 = vpop.f32.mrb[0].mxu0
    %1085 = vdwg.mxu0
    %v1086 = vsel %vm517, %v1081, -inf
    %1087 = vmax.xlane.f32.xlu0 %v1086
    %v1088 = vpop.xlane.xlu0 %1087
    %v1089 = vsub.f32 %v1081, %v1088
    %v1090 = vmul.f32 %v1089, 1.442695
    %v1091 = vpow.pop %v1090
    %v1092 = vsel %vm517, %v1091, 0.0
    %1093 = vadd.xlane.f32.xlu0 %v1092
    %v1094 = vpop.xlane.xlu0 %1093
    %v1095 = vrcp.pop %v1094
    %v1096 = vmul.f32 %v1091, %v1095
    %v1097 = vpack.c.bf16 %v1096, %v1096
    %1099 = vrot.lane.b32.xlu0 %v929, 96
    %v1100 = vpop.permute.xlu0 %1099
    %v1102 = vsel %vm517, %v1097, 0
    %v1105 = vsel %vm533, %v1100, 0
    %1107 = vmatprep.subr.bf16.mxu0 0
    %1108 = vmatpush1.bf16.msra.mxu0 %v1105
    %1109 = vmatprep.subr.bf16.mxu0 0
    %1110 = vmatpush1.bf16.msra.mxu0 0
    %1111 = vmatprep.subr.bf16.mxu0 0
    %1112 = vmatpush1.bf16.msra.mxu0 0
    %1113 = vmatprep.subr.bf16.mxu0 0
    %1114 = vmatpush1.bf16.msra.mxu0 0
    %1115 = vmatprep.subr.bf16.mxu0 0
    %1116 = vmatpush1.bf16.msra.mxu0 0
    %1117 = vmatprep.subr.bf16.mxu0 0
    %1118 = vmatpush1.bf16.msra.mxu0 0
    %1119 = vmatprep.subr.bf16.mxu0 0
    %1120 = vmatpush1.bf16.msra.mxu0 0
    %1121 = vmatprep.subr.bf16.mxu0 0
    %1122 = vmatpush1.bf16.msra.mxu0 0
    %1123 = vmatprep.subr.bf16.mxu0 0
    %1124 = vmatpush1.bf16.msra.mxu0 0
    %1125 = vmatprep.subr.bf16.mxu0 0
    %1126 = vmatpush1.bf16.msra.mxu0 0
    %1127 = vmatprep.subr.bf16.mxu0 0
    %1128 = vmatpush1.bf16.msra.mxu0 0
    %1129 = vmatprep.subr.bf16.mxu0 0
    %1130 = vmatpush1.bf16.msra.mxu0 0
    %1131 = vmatprep.subr.bf16.mxu0 0
    %1132 = vmatpush1.bf16.msra.mxu0 0
    %1133 = vmatprep.subr.bf16.mxu0 0
    %1134 = vmatpush1.bf16.msra.mxu0 0
    %1135 = vmatprep.subr.bf16.mxu0 0
    %1136 = vmatpush1.bf16.msra.mxu0 0
    %1137 = vmatprep.subr.bf16.mxu0 0
    %1138 = vmatpush1.bf16.msra.mxu0 0
    %1139 = vmatprep.mubr.bf16.mxu0 0
    %1140 = vmatmul.mubr.bf16.gmra.mrb[0].mxu0 %v1102
    %v1141 = vpop.f32.mrb[0].mxu0
    %v1142 = vadd.f32 0.0, %v1141
    %v1143 = vpop.f32.mrb[0].mxu0
    %v1144 = vpop.f32.mrb[0].mxu0
    %v1145 = vpop.f32.mrb[0].mxu0
    %1146 = vdwg.mxu0
    %1147 = vrot.lane.b32.xlu0 %v927, 64
    %v1148 = vpop.permute.xlu0 %1147
    %1149 = vrot.lane.b32.xlu0 %v928, 64
    %v1150 = vpop.permute.xlu0 %1149
    %v1152 = vsel %vm470, %v1148, 0
    %v1155 = vsel %vm470, %v1150, 0
    %1157 = vmatprep.subr.bf16.mxu0 0
    %1158 = vmatpush1.bf16.xpose.msra.mxu0 %v1155
    %1159 = vmatprep.subr.bf16.mxu0 0
    %1160 = vmatpush1.bf16.xpose.msra.mxu0 0
    %1161 = vmatprep.subr.bf16.mxu0 0
    %1162 = vmatpush1.bf16.xpose.msra.mxu0 0
    %1163 = vmatprep.subr.bf16.mxu0 0
    %1164 = vmatpush1.bf16.xpose.msra.mxu0 0
    %1165 = vmatprep.subr.bf16.mxu0 0
    %1166 = vmatpush1.bf16.xpose.msra.mxu0 0
    %1167 = vmatprep.subr.bf16.mxu0 0
    %1168 = vmatpush1.bf16.xpose.msra.mxu0 0
    %1169 = vmatprep.subr.bf16.mxu0 0
    %1170 = vmatpush1.bf16.xpose.msra.mxu0 0
    %1171 = vmatprep.subr.bf16.mxu0 0
    %1172 = vmatpush1.bf16.xpose.msra.mxu0 0
    %1173 = vmatprep.subr.bf16.mxu0 0
    %1174 = vmatpush1.bf16.xpose.msra.mxu0 0
    %1175 = vmatprep.subr.bf16.mxu0 0
    %1176 = vmatpush1.bf16.xpose.msra.mxu0 0
    %1177 = vmatprep.subr.bf16.mxu0 0
    %1178 = vmatpush1.bf16.xpose.msra.mxu0 0
    %1179 = vmatprep.subr.bf16.mxu0 0
    %1180 = vmatpush1.bf16.xpose.msra.mxu0 0
    %1181 = vmatprep.subr.bf16.mxu0 0
    %1182 = vmatpush1.bf16.xpose.msra.mxu0 0
    %1183 = vmatprep.subr.bf16.mxu0 0
    %1184 = vmatpush1.bf16.xpose.msra.mxu0 0
    %1185 = vmatprep.subr.bf16.mxu0 0
    %1186 = vmatpush1.bf16.xpose.msra.mxu0 0
    %1187 = vmatprep.subr.bf16.mxu0 0
    %1188 = vmatpush1.bf16.xpose.msra.mxu0 0
    %1189 = vmatprep.mubr.bf16.mxu0 0
    %1190 = vmatmul.mubr.bf16.gmra.mrb[0].mxu0 %v1152
    %v1191 = vpop.f32.mrb[0].mxu0
    %v1192 = vadd.f32 0.0, %v1191
    %v1193 = vpop.f32.mrb[0].mxu0
    %v1194 = vpop.f32.mrb[0].mxu0
    %v1195 = vpop.f32.mrb[0].mxu0
    %1196 = vdwg.mxu0
    %v1197 = vsel %vm517, %v1192, -inf
    %1198 = vmax.xlane.f32.xlu0 %v1197
    %v1199 = vpop.xlane.xlu0 %1198
    %v1200 = vsub.f32 %v1192, %v1199
    %v1201 = vmul.f32 %v1200, 1.442695
    %v1202 = vpow.pop %v1201
    %v1203 = vsel %vm517, %v1202, 0.0
    %1204 = vadd.xlane.f32.xlu0 %v1203
    %v1205 = vpop.xlane.xlu0 %1204
    %v1206 = vrcp.pop %v1205
    %v1207 = vmul.f32 %v1202, %v1206
    %v1208 = vpack.c.bf16 %v1207, %v1207
    %1209 = vrot.lane.b32.xlu0 %v929, 64
    %v1210 = vpop.permute.xlu0 %1209
    %v1212 = vsel %vm517, %v1208, 0
    %v1215 = vsel %vm533, %v1210, 0
    %1217 = vmatprep.subr.bf16.mxu0 0
    %1218 = vmatpush1.bf16.msra.mxu0 %v1215
    %1219 = vmatprep.subr.bf16.mxu0 0
    %1220 = vmatpush1.bf16.msra.mxu0 0
    %1221 = vmatprep.subr.bf16.mxu0 0
    %1222 = vmatpush1.bf16.msra.mxu0 0
    %1223 = vmatprep.subr.bf16.mxu0 0
    %1224 = vmatpush1.bf16.msra.mxu0 0
    %1225 = vmatprep.subr.bf16.mxu0 0
    %1226 = vmatpush1.bf16.msra.mxu0 0
    %1227 = vmatprep.subr.bf16.mxu0 0
    %1228 = vmatpush1.bf16.msra.mxu0 0
    %1229 = vmatprep.subr.bf16.mxu0 0
    %1230 = vmatpush1.bf16.msra.mxu0 0
    %1231 = vmatprep.subr.bf16.mxu0 0
    %1232 = vmatpush1.bf16.msra.mxu0 0
    %1233 = vmatprep.subr.bf16.mxu0 0
    %1234 = vmatpush1.bf16.msra.mxu0 0
    %1235 = vmatprep.subr.bf16.mxu0 0
    %1236 = vmatpush1.bf16.msra.mxu0 0
    %1237 = vmatprep.subr.bf16.mxu0 0
    %1238 = vmatpush1.bf16.msra.mxu0 0
    %1239 = vmatprep.subr.bf16.mxu0 0
    %1240 = vmatpush1.bf16.msra.mxu0 0
    %1241 = vmatprep.subr.bf16.mxu0 0
    %1242 = vmatpush1.bf16.msra.mxu0 0
    %1243 = vmatprep.subr.bf16.mxu0 0
    %1244 = vmatpush1.bf16.msra.mxu0 0
    %1245 = vmatprep.subr.bf16.mxu0 0
    %1246 = vmatpush1.bf16.msra.mxu0 0
    %1247 = vmatprep.subr.bf16.mxu0 0
    %1248 = vmatpush1.bf16.msra.mxu0 0
    %1249 = vmatprep.mubr.bf16.mxu0 0
    %1250 = vmatmul.mubr.bf16.gmra.mrb[0].mxu0 %v1212
    %v1251 = vpop.f32.mrb[0].mxu0
    %v1252 = vadd.f32 0.0, %v1251
    %v1253 = vpop.f32.mrb[0].mxu0
    %v1254 = vpop.f32.mrb[0].mxu0
    %v1255 = vpop.f32.mrb[0].mxu0
    %1256 = vdwg.mxu0
    %1257 = vrot.lane.b32.xlu0 %v927, 32
    %v1258 = vpop.permute.xlu0 %1257
    %1259 = vrot.lane.b32.xlu0 %v928, 32
    %v1260 = vpop.permute.xlu0 %1259
    %v1262 = vsel %vm470, %v1258, 0
    %v1265 = vsel %vm470, %v1260, 0
    %1267 = vmatprep.subr.bf16.mxu0 0
    %1268 = vmatpush1.bf16.xpose.msra.mxu0 %v1265
    %1269 = vmatprep.subr.bf16.mxu0 0
    %1270 = vmatpush1.bf16.xpose.msra.mxu0 0
    %1271 = vmatprep.subr.bf16.mxu0 0
    %1272 = vmatpush1.bf16.xpose.msra.mxu0 0
    %1273 = vmatprep.subr.bf16.mxu0 0
    %1274 = vmatpush1.bf16.xpose.msra.mxu0 0
    %1275 = vmatprep.subr.bf16.mxu0 0
    %1276 = vmatpush1.bf16.xpose.msra.mxu0 0
    %1277 = vmatprep.subr.bf16.mxu0 0
    %1278 = vmatpush1.bf16.xpose.msra.mxu0 0
    %1279 = vmatprep.subr.bf16.mxu0 0
    %1280 = vmatpush1.bf16.xpose.msra.mxu0 0
    %1281 = vmatprep.subr.bf16.mxu0 0
    %1282 = vmatpush1.bf16.xpose.msra.mxu0 0
    %1283 = vmatprep.subr.bf16.mxu0 0
    %1284 = vmatpush1.bf16.xpose.msra.mxu0 0
    %1285 = vmatprep.subr.bf16.mxu0 0
    %1286 = vmatpush1.bf16.xpose.msra.mxu0 0
    %1287 = vmatprep.subr.bf16.mxu0 0
    %1288 = vmatpush1.bf16.xpose.msra.mxu0 0
    %1289 = vmatprep.subr.bf16.mxu0 0
    %1290 = vmatpush1.bf16.xpose.msra.mxu0 0
    %1291 = vmatprep.subr.bf16.mxu0 0
    %1292 = vmatpush1.bf16.xpose.msra.mxu0 0
    %1293 = vmatprep.subr.bf16.mxu0 0
    %1294 = vmatpush1.bf16.xpose.msra.mxu0 0
    %1295 = vmatprep.subr.bf16.mxu0 0
    %1296 = vmatpush1.bf16.xpose.msra.mxu0 0
    %1297 = vmatprep.subr.bf16.mxu0 0
    %1298 = vmatpush1.bf16.xpose.msra.mxu0 0
    %1299 = vmatprep.mubr.bf16.mxu0 0
    %1300 = vmatmul.mubr.bf16.gmra.mrb[0].mxu0 %v1262
    %v1301 = vpop.f32.mrb[0].mxu0
    %v1302 = vadd.f32 0.0, %v1301
    %v1303 = vpop.f32.mrb[0].mxu0
    %v1304 = vpop.f32.mrb[0].mxu0
    %v1305 = vpop.f32.mrb[0].mxu0
    %1306 = vdwg.mxu0
    %v1307 = vsel %vm517, %v1302, -inf
    %1308 = vmax.xlane.f32.xlu0 %v1307
    %v1309 = vpop.xlane.xlu0 %1308
    %v1310 = vsub.f32 %v1302, %v1309
    %v1311 = vmul.f32 %v1310, 1.442695
    %v1312 = vpow.pop %v1311
    %v1313 = vsel %vm517, %v1312, 0.0
    %1314 = vadd.xlane.f32.xlu0 %v1313
    %v1315 = vpop.xlane.xlu0 %1314
    %v1316 = vrcp.pop %v1315
    %v1317 = vmul.f32 %v1312, %v1316
    %v1318 = vpack.c.bf16 %v1317, %v1317
    %1319 = vrot.lane.b32.xlu0 %v929, 32
    %v1320 = vpop.permute.xlu0 %1319
    %v1322 = vsel %vm517, %v1318, 0
    %v1325 = vsel %vm533, %v1320, 0
    %1327 = vmatprep.subr.bf16.mxu0 0
    %1328 = vmatpush1.bf16.msra.mxu0 %v1325
    %1329 = vmatprep.subr.bf16.mxu0 0
    %1330 = vmatpush1.bf16.msra.mxu0 0
    %1331 = vmatprep.subr.bf16.mxu0 0
    %1332 = vmatpush1.bf16.msra.mxu0 0
    %1333 = vmatprep.subr.bf16.mxu0 0
    %1334 = vmatpush1.bf16.msra.mxu0 0
    %1335 = vmatprep.subr.bf16.mxu0 0
    %1336 = vmatpush1.bf16.msra.mxu0 0
    %1337 = vmatprep.subr.bf16.mxu0 0
    %1338 = vmatpush1.bf16.msra.mxu0 0
    %1339 = vmatprep.subr.bf16.mxu0 0
    %1340 = vmatpush1.bf16.msra.mxu0 0
    %1341 = vmatprep.subr.bf16.mxu0 0
    %1342 = vmatpush1.bf16.msra.mxu0 0
    %1343 = vmatprep.subr.bf16.mxu0 0
    %1344 = vmatpush1.bf16.msra.mxu0 0
    %1345 = vmatprep.subr.bf16.mxu0 0
    %1346 = vmatpush1.bf16.msra.mxu0 0
    %1347 = vmatprep.subr.bf16.mxu0 0
    %1348 = vmatpush1.bf16.msra.mxu0 0
    %1349 = vmatprep.subr.bf16.mxu0 0
    %1350 = vmatpush1.bf16.msra.mxu0 0
    %1351 = vmatprep.subr.bf16.mxu0 0
    %1352 = vmatpush1.bf16.msra.mxu0 0
    %1353 = vmatprep.subr.bf16.mxu0 0
    %1354 = vmatpush1.bf16.msra.mxu0 0
    %1355 = vmatprep.subr.bf16.mxu0 0
    %1356 = vmatpush1.bf16.msra.mxu0 0
    %1357 = vmatprep.subr.bf16.mxu0 0
    %1358 = vmatpush1.bf16.msra.mxu0 0
    %1359 = vmatprep.mubr.bf16.mxu0 0
    %1360 = vmatmul.mubr.bf16.gmra.mrb[0].mxu0 %v1322
    %v1361 = vpop.f32.mrb[0].mxu0
    %v1362 = vadd.f32 0.0, %v1361
    %v1363 = vpop.f32.mrb[0].mxu0
    %v1364 = vpop.f32.mrb[0].mxu0
    %v1365 = vpop.f32.mrb[0].mxu0
    %1366 = vdwg.mxu0
    %1368 = vrot.lane.b32.xlu0 %v1142, 32
    %v1369 = vpop.permute.xlu0 %1368
    %1372 = vrot.lane.b32.xlu0 %v1252, 64
    %v1373 = vpop.permute.xlu0 %1372
    %1376 = vrot.lane.b32.xlu0 %v1362, 96
    %v1377 = vpop.permute.xlu0 %1376
    %v1379 = vsel %vm470, %v1029, %v1369
    %v1380 = vsel %vm159, %v1379, %v1373
    %v1381 = vsel %vm924, %v1380, %v1377
    %v1382 = vld [vmem:[#allocation5] sm:$0xf]
    %v1383 = vld [vmem:[#allocation5 + $0x4] sm:$0xf]
    %v1384 = vld [vmem:[#allocation5 + $0x8] sm:$0xf]
    %v1385 = vld [vmem:[#allocation5 + $0xc] sm:$0xf]
    %v1386 = vld [vmem:[#allocation5 + $0x10] sm:$0xf]
    %v1387 = vld [vmem:[#allocation5 + $0x14] sm:$0xf]
    %v1388 = vld [vmem:[#allocation5 + $0x18] sm:$0xf]
    %v1389 = vld [vmem:[#allocation5 + $0x1c] sm:$0xf]
    %v1390 = vld [vmem:[#allocation5 + $0x20] sm:$0xf]
    %v1391 = vld [vmem:[#allocation5 + $0x24] sm:$0xf]
    %v1392 = vld [vmem:[#allocation5 + $0x28] sm:$0xf]
    %v1393 = vld [vmem:[#allocation5 + $0x2c] sm:$0xf]
    %v1394 = vld [vmem:[#allocation5 + $0x30] sm:$0xf]
    %v1395 = vld [vmem:[#allocation5 + $0x34] sm:$0xf]
    %v1396 = vld [vmem:[#allocation5 + $0x38] sm:$0xf]
    %v1397 = vld [vmem:[#allocation5 + $0x3c] sm:$0xf]
    %v1398 = vld [vmem:[%s6] sm:$0x1]
    %v1399 = vpack.c.bf16 %v1381, %v925
    %v1401 = vlaneseq
    %v1402 = vshrl.u32 %v1401, 7
    %v1403 = vsub.s32 0, %v1402
    %v1404 = vrot.slane %v1398, %v1403
    %v1422 = vunpack.c.l.b16 %v1382
    %v1423 = vunpack.c.l.b16 %v1383
    %v1424 = vunpack.c.l.b16 %v1384
    %v1425 = vunpack.c.l.b16 %v1385
    %v1426 = vunpack.c.l.b16 %v1386
    %v1427 = vunpack.c.l.b16 %v1387
    %v1428 = vunpack.c.l.b16 %v1388
    %v1429 = vunpack.c.l.b16 %v1389
    %v1430 = vunpack.c.l.b16 %v1390
    %v1431 = vunpack.c.l.b16 %v1391
    %v1432 = vunpack.c.l.b16 %v1392
    %v1433 = vunpack.c.l.b16 %v1393
    %v1434 = vunpack.c.l.b16 %v1394
    %v1435 = vunpack.c.l.b16 %v1395
    %v1436 = vunpack.c.l.b16 %v1396
    %v1437 = vunpack.c.l.b16 %v1397
    %v1438 = vpack.c.b16 %v1423, %v1422
    %v1439 = vpack.c.b16 %v1425, %v1424
    %v1440 = vpack.c.b16 %v1427, %v1426
    %v1441 = vpack.c.b16 %v1429, %v1428
    %v1442 = vpack.c.b16 %v1431, %v1430
    %v1443 = vpack.c.b16 %v1433, %v1432
    %v1444 = vpack.c.b16 %v1435, %v1434
    %v1445 = vpack.c.b16 %v1437, %v1436
    %1454 = vmatprep.subr.bf16.mxu0 0
    %1455 = vmatpush1.bf16.msra.mxu0 %v1438
    %1456 = vmatprep.subr.bf16.mxu0 0
    %1457 = vmatpush1.bf16.msra.mxu0 %v1439
    %1458 = vmatprep.subr.bf16.mxu0 0
    %1459 = vmatpush1.bf16.msra.mxu0 %v1440
    %1460 = vmatprep.subr.bf16.mxu0 0
    %1461 = vmatpush1.bf16.msra.mxu0 %v1441
    %1462 = vmatprep.subr.bf16.mxu0 0
    %1463 = vmatpush1.bf16.msra.mxu0 %v1442
    %1464 = vmatprep.subr.bf16.mxu0 0
    %1465 = vmatpush1.bf16.msra.mxu0 %v1443
    %1466 = vmatprep.subr.bf16.mxu0 0
    %1467 = vmatpush1.bf16.msra.mxu0 %v1444
    %1468 = vmatprep.subr.bf16.mxu0 0
    %1469 = vmatpush1.bf16.msra.mxu0 %v1445
    %1470 = vmatprep.subr.bf16.mxu0 0
    %1471 = vmatpush1.bf16.msra.mxu0 0
    %1472 = vmatprep.subr.bf16.mxu0 0
    %1473 = vmatpush1.bf16.msra.mxu0 0
    %1474 = vmatprep.subr.bf16.mxu0 0
    %1475 = vmatpush1.bf16.msra.mxu0 0
    %1476 = vmatprep.subr.bf16.mxu0 0
    %1477 = vmatpush1.bf16.msra.mxu0 0
    %1478 = vmatprep.subr.bf16.mxu0 0
    %1479 = vmatpush1.bf16.msra.mxu0 0
    %1480 = vmatprep.subr.bf16.mxu0 0
    %1481 = vmatpush1.bf16.msra.mxu0 0
    %1482 = vmatprep.subr.bf16.mxu0 0
    %1483 = vmatpush1.bf16.msra.mxu0 0
    %1484 = vmatprep.subr.bf16.mxu0 0
    %1485 = vmatpush1.bf16.msra.mxu0 0
    %1486 = vmatprep.mubr.bf16.mxu0 0
    %1487 = vmatmul.mubr.bf16.gmra.mrb[0].mxu0 %v1399
    %v1488 = vpop.f32.mrb[0].mxu0
    %v1489 = vadd.f32 %v1404, %v1488
    %v1490 = vpop.f32.mrb[0].mxu0
    %v1491 = vpop.f32.mrb[0].mxu0
    %v1492 = vadd.f32 %v1404, %v1491
    %v1493 = vpop.f32.mrb[0].mxu0
    %1494 = vdwg.mxu0
    %v1495 = vadd.f32 %v198, %v1489
    %v1496 = vadd.f32 %v201, %v1492
    %v1497 = vld [vmem:[%s7] sm:$0x1]
    %v1498 = vld [vmem:[%s8] sm:$0x1]
    %1499 = vadd.xlane.f32.xlu0 %v1495
    %v1500 = vpop.xlane.xlu0 %1499
    %1501 = vadd.xlane.f32.xlu0 %v1496
    %v1502 = vpop.xlane.xlu0 %1501
    %v1503 = vrcp.pop 128.0
    %v1504 = vmul.f32 %v1500, %v1503
    %v1505 = vmul.f32 %v1502, %v1503
    %v1506 = vsub.f32 %v1495, %v1504
    %v1507 = vsub.f32 %v1496, %v1505
    %v1508 = vmul.f32 %v1506, %v1506
    %v1509 = vmul.f32 %v1507, %v1507
    %1510 = vadd.xlane.f32.xlu0 %v1508
    %v1511 = vpop.xlane.xlu0 %1510
    %1512 = vadd.xlane.f32.xlu0 %v1509
    %v1513 = vpop.xlane.xlu0 %1512
    %v1514 = vmul.f32 %v1511, %v1503
    %v1515 = vmul.f32 %v1513, %v1503
    %v1516 = vadd.f32 %v1514, 1e-05
    %v1517 = vadd.f32 %v1515, 1e-05
    %v1518 = vrsqrt.pop %v1516
    %v1519 = vrsqrt.pop %v1517
    %v1520 = vmul.f32 %v1506, %v1518
    %v1521 = vmul.f32 %v1507, %v1519
    %v1523 = vlaneseq
    %v1524 = vshrl.u32 %v1523, 7
    %v1525 = vsub.s32 0, %v1524
    %v1526 = vrot.slane %v1497, %v1525
    %v1528 = vmul.f32 %v1520, %v1526
    %v1529 = vmul.f32 %v1521, %v1526
    %v1531 = vlaneseq
    %v1532 = vshrl.u32 %v1531, 7
    %v1533 = vsub.s32 0, %v1532
    %v1534 = vrot.slane %v1498, %v1533
    %v1536 = vadd.f32 %v1528, %v1534
    %v1537 = vadd.f32 %v1529, %v1534
    %v1538 = vld [vmem:[#allocation7] sm:$0xff]
    %v1539 = vld [vmem:[#allocation7 + $0x8] sm:$0xff]
    %v1540 = vld [vmem:[#allocation7 + $0x10] sm:$0xff]
    %v1541 = vld [vmem:[#allocation7 + $0x18] sm:$0xff]
    %v1542 = vld [vmem:[#allocation7 + $0x20] sm:$0xff]
    %v1543 = vld [vmem:[#allocation7 + $0x28] sm:$0xff]
    %v1544 = vld [vmem:[#allocation7 + $0x30] sm:$0xff]
    %v1545 = vld [vmem:[#allocation7 + $0x38] sm:$0xff]
    %v1546 = vld [vmem:[#allocation7 + $0x40] sm:$0xff]
    %v1547 = vld [vmem:[#allocation7 + $0x48] sm:$0xff]
    %v1548 = vld [vmem:[#allocation7 + $0x50] sm:$0xff]
    %v1549 = vld [vmem:[#allocation7 + $0x58] sm:$0xff]
    %v1550 = vld [vmem:[#allocation7 + $0x60] sm:$0xff]
    %v1551 = vld [vmem:[#allocation7 + $0x68] sm:$0xff]
    %v1552 = vld [vmem:[#allocation7 + $0x70] sm:$0xff]
    %v1553 = vld [vmem:[#allocation7 + $0x78] sm:$0xff]
    %v1554 = vld [vmem:[#allocation7 + $0x80] sm:$0xff]
    %v1555 = vld [vmem:[#allocation7 + $0x88] sm:$0xff]
    %v1556 = vld [vmem:[#allocation7 + $0x90] sm:$0xff]
    %v1557 = vld [vmem:[#allocation7 + $0x98] sm:$0xff]
    %v1558 = vld [vmem:[#allocation7 + $0xa0] sm:$0xff]
    %v1559 = vld [vmem:[#allocation7 + $0xa8] sm:$0xff]
    %v1560 = vld [vmem:[#allocation7 + $0xb0] sm:$0xff]
    %v1561 = vld [vmem:[#allocation7 + $0xb8] sm:$0xff]
    %v1562 = vld [vmem:[#allocation7 + $0xc0] sm:$0xff]
    %v1563 = vld [vmem:[#allocation7 + $0xc8] sm:$0xff]
    %v1564 = vld [vmem:[#allocation7 + $0xd0] sm:$0xff]
    %v1565 = vld [vmem:[#allocation7 + $0xd8] sm:$0xff]
    %v1566 = vld [vmem:[#allocation7 + $0xe0] sm:$0xff]
    %v1567 = vld [vmem:[#allocation7 + $0xe8] sm:$0xff]
    %v1568 = vld [vmem:[#allocation7 + $0xf0] sm:$0xff]
    %v1569 = vld [vmem:[#allocation7 + $0xf8] sm:$0xff]
    %v1570 = vld [vmem:[%s10] sm:$0xf]
    %v1571 = vpack.c.bf16 %v1537, %v1536
    %v1573 = vlaneseq
    %v1574 = vshrl.u32 %v1573, 7
    %v1575 = vsub.s32 0, %v1574
    %v1576 = vrot.slane %v1570, %v1575
    %v1577 = vlaneseq
    %v1578 = vshrl.u32 %v1577, 7
    %v1579 = vsub.s32 1, %v1578
    %v1580 = vrot.slane %v1570, %v1579
    %v1581 = vlaneseq
    %v1582 = vshrl.u32 %v1581, 7
    %v1583 = vsub.s32 2, %v1582
    %v1584 = vrot.slane %v1570, %v1583
    %v1585 = vlaneseq
    %v1586 = vshrl.u32 %v1585, 7
    %v1587 = vsub.s32 3, %v1586
    %v1588 = vrot.slane %v1570, %v1587
    %v1625 = vunpack.c.l.b16 %v1538
    %v1626 = vunpack.c.h.b16 %v1538
    %v1627 = vunpack.c.l.b16 %v1539
    %v1628 = vunpack.c.h.b16 %v1539
    %v1629 = vunpack.c.l.b16 %v1540
    %v1630 = vunpack.c.h.b16 %v1540
    %v1631 = vunpack.c.l.b16 %v1541
    %v1632 = vunpack.c.h.b16 %v1541
    %v1633 = vunpack.c.l.b16 %v1542
    %v1634 = vunpack.c.h.b16 %v1542
    %v1635 = vunpack.c.l.b16 %v1543
    %v1636 = vunpack.c.h.b16 %v1543
    %v1637 = vunpack.c.l.b16 %v1544
    %v1638 = vunpack.c.h.b16 %v1544
    %v1639 = vunpack.c.l.b16 %v1545
    %v1640 = vunpack.c.h.b16 %v1545
    %v1641 = vunpack.c.l.b16 %v1546
    %v1642 = vunpack.c.h.b16 %v1546
    %v1643 = vunpack.c.l.b16 %v1547
    %v1644 = vunpack.c.h.b16 %v1547
    %v1645 = vunpack.c.l.b16 %v1548
    %v1646 = vunpack.c.h.b16 %v1548
    %v1647 = vunpack.c.l.b16 %v1549
    %v1648 = vunpack.c.h.b16 %v1549
    %v1649 = vunpack.c.l.b16 %v1550
    %v1650 = vunpack.c.h.b16 %v1550
    %v1651 = vunpack.c.l.b16 %v1551
    %v1652 = vunpack.c.h.b16 %v1551
    %v1653 = vunpack.c.l.b16 %v1552
    %v1654 = vunpack.c.h.b16 %v1552
    %v1655 = vunpack.c.l.b16 %v1553
    %v1656 = vunpack.c.h.b16 %v1553
    %v1657 = vunpack.c.l.b16 %v1554
    %v1658 = vunpack.c.h.b16 %v1554
    %v1659 = vunpack.c.l.b16 %v1555
    %v1660 = vunpack.c.h.b16 %v1555
    %v1661 = vunpack.c.l.b16 %v1556
    %v1662 = vunpack.c.h.b16 %v1556
    %v1663 = vunpack.c.l.b16 %v1557
    %v1664 = vunpack.c.h.b16 %v1557
    %v1665 = vunpack.c.l.b16 %v1558
    %v1666 = vunpack.c.h.b16 %v1558
    %v1667 = vunpack.c.l.b16 %v1559
    %v1668 = vunpack.c.h.b16 %v1559
    %v1669 = vunpack.c.l.b16 %v1560
    %v1670 = vunpack.c.h.b16 %v1560
    %v1671 = vunpack.c.l.b16 %v1561
    %v1672 = vunpack.c.h.b16 %v1561
    %v1673 = vunpack.c.l.b16 %v1562
    %v1674 = vunpack.c.h.b16 %v1562
    %v1675 = vunpack.c.l.b16 %v1563
    %v1676 = vunpack.c.h.b16 %v1563
    %v1677 = vunpack.c.l.b16 %v1564
    %v1678 = vunpack.c.h.b16 %v1564
    %v1679 = vunpack.c.l.b16 %v1565
    %v1680 = vunpack.c.h.b16 %v1565
    %v1681 = vunpack.c.l.b16 %v1566
    %v1682 = vunpack.c.h.b16 %v1566
    %v1683 = vunpack.c.l.b16 %v1567
    %v1684 = vunpack.c.h.b16 %v1567
    %v1685 = vunpack.c.l.b16 %v1568
    %v1686 = vunpack.c.h.b16 %v1568
    %v1687 = vunpack.c.l.b16 %v1569
    %v1688 = vunpack.c.h.b16 %v1569
    %v1689 = vpack.c.b16 %v1629, %v1625
    %v1690 = vpack.c.b16 %v1630, %v1626
    %v1691 = vpack.c.b16 %v1631, %v1627
    %v1692 = vpack.c.b16 %v1632, %v1628
    %v1693 = vpack.c.b16 %v1637, %v1633
    %v1694 = vpack.c.b16 %v1638, %v1634
    %v1695 = vpack.c.b16 %v1639, %v1635
    %v1696 = vpack.c.b16 %v1640, %v1636
    %v1697 = vpack.c.b16 %v1645, %v1641
    %v1698 = vpack.c.b16 %v1646, %v1642
    %v1699 = vpack.c.b16 %v1647, %v1643
    %v1700 = vpack.c.b16 %v1648, %v1644
    %v1701 = vpack.c.b16 %v1653, %v1649
    %v1702 = vpack.c.b16 %v1654, %v1650
    %v1703 = vpack.c.b16 %v1655, %v1651
    %v1704 = vpack.c.b16 %v1656, %v1652
    %v1705 = vpack.c.b16 %v1661, %v1657
    %v1706 = vpack.c.b16 %v1662, %v1658
    %v1707 = vpack.c.b16 %v1663, %v1659
    %v1708 = vpack.c.b16 %v1664, %v1660
    %v1709 = vpack.c.b16 %v1669, %v1665
    %v1710 = vpack.c.b16 %v1670, %v1666
    %v1711 = vpack.c.b16 %v1671, %v1667
    %v1712 = vpack.c.b16 %v1672, %v1668
    %v1713 = vpack.c.b16 %v1677, %v1673
    %v1714 = vpack.c.b16 %v1678, %v1674
    %v1715 = vpack.c.b16 %v1679, %v1675
    %v1716 = vpack.c.b16 %v1680, %v1676
    %v1717 = vpack.c.b16 %v1685, %v1681
    %v1718 = vpack.c.b16 %v1686, %v1682
    %v1719 = vpack.c.b16 %v1687, %v1683
    %v1720 = vpack.c.b16 %v1688, %v1684
    %1753 = vmatprep.subr.bf16.mxu0 %v1690
    %1754 = vmatpush1.bf16.msra.mxu0 %v1689
    %1755 = vmatprep.subr.bf16.mxu0 %v1694
    %1756 = vmatpush1.bf16.msra.mxu0 %v1693
    %1757 = vmatprep.subr.bf16.mxu0 %v1698
    %1758 = vmatpush1.bf16.msra.mxu0 %v1697
    %1759 = vmatprep.subr.bf16.mxu0 %v1702
    %1760 = vmatpush1.bf16.msra.mxu0 %v1701
    %1761 = vmatprep.subr.bf16.mxu0 %v1706
    %1762 = vmatpush1.bf16.msra.mxu0 %v1705
    %1763 = vmatprep.subr.bf16.mxu0 %v1710
    %1764 = vmatpush1.bf16.msra.mxu0 %v1709
    %1765 = vmatprep.subr.bf16.mxu0 %v1714
    %1766 = vmatpush1.bf16.msra.mxu0 %v1713
    %1767 = vmatprep.subr.bf16.mxu0 %v1718
    %1768 = vmatpush1.bf16.msra.mxu0 %v1717
    %1769 = vmatprep.subr.bf16.mxu0 0
    %1770 = vmatpush1.bf16.msra.mxu0 0
    %1771 = vmatprep.subr.bf16.mxu0 0
    %1772 = vmatpush1.bf16.msra.mxu0 0
    %1773 = vmatprep.subr.bf16.mxu0 0
    %1774 = vmatpush1.bf16.msra.mxu0 0
    %1775 = vmatprep.subr.bf16.mxu0 0
    %1776 = vmatpush1.bf16.msra.mxu0 0
    %1777 = vmatprep.subr.bf16.mxu0 0
    %1778 = vmatpush1.bf16.msra.mxu0 0
    %1779 = vmatprep.subr.bf16.mxu0 0
    %1780 = vmatpush1.bf16.msra.mxu0 0
    %1781 = vmatprep.subr.bf16.mxu0 0
    %1782 = vmatpush1.bf16.msra.mxu0 0
    %1783 = vmatprep.subr.bf16.mxu0 0
    %1784 = vmatpush1.bf16.msra.mxu0 0
    %1785 = vmatprep.mubr.bf16.mxu0 0
    %1786 = vmatmul.mubr.bf16.gmra.mrb[0].mxu0 %v1571
    %v1787 = vpop.f32.mrb[0].mxu0
    %v1788 = vadd.f32 %v1576, %v1787
    %v1789 = vpop.f32.mrb[0].mxu0
    %v1790 = vadd.f32 %v1580, %v1789
    %v1791 = vpop.f32.mrb[0].mxu0
    %v1792 = vadd.f32 %v1576, %v1791
    %v1793 = vpop.f32.mrb[0].mxu0
    %v1794 = vadd.f32 %v1580, %v1793
    %1795 = vdwg.mxu0
    %1796 = vmatprep.subr.bf16.mxu0 %v1692
    %1797 = vmatpush1.bf16.msra.mxu0 %v1691
    %1798 = vmatprep.subr.bf16.mxu0 %v1696
    %1799 = vmatpush1.bf16.msra.mxu0 %v1695
    %1800 = vmatprep.subr.bf16.mxu0 %v1700
    %1801 = vmatpush1.bf16.msra.mxu0 %v1699
    %1802 = vmatprep.subr.bf16.mxu0 %v1704
    %1803 = vmatpush1.bf16.msra.mxu0 %v1703
    %1804 = vmatprep.subr.bf16.mxu0 %v1708
    %1805 = vmatpush1.bf16.msra.mxu0 %v1707
    %1806 = vmatprep.subr.bf16.mxu0 %v1712
    %1807 = vmatpush1.bf16.msra.mxu0 %v1711
    %1808 = vmatprep.subr.bf16.mxu0 %v1716
    %1809 = vmatpush1.bf16.msra.mxu0 %v1715
    %1810 = vmatprep.subr.bf16.mxu0 %v1720
    %1811 = vmatpush1.bf16.msra.mxu0 %v1719
    %1812 = vmatprep.subr.bf16.mxu0 0
    %1813 = vmatpush1.bf16.msra.mxu0 0
    %1814 = vmatprep.subr.bf16.mxu0 0
    %1815 = vmatpush1.bf16.msra.mxu0 0
    %1816 = vmatprep.subr.bf16.mxu0 0
    %1817 = vmatpush1.bf16.msra.mxu0 0
    %1818 = vmatprep.subr.bf16.mxu0 0
    %1819 = vmatpush1.bf16.msra.mxu0 0
    %1820 = vmatprep.subr.bf16.mxu0 0
    %1821 = vmatpush1.bf16.msra.mxu0 0
    %1822 = vmatprep.subr.bf16.mxu0 0
    %1823 = vmatpush1.bf16.msra.mxu0 0
    %1824 = vmatprep.subr.bf16.mxu0 0
    %1825 = vmatpush1.bf16.msra.mxu0 0
    %1826 = vmatprep.subr.bf16.mxu0 0
    %1827 = vmatpush1.bf16.msra.mxu0 0
    %1828 = vmatprep.mubr.bf16.mxu0 0
    %1829 = vmatmul.mubr.bf16.gmra.mrb[0].mxu0 %v1571
    %v1830 = vpop.f32.mrb[0].mxu0
    %v1831 = vadd.f32 %v1584, %v1830
    %v1832 = vpop.f32.mrb[0].mxu0
    %v1833 = vadd.f32 %v1588, %v1832
    %v1834 = vpop.f32.mrb[0].mxu0
    %v1835 = vadd.f32 %v1584, %v1834
    %v1836 = vpop.f32.mrb[0].mxu0
    %v1837 = vadd.f32 %v1588, %v1836
    %1838 = vdwg.mxu0
    %v1839 = vmax.f32 %v1788, 0.0
    %v1840 = vmax.f32 %v1790, 0.0
    %v1841 = vmax.f32 %v1831, 0.0
    %v1842 = vmax.f32 %v1833, 0.0
    %v1843 = vmax.f32 %v1792, 0.0
    %v1844 = vmax.f32 %v1794, 0.0
    %v1845 = vmax.f32 %v1835, 0.0
    %v1846 = vmax.f32 %v1837, 0.0
    %v1847 = vld [vmem:[#allocation8] sm:$0xf]
    %v1848 = vld [vmem:[#allocation8 + $0x4] sm:$0xf]
    %v1849 = vld [vmem:[#allocation8 + $0x8] sm:$0xf]
    %v1850 = vld [vmem:[#allocation8 + $0xc] sm:$0xf]
    %v1851 = vld [vmem:[#allocation8 + $0x10] sm:$0xf]
    %v1852 = vld [vmem:[#allocation8 + $0x14] sm:$0xf]
    %v1853 = vld [vmem:[#allocation8 + $0x18] sm:$0xf]
    %v1854 = vld [vmem:[#allocation8 + $0x1c] sm:$0xf]
    %v1855 = vld [vmem:[#allocation8 + $0x20] sm:$0xf]
    %v1856 = vld [vmem:[#allocation8 + $0x24] sm:$0xf]
    %v1857 = vld [vmem:[#allocation8 + $0x28] sm:$0xf]
    %v1858 = vld [vmem:[#allocation8 + $0x2c] sm:$0xf]
    %v1859 = vld [vmem:[#allocation8 + $0x30] sm:$0xf]
    %v1860 = vld [vmem:[#allocation8 + $0x34] sm:$0xf]
    %v1861 = vld [vmem:[#allocation8 + $0x38] sm:$0xf]
    %v1862 = vld [vmem:[#allocation8 + $0x3c] sm:$0xf]
    %v1863 = vld [vmem:[#allocation8 + $0x40] sm:$0xf]
    %v1864 = vld [vmem:[#allocation8 + $0x44] sm:$0xf]
    %v1865 = vld [vmem:[#allocation8 + $0x48] sm:$0xf]
    %v1866 = vld [vmem:[#allocation8 + $0x4c] sm:$0xf]
    %v1867 = vld [vmem:[#allocation8 + $0x50] sm:$0xf]
    %v1868 = vld [vmem:[#allocation8 + $0x54] sm:$0xf]
    %v1869 = vld [vmem:[#allocation8 + $0x58] sm:$0xf]
    %v1870 = vld [vmem:[#allocation8 + $0x5c] sm:$0xf]
    %v1871 = vld [vmem:[#allocation8 + $0x60] sm:$0xf]
    %v1872 = vld [vmem:[#allocation8 + $0x64] sm:$0xf]
    %v1873 = vld [vmem:[#allocation8 + $0x68] sm:$0xf]
    %v1874 = vld [vmem:[#allocation8 + $0x6c] sm:$0xf]
    %v1875 = vld [vmem:[#allocation8 + $0x70] sm:$0xf]
    %v1876 = vld [vmem:[#allocation8 + $0x74] sm:$0xf]
    %v1877 = vld [vmem:[#allocation8 + $0x78] sm:$0xf]
    %v1878 = vld [vmem:[#allocation8 + $0x7c] sm:$0xf]
    %v1879 = vld [vmem:[#allocation8 + $0x80] sm:$0xf]
    %v1880 = vld [vmem:[#allocation8 + $0x84] sm:$0xf]
    %v1881 = vld [vmem:[#allocation8 + $0x88] sm:$0xf]
    %v1882 = vld [vmem:[#allocation8 + $0x8c] sm:$0xf]
    %v1883 = vld [vmem:[#allocation8 + $0x90] sm:$0xf]
    %v1884 = vld [vmem:[#allocation8 + $0x94] sm:$0xf]
    %v1885 = vld [vmem:[#allocation8 + $0x98] sm:$0xf]
    %v1886 = vld [vmem:[#allocation8 + $0x9c] sm:$0xf]
    %v1887 = vld [vmem:[#allocation8 + $0xa0] sm:$0xf]
    %v1888 = vld [vmem:[#allocation8 + $0xa4] sm:$0xf]
    %v1889 = vld [vmem:[#allocation8 + $0xa8] sm:$0xf]
    %v1890 = vld [vmem:[#allocation8 + $0xac] sm:$0xf]
    %v1891 = vld [vmem:[#allocation8 + $0xb0] sm:$0xf]
    %v1892 = vld [vmem:[#allocation8 + $0xb4] sm:$0xf]
    %v1893 = vld [vmem:[#allocation8 + $0xb8] sm:$0xf]
    %v1894 = vld [vmem:[#allocation8 + $0xbc] sm:$0xf]
    %v1895 = vld [vmem:[#allocation8 + $0xc0] sm:$0xf]
    %v1896 = vld [vmem:[#allocation8 + $0xc4] sm:$0xf]
    %v1897 = vld [vmem:[#allocation8 + $0xc8] sm:$0xf]
    %v1898 = vld [vmem:[#allocation8 + $0xcc] sm:$0xf]
    %v1899 = vld [vmem:[#allocation8 + $0xd0] sm:$0xf]
    %v1900 = vld [vmem:[#allocation8 + $0xd4] sm:$0xf]
    %v1901 = vld [vmem:[#allocation8 + $0xd8] sm:$0xf]
    %v1902 = vld [vmem:[#allocation8 + $0xdc] sm:$0xf]
    %v1903 = vld [vmem:[#allocation8 + $0xe0] sm:$0xf]
    %v1904 = vld [vmem:[#allocation8 + $0xe4] sm:$0xf]
    %v1905 = vld [vmem:[#allocation8 + $0xe8] sm:$0xf]
    %v1906 = vld [vmem:[#allocation8 + $0xec] sm:$0xf]
    %v1907 = vld [vmem:[#allocation8 + $0xf0] sm:$0xf]
    %v1908 = vld [vmem:[#allocation8 + $0xf4] sm:$0xf]
    %v1909 = vld [vmem:[#allocation8 + $0xf8] sm:$0xf]
    %v1910 = vld [vmem:[#allocation8 + $0xfc] sm:$0xf]
    %v1911 = vld [vmem:[%s12] sm:$0x1]
    %v1912 = vpack.c.bf16 %v1843, %v1839
    %v1913 = vpack.c.bf16 %v1844, %v1840
    %v1914 = vpack.c.bf16 %v1845, %v1841
    %v1915 = vpack.c.bf16 %v1846, %v1842
    %v1917 = vlaneseq
    %v1918 = vshrl.u32 %v1917, 7
    %v1919 = vsub.s32 0, %v1918
    %v1920 = vrot.slane %v1911, %v1919
    %v1986 = vunpack.c.l.b16 %v1847
    %v1987 = vunpack.c.l.b16 %v1848
    %v1988 = vunpack.c.l.b16 %v1849
    %v1989 = vunpack.c.l.b16 %v1850
    %v1990 = vunpack.c.l.b16 %v1851
    %v1991 = vunpack.c.l.b16 %v1852
    %v1992 = vunpack.c.l.b16 %v1853
    %v1993 = vunpack.c.l.b16 %v1854
    %v1994 = vunpack.c.l.b16 %v1855
    %v1995 = vunpack.c.l.b16 %v1856
    %v1996 = vunpack.c.l.b16 %v1857
    %v1997 = vunpack.c.l.b16 %v1858
    %v1998 = vunpack.c.l.b16 %v1859
    %v1999 = vunpack.c.l.b16 %v1860
    %v2000 = vunpack.c.l.b16 %v1861
    %v2001 = vunpack.c.l.b16 %v1862
    %v2002 = vunpack.c.l.b16 %v1863
    %v2003 = vunpack.c.l.b16 %v1864
    %v2004 = vunpack.c.l.b16 %v1865
    %v2005 = vunpack.c.l.b16 %v1866
    %v2006 = vunpack.c.l.b16 %v1867
    %v2007 = vunpack.c.l.b16 %v1868
    %v2008 = vunpack.c.l.b16 %v1869
    %v2009 = vunpack.c.l.b16 %v1870
    %v2010 = vunpack.c.l.b16 %v1871
    %v2011 = vunpack.c.l.b16 %v1872
    %v2012 = vunpack.c.l.b16 %v1873
    %v2013 = vunpack.c.l.b16 %v1874
    %v2014 = vunpack.c.l.b16 %v1875
    %v2015 = vunpack.c.l.b16 %v1876
    %v2016 = vunpack.c.l.b16 %v1877
    %v2017 = vunpack.c.l.b16 %v1878
    %v2018 = vunpack.c.l.b16 %v1879
    %v2019 = vunpack.c.l.b16 %v1880
    %v2020 = vunpack.c.l.b16 %v1881
    %v2021 = vunpack.c.l.b16 %v1882
    %v2022 = vunpack.c.l.b16 %v1883
    %v2023 = vunpack.c.l.b16 %v1884
    %v2024 = vunpack.c.l.b16 %v1885
    %v2025 = vunpack.c.l.b16 %v1886
    %v2026 = vunpack.c.l.b16 %v1887
    %v2027 = vunpack.c.l.b16 %v1888
    %v2028 = vunpack.c.l.b16 %v1889
    %v2029 = vunpack.c.l.b16 %v1890
    %v2030 = vunpack.c.l.b16 %v1891
    %v2031 = vunpack.c.l.b16 %v1892
    %v2032 = vunpack.c.l.b16 %v1893
    %v2033 = vunpack.c.l.b16 %v1894
    %v2034 = vunpack.c.l.b16 %v1895
    %v2035 = vunpack.c.l.b16 %v1896
    %v2036 = vunpack.c.l.b16 %v1897
    %v2037 = vunpack.c.l.b16 %v1898
    %v2038 = vunpack.c.l.b16 %v1899
    %v2039 = vunpack.c.l.b16 %v1900
    %v2040 = vunpack.c.l.b16 %v1901
    %v2041 = vunpack.c.l.b16 %v1902
    %v2042 = vunpack.c.l.b16 %v1903
    %v2043 = vunpack.c.l.b16 %v1904
    %v2044 = vunpack.c.l.b16 %v1905
    %v2045 = vunpack.c.l.b16 %v1906
    %v2046 = vunpack.c.l.b16 %v1907
    %v2047 = vunpack.c.l.b16 %v1908
    %v2048 = vunpack.c.l.b16 %v1909
    %v2049 = vunpack.c.l.b16 %v1910
    %v2050 = vpack.c.b16 %v1987, %v1986
    %v2051 = vpack.c.b16 %v1989, %v1988
    %v2052 = vpack.c.b16 %v1991, %v1990
    %v2053 = vpack.c.b16 %v1993, %v1992
    %v2054 = vpack.c.b16 %v1995, %v1994
    %v2055 = vpack.c.b16 %v1997, %v1996
    %v2056 = vpack.c.b16 %v1999, %v1998
    %v2057 = vpack.c.b16 %v2001, %v2000
    %v2058 = vpack.c.b16 %v2003, %v2002
    %v2059 = vpack.c.b16 %v2005, %v2004
    %v2060 = vpack.c.b16 %v2007, %v2006
    %v2061 = vpack.c.b16 %v2009, %v2008
    %v2062 = vpack.c.b16 %v2011, %v2010
    %v2063 = vpack.c.b16 %v2013, %v2012
    %v2064 = vpack.c.b16 %v2015, %v2014
    %v2065 = vpack.c.b16 %v2017, %v2016
    %v2066 = vpack.c.b16 %v2019, %v2018
    %v2067 = vpack.c.b16 %v2021, %v2020
    %v2068 = vpack.c.b16 %v2023, %v2022
    %v2069 = vpack.c.b16 %v2025, %v2024
    %v2070 = vpack.c.b16 %v2027, %v2026
    %v2071 = vpack.c.b16 %v2029, %v2028
    %v2072 = vpack.c.b16 %v2031, %v2030
    %v2073 = vpack.c.b16 %v2033, %v2032
    %v2074 = vpack.c.b16 %v2035, %v2034
    %v2075 = vpack.c.b16 %v2037, %v2036
    %v2076 = vpack.c.b16 %v2039, %v2038
    %v2077 = vpack.c.b16 %v2041, %v2040
    %v2078 = vpack.c.b16 %v2043, %v2042
    %v2079 = vpack.c.b16 %v2045, %v2044
    %v2080 = vpack.c.b16 %v2047, %v2046
    %v2081 = vpack.c.b16 %v2049, %v2048
    %2114 = vmatprep.subr.bf16.mxu0 0
    %2115 = vmatpush1.bf16.msra.mxu0 %v2050
    %2116 = vmatprep.subr.bf16.mxu0 0
    %2117 = vmatpush1.bf16.msra.mxu0 %v2051
    %2118 = vmatprep.subr.bf16.mxu0 0
    %2119 = vmatpush1.bf16.msra.mxu0 %v2052
    %2120 = vmatprep.subr.bf16.mxu0 0
    %2121 = vmatpush1.bf16.msra.mxu0 %v2053
    %2122 = vmatprep.subr.bf16.mxu0 0
    %2123 = vmatpush1.bf16.msra.mxu0 %v2054
    %2124 = vmatprep.subr.bf16.mxu0 0
    %2125 = vmatpush1.bf16.msra.mxu0 %v2055
    %2126 = vmatprep.subr.bf16.mxu0 0
    %2127 = vmatpush1.bf16.msra.mxu0 %v2056
    %2128 = vmatprep.subr.bf16.mxu0 0
    %2129 = vmatpush1.bf16.msra.mxu0 %v2057
    %2130 = vmatprep.subr.bf16.mxu0 0
    %2131 = vmatpush1.bf16.msra.mxu0 %v2058
    %2132 = vmatprep.subr.bf16.mxu0 0
    %2133 = vmatpush1.bf16.msra.mxu0 %v2059
    %2134 = vmatprep.subr.bf16.mxu0 0
    %2135 = vmatpush1.bf16.msra.mxu0 %v2060
    %2136 = vmatprep.subr.bf16.mxu0 0
    %2137 = vmatpush1.bf16.msra.mxu0 %v2061
    %2138 = vmatprep.subr.bf16.mxu0 0
    %2139 = vmatpush1.bf16.msra.mxu0 %v2062
    %2140 = vmatprep.subr.bf16.mxu0 0
    %2141 = vmatpush1.bf16.msra.mxu0 %v2063
    %2142 = vmatprep.subr.bf16.mxu0 0
    %2143 = vmatpush1.bf16.msra.mxu0 %v2064
    %2144 = vmatprep.subr.bf16.mxu0 0
    %2145 = vmatpush1.bf16.msra.mxu0 %v2065
    %2146 = vmatprep.mubr.bf16.mxu0 %v1913
    %2147 = vmatmul.mubr.bf16.gmra.mrb[0].mxu0 %v1912
    %v2148 = vpop.f32.mrb[0].mxu0
    %v2149 = vadd.f32 %v1920, %v2148
    %v2150 = vpop.f32.mrb[0].mxu0
    %v2151 = vpop.f32.mrb[0].mxu0
    %v2152 = vadd.f32 %v1920, %v2151
    %v2153 = vpop.f32.mrb[0].mxu0
    %2154 = vdwg.mxu0
    %2155 = vmatprep.subr.bf16.mxu0 0
    %2156 = vmatpush1.bf16.msra.mxu0 %v2066
    %2157 = vmatprep.subr.bf16.mxu0 0
    %2158 = vmatpush1.bf16.msra.mxu0 %v2067
    %2159 = vmatprep.subr.bf16.mxu0 0
    %2160 = vmatpush1.bf16.msra.mxu0 %v2068
    %2161 = vmatprep.subr.bf16.mxu0 0
    %2162 = vmatpush1.bf16.msra.mxu0 %v2069
    %2163 = vmatprep.subr.bf16.mxu0 0
    %2164 = vmatpush1.bf16.msra.mxu0 %v2070
    %2165 = vmatprep.subr.bf16.mxu0 0
    %2166 = vmatpush1.bf16.msra.mxu0 %v2071
    %2167 = vmatprep.subr.bf16.mxu0 0
    %2168 = vmatpush1.bf16.msra.mxu0 %v2072
    %2169 = vmatprep.subr.bf16.mxu0 0
    %2170 = vmatpush1.bf16.msra.mxu0 %v2073
    %2171 = vmatprep.subr.bf16.mxu0 0
    %2172 = vmatpush1.bf16.msra.mxu0 %v2074
    %2173 = vmatprep.subr.bf16.mxu0 0
    %2174 = vmatpush1.bf16.msra.mxu0 %v2075
    %2175 = vmatprep.subr.bf16.mxu0 0
    %2176 = vmatpush1.bf16.msra.mxu0 %v2076
    %2177 = vmatprep.subr.bf16.mxu0 0
    %2178 = vmatpush1.bf16.msra.mxu0 %v2077
    %2179 = vmatprep.subr.bf16.mxu0 0
    %2180 = vmatpush1.bf16.msra.mxu0 %v2078
    %2181 = vmatprep.subr.bf16.mxu0 0
    %2182 = vmatpush1.bf16.msra.mxu0 %v2079
    %2183 = vmatprep.subr.bf16.mxu0 0
    %2184 = vmatpush1.bf16.msra.mxu0 %v2080
    %2185 = vmatprep.subr.bf16.mxu0 0
    %2186 = vmatpush1.bf16.msra.mxu0 %v2081
    %2187 = vmatprep.mubr.bf16.mxu0 %v1915
    %2188 = vmatmul.mubr.bf16.gmra.mrb[0].mxu0 %v1914
    %v2189 = vpop.f32.mrb[0].mxu0
    %v2190 = vadd.f32 %v2149, %v2189
    %v2191 = vpop.f32.mrb[0].mxu0
    %v2192 = vpop.f32.mrb[0].mxu0
    %v2193 = vadd.f32 %v2152, %v2192
    %v2194 = vpop.f32.mrb[0].mxu0
    %2195 = vdwg.mxu0
    %v2196 = vadd.f32 %v1536, %v2190
    %v2197 = vadd.f32 %v1537, %v2193
    %v2198 = vld [vmem:[%s13] sm:$0x1]
    %v2199 = vld [vmem:[%s14] sm:$0x1]
    %2200 = vadd.xlane.f32.xlu0 %v2196
    %v2201 = vpop.xlane.xlu0 %2200
    %2202 = vadd.xlane.f32.xlu0 %v2197
    %v2203 = vpop.xlane.xlu0 %2202
    %v2204 = vmul.f32 %v2201, %v1503
    %v2205 = vmul.f32 %v2203, %v1503
    %v2206 = vsub.f32 %v2196, %v2204
    %v2207 = vsub.f32 %v2197, %v2205
    %v2208 = vmul.f32 %v2206, %v2206
    %v2209 = vmul.f32 %v2207, %v2207
    %2210 = vadd.xlane.f32.xlu0 %v2208
    %v2211 = vpop.xlane.xlu0 %2210
    %2212 = vadd.xlane.f32.xlu0 %v2209
    %v2213 = vpop.xlane.xlu0 %2212
    %v2214 = vmul.f32 %v2211, %v1503
    %v2215 = vmul.f32 %v2213, %v1503
    %v2216 = vadd.f32 %v2214, 1e-05
    %v2217 = vadd.f32 %v2215, 1e-05
    %v2218 = vrsqrt.pop %v2216
    %v2219 = vrsqrt.pop %v2217
    %v2220 = vmul.f32 %v2206, %v2218
    %v2221 = vmul.f32 %v2207, %v2219
    %v2223 = vlaneseq
    %v2224 = vshrl.u32 %v2223, 7
    %v2225 = vsub.s32 0, %v2224
    %v2226 = vrot.slane %v2198, %v2225
    %v2228 = vmul.f32 %v2220, %v2226
    %v2229 = vmul.f32 %v2221, %v2226
    %v2231 = vlaneseq
    %v2232 = vshrl.u32 %v2231, 7
    %v2233 = vsub.s32 0, %v2232
    %v2234 = vrot.slane %v2199, %v2233
    %v2236 = vadd.f32 %v2228, %v2234
    %v2237 = vadd.f32 %v2229, %v2234
    %s2238 = scalar_lea.vmem [#allocation2], 192
    %v2239 = vld [vmem:[%s2238] sm:$0xff]
    %v2240 = vld [vmem:[%s2238 + $0x8] sm:$0xf]
    %v2241 = vld [vmem:[%s2238 + $0xc] sm:$0xff]
    %v2242 = vld [vmem:[%s2238 + $0x14] sm:$0xf]
    %v2243 = vld [vmem:[%s2238 + $0x18] sm:$0xff]
    %v2244 = vld [vmem:[%s2238 + $0x20] sm:$0xf]
    %v2245 = vld [vmem:[%s2238 + $0x24] sm:$0xff]
    %v2246 = vld [vmem:[%s2238 + $0x2c] sm:$0xf]
    %v2247 = vld [vmem:[%s2238 + $0x30] sm:$0xff]
    %v2248 = vld [vmem:[%s2238 + $0x38] sm:$0xf]
    %v2249 = vld [vmem:[%s2238 + $0x3c] sm:$0xff]
    %v2250 = vld [vmem:[%s2238 + $0x44] sm:$0xf]
    %v2251 = vld [vmem:[%s2238 + $0x48] sm:$0xff]
    %v2252 = vld [vmem:[%s2238 + $0x50] sm:$0xf]
    %v2253 = vld [vmem:[%s2238 + $0x54] sm:$0xff]
    %v2254 = vld [vmem:[%s2238 + $0x5c] sm:$0xf]
    %v2255 = vld [vmem:[%s2238 + $0x60] sm:$0xff]
    %v2256 = vld [vmem:[%s2238 + $0x68] sm:$0xf]
    %v2257 = vld [vmem:[%s2238 + $0x6c] sm:$0xff]
    %v2258 = vld [vmem:[%s2238 + $0x74] sm:$0xf]
    %v2259 = vld [vmem:[%s2238 + $0x78] sm:$0xff]
    %v2260 = vld [vmem:[%s2238 + $0x80] sm:$0xf]
    %v2261 = vld [vmem:[%s2238 + $0x84] sm:$0xff]
    %v2262 = vld [vmem:[%s2238 + $0x8c] sm:$0xf]
    %v2263 = vld [vmem:[%s2238 + $0x90] sm:$0xff]
    %v2264 = vld [vmem:[%s2238 + $0x98] sm:$0xf]
    %v2265 = vld [vmem:[%s2238 + $0x9c] sm:$0xff]
    %v2266 = vld [vmem:[%s2238 + $0xa4] sm:$0xf]
    %v2267 = vld [vmem:[%s2238 + $0xa8] sm:$0xff]
    %v2268 = vld [vmem:[%s2238 + $0xb0] sm:$0xf]
    %v2269 = vld [vmem:[%s2238 + $0xb4] sm:$0xff]
    %v2270 = vld [vmem:[%s2238 + $0xbc] sm:$0xf]
    %s2271 = scalar_lea.vmem %s4, 3
    %v2272 = vld [vmem:[%s2271] sm:$0x7]
    %v2273 = vpack.c.bf16 %v2237, %v2236
    %v2275 = vlaneseq
    %v2276 = vshrl.u32 %v2275, 7
    %v2277 = vsub.s32 0, %v2276
    %v2278 = vrot.slane %v2272, %v2277
    %v2279 = vlaneseq
    %v2280 = vshrl.u32 %v2279, 7
    %v2281 = vsub.s32 1, %v2280
    %v2282 = vrot.slane %v2272, %v2281
    %v2283 = vlaneseq
    %v2284 = vshrl.u32 %v2283, 7
    %v2285 = vsub.s32 2, %v2284
    %v2286 = vrot.slane %v2272, %v2285
    %v2322 = vunpack.c.l.b16 %v2239
    %v2323 = vunpack.c.h.b16 %v2239
    %v2324 = vunpack.c.l.b16 %v2240
    %v2325 = vunpack.c.l.b16 %v2241
    %v2326 = vunpack.c.h.b16 %v2241
    %v2327 = vunpack.c.l.b16 %v2242
    %v2328 = vunpack.c.l.b16 %v2243
    %v2329 = vunpack.c.h.b16 %v2243
    %v2330 = vunpack.c.l.b16 %v2244
    %v2331 = vunpack.c.l.b16 %v2245
    %v2332 = vunpack.c.h.b16 %v2245
    %v2333 = vunpack.c.l.b16 %v2246
    %v2334 = vunpack.c.l.b16 %v2247
    %v2335 = vunpack.c.h.b16 %v2247
    %v2336 = vunpack.c.l.b16 %v2248
    %v2337 = vunpack.c.l.b16 %v2249
    %v2338 = vunpack.c.h.b16 %v2249
    %v2339 = vunpack.c.l.b16 %v2250
    %v2340 = vunpack.c.l.b16 %v2251
    %v2341 = vunpack.c.h.b16 %v2251
    %v2342 = vunpack.c.l.b16 %v2252
    %v2343 = vunpack.c.l.b16 %v2253
    %v2344 = vunpack.c.h.b16 %v2253
    %v2345 = vunpack.c.l.b16 %v2254
    %v2346 = vunpack.c.l.b16 %v2255
    %v2347 = vunpack.c.h.b16 %v2255
    %v2348 = vunpack.c.l.b16 %v2256
    %v2349 = vunpack.c.l.b16 %v2257
    %v2350 = vunpack.c.h.b16 %v2257
    %v2351 = vunpack.c.l.b16 %v2258
    %v2352 = vunpack.c.l.b16 %v2259
    %v2353 = vunpack.c.h.b16 %v2259
    %v2354 = vunpack.c.l.b16 %v2260
    %v2355 = vunpack.c.l.b16 %v2261
    %v2356 = vunpack.c.h.b16 %v2261
    %v2357 = vunpack.c.l.b16 %v2262
    %v2358 = vunpack.c.l.b16 %v2263
    %v2359 = vunpack.c.h.b16 %v2263
    %v2360 = vunpack.c.l.b16 %v2264
    %v2361 = vunpack.c.l.b16 %v2265
    %v2362 = vunpack.c.h.b16 %v2265
    %v2363 = vunpack.c.l.b16 %v2266
    %v2364 = vunpack.c.l.b16 %v2267
    %v2365 = vunpack.c.h.b16 %v2267
    %v2366 = vunpack.c.l.b16 %v2268
    %v2367 = vunpack.c.l.b16 %v2269
    %v2368 = vunpack.c.h.b16 %v2269
    %v2369 = vunpack.c.l.b16 %v2270
    %v2370 = vpack.c.b16 %v2325, %v2322
    %v2371 = vpack.c.b16 %v2326, %v2323
    %v2372 = vpack.c.b16 %v2327, %v2324
    %v2373 = vpack.c.b16 %v2331, %v2328
    %v2374 = vpack.c.b16 %v2332, %v2329
    %v2375 = vpack.c.b16 %v2333, %v2330
    %v2376 = vpack.c.b16 %v2337, %v2334
    %v2377 = vpack.c.b16 %v2338, %v2335
    %v2378 = vpack.c.b16 %v2339, %v2336
    %v2379 = vpack.c.b16 %v2343, %v2340
    %v2380 = vpack.c.b16 %v2344, %v2341
    %v2381 = vpack.c.b16 %v2345, %v2342
    %v2382 = vpack.c.b16 %v2349, %v2346
    %v2383 = vpack.c.b16 %v2350, %v2347
    %v2384 = vpack.c.b16 %v2351, %v2348
    %v2385 = vpack.c.b16 %v2355, %v2352
    %v2386 = vpack.c.b16 %v2356, %v2353
    %v2387 = vpack.c.b16 %v2357, %v2354
    %v2388 = vpack.c.b16 %v2361, %v2358
    %v2389 = vpack.c.b16 %v2362, %v2359
    %v2390 = vpack.c.b16 %v2363, %v2360
    %v2391 = vpack.c.b16 %v2367, %v2364
    %v2392 = vpack.c.b16 %v2368, %v2365
    %v2393 = vpack.c.b16 %v2369, %v2366
    %2418 = vmatprep.subr.bf16.mxu0 %v2371
    %2419 = vmatpush1.bf16.msra.mxu0 %v2370
    %2420 = vmatprep.subr.bf16.mxu0 %v2374
    %2421 = vmatpush1.bf16.msra.mxu0 %v2373
    %2422 = vmatprep.subr.bf16.mxu0 %v2377
    %2423 = vmatpush1.bf16.msra.mxu0 %v2376
    %2424 = vmatprep.subr.bf16.mxu0 %v2380
    %2425 = vmatpush1.bf16.msra.mxu0 %v2379
    %2426 = vmatprep.subr.bf16.mxu0 %v2383
    %2427 = vmatpush1.bf16.msra.mxu0 %v2382
    %2428 = vmatprep.subr.bf16.mxu0 %v2386
    %2429 = vmatpush1.bf16.msra.mxu0 %v2385
    %2430 = vmatprep.subr.bf16.mxu0 %v2389
    %2431 = vmatpush1.bf16.msra.mxu0 %v2388
    %2432 = vmatprep.subr.bf16.mxu0 %v2392
    %2433 = vmatpush1.bf16.msra.mxu0 %v2391
    %2434 = vmatprep.subr.bf16.mxu0 0
    %2435 = vmatpush1.bf16.msra.mxu0 0
    %2436 = vmatprep.subr.bf16.mxu0 0
    %2437 = vmatpush1.bf16.msra.mxu0 0
    %2438 = vmatprep.subr.bf16.mxu0 0
    %2439 = vmatpush1.bf16.msra.mxu0 0
    %2440 = vmatprep.subr.bf16.mxu0 0
    %2441 = vmatpush1.bf16.msra.mxu0 0
    %2442 = vmatprep.subr.bf16.mxu0 0
    %2443 = vmatpush1.bf16.msra.mxu0 0
    %2444 = vmatprep.subr.bf16.mxu0 0
    %2445 = vmatpush1.bf16.msra.mxu0 0
    %2446 = vmatprep.subr.bf16.mxu0 0
    %2447 = vmatpush1.bf16.msra.mxu0 0
    %2448 = vmatprep.subr.bf16.mxu0 0
    %2449 = vmatpush1.bf16.msra.mxu0 0
    %2450 = vmatprep.mubr.bf16.mxu0 0
    %2451 = vmatmul.mubr.bf16.gmra.mrb[0].mxu0 %v2273
    %v2452 = vpop.f32.mrb[0].mxu0
    %v2453 = vadd.f32 %v2278, %v2452
    %v2454 = vpop.f32.mrb[0].mxu0
    %v2455 = vadd.f32 %v2282, %v2454
    %v2456 = vpop.f32.mrb[0].mxu0
    %v2457 = vadd.f32 %v2278, %v2456
    %v2458 = vpop.f32.mrb[0].mxu0
    %v2459 = vadd.f32 %v2282, %v2458
    %2460 = vdwg.mxu0
    %2461 = vmatprep.subr.bf16.mxu0 0
    %2462 = vmatpush1.bf16.msra.mxu0 %v2372
    %2463 = vmatprep.subr.bf16.mxu0 0
    %2464 = vmatpush1.bf16.msra.mxu0 %v2375
    %2465 = vmatprep.subr.bf16.mxu0 0
    %2466 = vmatpush1.bf16.msra.mxu0 %v2378
    %2467 = vmatprep.subr.bf16.mxu0 0
    %2468 = vmatpush1.bf16.msra.mxu0 %v2381
    %2469 = vmatprep.subr.bf16.mxu0 0
    %2470 = vmatpush1.bf16.msra.mxu0 %v2384
    %2471 = vmatprep.subr.bf16.mxu0 0
    %2472 = vmatpush1.bf16.msra.mxu0 %v2387
    %2473 = vmatprep.subr.bf16.mxu0 0
    %2474 = vmatpush1.bf16.msra.mxu0 %v2390
    %2475 = vmatprep.subr.bf16.mxu0 0
    %2476 = vmatpush1.bf16.msra.mxu0 %v2393
    %2477 = vmatprep.subr.bf16.mxu0 0
    %2478 = vmatpush1.bf16.msra.mxu0 0
    %2479 = vmatprep.subr.bf16.mxu0 0
    %2480 = vmatpush1.bf16.msra.mxu0 0
    %2481 = vmatprep.subr.bf16.mxu0 0
    %2482 = vmatpush1.bf16.msra.mxu0 0
    %2483 = vmatprep.subr.bf16.mxu0 0
    %2484 = vmatpush1.bf16.msra.mxu0 0
    %2485 = vmatprep.subr.bf16.mxu0 0
    %2486 = vmatpush1.bf16.msra.mxu0 0
    %2487 = vmatprep.subr.bf16.mxu0 0
    %2488 = vmatpush1.bf16.msra.mxu0 0
    %2489 = vmatprep.subr.bf16.mxu0 0
    %2490 = vmatpush1.bf16.msra.mxu0 0
    %2491 = vmatprep.subr.bf16.mxu0 0
    %2492 = vmatpush1.bf16.msra.mxu0 0
    %2493 = vmatprep.mubr.bf16.mxu0 0
    %2494 = vmatmul.mubr.bf16.gmra.mrb[0].mxu0 %v2273
    %v2495 = vpop.f32.mrb[0].mxu0
    %v2496 = vadd.f32 %v2286, %v2495
    %v2497 = vpop.f32.mrb[0].mxu0
    %v2498 = vpop.f32.mrb[0].mxu0
    %v2499 = vadd.f32 %v2286, %v2498
    %v2500 = vpop.f32.mrb[0].mxu0
    %2501 = vdwg.mxu0
    %v2502 = vmul.f32 %v2453, 0.17677669
    %v2503 = vpack.c.bf16 %v2502, %v2502
    %v2504 = vpack.c.bf16 %v2455, %v2455
    %v2505 = vpack.c.bf16 %v2496, %v2496
    %v2507 = vsel %vm470, %v2503, 0
    %v2510 = vsel %vm470, %v2504, 0
    %2512 = vmatprep.subr.bf16.mxu0 0
    %2513 = vmatpush1.bf16.xpose.msra.mxu0 %v2510
    %2514 = vmatprep.subr.bf16.mxu0 0
    %2515 = vmatpush1.bf16.xpose.msra.mxu0 0
    %2516 = vmatprep.subr.bf16.mxu0 0
    %2517 = vmatpush1.bf16.xpose.msra.mxu0 0
    %2518 = vmatprep.subr.bf16.mxu0 0
    %2519 = vmatpush1.bf16.xpose.msra.mxu0 0
    %2520 = vmatprep.subr.bf16.mxu0 0
    %2521 = vmatpush1.bf16.xpose.msra.mxu0 0
    %2522 = vmatprep.subr.bf16.mxu0 0
    %2523 = vmatpush1.bf16.xpose.msra.mxu0 0
    %2524 = vmatprep.subr.bf16.mxu0 0
    %2525 = vmatpush1.bf16.xpose.msra.mxu0 0
    %2526 = vmatprep.subr.bf16.mxu0 0
    %2527 = vmatpush1.bf16.xpose.msra.mxu0 0
    %2528 = vmatprep.subr.bf16.mxu0 0
    %2529 = vmatpush1.bf16.xpose.msra.mxu0 0
    %2530 = vmatprep.subr.bf16.mxu0 0
    %2531 = vmatpush1.bf16.xpose.msra.mxu0 0
    %2532 = vmatprep.subr.bf16.mxu0 0
    %2533 = vmatpush1.bf16.xpose.msra.mxu0 0
    %2534 = vmatprep.subr.bf16.mxu0 0
    %2535 = vmatpush1.bf16.xpose.msra.mxu0 0
    %2536 = vmatprep.subr.bf16.mxu0 0
    %2537 = vmatpush1.bf16.xpose.msra.mxu0 0
    %2538 = vmatprep.subr.bf16.mxu0 0
    %2539 = vmatpush1.bf16.xpose.msra.mxu0 0
    %2540 = vmatprep.subr.bf16.mxu0 0
    %2541 = vmatpush1.bf16.xpose.msra.mxu0 0
    %2542 = vmatprep.subr.bf16.mxu0 0
    %2543 = vmatpush1.bf16.xpose.msra.mxu0 0
    %2544 = vmatprep.mubr.bf16.mxu0 0
    %2545 = vmatmul.mubr.bf16.gmra.mrb[0].mxu0 %v2507
    %v2546 = vpop.f32.mrb[0].mxu0
    %v2547 = vadd.f32 0.0, %v2546
    %v2548 = vpop.f32.mrb[0].mxu0
    %v2549 = vpop.f32.mrb[0].mxu0
    %v2550 = vpop.f32.mrb[0].mxu0
    %2551 = vdwg.mxu0
    %v2552 = vsel %vm517, %v2547, -inf
    %2553 = vmax.xlane.f32.xlu0 %v2552
    %v2554 = vpop.xlane.xlu0 %2553
    %v2555 = vsub.f32 %v2547, %v2554
    %v2556 = vmul.f32 %v2555, 1.442695
    %v2557 = vpow.pop %v2556
    %v2558 = vsel %vm517, %v2557, 0.0
    %2559 = vadd.xlane.f32.xlu0 %v2558
    %v2560 = vpop.xlane.xlu0 %2559
    %v2561 = vrcp.pop %v2560
    %v2562 = vmul.f32 %v2557, %v2561
    %v2563 = vpack.c.bf16 %v2562, %v2562
    %v2565 = vsel %vm517, %v2563, 0
    %v2568 = vsel %vm533, %v2505, 0
    %2570 = vmatprep.subr.bf16.mxu0 0
    %2571 = vmatpush1.bf16.msra.mxu0 %v2568
    %2572 = vmatprep.subr.bf16.mxu0 0
    %2573 = vmatpush1.bf16.msra.mxu0 0
    %2574 = vmatprep.subr.bf16.mxu0 0
    %2575 = vmatpush1.bf16.msra.mxu0 0
    %2576 = vmatprep.subr.bf16.mxu0 0
    %2577 = vmatpush1.bf16.msra.mxu0 0
    %2578 = vmatprep.subr.bf16.mxu0 0
    %2579 = vmatpush1.bf16.msra.mxu0 0
    %2580 = vmatprep.subr.bf16.mxu0 0
    %2581 = vmatpush1.bf16.msra.mxu0 0
    %2582 = vmatprep.subr.bf16.mxu0 0
    %2583 = vmatpush1.bf16.msra.mxu0 0
    %2584 = vmatprep.subr.bf16.mxu0 0
    %2585 = vmatpush1.bf16.msra.mxu0 0
    %2586 = vmatprep.subr.bf16.mxu0 0
    %2587 = vmatpush1.bf16.msra.mxu0 0
    %2588 = vmatprep.subr.bf16.mxu0 0
    %2589 = vmatpush1.bf16.msra.mxu0 0
    %2590 = vmatprep.subr.bf16.mxu0 0
    %2591 = vmatpush1.bf16.msra.mxu0 0
    %2592 = vmatprep.subr.bf16.mxu0 0
    %2593 = vmatpush1.bf16.msra.mxu0 0
    %2594 = vmatprep.subr.bf16.mxu0 0
    %2595 = vmatpush1.bf16.msra.mxu0 0
    %2596 = vmatprep.subr.bf16.mxu0 0
    %2597 = vmatpush1.bf16.msra.mxu0 0
    %2598 = vmatprep.subr.bf16.mxu0 0
    %2599 = vmatpush1.bf16.msra.mxu0 0
    %2600 = vmatprep.subr.bf16.mxu0 0
    %2601 = vmatpush1.bf16.msra.mxu0 0
    %2602 = vmatprep.mubr.bf16.mxu0 0
    %2603 = vmatmul.mubr.bf16.gmra.mrb[0].mxu0 %v2565
    %v2604 = vpop.f32.mrb[0].mxu0
    %v2605 = vadd.f32 0.0, %v2604
    %v2606 = vpop.f32.mrb[0].mxu0
    %v2607 = vpop.f32.mrb[0].mxu0
    %v2608 = vpop.f32.mrb[0].mxu0
    %2609 = vdwg.mxu0
    %2611 = vrot.lane.b32.xlu0 %v2503, 96
    %v2612 = vpop.permute.xlu0 %2611
    %2614 = vrot.lane.b32.xlu0 %v2504, 96
    %v2615 = vpop.permute.xlu0 %2614
    %v2617 = vsel %vm470, %v2612, 0
    %v2620 = vsel %vm470, %v2615, 0
    %2622 = vmatprep.subr.bf16.mxu0 0
    %2623 = vmatpush1.bf16.xpose.msra.mxu0 %v2620
    %2624 = vmatprep.subr.bf16.mxu0 0
    %2625 = vmatpush1.bf16.xpose.msra.mxu0 0
    %2626 = vmatprep.subr.bf16.mxu0 0
    %2627 = vmatpush1.bf16.xpose.msra.mxu0 0
    %2628 = vmatprep.subr.bf16.mxu0 0
    %2629 = vmatpush1.bf16.xpose.msra.mxu0 0
    %2630 = vmatprep.subr.bf16.mxu0 0
    %2631 = vmatpush1.bf16.xpose.msra.mxu0 0
    %2632 = vmatprep.subr.bf16.mxu0 0
    %2633 = vmatpush1.bf16.xpose.msra.mxu0 0
    %2634 = vmatprep.subr.bf16.mxu0 0
    %2635 = vmatpush1.bf16.xpose.msra.mxu0 0
    %2636 = vmatprep.subr.bf16.mxu0 0
    %2637 = vmatpush1.bf16.xpose.msra.mxu0 0
    %2638 = vmatprep.subr.bf16.mxu0 0
    %2639 = vmatpush1.bf16.xpose.msra.mxu0 0
    %2640 = vmatprep.subr.bf16.mxu0 0
    %2641 = vmatpush1.bf16.xpose.msra.mxu0 0
    %2642 = vmatprep.subr.bf16.mxu0 0
    %2643 = vmatpush1.bf16.xpose.msra.mxu0 0
    %2644 = vmatprep.subr.bf16.mxu0 0
    %2645 = vmatpush1.bf16.xpose.msra.mxu0 0
    %2646 = vmatprep.subr.bf16.mxu0 0
    %2647 = vmatpush1.bf16.xpose.msra.mxu0 0
    %2648 = vmatprep.subr.bf16.mxu0 0
    %2649 = vmatpush1.bf16.xpose.msra.mxu0 0
    %2650 = vmatprep.subr.bf16.mxu0 0
    %2651 = vmatpush1.bf16.xpose.msra.mxu0 0
    %2652 = vmatprep.subr.bf16.mxu0 0
    %2653 = vmatpush1.bf16.xpose.msra.mxu0 0
    %2654 = vmatprep.mubr.bf16.mxu0 0
    %2655 = vmatmul.mubr.bf16.gmra.mrb[0].mxu0 %v2617
    %v2656 = vpop.f32.mrb[0].mxu0
    %v2657 = vadd.f32 0.0, %v2656
    %v2658 = vpop.f32.mrb[0].mxu0
    %v2659 = vpop.f32.mrb[0].mxu0
    %v2660 = vpop.f32.mrb[0].mxu0
    %2661 = vdwg.mxu0
    %v2662 = vsel %vm517, %v2657, -inf
    %2663 = vmax.xlane.f32.xlu0 %v2662
    %v2664 = vpop.xlane.xlu0 %2663
    %v2665 = vsub.f32 %v2657, %v2664
    %v2666 = vmul.f32 %v2665, 1.442695
    %v2667 = vpow.pop %v2666
    %v2668 = vsel %vm517, %v2667, 0.0
    %2669 = vadd.xlane.f32.xlu0 %v2668
    %v2670 = vpop.xlane.xlu0 %2669
    %v2671 = vrcp.pop %v2670
    %v2672 = vmul.f32 %v2667, %v2671
    %v2673 = vpack.c.bf16 %v2672, %v2672
    %2675 = vrot.lane.b32.xlu0 %v2505, 96
    %v2676 = vpop.permute.xlu0 %2675
    %v2678 = vsel %vm517, %v2673, 0
    %v2681 = vsel %vm533, %v2676, 0
    %2683 = vmatprep.subr.bf16.mxu0 0
    %2684 = vmatpush1.bf16.msra.mxu0 %v2681
    %2685 = vmatprep.subr.bf16.mxu0 0
    %2686 = vmatpush1.bf16.msra.mxu0 0
    %2687 = vmatprep.subr.bf16.mxu0 0
    %2688 = vmatpush1.bf16.msra.mxu0 0
    %2689 = vmatprep.subr.bf16.mxu0 0
    %2690 = vmatpush1.bf16.msra.mxu0 0
    %2691 = vmatprep.subr.bf16.mxu0 0
    %2692 = vmatpush1.bf16.msra.mxu0 0
    %2693 = vmatprep.subr.bf16.mxu0 0
    %2694 = vmatpush1.bf16.msra.mxu0 0
    %2695 = vmatprep.subr.bf16.mxu0 0
    %2696 = vmatpush1.bf16.msra.mxu0 0
    %2697 = vmatprep.subr.bf16.mxu0 0
    %2698 = vmatpush1.bf16.msra.mxu0 0
    %2699 = vmatprep.subr.bf16.mxu0 0
    %2700 = vmatpush1.bf16.msra.mxu0 0
    %2701 = vmatprep.subr.bf16.mxu0 0
    %2702 = vmatpush1.bf16.msra.mxu0 0
    %2703 = vmatprep.subr.bf16.mxu0 0
    %2704 = vmatpush1.bf16.msra.mxu0 0
    %2705 = vmatprep.subr.bf16.mxu0 0
    %2706 = vmatpush1.bf16.msra.mxu0 0
    %2707 = vmatprep.subr.bf16.mxu0 0
    %2708 = vmatpush1.bf16.msra.mxu0 0
    %2709 = vmatprep.subr.bf16.mxu0 0
    %2710 = vmatpush1.bf16.msra.mxu0 0
    %2711 = vmatprep.subr.bf16.mxu0 0
    %2712 = vmatpush1.bf16.msra.mxu0 0
    %2713 = vmatprep.subr.bf16.mxu0 0
    %2714 = vmatpush1.bf16.msra.mxu0 0
    %2715 = vmatprep.mubr.bf16.mxu0 0
    %2716 = vmatmul.mubr.bf16.gmra.mrb[0].mxu0 %v2678
    %v2717 = vpop.f32.mrb[0].mxu0
    %v2718 = vadd.f32 0.0, %v2717
    %v2719 = vpop.f32.mrb[0].mxu0
    %v2720 = vpop.f32.mrb[0].mxu0
    %v2721 = vpop.f32.mrb[0].mxu0
    %2722 = vdwg.mxu0
    %2723 = vrot.lane.b32.xlu0 %v2503, 64
    %v2724 = vpop.permute.xlu0 %2723
    %2725 = vrot.lane.b32.xlu0 %v2504, 64
    %v2726 = vpop.permute.xlu0 %2725
    %v2728 = vsel %vm470, %v2724, 0
    %v2731 = vsel %vm470, %v2726, 0
    %2733 = vmatprep.subr.bf16.mxu0 0
    %2734 = vmatpush1.bf16.xpose.msra.mxu0 %v2731
    %2735 = vmatprep.subr.bf16.mxu0 0
    %2736 = vmatpush1.bf16.xpose.msra.mxu0 0
    %2737 = vmatprep.subr.bf16.mxu0 0
    %2738 = vmatpush1.bf16.xpose.msra.mxu0 0
    %2739 = vmatprep.subr.bf16.mxu0 0
    %2740 = vmatpush1.bf16.xpose.msra.mxu0 0
    %2741 = vmatprep.subr.bf16.mxu0 0
    %2742 = vmatpush1.bf16.xpose.msra.mxu0 0
    %2743 = vmatprep.subr.bf16.mxu0 0
    %2744 = vmatpush1.bf16.xpose.msra.mxu0 0
    %2745 = vmatprep.subr.bf16.mxu0 0
    %2746 = vmatpush1.bf16.xpose.msra.mxu0 0
    %2747 = vmatprep.subr.bf16.mxu0 0
    %2748 = vmatpush1.bf16.xpose.msra.mxu0 0
    %2749 = vmatprep.subr.bf16.mxu0 0
    %2750 = vmatpush1.bf16.xpose.msra.mxu0 0
    %2751 = vmatprep.subr.bf16.mxu0 0
    %2752 = vmatpush1.bf16.xpose.msra.mxu0 0
    %2753 = vmatprep.subr.bf16.mxu0 0
    %2754 = vmatpush1.bf16.xpose.msra.mxu0 0
    %2755 = vmatprep.subr.bf16.mxu0 0
    %2756 = vmatpush1.bf16.xpose.msra.mxu0 0
    %2757 = vmatprep.subr.bf16.mxu0 0
    %2758 = vmatpush1.bf16.xpose.msra.mxu0 0
    %2759 = vmatprep.subr.bf16.mxu0 0
    %2760 = vmatpush1.bf16.xpose.msra.mxu0 0
    %2761 = vmatprep.subr.bf16.mxu0 0
    %2762 = vmatpush1.bf16.xpose.msra.mxu0 0
    %2763 = vmatprep.subr.bf16.mxu0 0
    %2764 = vmatpush1.bf16.xpose.msra.mxu0 0
    %2765 = vmatprep.mubr.bf16.mxu0 0
    %2766 = vmatmul.mubr.bf16.gmra.mrb[0].mxu0 %v2728
    %v2767 = vpop.f32.mrb[0].mxu0
    %v2768 = vadd.f32 0.0, %v2767
    %v2769 = vpop.f32.mrb[0].mxu0
    %v2770 = vpop.f32.mrb[0].mxu0
    %v2771 = vpop.f32.mrb[0].mxu0
    %2772 = vdwg.mxu0
    %v2773 = vsel %vm517, %v2768, -inf
    %2774 = vmax.xlane.f32.xlu0 %v2773
    %v2775 = vpop.xlane.xlu0 %2774
    %v2776 = vsub.f32 %v2768, %v2775
    %v2777 = vmul.f32 %v2776, 1.442695
    %v2778 = vpow.pop %v2777
    %v2779 = vsel %vm517, %v2778, 0.0
    %2780 = vadd.xlane.f32.xlu0 %v2779
    %v2781 = vpop.xlane.xlu0 %2780
    %v2782 = vrcp.pop %v2781
    %v2783 = vmul.f32 %v2778, %v2782
    %v2784 = vpack.c.bf16 %v2783, %v2783
    %2785 = vrot.lane.b32.xlu0 %v2505, 64
    %v2786 = vpop.permute.xlu0 %2785
    %v2788 = vsel %vm517, %v2784, 0
    %v2791 = vsel %vm533, %v2786, 0
    %2793 = vmatprep.subr.bf16.mxu0 0
    %2794 = vmatpush1.bf16.msra.mxu0 %v2791
    %2795 = vmatprep.subr.bf16.mxu0 0
    %2796 = vmatpush1.bf16.msra.mxu0 0
    %2797 = vmatprep.subr.bf16.mxu0 0
    %2798 = vmatpush1.bf16.msra.mxu0 0
    %2799 = vmatprep.subr.bf16.mxu0 0
    %2800 = vmatpush1.bf16.msra.mxu0 0
    %2801 = vmatprep.subr.bf16.mxu0 0
    %2802 = vmatpush1.bf16.msra.mxu0 0
    %2803 = vmatprep.subr.bf16.mxu0 0
    %2804 = vmatpush1.bf16.msra.mxu0 0
    %2805 = vmatprep.subr.bf16.mxu0 0
    %2806 = vmatpush1.bf16.msra.mxu0 0
    %2807 = vmatprep.subr.bf16.mxu0 0
    %2808 = vmatpush1.bf16.msra.mxu0 0
    %2809 = vmatprep.subr.bf16.mxu0 0
    %2810 = vmatpush1.bf16.msra.mxu0 0
    %2811 = vmatprep.subr.bf16.mxu0 0
    %2812 = vmatpush1.bf16.msra.mxu0 0
    %2813 = vmatprep.subr.bf16.mxu0 0
    %2814 = vmatpush1.bf16.msra.mxu0 0
    %2815 = vmatprep.subr.bf16.mxu0 0
    %2816 = vmatpush1.bf16.msra.mxu0 0
    %2817 = vmatprep.subr.bf16.mxu0 0
    %2818 = vmatpush1.bf16.msra.mxu0 0
    %2819 = vmatprep.subr.bf16.mxu0 0
    %2820 = vmatpush1.bf16.msra.mxu0 0
    %2821 = vmatprep.subr.bf16.mxu0 0
    %2822 = vmatpush1.bf16.msra.mxu0 0
    %2823 = vmatprep.subr.bf16.mxu0 0
    %2824 = vmatpush1.bf16.msra.mxu0 0
    %2825 = vmatprep.mubr.bf16.mxu0 0
    %2826 = vmatmul.mubr.bf16.gmra.mrb[0].mxu0 %v2788
    %v2827 = vpop.f32.mrb[0].mxu0
    %v2828 = vadd.f32 0.0, %v2827
    %v2829 = vpop.f32.mrb[0].mxu0
    %v2830 = vpop.f32.mrb[0].mxu0
    %v2831 = vpop.f32.mrb[0].mxu0
    %2832 = vdwg.mxu0
    %2833 = vrot.lane.b32.xlu0 %v2503, 32
    %v2834 = vpop.permute.xlu0 %2833
    %2835 = vrot.lane.b32.xlu0 %v2504, 32
    %v2836 = vpop.permute.xlu0 %2835
    %v2838 = vsel %vm470, %v2834, 0
    %v2841 = vsel %vm470, %v2836, 0
    %2843 = vmatprep.subr.bf16.mxu0 0
    %2844 = vmatpush1.bf16.xpose.msra.mxu0 %v2841
    %2845 = vmatprep.subr.bf16.mxu0 0
    %2846 = vmatpush1.bf16.xpose.msra.mxu0 0
    %2847 = vmatprep.subr.bf16.mxu0 0
    %2848 = vmatpush1.bf16.xpose.msra.mxu0 0
    %2849 = vmatprep.subr.bf16.mxu0 0
    %2850 = vmatpush1.bf16.xpose.msra.mxu0 0
    %2851 = vmatprep.subr.bf16.mxu0 0
    %2852 = vmatpush1.bf16.xpose.msra.mxu0 0
    %2853 = vmatprep.subr.bf16.mxu0 0
    %2854 = vmatpush1.bf16.xpose.msra.mxu0 0
    %2855 = vmatprep.subr.bf16.mxu0 0
    %2856 = vmatpush1.bf16.xpose.msra.mxu0 0
    %2857 = vmatprep.subr.bf16.mxu0 0
    %2858 = vmatpush1.bf16.xpose.msra.mxu0 0
    %2859 = vmatprep.subr.bf16.mxu0 0
    %2860 = vmatpush1.bf16.xpose.msra.mxu0 0
    %2861 = vmatprep.subr.bf16.mxu0 0
    %2862 = vmatpush1.bf16.xpose.msra.mxu0 0
    %2863 = vmatprep.subr.bf16.mxu0 0
    %2864 = vmatpush1.bf16.xpose.msra.mxu0 0
    %2865 = vmatprep.subr.bf16.mxu0 0
    %2866 = vmatpush1.bf16.xpose.msra.mxu0 0
    %2867 = vmatprep.subr.bf16.mxu0 0
    %2868 = vmatpush1.bf16.xpose.msra.mxu0 0
    %2869 = vmatprep.subr.bf16.mxu0 0
    %2870 = vmatpush1.bf16.xpose.msra.mxu0 0
    %2871 = vmatprep.subr.bf16.mxu0 0
    %2872 = vmatpush1.bf16.xpose.msra.mxu0 0
    %2873 = vmatprep.subr.bf16.mxu0 0
    %2874 = vmatpush1.bf16.xpose.msra.mxu0 0
    %2875 = vmatprep.mubr.bf16.mxu0 0
    %2876 = vmatmul.mubr.bf16.gmra.mrb[0].mxu0 %v2838
    %v2877 = vpop.f32.mrb[0].mxu0
    %v2878 = vadd.f32 0.0, %v2877
    %v2879 = vpop.f32.mrb[0].mxu0
    %v2880 = vpop.f32.mrb[0].mxu0
    %v2881 = vpop.f32.mrb[0].mxu0
    %2882 = vdwg.mxu0
    %v2883 = vsel %vm517, %v2878, -inf
    %2884 = vmax.xlane.f32.xlu0 %v2883
    %v2885 = vpop.xlane.xlu0 %2884
    %v2886 = vsub.f32 %v2878, %v2885
    %v2887 = vmul.f32 %v2886, 1.442695
    %v2888 = vpow.pop %v2887
    %v2889 = vsel %vm517, %v2888, 0.0
    %2890 = vadd.xlane.f32.xlu0 %v2889
    %v2891 = vpop.xlane.xlu0 %2890
    %v2892 = vrcp.pop %v2891
    %v2893 = vmul.f32 %v2888, %v2892
    %v2894 = vpack.c.bf16 %v2893, %v2893
    %2895 = vrot.lane.b32.xlu0 %v2505, 32
    %v2896 = vpop.permute.xlu0 %2895
    %v2898 = vsel %vm517, %v2894, 0
    %v2901 = vsel %vm533, %v2896, 0
    %2903 = vmatprep.subr.bf16.mxu0 0
    %2904 = vmatpush1.bf16.msra.mxu0 %v2901
    %2905 = vmatprep.subr.bf16.mxu0 0
    %2906 = vmatpush1.bf16.msra.mxu0 0
    %2907 = vmatprep.subr.bf16.mxu0 0
    %2908 = vmatpush1.bf16.msra.mxu0 0
    %2909 = vmatprep.subr.bf16.mxu0 0
    %2910 = vmatpush1.bf16.msra.mxu0 0
    %2911 = vmatprep.subr.bf16.mxu0 0
    %2912 = vmatpush1.bf16.msra.mxu0 0
    %2913 = vmatprep.subr.bf16.mxu0 0
    %2914 = vmatpush1.bf16.msra.mxu0 0
    %2915 = vmatprep.subr.bf16.mxu0 0
    %2916 = vmatpush1.bf16.msra.mxu0 0
    %2917 = vmatprep.subr.bf16.mxu0 0
    %2918 = vmatpush1.bf16.msra.mxu0 0
    %2919 = vmatprep.subr.bf16.mxu0 0
    %2920 = vmatpush1.bf16.msra.mxu0 0
    %2921 = vmatprep.subr.bf16.mxu0 0
    %2922 = vmatpush1.bf16.msra.mxu0 0
    %2923 = vmatprep.subr.bf16.mxu0 0
    %2924 = vmatpush1.bf16.msra.mxu0 0
    %2925 = vmatprep.subr.bf16.mxu0 0
    %2926 = vmatpush1.bf16.msra.mxu0 0
    %2927 = vmatprep.subr.bf16.mxu0 0
    %2928 = vmatpush1.bf16.msra.mxu0 0
    %2929 = vmatprep.subr.bf16.mxu0 0
    %2930 = vmatpush1.bf16.msra.mxu0 0
    %2931 = vmatprep.subr.bf16.mxu0 0
    %2932 = vmatpush1.bf16.msra.mxu0 0
    %2933 = vmatprep.subr.bf16.mxu0 0
    %2934 = vmatpush1.bf16.msra.mxu0 0
    %2935 = vmatprep.mubr.bf16.mxu0 0
    %2936 = vmatmul.mubr.bf16.gmra.mrb[0].mxu0 %v2898
    %v2937 = vpop.f32.mrb[0].mxu0
    %v2938 = vadd.f32 0.0, %v2937
    %v2939 = vpop.f32.mrb[0].mxu0
    %v2940 = vpop.f32.mrb[0].mxu0
    %v2941 = vpop.f32.mrb[0].mxu0
    %2942 = vdwg.mxu0
    %2944 = vrot.lane.b32.xlu0 %v2718, 32
    %v2945 = vpop.permute.xlu0 %2944
    %2948 = vrot.lane.b32.xlu0 %v2828, 64
    %v2949 = vpop.permute.xlu0 %2948
    %2952 = vrot.lane.b32.xlu0 %v2938, 96
    %v2953 = vpop.permute.xlu0 %2952
    %v2955 = vsel %vm470, %v2605, %v2945
    %v2956 = vsel %vm159, %v2955, %v2949
    %v2957 = vsel %vm924, %v2956, %v2953
    %v2958 = vmul.f32 %v2457, 0.17677669
    %v2959 = vpack.c.bf16 %v2958, %v2958
    %v2960 = vpack.c.bf16 %v2459, %v2459
    %v2961 = vpack.c.bf16 %v2499, %v2499
    %v2963 = vsel %vm470, %v2959, 0
    %v2966 = vsel %vm470, %v2960, 0
    %2968 = vmatprep.subr.bf16.mxu0 0
    %2969 = vmatpush1.bf16.xpose.msra.mxu0 %v2966
    %2970 = vmatprep.subr.bf16.mxu0 0
    %2971 = vmatpush1.bf16.xpose.msra.mxu0 0
    %2972 = vmatprep.subr.bf16.mxu0 0
    %2973 = vmatpush1.bf16.xpose.msra.mxu0 0
    %2974 = vmatprep.subr.bf16.mxu0 0
    %2975 = vmatpush1.bf16.xpose.msra.mxu0 0
    %2976 = vmatprep.subr.bf16.mxu0 0
    %2977 = vmatpush1.bf16.xpose.msra.mxu0 0
    %2978 = vmatprep.subr.bf16.mxu0 0
    %2979 = vmatpush1.bf16.xpose.msra.mxu0 0
    %2980 = vmatprep.subr.bf16.mxu0 0
    %2981 = vmatpush1.bf16.xpose.msra.mxu0 0
    %2982 = vmatprep.subr.bf16.mxu0 0
    %2983 = vmatpush1.bf16.xpose.msra.mxu0 0
    %2984 = vmatprep.subr.bf16.mxu0 0
    %2985 = vmatpush1.bf16.xpose.msra.mxu0 0
    %2986 = vmatprep.subr.bf16.mxu0 0
    %2987 = vmatpush1.bf16.xpose.msra.mxu0 0
    %2988 = vmatprep.subr.bf16.mxu0 0
    %2989 = vmatpush1.bf16.xpose.msra.mxu0 0
    %2990 = vmatprep.subr.bf16.mxu0 0
    %2991 = vmatpush1.bf16.xpose.msra.mxu0 0
    %2992 = vmatprep.subr.bf16.mxu0 0
    %2993 = vmatpush1.bf16.xpose.msra.mxu0 0
    %2994 = vmatprep.subr.bf16.mxu0 0
    %2995 = vmatpush1.bf16.xpose.msra.mxu0 0
    %2996 = vmatprep.subr.bf16.mxu0 0
    %2997 = vmatpush1.bf16.xpose.msra.mxu0 0
    %2998 = vmatprep.subr.bf16.mxu0 0
    %2999 = vmatpush1.bf16.xpose.msra.mxu0 0
    %3000 = vmatprep.mubr.bf16.mxu0 0
    %3001 = vmatmul.mubr.bf16.gmra.mrb[0].mxu0 %v2963
    %v3002 = vpop.f32.mrb[0].mxu0
    %v3003 = vadd.f32 0.0, %v3002
    %v3004 = vpop.f32.mrb[0].mxu0
    %v3005 = vpop.f32.mrb[0].mxu0
    %v3006 = vpop.f32.mrb[0].mxu0
    %3007 = vdwg.mxu0
    %v3008 = vsel %vm517, %v3003, -inf
    %3009 = vmax.xlane.f32.xlu0 %v3008
    %v3010 = vpop.xlane.xlu0 %3009
    %v3011 = vsub.f32 %v3003, %v3010
    %v3012 = vmul.f32 %v3011, 1.442695
    %v3013 = vpow.pop %v3012
    %v3014 = vsel %vm517, %v3013, 0.0
    %3015 = vadd.xlane.f32.xlu0 %v3014
    %v3016 = vpop.xlane.xlu0 %3015
    %v3017 = vrcp.pop %v3016
    %v3018 = vmul.f32 %v3013, %v3017
    %v3019 = vpack.c.bf16 %v3018, %v3018
    %v3021 = vsel %vm517, %v3019, 0
    %v3024 = vsel %vm533, %v2961, 0
    %3026 = vmatprep.subr.bf16.mxu0 0
    %3027 = vmatpush1.bf16.msra.mxu0 %v3024
    %3028 = vmatprep.subr.bf16.mxu0 0
    %3029 = vmatpush1.bf16.msra.mxu0 0
    %3030 = vmatprep.subr.bf16.mxu0 0
    %3031 = vmatpush1.bf16.msra.mxu0 0
    %3032 = vmatprep.subr.bf16.mxu0 0
    %3033 = vmatpush1.bf16.msra.mxu0 0
    %3034 = vmatprep.subr.bf16.mxu0 0
    %3035 = vmatpush1.bf16.msra.mxu0 0
    %3036 = vmatprep.subr.bf16.mxu0 0
    %3037 = vmatpush1.bf16.msra.mxu0 0
    %3038 = vmatprep.subr.bf16.mxu0 0
    %3039 = vmatpush1.bf16.msra.mxu0 0
    %3040 = vmatprep.subr.bf16.mxu0 0
    %3041 = vmatpush1.bf16.msra.mxu0 0
    %3042 = vmatprep.subr.bf16.mxu0 0
    %3043 = vmatpush1.bf16.msra.mxu0 0
    %3044 = vmatprep.subr.bf16.mxu0 0
    %3045 = vmatpush1.bf16.msra.mxu0 0
    %3046 = vmatprep.subr.bf16.mxu0 0
    %3047 = vmatpush1.bf16.msra.mxu0 0
    %3048 = vmatprep.subr.bf16.mxu0 0
    %3049 = vmatpush1.bf16.msra.mxu0 0
    %3050 = vmatprep.subr.bf16.mxu0 0
    %3051 = vmatpush1.bf16.msra.mxu0 0
    %3052 = vmatprep.subr.bf16.mxu0 0
    %3053 = vmatpush1.bf16.msra.mxu0 0
    %3054 = vmatprep.subr.bf16.mxu0 0
    %3055 = vmatpush1.bf16.msra.mxu0 0
    %3056 = vmatprep.subr.bf16.mxu0 0
    %3057 = vmatpush1.bf16.msra.mxu0 0
    %3058 = vmatprep.mubr.bf16.mxu0 0
    %3059 = vmatmul.mubr.bf16.gmra.mrb[0].mxu0 %v3021
    %v3060 = vpop.f32.mrb[0].mxu0
    %v3061 = vadd.f32 0.0, %v3060
    %v3062 = vpop.f32.mrb[0].mxu0
    %v3063 = vpop.f32.mrb[0].mxu0
    %v3064 = vpop.f32.mrb[0].mxu0
    %3065 = vdwg.mxu0
    %3067 = vrot.lane.b32.xlu0 %v2959, 96
    %v3068 = vpop.permute.xlu0 %3067
    %3070 = vrot.lane.b32.xlu0 %v2960, 96
    %v3071 = vpop.permute.xlu0 %3070
    %v3073 = vsel %vm470, %v3068, 0
    %v3076 = vsel %vm470, %v3071, 0
    %3078 = vmatprep.subr.bf16.mxu0 0
    %3079 = vmatpush1.bf16.xpose.msra.mxu0 %v3076
    %3080 = vmatprep.subr.bf16.mxu0 0
    %3081 = vmatpush1.bf16.xpose.msra.mxu0 0
    %3082 = vmatprep.subr.bf16.mxu0 0
    %3083 = vmatpush1.bf16.xpose.msra.mxu0 0
    %3084 = vmatprep.subr.bf16.mxu0 0
    %3085 = vmatpush1.bf16.xpose.msra.mxu0 0
    %3086 = vmatprep.subr.bf16.mxu0 0
    %3087 = vmatpush1.bf16.xpose.msra.mxu0 0
    %3088 = vmatprep.subr.bf16.mxu0 0
    %3089 = vmatpush1.bf16.xpose.msra.mxu0 0
    %3090 = vmatprep.subr.bf16.mxu0 0
    %3091 = vmatpush1.bf16.xpose.msra.mxu0 0
    %3092 = vmatprep.subr.bf16.mxu0 0
    %3093 = vmatpush1.bf16.xpose.msra.mxu0 0
    %3094 = vmatprep.subr.bf16.mxu0 0
    %3095 = vmatpush1.bf16.xpose.msra.mxu0 0
    %3096 = vmatprep.subr.bf16.mxu0 0
    %3097 = vmatpush1.bf16.xpose.msra.mxu0 0
    %3098 = vmatprep.subr.bf16.mxu0 0
    %3099 = vmatpush1.bf16.xpose.msra.mxu0 0
    %3100 = vmatprep.subr.bf16.mxu0 0
    %3101 = vmatpush1.bf16.xpose.msra.mxu0 0
    %3102 = vmatprep.subr.bf16.mxu0 0
    %3103 = vmatpush1.bf16.xpose.msra.mxu0 0
    %3104 = vmatprep.subr.bf16.mxu0 0
    %3105 = vmatpush1.bf16.xpose.msra.mxu0 0
    %3106 = vmatprep.subr.bf16.mxu0 0
    %3107 = vmatpush1.bf16.xpose.msra.mxu0 0
    %3108 = vmatprep.subr.bf16.mxu0 0
    %3109 = vmatpush1.bf16.xpose.msra.mxu0 0
    %3110 = vmatprep.mubr.bf16.mxu0 0
    %3111 = vmatmul.mubr.bf16.gmra.mrb[0].mxu0 %v3073
    %v3112 = vpop.f32.mrb[0].mxu0
    %v3113 = vadd.f32 0.0, %v3112
    %v3114 = vpop.f32.mrb[0].mxu0
    %v3115 = vpop.f32.mrb[0].mxu0
    %v3116 = vpop.f32.mrb[0].mxu0
    %3117 = vdwg.mxu0
    %v3118 = vsel %vm517, %v3113, -inf
    %3119 = vmax.xlane.f32.xlu0 %v3118
    %v3120 = vpop.xlane.xlu0 %3119
    %v3121 = vsub.f32 %v3113, %v3120
    %v3122 = vmul.f32 %v3121, 1.442695
    %v3123 = vpow.pop %v3122
    %v3124 = vsel %vm517, %v3123, 0.0
    %3125 = vadd.xlane.f32.xlu0 %v3124
    %v3126 = vpop.xlane.xlu0 %3125
    %v3127 = vrcp.pop %v3126
    %v3128 = vmul.f32 %v3123, %v3127
    %v3129 = vpack.c.bf16 %v3128, %v3128
    %3131 = vrot.lane.b32.xlu0 %v2961, 96
    %v3132 = vpop.permute.xlu0 %3131
    %v3134 = vsel %vm517, %v3129, 0
    %v3137 = vsel %vm533, %v3132, 0
    %3139 = vmatprep.subr.bf16.mxu0 0
    %3140 = vmatpush1.bf16.msra.mxu0 %v3137
    %3141 = vmatprep.subr.bf16.mxu0 0
    %3142 = vmatpush1.bf16.msra.mxu0 0
    %3143 = vmatprep.subr.bf16.mxu0 0
    %3144 = vmatpush1.bf16.msra.mxu0 0
    %3145 = vmatprep.subr.bf16.mxu0 0
    %3146 = vmatpush1.bf16.msra.mxu0 0
    %3147 = vmatprep.subr.bf16.mxu0 0
    %3148 = vmatpush1.bf16.msra.mxu0 0
    %3149 = vmatprep.subr.bf16.mxu0 0
    %3150 = vmatpush1.bf16.msra.mxu0 0
    %3151 = vmatprep.subr.bf16.mxu0 0
    %3152 = vmatpush1.bf16.msra.mxu0 0
    %3153 = vmatprep.subr.bf16.mxu0 0
    %3154 = vmatpush1.bf16.msra.mxu0 0
    %3155 = vmatprep.subr.bf16.mxu0 0
    %3156 = vmatpush1.bf16.msra.mxu0 0
    %3157 = vmatprep.subr.bf16.mxu0 0
    %3158 = vmatpush1.bf16.msra.mxu0 0
    %3159 = vmatprep.subr.bf16.mxu0 0
    %3160 = vmatpush1.bf16.msra.mxu0 0
    %3161 = vmatprep.subr.bf16.mxu0 0
    %3162 = vmatpush1.bf16.msra.mxu0 0
    %3163 = vmatprep.subr.bf16.mxu0 0
    %3164 = vmatpush1.bf16.msra.mxu0 0
    %3165 = vmatprep.subr.bf16.mxu0 0
    %3166 = vmatpush1.bf16.msra.mxu0 0
    %3167 = vmatprep.subr.bf16.mxu0 0
    %3168 = vmatpush1.bf16.msra.mxu0 0
    %3169 = vmatprep.subr.bf16.mxu0 0
    %3170 = vmatpush1.bf16.msra.mxu0 0
    %3171 = vmatprep.mubr.bf16.mxu0 0
    %3172 = vmatmul.mubr.bf16.gmra.mrb[0].mxu0 %v3134
    %v3173 = vpop.f32.mrb[0].mxu0
    %v3174 = vadd.f32 0.0, %v3173
    %v3175 = vpop.f32.mrb[0].mxu0
    %v3176 = vpop.f32.mrb[0].mxu0
    %v3177 = vpop.f32.mrb[0].mxu0
    %3178 = vdwg.mxu0
    %3179 = vrot.lane.b32.xlu0 %v2959, 64
    %v3180 = vpop.permute.xlu0 %3179
    %3181 = vrot.lane.b32.xlu0 %v2960, 64
    %v3182 = vpop.permute.xlu0 %3181
    %v3184 = vsel %vm470, %v3180, 0
    %v3187 = vsel %vm470, %v3182, 0
    %3189 = vmatprep.subr.bf16.mxu0 0
    %3190 = vmatpush1.bf16.xpose.msra.mxu0 %v3187
    %3191 = vmatprep.subr.bf16.mxu0 0
    %3192 = vmatpush1.bf16.xpose.msra.mxu0 0
    %3193 = vmatprep.subr.bf16.mxu0 0
    %3194 = vmatpush1.bf16.xpose.msra.mxu0 0
    %3195 = vmatprep.subr.bf16.mxu0 0
    %3196 = vmatpush1.bf16.xpose.msra.mxu0 0
    %3197 = vmatprep.subr.bf16.mxu0 0
    %3198 = vmatpush1.bf16.xpose.msra.mxu0 0
    %3199 = vmatprep.subr.bf16.mxu0 0
    %3200 = vmatpush1.bf16.xpose.msra.mxu0 0
    %3201 = vmatprep.subr.bf16.mxu0 0
    %3202 = vmatpush1.bf16.xpose.msra.mxu0 0
    %3203 = vmatprep.subr.bf16.mxu0 0
    %3204 = vmatpush1.bf16.xpose.msra.mxu0 0
    %3205 = vmatprep.subr.bf16.mxu0 0
    %3206 = vmatpush1.bf16.xpose.msra.mxu0 0
    %3207 = vmatprep.subr.bf16.mxu0 0
    %3208 = vmatpush1.bf16.xpose.msra.mxu0 0
    %3209 = vmatprep.subr.bf16.mxu0 0
    %3210 = vmatpush1.bf16.xpose.msra.mxu0 0
    %3211 = vmatprep.subr.bf16.mxu0 0
    %3212 = vmatpush1.bf16.xpose.msra.mxu0 0
    %3213 = vmatprep.subr.bf16.mxu0 0
    %3214 = vmatpush1.bf16.xpose.msra.mxu0 0
    %3215 = vmatprep.subr.bf16.mxu0 0
    %3216 = vmatpush1.bf16.xpose.msra.mxu0 0
    %3217 = vmatprep.subr.bf16.mxu0 0
    %3218 = vmatpush1.bf16.xpose.msra.mxu0 0
    %3219 = vmatprep.subr.bf16.mxu0 0
    %3220 = vmatpush1.bf16.xpose.msra.mxu0 0
    %3221 = vmatprep.mubr.bf16.mxu0 0
    %3222 = vmatmul.mubr.bf16.gmra.mrb[0].mxu0 %v3184
    %v3223 = vpop.f32.mrb[0].mxu0
    %v3224 = vadd.f32 0.0, %v3223
    %v3225 = vpop.f32.mrb[0].mxu0
    %v3226 = vpop.f32.mrb[0].mxu0
    %v3227 = vpop.f32.mrb[0].mxu0
    %3228 = vdwg.mxu0
    %v3229 = vsel %vm517, %v3224, -inf
    %3230 = vmax.xlane.f32.xlu0 %v3229
    %v3231 = vpop.xlane.xlu0 %3230
    %v3232 = vsub.f32 %v3224, %v3231
    %v3233 = vmul.f32 %v3232, 1.442695
    %v3234 = vpow.pop %v3233
    %v3235 = vsel %vm517, %v3234, 0.0
    %3236 = vadd.xlane.f32.xlu0 %v3235
    %v3237 = vpop.xlane.xlu0 %3236
    %v3238 = vrcp.pop %v3237
    %v3239 = vmul.f32 %v3234, %v3238
    %v3240 = vpack.c.bf16 %v3239, %v3239
    %3241 = vrot.lane.b32.xlu0 %v2961, 64
    %v3242 = vpop.permute.xlu0 %3241
    %v3244 = vsel %vm517, %v3240, 0
    %v3247 = vsel %vm533, %v3242, 0
    %3249 = vmatprep.subr.bf16.mxu0 0
    %3250 = vmatpush1.bf16.msra.mxu0 %v3247
    %3251 = vmatprep.subr.bf16.mxu0 0
    %3252 = vmatpush1.bf16.msra.mxu0 0
    %3253 = vmatprep.subr.bf16.mxu0 0
    %3254 = vmatpush1.bf16.msra.mxu0 0
    %3255 = vmatprep.subr.bf16.mxu0 0
    %3256 = vmatpush1.bf16.msra.mxu0 0
    %3257 = vmatprep.subr.bf16.mxu0 0
    %3258 = vmatpush1.bf16.msra.mxu0 0
    %3259 = vmatprep.subr.bf16.mxu0 0
    %3260 = vmatpush1.bf16.msra.mxu0 0
    %3261 = vmatprep.subr.bf16.mxu0 0
    %3262 = vmatpush1.bf16.msra.mxu0 0
    %3263 = vmatprep.subr.bf16.mxu0 0
    %3264 = vmatpush1.bf16.msra.mxu0 0
    %3265 = vmatprep.subr.bf16.mxu0 0
    %3266 = vmatpush1.bf16.msra.mxu0 0
    %3267 = vmatprep.subr.bf16.mxu0 0
    %3268 = vmatpush1.bf16.msra.mxu0 0
    %3269 = vmatprep.subr.bf16.mxu0 0
    %3270 = vmatpush1.bf16.msra.mxu0 0
    %3271 = vmatprep.subr.bf16.mxu0 0
    %3272 = vmatpush1.bf16.msra.mxu0 0
    %3273 = vmatprep.subr.bf16.mxu0 0
    %3274 = vmatpush1.bf16.msra.mxu0 0
    %3275 = vmatprep.subr.bf16.mxu0 0
    %3276 = vmatpush1.bf16.msra.mxu0 0
    %3277 = vmatprep.subr.bf16.mxu0 0
    %3278 = vmatpush1.bf16.msra.mxu0 0
    %3279 = vmatprep.subr.bf16.mxu0 0
    %3280 = vmatpush1.bf16.msra.mxu0 0
    %3281 = vmatprep.mubr.bf16.mxu0 0
    %3282 = vmatmul.mubr.bf16.gmra.mrb[0].mxu0 %v3244
    %v3283 = vpop.f32.mrb[0].mxu0
    %v3284 = vadd.f32 0.0, %v3283
    %v3285 = vpop.f32.mrb[0].mxu0
    %v3286 = vpop.f32.mrb[0].mxu0
    %v3287 = vpop.f32.mrb[0].mxu0
    %3288 = vdwg.mxu0
    %3289 = vrot.lane.b32.xlu0 %v2959, 32
    %v3290 = vpop.permute.xlu0 %3289
    %3291 = vrot.lane.b32.xlu0 %v2960, 32
    %v3292 = vpop.permute.xlu0 %3291
    %v3294 = vsel %vm470, %v3290, 0
    %v3297 = vsel %vm470, %v3292, 0
    %3299 = vmatprep.subr.bf16.mxu0 0
    %3300 = vmatpush1.bf16.xpose.msra.mxu0 %v3297
    %3301 = vmatprep.subr.bf16.mxu0 0
    %3302 = vmatpush1.bf16.xpose.msra.mxu0 0
    %3303 = vmatprep.subr.bf16.mxu0 0
    %3304 = vmatpush1.bf16.xpose.msra.mxu0 0
    %3305 = vmatprep.subr.bf16.mxu0 0
    %3306 = vmatpush1.bf16.xpose.msra.mxu0 0
    %3307 = vmatprep.subr.bf16.mxu0 0
    %3308 = vmatpush1.bf16.xpose.msra.mxu0 0
    %3309 = vmatprep.subr.bf16.mxu0 0
    %3310 = vmatpush1.bf16.xpose.msra.mxu0 0
    %3311 = vmatprep.subr.bf16.mxu0 0
    %3312 = vmatpush1.bf16.xpose.msra.mxu0 0
    %3313 = vmatprep.subr.bf16.mxu0 0
    %3314 = vmatpush1.bf16.xpose.msra.mxu0 0
    %3315 = vmatprep.subr.bf16.mxu0 0
    %3316 = vmatpush1.bf16.xpose.msra.mxu0 0
    %3317 = vmatprep.subr.bf16.mxu0 0
    %3318 = vmatpush1.bf16.xpose.msra.mxu0 0
    %3319 = vmatprep.subr.bf16.mxu0 0
    %3320 = vmatpush1.bf16.xpose.msra.mxu0 0
    %3321 = vmatprep.subr.bf16.mxu0 0
    %3322 = vmatpush1.bf16.xpose.msra.mxu0 0
    %3323 = vmatprep.subr.bf16.mxu0 0
    %3324 = vmatpush1.bf16.xpose.msra.mxu0 0
    %3325 = vmatprep.subr.bf16.mxu0 0
    %3326 = vmatpush1.bf16.xpose.msra.mxu0 0
    %3327 = vmatprep.subr.bf16.mxu0 0
    %3328 = vmatpush1.bf16.xpose.msra.mxu0 0
    %3329 = vmatprep.subr.bf16.mxu0 0
    %3330 = vmatpush1.bf16.xpose.msra.mxu0 0
    %3331 = vmatprep.mubr.bf16.mxu0 0
    %3332 = vmatmul.mubr.bf16.gmra.mrb[0].mxu0 %v3294
    %v3333 = vpop.f32.mrb[0].mxu0
    %v3334 = vadd.f32 0.0, %v3333
    %v3335 = vpop.f32.mrb[0].mxu0
    %v3336 = vpop.f32.mrb[0].mxu0
    %v3337 = vpop.f32.mrb[0].mxu0
    %3338 = vdwg.mxu0
    %v3339 = vsel %vm517, %v3334, -inf
    %3340 = vmax.xlane.f32.xlu0 %v3339
    %v3341 = vpop.xlane.xlu0 %3340
    %v3342 = vsub.f32 %v3334, %v3341
    %v3343 = vmul.f32 %v3342, 1.442695
    %v3344 = vpow.pop %v3343
    %v3345 = vsel %vm517, %v3344, 0.0
    %3346 = vadd.xlane.f32.xlu0 %v3345
    %v3347 = vpop.xlane.xlu0 %3346
    %v3348 = vrcp.pop %v3347
    %v3349 = vmul.f32 %v3344, %v3348
    %v3350 = vpack.c.bf16 %v3349, %v3349
    %3351 = vrot.lane.b32.xlu0 %v2961, 32
    %v3352 = vpop.permute.xlu0 %3351
    %v3354 = vsel %vm517, %v3350, 0
    %v3357 = vsel %vm533, %v3352, 0
    %3359 = vmatprep.subr.bf16.mxu0 0
    %3360 = vmatpush1.bf16.msra.mxu0 %v3357
    %3361 = vmatprep.subr.bf16.mxu0 0
    %3362 = vmatpush1.bf16.msra.mxu0 0
    %3363 = vmatprep.subr.bf16.mxu0 0
    %3364 = vmatpush1.bf16.msra.mxu0 0
    %3365 = vmatprep.subr.bf16.mxu0 0
    %3366 = vmatpush1.bf16.msra.mxu0 0
    %3367 = vmatprep.subr.bf16.mxu0 0
    %3368 = vmatpush1.bf16.msra.mxu0 0
    %3369 = vmatprep.subr.bf16.mxu0 0
    %3370 = vmatpush1.bf16.msra.mxu0 0
    %3371 = vmatprep.subr.bf16.mxu0 0
    %3372 = vmatpush1.bf16.msra.mxu0 0
    %3373 = vmatprep.subr.bf16.mxu0 0
    %3374 = vmatpush1.bf16.msra.mxu0 0
    %3375 = vmatprep.subr.bf16.mxu0 0
    %3376 = vmatpush1.bf16.msra.mxu0 0
    %3377 = vmatprep.subr.bf16.mxu0 0
    %3378 = vmatpush1.bf16.msra.mxu0 0
    %3379 = vmatprep.subr.bf16.mxu0 0
    %3380 = vmatpush1.bf16.msra.mxu0 0
    %3381 = vmatprep.subr.bf16.mxu0 0
    %3382 = vmatpush1.bf16.msra.mxu0 0
    %3383 = vmatprep.subr.bf16.mxu0 0
    %3384 = vmatpush1.bf16.msra.mxu0 0
    %3385 = vmatprep.subr.bf16.mxu0 0
    %3386 = vmatpush1.bf16.msra.mxu0 0
    %3387 = vmatprep.subr.bf16.mxu0 0
    %3388 = vmatpush1.bf16.msra.mxu0 0
    %3389 = vmatprep.subr.bf16.mxu0 0
    %3390 = vmatpush1.bf16.msra.mxu0 0
    %3391 = vmatprep.mubr.bf16.mxu0 0
    %3392 = vmatmul.mubr.bf16.gmra.mrb[0].mxu0 %v3354
    %v3393 = vpop.f32.mrb[0].mxu0
    %v3394 = vadd.f32 0.0, %v3393
    %v3395 = vpop.f32.mrb[0].mxu0
    %v3396 = vpop.f32.mrb[0].mxu0
    %v3397 = vpop.f32.mrb[0].mxu0
    %3398 = vdwg.mxu0
    %3400 = vrot.lane.b32.xlu0 %v3174, 32
    %v3401 = vpop.permute.xlu0 %3400
    %3404 = vrot.lane.b32.xlu0 %v3284, 64
    %v3405 = vpop.permute.xlu0 %3404
    %3408 = vrot.lane.b32.xlu0 %v3394, 96
    %v3409 = vpop.permute.xlu0 %3408
    %v3411 = vsel %vm470, %v3061, %v3401
    %v3412 = vsel %vm159, %v3411, %v3405
    %v3413 = vsel %vm924, %v3412, %v3409
    %s3414 = scalar_lea.vmem [#allocation5], 64
    %v3415 = vld [vmem:[%s3414] sm:$0xf]
    %v3416 = vld [vmem:[%s3414 + $0x4] sm:$0xf]
    %v3417 = vld [vmem:[%s3414 + $0x8] sm:$0xf]
    %v3418 = vld [vmem:[%s3414 + $0xc] sm:$0xf]
    %v3419 = vld [vmem:[%s3414 + $0x10] sm:$0xf]
    %v3420 = vld [vmem:[%s3414 + $0x14] sm:$0xf]
    %v3421 = vld [vmem:[%s3414 + $0x18] sm:$0xf]
    %v3422 = vld [vmem:[%s3414 + $0x1c] sm:$0xf]
    %v3423 = vld [vmem:[%s3414 + $0x20] sm:$0xf]
    %v3424 = vld [vmem:[%s3414 + $0x24] sm:$0xf]
    %v3425 = vld [vmem:[%s3414 + $0x28] sm:$0xf]
    %v3426 = vld [vmem:[%s3414 + $0x2c] sm:$0xf]
    %v3427 = vld [vmem:[%s3414 + $0x30] sm:$0xf]
    %v3428 = vld [vmem:[%s3414 + $0x34] sm:$0xf]
    %v3429 = vld [vmem:[%s3414 + $0x38] sm:$0xf]
    %v3430 = vld [vmem:[%s3414 + $0x3c] sm:$0xf]
    %s3431 = scalar_lea.vmem %s6, 1
    %v3432 = vld [vmem:[%s3431] sm:$0x1]
    %v3433 = vpack.c.bf16 %v3413, %v2957
    %v3435 = vlaneseq
    %v3436 = vshrl.u32 %v3435, 7
    %v3437 = vsub.s32 0, %v3436
    %v3438 = vrot.slane %v3432, %v3437
    %v3456 = vunpack.c.l.b16 %v3415
    %v3457 = vunpack.c.l.b16 %v3416
    %v3458 = vunpack.c.l.b16 %v3417
    %v3459 = vunpack.c.l.b16 %v3418
    %v3460 = vunpack.c.l.b16 %v3419
    %v3461 = vunpack.c.l.b16 %v3420
    %v3462 = vunpack.c.l.b16 %v3421
    %v3463 = vunpack.c.l.b16 %v3422
    %v3464 = vunpack.c.l.b16 %v3423
    %v3465 = vunpack.c.l.b16 %v3424
    %v3466 = vunpack.c.l.b16 %v3425
    %v3467 = vunpack.c.l.b16 %v3426
    %v3468 = vunpack.c.l.b16 %v3427
    %v3469 = vunpack.c.l.b16 %v3428
    %v3470 = vunpack.c.l.b16 %v3429
    %v3471 = vunpack.c.l.b16 %v3430
    %v3472 = vpack.c.b16 %v3457, %v3456
    %v3473 = vpack.c.b16 %v3459, %v3458
    %v3474 = vpack.c.b16 %v3461, %v3460
    %v3475 = vpack.c.b16 %v3463, %v3462
    %v3476 = vpack.c.b16 %v3465, %v3464
    %v3477 = vpack.c.b16 %v3467, %v3466
    %v3478 = vpack.c.b16 %v3469, %v3468
    %v3479 = vpack.c.b16 %v3471, %v3470
    %3488 = vmatprep.subr.bf16.mxu0 0
    %3489 = vmatpush1.bf16.msra.mxu0 %v3472
    %3490 = vmatprep.subr.bf16.mxu0 0
    %3491 = vmatpush1.bf16.msra.mxu0 %v3473
    %3492 = vmatprep.subr.bf16.mxu0 0
    %3493 = vmatpush1.bf16.msra.mxu0 %v3474
    %3494 = vmatprep.subr.bf16.mxu0 0
    %3495 = vmatpush1.bf16.msra.mxu0 %v3475
    %3496 = vmatprep.subr.bf16.mxu0 0
    %3497 = vmatpush1.bf16.msra.mxu0 %v3476
    %3498 = vmatprep.subr.bf16.mxu0 0
    %3499 = vmatpush1.bf16.msra.mxu0 %v3477
    %3500 = vmatprep.subr.bf16.mxu0 0
    %3501 = vmatpush1.bf16.msra.mxu0 %v3478
    %3502 = vmatprep.subr.bf16.mxu0 0
    %3503 = vmatpush1.bf16.msra.mxu0 %v3479
    %3504 = vmatprep.subr.bf16.mxu0 0
    %3505 = vmatpush1.bf16.msra.mxu0 0
    %3506 = vmatprep.subr.bf16.mxu0 0
    %3507 = vmatpush1.bf16.msra.mxu0 0
    %3508 = vmatprep.subr.bf16.mxu0 0
    %3509 = vmatpush1.bf16.msra.mxu0 0
    %3510 = vmatprep.subr.bf16.mxu0 0
    %3511 = vmatpush1.bf16.msra.mxu0 0
    %3512 = vmatprep.subr.bf16.mxu0 0
    %3513 = vmatpush1.bf16.msra.mxu0 0
    %3514 = vmatprep.subr.bf16.mxu0 0
    %3515 = vmatpush1.bf16.msra.mxu0 0
    %3516 = vmatprep.subr.bf16.mxu0 0
    %3517 = vmatpush1.bf16.msra.mxu0 0
    %3518 = vmatprep.subr.bf16.mxu0 0
    %3519 = vmatpush1.bf16.msra.mxu0 0
    %3520 = vmatprep.mubr.bf16.mxu0 0
    %3521 = vmatmul.mubr.bf16.gmra.mrb[0].mxu0 %v3433
    %v3522 = vpop.f32.mrb[0].mxu0
    %v3523 = vadd.f32 %v3438, %v3522
    %v3524 = vpop.f32.mrb[0].mxu0
    %v3525 = vpop.f32.mrb[0].mxu0
    %v3526 = vadd.f32 %v3438, %v3525
    %v3527 = vpop.f32.mrb[0].mxu0
    %3528 = vdwg.mxu0
    %v3529 = vadd.f32 %v2236, %v3523
    %v3530 = vadd.f32 %v2237, %v3526
    %s3531 = scalar_lea.vmem %s7, 1
    %v3532 = vld [vmem:[%s3531] sm:$0x1]
    %s3533 = scalar_lea.vmem %s8, 1
    %v3534 = vld [vmem:[%s3533] sm:$0x1]
    %3535 = vadd.xlane.f32.xlu0 %v3529
    %v3536 = vpop.xlane.xlu0 %3535
    %3537 = vadd.xlane.f32.xlu0 %v3530
    %v3538 = vpop.xlane.xlu0 %3537
    %v3539 = vmul.f32 %v3536, %v1503
    %v3540 = vmul.f32 %v3538, %v1503
    %v3541 = vsub.f32 %v3529, %v3539
    %v3542 = vsub.f32 %v3530, %v3540
    %v3543 = vmul.f32 %v3541, %v3541
    %v3544 = vmul.f32 %v3542, %v3542
    %3545 = vadd.xlane.f32.xlu0 %v3543
    %v3546 = vpop.xlane.xlu0 %3545
    %3547 = vadd.xlane.f32.xlu0 %v3544
    %v3548 = vpop.xlane.xlu0 %3547
    %v3549 = vmul.f32 %v3546, %v1503
    %v3550 = vmul.f32 %v3548, %v1503
    %v3551 = vadd.f32 %v3549, 1e-05
    %v3552 = vadd.f32 %v3550, 1e-05
    %v3553 = vrsqrt.pop %v3551
    %v3554 = vrsqrt.pop %v3552
    %v3555 = vmul.f32 %v3541, %v3553
    %v3556 = vmul.f32 %v3542, %v3554
    %v3558 = vlaneseq
    %v3559 = vshrl.u32 %v3558, 7
    %v3560 = vsub.s32 0, %v3559
    %v3561 = vrot.slane %v3532, %v3560
    %v3563 = vmul.f32 %v3555, %v3561
    %v3564 = vmul.f32 %v3556, %v3561
    %v3566 = vlaneseq
    %v3567 = vshrl.u32 %v3566, 7
    %v3568 = vsub.s32 0, %v3567
    %v3569 = vrot.slane %v3534, %v3568
    %v3571 = vadd.f32 %v3563, %v3569
    %v3572 = vadd.f32 %v3564, %v3569
    %s3573 = scalar_lea.vmem [#allocation7], 256
    %v3574 = vld [vmem:[%s3573] sm:$0xff]
    %v3575 = vld [vmem:[%s3573 + $0x8] sm:$0xff]
    %v3576 = vld [vmem:[%s3573 + $0x10] sm:$0xff]
    %v3577 = vld [vmem:[%s3573 + $0x18] sm:$0xff]
    %v3578 = vld [vmem:[%s3573 + $0x20] sm:$0xff]
    %v3579 = vld [vmem:[%s3573 + $0x28] sm:$0xff]
    %v3580 = vld [vmem:[%s3573 + $0x30] sm:$0xff]
    %v3581 = vld [vmem:[%s3573 + $0x38] sm:$0xff]
    %v3582 = vld [vmem:[%s3573 + $0x40] sm:$0xff]
    %v3583 = vld [vmem:[%s3573 + $0x48] sm:$0xff]
    %v3584 = vld [vmem:[%s3573 + $0x50] sm:$0xff]
    %v3585 = vld [vmem:[%s3573 + $0x58] sm:$0xff]
    %v3586 = vld [vmem:[%s3573 + $0x60] sm:$0xff]
    %v3587 = vld [vmem:[%s3573 + $0x68] sm:$0xff]
    %v3588 = vld [vmem:[%s3573 + $0x70] sm:$0xff]
    %v3589 = vld [vmem:[%s3573 + $0x78] sm:$0xff]
    %v3590 = vld [vmem:[%s3573 + $0x80] sm:$0xff]
    %v3591 = vld [vmem:[%s3573 + $0x88] sm:$0xff]
    %v3592 = vld [vmem:[%s3573 + $0x90] sm:$0xff]
    %v3593 = vld [vmem:[%s3573 + $0x98] sm:$0xff]
    %v3594 = vld [vmem:[%s3573 + $0xa0] sm:$0xff]
    %v3595 = vld [vmem:[%s3573 + $0xa8] sm:$0xff]
    %v3596 = vld [vmem:[%s3573 + $0xb0] sm:$0xff]
    %v3597 = vld [vmem:[%s3573 + $0xb8] sm:$0xff]
    %v3598 = vld [vmem:[%s3573 + $0xc0] sm:$0xff]
    %v3599 = vld [vmem:[%s3573 + $0xc8] sm:$0xff]
    %v3600 = vld [vmem:[%s3573 + $0xd0] sm:$0xff]
    %v3601 = vld [vmem:[%s3573 + $0xd8] sm:$0xff]
    %v3602 = vld [vmem:[%s3573 + $0xe0] sm:$0xff]
    %v3603 = vld [vmem:[%s3573 + $0xe8] sm:$0xff]
    %v3604 = vld [vmem:[%s3573 + $0xf0] sm:$0xff]
    %v3605 = vld [vmem:[%s3573 + $0xf8] sm:$0xff]
    %s3606 = scalar_lea.vmem %s10, 4
    %v3607 = vld [vmem:[%s3606] sm:$0xf]
    %v3608 = vpack.c.bf16 %v3572, %v3571
    %v3610 = vlaneseq
    %v3611 = vshrl.u32 %v3610, 7
    %v3612 = vsub.s32 0, %v3611
    %v3613 = vrot.slane %v3607, %v3612
    %v3614 = vlaneseq
    %v3615 = vshrl.u32 %v3614, 7
    %v3616 = vsub.s32 1, %v3615
    %v3617 = vrot.slane %v3607, %v3616
    %v3618 = vlaneseq
    %v3619 = vshrl.u32 %v3618, 7
    %v3620 = vsub.s32 2, %v3619
    %v3621 = vrot.slane %v3607, %v3620
    %v3622 = vlaneseq
    %v3623 = vshrl.u32 %v3622, 7
    %v3624 = vsub.s32 3, %v3623
    %v3625 = vrot.slane %v3607, %v3624
    %v3662 = vunpack.c.l.b16 %v3574
    %v3663 = vunpack.c.h.b16 %v3574
    %v3664 = vunpack.c.l.b16 %v3575
    %v3665 = vunpack.c.h.b16 %v3575
    %v3666 = vunpack.c.l.b16 %v3576
    %v3667 = vunpack.c.h.b16 %v3576
    %v3668 = vunpack.c.l.b16 %v3577
    %v3669 = vunpack.c.h.b16 %v3577
    %v3670 = vunpack.c.l.b16 %v3578
    %v3671 = vunpack.c.h.b16 %v3578
    %v3672 = vunpack.c.l.b16 %v3579
    %v3673 = vunpack.c.h.b16 %v3579
    %v3674 = vunpack.c.l.b16 %v3580
    %v3675 = vunpack.c.h.b16 %v3580
    %v3676 = vunpack.c.l.b16 %v3581
    %v3677 = vunpack.c.h.b16 %v3581
    %v3678 = vunpack.c.l.b16 %v3582
    %v3679 = vunpack.c.h.b16 %v3582
    %v3680 = vunpack.c.l.b16 %v3583
    %v3681 = vunpack.c.h.b16 %v3583
    %v3682 = vunpack.c.l.b16 %v3584
    %v3683 = vunpack.c.h.b16 %v3584
    %v3684 = vunpack.c.l.b16 %v3585
    %v3685 = vunpack.c.h.b16 %v3585
    %v3686 = vunpack.c.l.b16 %v3586
    %v3687 = vunpack.c.h.b16 %v3586
    %v3688 = vunpack.c.l.b16 %v3587
    %v3689 = vunpack.c.h.b16 %v3587
    %v3690 = vunpack.c.l.b16 %v3588
    %v3691 = vunpack.c.h.b16 %v3588
    %v3692 = vunpack.c.l.b16 %v3589
    %v3693 = vunpack.c.h.b16 %v3589
    %v3694 = vunpack.c.l.b16 %v3590
    %v3695 = vunpack.c.h.b16 %v3590
    %v3696 = vunpack.c.l.b16 %v3591
    %v3697 = vunpack.c.h.b16 %v3591
    %v3698 = vunpack.c.l.b16 %v3592
    %v3699 = vunpack.c.h.b16 %v3592
    %v3700 = vunpack.c.l.b16 %v3593
    %v3701 = vunpack.c.h.b16 %v3593
    %v3702 = vunpack.c.l.b16 %v3594
    %v3703 = vunpack.c.h.b16 %v3594
    %v3704 = vunpack.c.l.b16 %v3595
    %v3705 = vunpack.c.h.b16 %v3595
    %v3706 = vunpack.c.l.b16 %v3596
    %v3707 = vunpack.c.h.b16 %v3596
    %v3708 = vunpack.c.l.b16 %v3597
    %v3709 = vunpack.c.h.b16 %v3597
    %v3710 = vunpack.c.l.b16 %v3598
    %v3711 = vunpack.c.h.b16 %v3598
    %v3712 = vunpack.c.l.b16 %v3599
    %v3713 = vunpack.c.h.b16 %v3599
    %v3714 = vunpack.c.l.b16 %v3600
    %v3715 = vunpack.c.h.b16 %v3600
    %v3716 = vunpack.c.l.b16 %v3601
    %v3717 = vunpack.c.h.b16 %v3601
    %v3718 = vunpack.c.l.b16 %v3602
    %v3719 = vunpack.c.h.b16 %v3602
    %v3720 = vunpack.c.l.b16 %v3603
    %v3721 = vunpack.c.h.b16 %v3603
    %v3722 = vunpack.c.l.b16 %v3604
    %v3723 = vunpack.c.h.b16 %v3604
    %v3724 = vunpack.c.l.b16 %v3605
    %v3725 = vunpack.c.h.b16 %v3605
    %v3726 = vpack.c.b16 %v3666, %v3662
    %v3727 = vpack.c.b16 %v3667, %v3663
    %v3728 = vpack.c.b16 %v3668, %v3664
    %v3729 = vpack.c.b16 %v3669, %v3665
    %v3730 = vpack.c.b16 %v3674, %v3670
    %v3731 = vpack.c.b16 %v3675, %v3671
    %v3732 = vpack.c.b16 %v3676, %v3672
    %v3733 = vpack.c.b16 %v3677, %v3673
    %v3734 = vpack.c.b16 %v3682, %v3678
    %v3735 = vpack.c.b16 %v3683, %v3679
    %v3736 = vpack.c.b16 %v3684, %v3680
    %v3737 = vpack.c.b16 %v3685, %v3681
    %v3738 = vpack.c.b16 %v3690, %v3686
    %v3739 = vpack.c.b16 %v3691, %v3687
    %v3740 = vpack.c.b16 %v3692, %v3688
    %v3741 = vpack.c.b16 %v3693, %v3689
    %v3742 = vpack.c.b16 %v3698, %v3694
    %v3743 = vpack.c.b16 %v3699, %v3695
    %v3744 = vpack.c.b16 %v3700, %v3696
    %v3745 = vpack.c.b16 %v3701, %v3697
    %v3746 = vpack.c.b16 %v3706, %v3702
    %v3747 = vpack.c.b16 %v3707, %v3703
    %v3748 = vpack.c.b16 %v3708, %v3704
    %v3749 = vpack.c.b16 %v3709, %v3705
    %v3750 = vpack.c.b16 %v3714, %v3710
    %v3751 = vpack.c.b16 %v3715, %v3711
    %v3752 = vpack.c.b16 %v3716, %v3712
    %v3753 = vpack.c.b16 %v3717, %v3713
    %v3754 = vpack.c.b16 %v3722, %v3718
    %v3755 = vpack.c.b16 %v3723, %v3719
    %v3756 = vpack.c.b16 %v3724, %v3720
    %v3757 = vpack.c.b16 %v3725, %v3721
    %3790 = vmatprep.subr.bf16.mxu0 %v3727
    %3791 = vmatpush1.bf16.msra.mxu0 %v3726
    %3792 = vmatprep.subr.bf16.mxu0 %v3731
    %3793 = vmatpush1.bf16.msra.mxu0 %v3730
    %3794 = vmatprep.subr.bf16.mxu0 %v3735
    %3795 = vmatpush1.bf16.msra.mxu0 %v3734
    %3796 = vmatprep.subr.bf16.mxu0 %v3739
    %3797 = vmatpush1.bf16.msra.mxu0 %v3738
    %3798 = vmatprep.subr.bf16.mxu0 %v3743
    %3799 = vmatpush1.bf16.msra.mxu0 %v3742
    %3800 = vmatprep.subr.bf16.mxu0 %v3747
    %3801 = vmatpush1.bf16.msra.mxu0 %v3746
    %3802 = vmatprep.subr.bf16.mxu0 %v3751
    %3803 = vmatpush1.bf16.msra.mxu0 %v3750
    %3804 = vmatprep.subr.bf16.mxu0 %v3755
    %3805 = vmatpush1.bf16.msra.mxu0 %v3754
    %3806 = vmatprep.subr.bf16.mxu0 0
    %3807 = vmatpush1.bf16.msra.mxu0 0
    %3808 = vmatprep.subr.bf16.mxu0 0
    %3809 = vmatpush1.bf16.msra.mxu0 0
    %3810 = vmatprep.subr.bf16.mxu0 0
    %3811 = vmatpush1.bf16.msra.mxu0 0
    %3812 = vmatprep.subr.bf16.mxu0 0
    %3813 = vmatpush1.bf16.msra.mxu0 0
    %3814 = vmatprep.subr.bf16.mxu0 0
    %3815 = vmatpush1.bf16.msra.mxu0 0
    %3816 = vmatprep.subr.bf16.mxu0 0
    %3817 = vmatpush1.bf16.msra.mxu0 0
    %3818 = vmatprep.subr.bf16.mxu0 0
    %3819 = vmatpush1.bf16.msra.mxu0 0
    %3820 = vmatprep.subr.bf16.mxu0 0
    %3821 = vmatpush1.bf16.msra.mxu0 0
    %3822 = vmatprep.mubr.bf16.mxu0 0
    %3823 = vmatmul.mubr.bf16.gmra.mrb[0].mxu0 %v3608
    %v3824 = vpop.f32.mrb[0].mxu0
    %v3825 = vadd.f32 %v3613, %v3824
    %v3826 = vpop.f32.mrb[0].mxu0
    %v3827 = vadd.f32 %v3617, %v3826
    %v3828 = vpop.f32.mrb[0].mxu0
    %v3829 = vadd.f32 %v3613, %v3828
    %v3830 = vpop.f32.mrb[0].mxu0
    %v3831 = vadd.f32 %v3617, %v3830
    %3832 = vdwg.mxu0
    %3833 = vmatprep.subr.bf16.mxu0 %v3729
    %3834 = vmatpush1.bf16.msra.mxu0 %v3728
    %3835 = vmatprep.subr.bf16.mxu0 %v3733
    %3836 = vmatpush1.bf16.msra.mxu0 %v3732
    %3837 = vmatprep.subr.bf16.mxu0 %v3737
    %3838 = vmatpush1.bf16.msra.mxu0 %v3736
    %3839 = vmatprep.subr.bf16.mxu0 %v3741
    %3840 = vmatpush1.bf16.msra.mxu0 %v3740
    %3841 = vmatprep.subr.bf16.mxu0 %v3745
    %3842 = vmatpush1.bf16.msra.mxu0 %v3744
    %3843 = vmatprep.subr.bf16.mxu0 %v3749
    %3844 = vmatpush1.bf16.msra.mxu0 %v3748
    %3845 = vmatprep.subr.bf16.mxu0 %v3753
    %3846 = vmatpush1.bf16.msra.mxu0 %v3752
    %3847 = vmatprep.subr.bf16.mxu0 %v3757
    %3848 = vmatpush1.bf16.msra.mxu0 %v3756
    %3849 = vmatprep.subr.bf16.mxu0 0
    %3850 = vmatpush1.bf16.msra.mxu0 0
    %3851 = vmatprep.subr.bf16.mxu0 0
    %3852 = vmatpush1.bf16.msra.mxu0 0
    %3853 = vmatprep.subr.bf16.mxu0 0
    %3854 = vmatpush1.bf16.msra.mxu0 0
    %3855 = vmatprep.subr.bf16.mxu0 0
    %3856 = vmatpush1.bf16.msra.mxu0 0
    %3857 = vmatprep.subr.bf16.mxu0 0
    %3858 = vmatpush1.bf16.msra.mxu0 0
    %3859 = vmatprep.subr.bf16.mxu0 0
    %3860 = vmatpush1.bf16.msra.mxu0 0
    %3861 = vmatprep.subr.bf16.mxu0 0
    %3862 = vmatpush1.bf16.msra.mxu0 0
    %3863 = vmatprep.subr.bf16.mxu0 0
    %3864 = vmatpush1.bf16.msra.mxu0 0
    %3865 = vmatprep.mubr.bf16.mxu0 0
    %3866 = vmatmul.mubr.bf16.gmra.mrb[0].mxu0 %v3608
    %v3867 = vpop.f32.mrb[0].mxu0
    %v3868 = vadd.f32 %v3621, %v3867
    %v3869 = vpop.f32.mrb[0].mxu0
    %v3870 = vadd.f32 %v3625, %v3869
    %v3871 = vpop.f32.mrb[0].mxu0
    %v3872 = vadd.f32 %v3621, %v3871
    %v3873 = vpop.f32.mrb[0].mxu0
    %v3874 = vadd.f32 %v3625, %v3873
    %3875 = vdwg.mxu0
    %v3876 = vmax.f32 %v3825, 0.0
    %v3877 = vmax.f32 %v3827, 0.0
    %v3878 = vmax.f32 %v3868, 0.0
    %v3879 = vmax.f32 %v3870, 0.0
    %v3880 = vmax.f32 %v3829, 0.0
    %v3881 = vmax.f32 %v3831, 0.0
    %v3882 = vmax.f32 %v3872, 0.0
    %v3883 = vmax.f32 %v3874, 0.0
    %s3884 = scalar_lea.vmem [#allocation8], 256
    %v3885 = vld [vmem:[%s3884] sm:$0xf]
    %v3886 = vld [vmem:[%s3884 + $0x4] sm:$0xf]
    %v3887 = vld [vmem:[%s3884 + $0x8] sm:$0xf]
    %v3888 = vld [vmem:[%s3884 + $0xc] sm:$0xf]
    %v3889 = vld [vmem:[%s3884 + $0x10] sm:$0xf]
    %v3890 = vld [vmem:[%s3884 + $0x14] sm:$0xf]
    %v3891 = vld [vmem:[%s3884 + $0x18] sm:$0xf]
    %v3892 = vld [vmem:[%s3884 + $0x1c] sm:$0xf]
    %v3893 = vld [vmem:[%s3884 + $0x20] sm:$0xf]
    %v3894 = vld [vmem:[%s3884 + $0x24] sm:$0xf]
    %v3895 = vld [vmem:[%s3884 + $0x28] sm:$0xf]
    %v3896 = vld [vmem:[%s3884 + $0x2c] sm:$0xf]
    %v3897 = vld [vmem:[%s3884 + $0x30] sm:$0xf]
    %v3898 = vld [vmem:[%s3884 + $0x34] sm:$0xf]
    %v3899 = vld [vmem:[%s3884 + $0x38] sm:$0xf]
    %v3900 = vld [vmem:[%s3884 + $0x3c] sm:$0xf]
    %v3901 = vld [vmem:[%s3884 + $0x40] sm:$0xf]
    %v3902 = vld [vmem:[%s3884 + $0x44] sm:$0xf]
    %v3903 = vld [vmem:[%s3884 + $0x48] sm:$0xf]
    %v3904 = vld [vmem:[%s3884 + $0x4c] sm:$0xf]
    %v3905 = vld [vmem:[%s3884 + $0x50] sm:$0xf]
    %v3906 = vld [vmem:[%s3884 + $0x54] sm:$0xf]
    %v3907 = vld [vmem:[%s3884 + $0x58] sm:$0xf]
    %v3908 = vld [vmem:[%s3884 + $0x5c] sm:$0xf]
    %v3909 = vld [vmem:[%s3884 + $0x60] sm:$0xf]
    %v3910 = vld [vmem:[%s3884 + $0x64] sm:$0xf]
    %v3911 = vld [vmem:[%s3884 + $0x68] sm:$0xf]
    %v3912 = vld [vmem:[%s3884 + $0x6c] sm:$0xf]
    %v3913 = vld [vmem:[%s3884 + $0x70] sm:$0xf]
    %v3914 = vld [vmem:[%s3884 + $0x74] sm:$0xf]
    %v3915 = vld [vmem:[%s3884 + $0x78] sm:$0xf]
    %v3916 = vld [vmem:[%s3884 + $0x7c] sm:$0xf]
    %v3917 = vld [vmem:[%s3884 + $0x80] sm:$0xf]
    %v3918 = vld [vmem:[%s3884 + $0x84] sm:$0xf]
    %v3919 = vld [vmem:[%s3884 + $0x88] sm:$0xf]
    %v3920 = vld [vmem:[%s3884 + $0x8c] sm:$0xf]
    %v3921 = vld [vmem:[%s3884 + $0x90] sm:$0xf]
    %v3922 = vld [vmem:[%s3884 + $0x94] sm:$0xf]
    %v3923 = vld [vmem:[%s3884 + $0x98] sm:$0xf]
    %v3924 = vld [vmem:[%s3884 + $0x9c] sm:$0xf]
    %v3925 = vld [vmem:[%s3884 + $0xa0] sm:$0xf]
    %v3926 = vld [vmem:[%s3884 + $0xa4] sm:$0xf]
    %v3927 = vld [vmem:[%s3884 + $0xa8] sm:$0xf]
    %v3928 = vld [vmem:[%s3884 + $0xac] sm:$0xf]
    %v3929 = vld [vmem:[%s3884 + $0xb0] sm:$0xf]
    %v3930 = vld [vmem:[%s3884 + $0xb4] sm:$0xf]
    %v3931 = vld [vmem:[%s3884 + $0xb8] sm:$0xf]
    %v3932 = vld [vmem:[%s3884 + $0xbc] sm:$0xf]
    %v3933 = vld [vmem:[%s3884 + $0xc0] sm:$0xf]
    %v3934 = vld [vmem:[%s3884 + $0xc4] sm:$0xf]
    %v3935 = vld [vmem:[%s3884 + $0xc8] sm:$0xf]
    %v3936 = vld [vmem:[%s3884 + $0xcc] sm:$0xf]
    %v3937 = vld [vmem:[%s3884 + $0xd0] sm:$0xf]
    %v3938 = vld [vmem:[%s3884 + $0xd4] sm:$0xf]
    %v3939 = vld [vmem:[%s3884 + $0xd8] sm:$0xf]
    %v3940 = vld [vmem:[%s3884 + $0xdc] sm:$0xf]
    %v3941 = vld [vmem:[%s3884 + $0xe0] sm:$0xf]
    %v3942 = vld [vmem:[%s3884 + $0xe4] sm:$0xf]
    %v3943 = vld [vmem:[%s3884 + $0xe8] sm:$0xf]
    %v3944 = vld [vmem:[%s3884 + $0xec] sm:$0xf]
    %v3945 = vld [vmem:[%s3884 + $0xf0] sm:$0xf]
    %v3946 = vld [vmem:[%s3884 + $0xf4] sm:$0xf]
    %v3947 = vld [vmem:[%s3884 + $0xf8] sm:$0xf]
    %v3948 = vld [vmem:[%s3884 + $0xfc] sm:$0xf]
    %s3949 = scalar_lea.vmem %s12, 1
    %v3950 = vld [vmem:[%s3949] sm:$0x1]
    %v3951 = vpack.c.bf16 %v3880, %v3876
    %v3952 = vpack.c.bf16 %v3881, %v3877
    %v3953 = vpack.c.bf16 %v3882, %v3878
    %v3954 = vpack.c.bf16 %v3883, %v3879
    %v3956 = vlaneseq
    %v3957 = vshrl.u32 %v3956, 7
    %v3958 = vsub.s32 0, %v3957
    %v3959 = vrot.slane %v3950, %v3958
    %v4025 = vunpack.c.l.b16 %v3885
    %v4026 = vunpack.c.l.b16 %v3886
    %v4027 = vunpack.c.l.b16 %v3887
    %v4028 = vunpack.c.l.b16 %v3888
    %v4029 = vunpack.c.l.b16 %v3889
    %v4030 = vunpack.c.l.b16 %v3890
    %v4031 = vunpack.c.l.b16 %v3891
    %v4032 = vunpack.c.l.b16 %v3892
    %v4033 = vunpack.c.l.b16 %v3893
    %v4034 = vunpack.c.l.b16 %v3894
    %v4035 = vunpack.c.l.b16 %v3895
    %v4036 = vunpack.c.l.b16 %v3896
    %v4037 = vunpack.c.l.b16 %v3897
    %v4038 = vunpack.c.l.b16 %v3898
    %v4039 = vunpack.c.l.b16 %v3899
    %v4040 = vunpack.c.l.b16 %v3900
    %v4041 = vunpack.c.l.b16 %v3901
    %v4042 = vunpack.c.l.b16 %v3902
    %v4043 = vunpack.c.l.b16 %v3903
    %v4044 = vunpack.c.l.b16 %v3904
    %v4045 = vunpack.c.l.b16 %v3905
    %v4046 = vunpack.c.l.b16 %v3906
    %v4047 = vunpack.c.l.b16 %v3907
    %v4048 = vunpack.c.l.b16 %v3908
    %v4049 = vunpack.c.l.b16 %v3909
    %v4050 = vunpack.c.l.b16 %v3910
    %v4051 = vunpack.c.l.b16 %v3911
    %v4052 = vunpack.c.l.b16 %v3912
    %v4053 = vunpack.c.l.b16 %v3913
    %v4054 = vunpack.c.l.b16 %v3914
    %v4055 = vunpack.c.l.b16 %v3915
    %v4056 = vunpack.c.l.b16 %v3916
    %v4057 = vunpack.c.l.b16 %v3917
    %v4058 = vunpack.c.l.b16 %v3918
    %v4059 = vunpack.c.l.b16 %v3919
    %v4060 = vunpack.c.l.b16 %v3920
    %v4061 = vunpack.c.l.b16 %v3921
    %v4062 = vunpack.c.l.b16 %v3922
    %v4063 = vunpack.c.l.b16 %v3923
    %v4064 = vunpack.c.l.b16 %v3924
    %v4065 = vunpack.c.l.b16 %v3925
    %v4066 = vunpack.c.l.b16 %v3926
    %v4067 = vunpack.c.l.b16 %v3927
    %v4068 = vunpack.c.l.b16 %v3928
    %v4069 = vunpack.c.l.b16 %v3929
    %v4070 = vunpack.c.l.b16 %v3930
    %v4071 = vunpack.c.l.b16 %v3931
    %v4072 = vunpack.c.l.b16 %v3932
    %v4073 = vunpack.c.l.b16 %v3933
    %v4074 = vunpack.c.l.b16 %v3934
    %v4075 = vunpack.c.l.b16 %v3935
    %v4076 = vunpack.c.l.b16 %v3936
    %v4077 = vunpack.c.l.b16 %v3937
    %v4078 = vunpack.c.l.b16 %v3938
    %v4079 = vunpack.c.l.b16 %v3939
    %v4080 = vunpack.c.l.b16 %v3940
    %v4081 = vunpack.c.l.b16 %v3941
    %v4082 = vunpack.c.l.b16 %v3942
    %v4083 = vunpack.c.l.b16 %v3943
    %v4084 = vunpack.c.l.b16 %v3944
    %v4085 = vunpack.c.l.b16 %v3945
    %v4086 = vunpack.c.l.b16 %v3946
    %v4087 = vunpack.c.l.b16 %v3947
    %v4088 = vunpack.c.l.b16 %v3948
    %v4089 = vpack.c.b16 %v4026, %v4025
    %v4090 = vpack.c.b16 %v4028, %v4027
    %v4091 = vpack.c.b16 %v4030, %v4029
    %v4092 = vpack.c.b16 %v4032, %v4031
    %v4093 = vpack.c.b16 %v4034, %v4033
    %v4094 = vpack.c.b16 %v4036, %v4035
    %v4095 = vpack.c.b16 %v4038, %v4037
    %v4096 = vpack.c.b16 %v4040, %v4039
    %v4097 = vpack.c.b16 %v4042, %v4041
    %v4098 = vpack.c.b16 %v4044, %v4043
    %v4099 = vpack.c.b16 %v4046, %v4045
    %v4100 = vpack.c.b16 %v4048, %v4047
    %v4101 = vpack.c.b16 %v4050, %v4049
    %v4102 = vpack.c.b16 %v4052, %v4051
    %v4103 = vpack.c.b16 %v4054, %v4053
    %v4104 = vpack.c.b16 %v4056, %v4055
    %v4105 = vpack.c.b16 %v4058, %v4057
    %v4106 = vpack.c.b16 %v4060, %v4059
    %v4107 = vpack.c.b16 %v4062, %v4061
    %v4108 = vpack.c.b16 %v4064, %v4063
    %v4109 = vpack.c.b16 %v4066, %v4065
    %v4110 = vpack.c.b16 %v4068, %v4067
    %v4111 = vpack.c.b16 %v4070, %v4069
    %v4112 = vpack.c.b16 %v4072, %v4071
    %v4113 = vpack.c.b16 %v4074, %v4073
    %v4114 = vpack.c.b16 %v4076, %v4075
    %v4115 = vpack.c.b16 %v4078, %v4077
    %v4116 = vpack.c.b16 %v4080, %v4079
    %v4117 = vpack.c.b16 %v4082, %v4081
    %v4118 = vpack.c.b16 %v4084, %v4083
    %v4119 = vpack.c.b16 %v4086, %v4085
    %v4120 = vpack.c.b16 %v4088, %v4087
    %4153 = vmatprep.subr.bf16.mxu0 0
    %4154 = vmatpush1.bf16.msra.mxu0 %v4089
    %4155 = vmatprep.subr.bf16.mxu0 0
    %4156 = vmatpush1.bf16.msra.mxu0 %v4090
    %4157 = vmatprep.subr.bf16.mxu0 0
    %4158 = vmatpush1.bf16.msra.mxu0 %v4091
    %4159 = vmatprep.subr.bf16.mxu0 0
    %4160 = vmatpush1.bf16.msra.mxu0 %v4092
    %4161 = vmatprep.subr.bf16.mxu0 0
    %4162 = vmatpush1.bf16.msra.mxu0 %v4093
    %4163 = vmatprep.subr.bf16.mxu0 0
    %4164 = vmatpush1.bf16.msra.mxu0 %v4094
    %4165 = vmatprep.subr.bf16.mxu0 0
    %4166 = vmatpush1.bf16.msra.mxu0 %v4095
    %4167 = vmatprep.subr.bf16.mxu0 0
    %4168 = vmatpush1.bf16.msra.mxu0 %v4096
    %4169 = vmatprep.subr.bf16.mxu0 0
    %4170 = vmatpush1.bf16.msra.mxu0 %v4097
    %4171 = vmatprep.subr.bf16.mxu0 0
    %4172 = vmatpush1.bf16.msra.mxu0 %v4098
    %4173 = vmatprep.subr.bf16.mxu0 0
    %4174 = vmatpush1.bf16.msra.mxu0 %v4099
    %4175 = vmatprep.subr.bf16.mxu0 0
    %4176 = vmatpush1.bf16.msra.mxu0 %v4100
    %4177 = vmatprep.subr.bf16.mxu0 0
    %4178 = vmatpush1.bf16.msra.mxu0 %v4101
    %4179 = vmatprep.subr.bf16.mxu0 0
    %4180 = vmatpush1.bf16.msra.mxu0 %v4102
    %4181 = vmatprep.subr.bf16.mxu0 0
    %4182 = vmatpush1.bf16.msra.mxu0 %v4103
    %4183 = vmatprep.subr.bf16.mxu0 0
    %4184 = vmatpush1.bf16.msra.mxu0 %v4104
    %4185 = vmatprep.mubr.bf16.mxu0 %v3952
    %4186 = vmatmul.mubr.bf16.gmra.mrb[0].mxu0 %v3951
    %v4187 = vpop.f32.mrb[0].mxu0
    %v4188 = vadd.f32 %v3959, %v4187
    %v4189 = vpop.f32.mrb[0].mxu0
    %v4190 = vpop.f32.mrb[0].mxu0
    %v4191 = vadd.f32 %v3959, %v4190
    %v4192 = vpop.f32.mrb[0].mxu0
    %4193 = vdwg.mxu0
    %4194 = vmatprep.subr.bf16.mxu0 0
    %4195 = vmatpush1.bf16.msra.mxu0 %v4105
    %4196 = vmatprep.subr.bf16.mxu0 0
    %4197 = vmatpush1.bf16.msra.mxu0 %v4106
    %4198 = vmatprep.subr.bf16.mxu0 0
    %4199 = vmatpush1.bf16.msra.mxu0 %v4107
    %4200 = vmatprep.subr.bf16.mxu0 0
    %4201 = vmatpush1.bf16.msra.mxu0 %v4108
    %4202 = vmatprep.subr.bf16.mxu0 0
    %4203 = vmatpush1.bf16.msra.mxu0 %v4109
    %4204 = vmatprep.subr.bf16.mxu0 0
    %4205 = vmatpush1.bf16.msra.mxu0 %v4110
    %4206 = vmatprep.subr.bf16.mxu0 0
    %4207 = vmatpush1.bf16.msra.mxu0 %v4111
    %4208 = vmatprep.subr.bf16.mxu0 0
    %4209 = vmatpush1.bf16.msra.mxu0 %v4112
    %4210 = vmatprep.subr.bf16.mxu0 0
    %4211 = vmatpush1.bf16.msra.mxu0 %v4113
    %4212 = vmatprep.subr.bf16.mxu0 0
    %4213 = vmatpush1.bf16.msra.mxu0 %v4114
    %4214 = vmatprep.subr.bf16.mxu0 0
    %4215 = vmatpush1.bf16.msra.mxu0 %v4115
    %4216 = vmatprep.subr.bf16.mxu0 0
    %4217 = vmatpush1.bf16.msra.mxu0 %v4116
    %4218 = vmatprep.subr.bf16.mxu0 0
    %4219 = vmatpush1.bf16.msra.mxu0 %v4117
    %4220 = vmatprep.subr.bf16.mxu0 0
    %4221 = vmatpush1.bf16.msra.mxu0 %v4118
    %4222 = vmatprep.subr.bf16.mxu0 0
    %4223 = vmatpush1.bf16.msra.mxu0 %v4119
    %4224 = vmatprep.subr.bf16.mxu0 0
    %4225 = vmatpush1.bf16.msra.mxu0 %v4120
    %4226 = vmatprep.mubr.bf16.mxu0 %v3954
    %4227 = vmatmul.mubr.bf16.gmra.mrb[0].mxu0 %v3953
    %v4228 = vpop.f32.mrb[0].mxu0
    %v4229 = vadd.f32 %v4188, %v4228
    %v4230 = vpop.f32.mrb[0].mxu0
    %v4231 = vpop.f32.mrb[0].mxu0
    %v4232 = vadd.f32 %v4191, %v4231
    %v4233 = vpop.f32.mrb[0].mxu0
    %4234 = vdwg.mxu0
    %v4235 = vadd.f32 %v3571, %v4229
    %v4236 = vadd.f32 %v3572, %v4232
    %s4237 = scalar_lea.vmem %s13, 1
    %v4238 = vld [vmem:[%s4237] sm:$0x1]
    %s4239 = scalar_lea.vmem %s14, 1
    %v4240 = vld [vmem:[%s4239] sm:$0x1]
    %4241 = vadd.xlane.f32.xlu0 %v4235
    %v4242 = vpop.xlane.xlu0 %4241
    %4243 = vadd.xlane.f32.xlu0 %v4236
    %v4244 = vpop.xlane.xlu0 %4243
    %v4245 = vmul.f32 %v4242, %v1503
    %v4246 = vmul.f32 %v4244, %v1503
    %v4247 = vsub.f32 %v4235, %v4245
    %v4248 = vsub.f32 %v4236, %v4246
    %v4249 = vmul.f32 %v4247, %v4247
    %v4250 = vmul.f32 %v4248, %v4248
    %4251 = vadd.xlane.f32.xlu0 %v4249
    %v4252 = vpop.xlane.xlu0 %4251
    %4253 = vadd.xlane.f32.xlu0 %v4250
    %v4254 = vpop.xlane.xlu0 %4253
    %v4255 = vmul.f32 %v4252, %v1503
    %v4256 = vmul.f32 %v4254, %v1503
    %v4257 = vadd.f32 %v4255, 1e-05
    %v4258 = vadd.f32 %v4256, 1e-05
    %v4259 = vrsqrt.pop %v4257
    %v4260 = vrsqrt.pop %v4258
    %v4261 = vmul.f32 %v4247, %v4259
    %v4262 = vmul.f32 %v4248, %v4260
    %v4264 = vlaneseq
    %v4265 = vshrl.u32 %v4264, 7
    %v4266 = vsub.s32 0, %v4265
    %v4267 = vrot.slane %v4238, %v4266
    %v4269 = vmul.f32 %v4261, %v4267
    %v4270 = vmul.f32 %v4262, %v4267
    %v4272 = vlaneseq
    %v4273 = vshrl.u32 %v4272, 7
    %v4274 = vsub.s32 0, %v4273
    %v4275 = vrot.slane %v4240, %v4274
    %v4277 = vadd.f32 %v4269, %v4275
    %v4278 = vadd.f32 %v4270, %v4275
    %s4279 = scalar_lea.vmem [#allocation2], 384
    %v4280 = vld [vmem:[%s4279] sm:$0xff]
    %v4281 = vld [vmem:[%s4279 + $0x8] sm:$0xf]
    %v4282 = vld [vmem:[%s4279 + $0xc] sm:$0xff]
    %v4283 = vld [vmem:[%s4279 + $0x14] sm:$0xf]
    %v4284 = vld [vmem:[%s4279 + $0x18] sm:$0xff]
    %v4285 = vld [vmem:[%s4279 + $0x20] sm:$0xf]
    %v4286 = vld [vmem:[%s4279 + $0x24] sm:$0xff]
    %v4287 = vld [vmem:[%s4279 + $0x2c] sm:$0xf]
    %v4288 = vld [vmem:[%s4279 + $0x30] sm:$0xff]
    %v4289 = vld [vmem:[%s4279 + $0x38] sm:$0xf]
    %v4290 = vld [vmem:[%s4279 + $0x3c] sm:$0xff]
    %v4291 = vld [vmem:[%s4279 + $0x44] sm:$0xf]
    %v4292 = vld [vmem:[%s4279 + $0x48] sm:$0xff]
    %v4293 = vld [vmem:[%s4279 + $0x50] sm:$0xf]
    %v4294 = vld [vmem:[%s4279 + $0x54] sm:$0xff]
    %v4295 = vld [vmem:[%s4279 + $0x5c] sm:$0xf]
    %v4296 = vld [vmem:[%s4279 + $0x60] sm:$0xff]
    %v4297 = vld [vmem:[%s4279 + $0x68] sm:$0xf]
    %v4298 = vld [vmem:[%s4279 + $0x6c] sm:$0xff]
    %v4299 = vld [vmem:[%s4279 + $0x74] sm:$0xf]
    %v4300 = vld [vmem:[%s4279 + $0x78] sm:$0xff]
    %v4301 = vld [vmem:[%s4279 + $0x80] sm:$0xf]
    %v4302 = vld [vmem:[%s4279 + $0x84] sm:$0xff]
    %v4303 = vld [vmem:[%s4279 + $0x8c] sm:$0xf]
    %v4304 = vld [vmem:[%s4279 + $0x90] sm:$0xff]
    %v4305 = vld [vmem:[%s4279 + $0x98] sm:$0xf]
    %v4306 = vld [vmem:[%s4279 + $0x9c] sm:$0xff]
    %v4307 = vld [vmem:[%s4279 + $0xa4] sm:$0xf]
    %v4308 = vld [vmem:[%s4279 + $0xa8] sm:$0xff]
    %v4309 = vld [vmem:[%s4279 + $0xb0] sm:$0xf]
    %v4310 = vld [vmem:[%s4279 + $0xb4] sm:$0xff]
    %v4311 = vld [vmem:[%s4279 + $0xbc] sm:$0xf]
    %s4312 = scalar_lea.vmem %s4, 6
    %v4313 = vld [vmem:[%s4312] sm:$0x7]
    %v4314 = vpack.c.bf16 %v4278, %v4277
    %v4316 = vlaneseq
    %v4317 = vshrl.u32 %v4316, 7
    %v4318 = vsub.s32 0, %v4317
    %v4319 = vrot.slane %v4313, %v4318
    %v4320 = vlaneseq
    %v4321 = vshrl.u32 %v4320, 7
    %v4322 = vsub.s32 1, %v4321
    %v4323 = vrot.slane %v4313, %v4322
    %v4324 = vlaneseq
    %v4325 = vshrl.u32 %v4324, 7
    %v4326 = vsub.s32 2, %v4325
    %v4327 = vrot.slane %v4313, %v4326
    %v4363 = vunpack.c.l.b16 %v4280
    %v4364 = vunpack.c.h.b16 %v4280
    %v4365 = vunpack.c.l.b16 %v4281
    %v4366 = vunpack.c.l.b16 %v4282
    %v4367 = vunpack.c.h.b16 %v4282
    %v4368 = vunpack.c.l.b16 %v4283
    %v4369 = vunpack.c.l.b16 %v4284
    %v4370 = vunpack.c.h.b16 %v4284
    %v4371 = vunpack.c.l.b16 %v4285
    %v4372 = vunpack.c.l.b16 %v4286
    %v4373 = vunpack.c.h.b16 %v4286
    %v4374 = vunpack.c.l.b16 %v4287
    %v4375 = vunpack.c.l.b16 %v4288
    %v4376 = vunpack.c.h.b16 %v4288
    %v4377 = vunpack.c.l.b16 %v4289
    %v4378 = vunpack.c.l.b16 %v4290
    %v4379 = vunpack.c.h.b16 %v4290
    %v4380 = vunpack.c.l.b16 %v4291
    %v4381 = vunpack.c.l.b16 %v4292
    %v4382 = vunpack.c.h.b16 %v4292
    %v4383 = vunpack.c.l.b16 %v4293
    %v4384 = vunpack.c.l.b16 %v4294
    %v4385 = vunpack.c.h.b16 %v4294
    %v4386 = vunpack.c.l.b16 %v4295
    %v4387 = vunpack.c.l.b16 %v4296
    %v4388 = vunpack.c.h.b16 %v4296
    %v4389 = vunpack.c.l.b16 %v4297
    %v4390 = vunpack.c.l.b16 %v4298
    %v4391 = vunpack.c.h.b16 %v4298
    %v4392 = vunpack.c.l.b16 %v4299
    %v4393 = vunpack.c.l.b16 %v4300
    %v4394 = vunpack.c.h.b16 %v4300
    %v4395 = vunpack.c.l.b16 %v4301
    %v4396 = vunpack.c.l.b16 %v4302
    %v4397 = vunpack.c.h.b16 %v4302
    %v4398 = vunpack.c.l.b16 %v4303
    %v4399 = vunpack.c.l.b16 %v4304
    %v4400 = vunpack.c.h.b16 %v4304
    %v4401 = vunpack.c.l.b16 %v4305
    %v4402 = vunpack.c.l.b16 %v4306
    %v4403 = vunpack.c.h.b16 %v4306
    %v4404 = vunpack.c.l.b16 %v4307
    %v4405 = vunpack.c.l.b16 %v4308
    %v4406 = vunpack.c.h.b16 %v4308
    %v4407 = vunpack.c.l.b16 %v4309
    %v4408 = vunpack.c.l.b16 %v4310
    %v4409 = vunpack.c.h.b16 %v4310
    %v4410 = vunpack.c.l.b16 %v4311
    %v4411 = vpack.c.b16 %v4366, %v4363
    %v4412 = vpack.c.b16 %v4367, %v4364
    %v4413 = vpack.c.b16 %v4368, %v4365
    %v4414 = vpack.c.b16 %v4372, %v4369
    %v4415 = vpack.c.b16 %v4373, %v4370
    %v4416 = vpack.c.b16 %v4374, %v4371
    %v4417 = vpack.c.b16 %v4378, %v4375
    %v4418 = vpack.c.b16 %v4379, %v4376
    %v4419 = vpack.c.b16 %v4380, %v4377
    %v4420 = vpack.c.b16 %v4384, %v4381
    %v4421 = vpack.c.b16 %v4385, %v4382
    %v4422 = vpack.c.b16 %v4386, %v4383
    %v4423 = vpack.c.b16 %v4390, %v4387
    %v4424 = vpack.c.b16 %v4391, %v4388
    %v4425 = vpack.c.b16 %v4392, %v4389
    %v4426 = vpack.c.b16 %v4396, %v4393
    %v4427 = vpack.c.b16 %v4397, %v4394
    %v4428 = vpack.c.b16 %v4398, %v4395
    %v4429 = vpack.c.b16 %v4402, %v4399
    %v4430 = vpack.c.b16 %v4403, %v4400
    %v4431 = vpack.c.b16 %v4404, %v4401
    %v4432 = vpack.c.b16 %v4408, %v4405
    %v4433 = vpack.c.b16 %v4409, %v4406
    %v4434 = vpack.c.b16 %v4410, %v4407
    %4459 = vmatprep.subr.bf16.mxu0 %v4412
    %4460 = vmatpush1.bf16.msra.mxu0 %v4411
    %4461 = vmatprep.subr.bf16.mxu0 %v4415
    %4462 = vmatpush1.bf16.msra.mxu0 %v4414
    %4463 = vmatprep.subr.bf16.mxu0 %v4418
    %4464 = vmatpush1.bf16.msra.mxu0 %v4417
    %4465 = vmatprep.subr.bf16.mxu0 %v4421
    %4466 = vmatpush1.bf16.msra.mxu0 %v4420
    %4467 = vmatprep.subr.bf16.mxu0 %v4424
    %4468 = vmatpush1.bf16.msra.mxu0 %v4423
    %4469 = vmatprep.subr.bf16.mxu0 %v4427
    %4470 = vmatpush1.bf16.msra.mxu0 %v4426
    %4471 = vmatprep.subr.bf16.mxu0 %v4430
    %4472 = vmatpush1.bf16.msra.mxu0 %v4429
    %4473 = vmatprep.subr.bf16.mxu0 %v4433
    %4474 = vmatpush1.bf16.msra.mxu0 %v4432
    %4475 = vmatprep.subr.bf16.mxu0 0
    %4476 = vmatpush1.bf16.msra.mxu0 0
    %4477 = vmatprep.subr.bf16.mxu0 0
    %4478 = vmatpush1.bf16.msra.mxu0 0
    %4479 = vmatprep.subr.bf16.mxu0 0
    %4480 = vmatpush1.bf16.msra.mxu0 0
    %4481 = vmatprep.subr.bf16.mxu0 0
    %4482 = vmatpush1.bf16.msra.mxu0 0
    %4483 = vmatprep.subr.bf16.mxu0 0
    %4484 = vmatpush1.bf16.msra.mxu0 0
    %4485 = vmatprep.subr.bf16.mxu0 0
    %4486 = vmatpush1.bf16.msra.mxu0 0
    %4487 = vmatprep.subr.bf16.mxu0 0
    %4488 = vmatpush1.bf16.msra.mxu0 0
    %4489 = vmatprep.subr.bf16.mxu0 0
    %4490 = vmatpush1.bf16.msra.mxu0 0
    %4491 = vmatprep.mubr.bf16.mxu0 0
    %4492 = vmatmul.mubr.bf16.gmra.mrb[0].mxu0 %v4314
    %v4493 = vpop.f32.mrb[0].mxu0
    %v4494 = vadd.f32 %v4319, %v4493
    %v4495 = vpop.f32.mrb[0].mxu0
    %v4496 = vadd.f32 %v4323, %v4495
    %v4497 = vpop.f32.mrb[0].mxu0
    %v4498 = vadd.f32 %v4319, %v4497
    %v4499 = vpop.f32.mrb[0].mxu0
    %v4500 = vadd.f32 %v4323, %v4499
    %4501 = vdwg.mxu0
    %4502 = vmatprep.subr.bf16.mxu0 0
    %4503 = vmatpush1.bf16.msra.mxu0 %v4413
    %4504 = vmatprep.subr.bf16.mxu0 0
    %4505 = vmatpush1.bf16.msra.mxu0 %v4416
    %4506 = vmatprep.subr.bf16.mxu0 0
    %4507 = vmatpush1.bf16.msra.mxu0 %v4419
    %4508 = vmatprep.subr.bf16.mxu0 0
    %4509 = vmatpush1.bf16.msra.mxu0 %v4422
    %4510 = vmatprep.subr.bf16.mxu0 0
    %4511 = vmatpush1.bf16.msra.mxu0 %v4425
    %4512 = vmatprep.subr.bf16.mxu0 0
    %4513 = vmatpush1.bf16.msra.mxu0 %v4428
    %4514 = vmatprep.subr.bf16.mxu0 0
    %4515 = vmatpush1.bf16.msra.mxu0 %v4431
    %4516 = vmatprep.subr.bf16.mxu0 0
    %4517 = vmatpush1.bf16.msra.mxu0 %v4434
    %4518 = vmatprep.subr.bf16.mxu0 0
    %4519 = vmatpush1.bf16.msra.mxu0 0
    %4520 = vmatprep.subr.bf16.mxu0 0
    %4521 = vmatpush1.bf16.msra.mxu0 0
    %4522 = vmatprep.subr.bf16.mxu0 0
    %4523 = vmatpush1.bf16.msra.mxu0 0
    %4524 = vmatprep.subr.bf16.mxu0 0
    %4525 = vmatpush1.bf16.msra.mxu0 0
    %4526 = vmatprep.subr.bf16.mxu0 0
    %4527 = vmatpush1.bf16.msra.mxu0 0
    %4528 = vmatprep.subr.bf16.mxu0 0
    %4529 = vmatpush1.bf16.msra.mxu0 0
    %4530 = vmatprep.subr.bf16.mxu0 0
    %4531 = vmatpush1.bf16.msra.mxu0 0
    %4532 = vmatprep.subr.bf16.mxu0 0
    %4533 = vmatpush1.bf16.msra.mxu0 0
    %4534 = vmatprep.mubr.bf16.mxu0 0
    %4535 = vmatmul.mubr.bf16.gmra.mrb[0].mxu0 %v4314
    %v4536 = vpop.f32.mrb[0].mxu0
    %v4537 = vadd.f32 %v4327, %v4536
    %v4538 = vpop.f32.mrb[0].mxu0
    %v4539 = vpop.f32.mrb[0].mxu0
    %v4540 = vadd.f32 %v4327, %v4539
    %v4541 = vpop.f32.mrb[0].mxu0
    %4542 = vdwg.mxu0
    %v4543 = vmul.f32 %v4494, 0.17677669
    %v4544 = vpack.c.bf16 %v4543, %v4543
    %v4545 = vpack.c.bf16 %v4496, %v4496
    %v4546 = vpack.c.bf16 %v4537, %v4537
    %v4548 = vsel %vm470, %v4544, 0
    %v4551 = vsel %vm470, %v4545, 0
    %4553 = vmatprep.subr.bf16.mxu0 0
    %4554 = vmatpush1.bf16.xpose.msra.mxu0 %v4551
    %4555 = vmatprep.subr.bf16.mxu0 0
    %4556 = vmatpush1.bf16.xpose.msra.mxu0 0
    %4557 = vmatprep.subr.bf16.mxu0 0
    %4558 = vmatpush1.bf16.xpose.msra.mxu0 0
    %4559 = vmatprep.subr.bf16.mxu0 0
    %4560 = vmatpush1.bf16.xpose.msra.mxu0 0
    %4561 = vmatprep.subr.bf16.mxu0 0
    %4562 = vmatpush1.bf16.xpose.msra.mxu0 0
    %4563 = vmatprep.subr.bf16.mxu0 0
    %4564 = vmatpush1.bf16.xpose.msra.mxu0 0
    %4565 = vmatprep.subr.bf16.mxu0 0
    %4566 = vmatpush1.bf16.xpose.msra.mxu0 0
    %4567 = vmatprep.subr.bf16.mxu0 0
    %4568 = vmatpush1.bf16.xpose.msra.mxu0 0
    %4569 = vmatprep.subr.bf16.mxu0 0
    %4570 = vmatpush1.bf16.xpose.msra.mxu0 0
    %4571 = vmatprep.subr.bf16.mxu0 0
    %4572 = vmatpush1.bf16.xpose.msra.mxu0 0
    %4573 = vmatprep.subr.bf16.mxu0 0
    %4574 = vmatpush1.bf16.xpose.msra.mxu0 0
    %4575 = vmatprep.subr.bf16.mxu0 0
    %4576 = vmatpush1.bf16.xpose.msra.mxu0 0
    %4577 = vmatprep.subr.bf16.mxu0 0
    %4578 = vmatpush1.bf16.xpose.msra.mxu0 0
    %4579 = vmatprep.subr.bf16.mxu0 0
    %4580 = vmatpush1.bf16.xpose.msra.mxu0 0
    %4581 = vmatprep.subr.bf16.mxu0 0
    %4582 = vmatpush1.bf16.xpose.msra.mxu0 0
    %4583 = vmatprep.subr.bf16.mxu0 0
    %4584 = vmatpush1.bf16.xpose.msra.mxu0 0
    %4585 = vmatprep.mubr.bf16.mxu0 0
    %4586 = vmatmul.mubr.bf16.gmra.mrb[0].mxu0 %v4548
    %v4587 = vpop.f32.mrb[0].mxu0
    %v4588 = vadd.f32 0.0, %v4587
    %v4589 = vpop.f32.mrb[0].mxu0
    %v4590 = vpop.f32.mrb[0].mxu0
    %v4591 = vpop.f32.mrb[0].mxu0
    %4592 = vdwg.mxu0
    %v4593 = vsel %vm517, %v4588, -inf
    %4594 = vmax.xlane.f32.xlu0 %v4593
    %v4595 = vpop.xlane.xlu0 %4594
    %v4596 = vsub.f32 %v4588, %v4595
    %v4597 = vmul.f32 %v4596, 1.442695
    %v4598 = vpow.pop %v4597
    %v4599 = vsel %vm517, %v4598, 0.0
    %4600 = vadd.xlane.f32.xlu0 %v4599
    %v4601 = vpop.xlane.xlu0 %4600
    %v4602 = vrcp.pop %v4601
    %v4603 = vmul.f32 %v4598, %v4602
    %v4604 = vpack.c.bf16 %v4603, %v4603
    %v4606 = vsel %vm517, %v4604, 0
    %v4609 = vsel %vm533, %v4546, 0
    %4611 = vmatprep.subr.bf16.mxu0 0
    %4612 = vmatpush1.bf16.msra.mxu0 %v4609
    %4613 = vmatprep.subr.bf16.mxu0 0
    %4614 = vmatpush1.bf16.msra.mxu0 0
    %4615 = vmatprep.subr.bf16.mxu0 0
    %4616 = vmatpush1.bf16.msra.mxu0 0
    %4617 = vmatprep.subr.bf16.mxu0 0
    %4618 = vmatpush1.bf16.msra.mxu0 0
    %4619 = vmatprep.subr.bf16.mxu0 0
    %4620 = vmatpush1.bf16.msra.mxu0 0
    %4621 = vmatprep.subr.bf16.mxu0 0
    %4622 = vmatpush1.bf16.msra.mxu0 0
    %4623 = vmatprep.subr.bf16.mxu0 0
    %4624 = vmatpush1.bf16.msra.mxu0 0
    %4625 = vmatprep.subr.bf16.mxu0 0
    %4626 = vmatpush1.bf16.msra.mxu0 0
    %4627 = vmatprep.subr.bf16.mxu0 0
    %4628 = vmatpush1.bf16.msra.mxu0 0
    %4629 = vmatprep.subr.bf16.mxu0 0
    %4630 = vmatpush1.bf16.msra.mxu0 0
    %4631 = vmatprep.subr.bf16.mxu0 0
    %4632 = vmatpush1.bf16.msra.mxu0 0
    %4633 = vmatprep.subr.bf16.mxu0 0
    %4634 = vmatpush1.bf16.msra.mxu0 0
    %4635 = vmatprep.subr.bf16.mxu0 0
    %4636 = vmatpush1.bf16.msra.mxu0 0
    %4637 = vmatprep.subr.bf16.mxu0 0
    %4638 = vmatpush1.bf16.msra.mxu0 0
    %4639 = vmatprep.subr.bf16.mxu0 0
    %4640 = vmatpush1.bf16.msra.mxu0 0
    %4641 = vmatprep.subr.bf16.mxu0 0
    %4642 = vmatpush1.bf16.msra.mxu0 0
    %4643 = vmatprep.mubr.bf16.mxu0 0
    %4644 = vmatmul.mubr.bf16.gmra.mrb[0].mxu0 %v4606
    %v4645 = vpop.f32.mrb[0].mxu0
    %v4646 = vadd.f32 0.0, %v4645
    %v4647 = vpop.f32.mrb[0].mxu0
    %v4648 = vpop.f32.mrb[0].mxu0
    %v4649 = vpop.f32.mrb[0].mxu0
    %4650 = vdwg.mxu0
    %4652 = vrot.lane.b32.xlu0 %v4544, 96
    %v4653 = vpop.permute.xlu0 %4652
    %4655 = vrot.lane.b32.xlu0 %v4545, 96
    %v4656 = vpop.permute.xlu0 %4655
    %v4658 = vsel %vm470, %v4653, 0
    %v4661 = vsel %vm470, %v4656, 0
    %4663 = vmatprep.subr.bf16.mxu0 0
    %4664 = vmatpush1.bf16.xpose.msra.mxu0 %v4661
    %4665 = vmatprep.subr.bf16.mxu0 0
    %4666 = vmatpush1.bf16.xpose.msra.mxu0 0
    %4667 = vmatprep.subr.bf16.mxu0 0
    %4668 = vmatpush1.bf16.xpose.msra.mxu0 0
    %4669 = vmatprep.subr.bf16.mxu0 0
    %4670 = vmatpush1.bf16.xpose.msra.mxu0 0
    %4671 = vmatprep.subr.bf16.mxu0 0
    %4672 = vmatpush1.bf16.xpose.msra.mxu0 0
    %4673 = vmatprep.subr.bf16.mxu0 0
    %4674 = vmatpush1.bf16.xpose.msra.mxu0 0
    %4675 = vmatprep.subr.bf16.mxu0 0
    %4676 = vmatpush1.bf16.xpose.msra.mxu0 0
    %4677 = vmatprep.subr.bf16.mxu0 0
    %4678 = vmatpush1.bf16.xpose.msra.mxu0 0
    %4679 = vmatprep.subr.bf16.mxu0 0
    %4680 = vmatpush1.bf16.xpose.msra.mxu0 0
    %4681 = vmatprep.subr.bf16.mxu0 0
    %4682 = vmatpush1.bf16.xpose.msra.mxu0 0
    %4683 = vmatprep.subr.bf16.mxu0 0
    %4684 = vmatpush1.bf16.xpose.msra.mxu0 0
    %4685 = vmatprep.subr.bf16.mxu0 0
    %4686 = vmatpush1.bf16.xpose.msra.mxu0 0
    %4687 = vmatprep.subr.bf16.mxu0 0
    %4688 = vmatpush1.bf16.xpose.msra.mxu0 0
    %4689 = vmatprep.subr.bf16.mxu0 0
    %4690 = vmatpush1.bf16.xpose.msra.mxu0 0
    %4691 = vmatprep.subr.bf16.mxu0 0
    %4692 = vmatpush1.bf16.xpose.msra.mxu0 0
    %4693 = vmatprep.subr.bf16.mxu0 0
    %4694 = vmatpush1.bf16.xpose.msra.mxu0 0
    %4695 = vmatprep.mubr.bf16.mxu0 0
    %4696 = vmatmul.mubr.bf16.gmra.mrb[0].mxu0 %v4658
    %v4697 = vpop.f32.mrb[0].mxu0
    %v4698 = vadd.f32 0.0, %v4697
    %v4699 = vpop.f32.mrb[0].mxu0
    %v4700 = vpop.f32.mrb[0].mxu0
    %v4701 = vpop.f32.mrb[0].mxu0
    %4702 = vdwg.mxu0
    %v4703 = vsel %vm517, %v4698, -inf
    %4704 = vmax.xlane.f32.xlu0 %v4703
    %v4705 = vpop.xlane.xlu0 %4704
    %v4706 = vsub.f32 %v4698, %v4705
    %v4707 = vmul.f32 %v4706, 1.442695
    %v4708 = vpow.pop %v4707
    %v4709 = vsel %vm517, %v4708, 0.0
    %4710 = vadd.xlane.f32.xlu0 %v4709
    %v4711 = vpop.xlane.xlu0 %4710
    %v4712 = vrcp.pop %v4711
    %v4713 = vmul.f32 %v4708, %v4712
    %v4714 = vpack.c.bf16 %v4713, %v4713
    %4716 = vrot.lane.b32.xlu0 %v4546, 96
    %v4717 = vpop.permute.xlu0 %4716
    %v4719 = vsel %vm517, %v4714, 0
    %v4722 = vsel %vm533, %v4717, 0
    %4724 = vmatprep.subr.bf16.mxu0 0
    %4725 = vmatpush1.bf16.msra.mxu0 %v4722
    %4726 = vmatprep.subr.bf16.mxu0 0
    %4727 = vmatpush1.bf16.msra.mxu0 0
    %4728 = vmatprep.subr.bf16.mxu0 0
    %4729 = vmatpush1.bf16.msra.mxu0 0
    %4730 = vmatprep.subr.bf16.mxu0 0
    %4731 = vmatpush1.bf16.msra.mxu0 0
    %4732 = vmatprep.subr.bf16.mxu0 0
    %4733 = vmatpush1.bf16.msra.mxu0 0
    %4734 = vmatprep.subr.bf16.mxu0 0
    %4735 = vmatpush1.bf16.msra.mxu0 0
    %4736 = vmatprep.subr.bf16.mxu0 0
    %4737 = vmatpush1.bf16.msra.mxu0 0
    %4738 = vmatprep.subr.bf16.mxu0 0
    %4739 = vmatpush1.bf16.msra.mxu0 0
    %4740 = vmatprep.subr.bf16.mxu0 0
    %4741 = vmatpush1.bf16.msra.mxu0 0
    %4742 = vmatprep.subr.bf16.mxu0 0
    %4743 = vmatpush1.bf16.msra.mxu0 0
    %4744 = vmatprep.subr.bf16.mxu0 0
    %4745 = vmatpush1.bf16.msra.mxu0 0
    %4746 = vmatprep.subr.bf16.mxu0 0
    %4747 = vmatpush1.bf16.msra.mxu0 0
    %4748 = vmatprep.subr.bf16.mxu0 0
    %4749 = vmatpush1.bf16.msra.mxu0 0
    %4750 = vmatprep.subr.bf16.mxu0 0
    %4751 = vmatpush1.bf16.msra.mxu0 0
    %4752 = vmatprep.subr.bf16.mxu0 0
    %4753 = vmatpush1.bf16.msra.mxu0 0
    %4754 = vmatprep.subr.bf16.mxu0 0
    %4755 = vmatpush1.bf16.msra.mxu0 0
    %4756 = vmatprep.mubr.bf16.mxu0 0
    %4757 = vmatmul.mubr.bf16.gmra.mrb[0].mxu0 %v4719
    %v4758 = vpop.f32.mrb[0].mxu0
    %v4759 = vadd.f32 0.0, %v4758
    %v4760 = vpop.f32.mrb[0].mxu0
    %v4761 = vpop.f32.mrb[0].mxu0
    %v4762 = vpop.f32.mrb[0].mxu0
    %4763 = vdwg.mxu0
    %4764 = vrot.lane.b32.xlu0 %v4544, 64
    %v4765 = vpop.permute.xlu0 %4764
    %4766 = vrot.lane.b32.xlu0 %v4545, 64
    %v4767 = vpop.permute.xlu0 %4766
    %v4769 = vsel %vm470, %v4765, 0
    %v4772 = vsel %vm470, %v4767, 0
    %4774 = vmatprep.subr.bf16.mxu0 0
    %4775 = vmatpush1.bf16.xpose.msra.mxu0 %v4772
    %4776 = vmatprep.subr.bf16.mxu0 0
    %4777 = vmatpush1.bf16.xpose.msra.mxu0 0
    %4778 = vmatprep.subr.bf16.mxu0 0
    %4779 = vmatpush1.bf16.xpose.msra.mxu0 0
    %4780 = vmatprep.subr.bf16.mxu0 0
    %4781 = vmatpush1.bf16.xpose.msra.mxu0 0
    %4782 = vmatprep.subr.bf16.mxu0 0
    %4783 = vmatpush1.bf16.xpose.msra.mxu0 0
    %4784 = vmatprep.subr.bf16.mxu0 0
    %4785 = vmatpush1.bf16.xpose.msra.mxu0 0
    %4786 = vmatprep.subr.bf16.mxu0 0
    %4787 = vmatpush1.bf16.xpose.msra.mxu0 0
    %4788 = vmatprep.subr.bf16.mxu0 0
    %4789 = vmatpush1.bf16.xpose.msra.mxu0 0
    %4790 = vmatprep.subr.bf16.mxu0 0
    %4791 = vmatpush1.bf16.xpose.msra.mxu0 0
    %4792 = vmatprep.subr.bf16.mxu0 0
    %4793 = vmatpush1.bf16.xpose.msra.mxu0 0
    %4794 = vmatprep.subr.bf16.mxu0 0
    %4795 = vmatpush1.bf16.xpose.msra.mxu0 0
    %4796 = vmatprep.subr.bf16.mxu0 0
    %4797 = vmatpush1.bf16.xpose.msra.mxu0 0
    %4798 = vmatprep.subr.bf16.mxu0 0
    %4799 = vmatpush1.bf16.xpose.msra.mxu0 0
    %4800 = vmatprep.subr.bf16.mxu0 0
    %4801 = vmatpush1.bf16.xpose.msra.mxu0 0
    %4802 = vmatprep.subr.bf16.mxu0 0
    %4803 = vmatpush1.bf16.xpose.msra.mxu0 0
    %4804 = vmatprep.subr.bf16.mxu0 0
    %4805 = vmatpush1.bf16.xpose.msra.mxu0 0
    %4806 = vmatprep.mubr.bf16.mxu0 0
    %4807 = vmatmul.mubr.bf16.gmra.mrb[0].mxu0 %v4769
    %v4808 = vpop.f32.mrb[0].mxu0
    %v4809 = vadd.f32 0.0, %v4808
    %v4810 = vpop.f32.mrb[0].mxu0
    %v4811 = vpop.f32.mrb[0].mxu0
    %v4812 = vpop.f32.mrb[0].mxu0
    %4813 = vdwg.mxu0
    %v4814 = vsel %vm517, %v4809, -inf
    %4815 = vmax.xlane.f32.xlu0 %v4814
    %v4816 = vpop.xlane.xlu0 %4815
    %v4817 = vsub.f32 %v4809, %v4816
    %v4818 = vmul.f32 %v4817, 1.442695
    %v4819 = vpow.pop %v4818
    %v4820 = vsel %vm517, %v4819, 0.0
    %4821 = vadd.xlane.f32.xlu0 %v4820
    %v4822 = vpop.xlane.xlu0 %4821
    %v4823 = vrcp.pop %v4822
    %v4824 = vmul.f32 %v4819, %v4823
    %v4825 = vpack.c.bf16 %v4824, %v4824
    %4826 = vrot.lane.b32.xlu0 %v4546, 64
    %v4827 = vpop.permute.xlu0 %4826
    %v4829 = vsel %vm517, %v4825, 0
    %v4832 = vsel %vm533, %v4827, 0
    %4834 = vmatprep.subr.bf16.mxu0 0
    %4835 = vmatpush1.bf16.msra.mxu0 %v4832
    %4836 = vmatprep.subr.bf16.mxu0 0
    %4837 = vmatpush1.bf16.msra.mxu0 0
    %4838 = vmatprep.subr.bf16.mxu0 0
    %4839 = vmatpush1.bf16.msra.mxu0 0
    %4840 = vmatprep.subr.bf16.mxu0 0
    %4841 = vmatpush1.bf16.msra.mxu0 0
    %4842 = vmatprep.subr.bf16.mxu0 0
    %4843 = vmatpush1.bf16.msra.mxu0 0
    %4844 = vmatprep.subr.bf16.mxu0 0
    %4845 = vmatpush1.bf16.msra.mxu0 0
    %4846 = vmatprep.subr.bf16.mxu0 0
    %4847 = vmatpush1.bf16.msra.mxu0 0
    %4848 = vmatprep.subr.bf16.mxu0 0
    %4849 = vmatpush1.bf16.msra.mxu0 0
    %4850 = vmatprep.subr.bf16.mxu0 0
    %4851 = vmatpush1.bf16.msra.mxu0 0
    %4852 = vmatprep.subr.bf16.mxu0 0
    %4853 = vmatpush1.bf16.msra.mxu0 0
    %4854 = vmatprep.subr.bf16.mxu0 0
    %4855 = vmatpush1.bf16.msra.mxu0 0
    %4856 = vmatprep.subr.bf16.mxu0 0
    %4857 = vmatpush1.bf16.msra.mxu0 0
    %4858 = vmatprep.subr.bf16.mxu0 0
    %4859 = vmatpush1.bf16.msra.mxu0 0
    %4860 = vmatprep.subr.bf16.mxu0 0
    %4861 = vmatpush1.bf16.msra.mxu0 0
    %4862 = vmatprep.subr.bf16.mxu0 0
    %4863 = vmatpush1.bf16.msra.mxu0 0
    %4864 = vmatprep.subr.bf16.mxu0 0
    %4865 = vmatpush1.bf16.msra.mxu0 0
    %4866 = vmatprep.mubr.bf16.mxu0 0
    %4867 = vmatmul.mubr.bf16.gmra.mrb[0].mxu0 %v4829
    %v4868 = vpop.f32.mrb[0].mxu0
    %v4869 = vadd.f32 0.0, %v4868
    %v4870 = vpop.f32.mrb[0].mxu0
    %v4871 = vpop.f32.mrb[0].mxu0
    %v4872 = vpop.f32.mrb[0].mxu0
    %4873 = vdwg.mxu0
    %4874 = vrot.lane.b32.xlu0 %v4544, 32
    %v4875 = vpop.permute.xlu0 %4874
    %4876 = vrot.lane.b32.xlu0 %v4545, 32
    %v4877 = vpop.permute.xlu0 %4876
    %v4879 = vsel %vm470, %v4875, 0
    %v4882 = vsel %vm470, %v4877, 0
    %4884 = vmatprep.subr.bf16.mxu0 0
    %4885 = vmatpush1.bf16.xpose.msra.mxu0 %v4882
    %4886 = vmatprep.subr.bf16.mxu0 0
    %4887 = vmatpush1.bf16.xpose.msra.mxu0 0
    %4888 = vmatprep.subr.bf16.mxu0 0
    %4889 = vmatpush1.bf16.xpose.msra.mxu0 0
    %4890 = vmatprep.subr.bf16.mxu0 0
    %4891 = vmatpush1.bf16.xpose.msra.mxu0 0
    %4892 = vmatprep.subr.bf16.mxu0 0
    %4893 = vmatpush1.bf16.xpose.msra.mxu0 0
    %4894 = vmatprep.subr.bf16.mxu0 0
    %4895 = vmatpush1.bf16.xpose.msra.mxu0 0
    %4896 = vmatprep.subr.bf16.mxu0 0
    %4897 = vmatpush1.bf16.xpose.msra.mxu0 0
    %4898 = vmatprep.subr.bf16.mxu0 0
    %4899 = vmatpush1.bf16.xpose.msra.mxu0 0
    %4900 = vmatprep.subr.bf16.mxu0 0
    %4901 = vmatpush1.bf16.xpose.msra.mxu0 0
    %4902 = vmatprep.subr.bf16.mxu0 0
    %4903 = vmatpush1.bf16.xpose.msra.mxu0 0
    %4904 = vmatprep.subr.bf16.mxu0 0
    %4905 = vmatpush1.bf16.xpose.msra.mxu0 0
    %4906 = vmatprep.subr.bf16.mxu0 0
    %4907 = vmatpush1.bf16.xpose.msra.mxu0 0
    %4908 = vmatprep.subr.bf16.mxu0 0
    %4909 = vmatpush1.bf16.xpose.msra.mxu0 0
    %4910 = vmatprep.subr.bf16.mxu0 0
    %4911 = vmatpush1.bf16.xpose.msra.mxu0 0
    %4912 = vmatprep.subr.bf16.mxu0 0
    %4913 = vmatpush1.bf16.xpose.msra.mxu0 0
    %4914 = vmatprep.subr.bf16.mxu0 0
    %4915 = vmatpush1.bf16.xpose.msra.mxu0 0
    %4916 = vmatprep.mubr.bf16.mxu0 0
    %4917 = vmatmul.mubr.bf16.gmra.mrb[0].mxu0 %v4879
    %v4918 = vpop.f32.mrb[0].mxu0
    %v4919 = vadd.f32 0.0, %v4918
    %v4920 = vpop.f32.mrb[0].mxu0
    %v4921 = vpop.f32.mrb[0].mxu0
    %v4922 = vpop.f32.mrb[0].mxu0
    %4923 = vdwg.mxu0
    %v4924 = vsel %vm517, %v4919, -inf
    %4925 = vmax.xlane.f32.xlu0 %v4924
    %v4926 = vpop.xlane.xlu0 %4925
    %v4927 = vsub.f32 %v4919, %v4926
    %v4928 = vmul.f32 %v4927, 1.442695
    %v4929 = vpow.pop %v4928
    %v4930 = vsel %vm517, %v4929, 0.0
    %4931 = vadd.xlane.f32.xlu0 %v4930
    %v4932 = vpop.xlane.xlu0 %4931
    %v4933 = vrcp.pop %v4932
    %v4934 = vmul.f32 %v4929, %v4933
    %v4935 = vpack.c.bf16 %v4934, %v4934
    %4936 = vrot.lane.b32.xlu0 %v4546, 32
    %v4937 = vpop.permute.xlu0 %4936
    %v4939 = vsel %vm517, %v4935, 0
    %v4942 = vsel %vm533, %v4937, 0
    %4944 = vmatprep.subr.bf16.mxu0 0
    %4945 = vmatpush1.bf16.msra.mxu0 %v4942
    %4946 = vmatprep.subr.bf16.mxu0 0
    %4947 = vmatpush1.bf16.msra.mxu0 0
    %4948 = vmatprep.subr.bf16.mxu0 0
    %4949 = vmatpush1.bf16.msra.mxu0 0
    %4950 = vmatprep.subr.bf16.mxu0 0
    %4951 = vmatpush1.bf16.msra.mxu0 0
    %4952 = vmatprep.subr.bf16.mxu0 0
    %4953 = vmatpush1.bf16.msra.mxu0 0
    %4954 = vmatprep.subr.bf16.mxu0 0
    %4955 = vmatpush1.bf16.msra.mxu0 0
    %4956 = vmatprep.subr.bf16.mxu0 0
    %4957 = vmatpush1.bf16.msra.mxu0 0
    %4958 = vmatprep.subr.bf16.mxu0 0
    %4959 = vmatpush1.bf16.msra.mxu0 0
    %4960 = vmatprep.subr.bf16.mxu0 0
    %4961 = vmatpush1.bf16.msra.mxu0 0
    %4962 = vmatprep.subr.bf16.mxu0 0
    %4963 = vmatpush1.bf16.msra.mxu0 0
    %4964 = vmatprep.subr.bf16.mxu0 0
    %4965 = vmatpush1.bf16.msra.mxu0 0
    %4966 = vmatprep.subr.bf16.mxu0 0
    %4967 = vmatpush1.bf16.msra.mxu0 0
    %4968 = vmatprep.subr.bf16.mxu0 0
    %4969 = vmatpush1.bf16.msra.mxu0 0
    %4970 = vmatprep.subr.bf16.mxu0 0
    %4971 = vmatpush1.bf16.msra.mxu0 0
    %4972 = vmatprep.subr.bf16.mxu0 0
    %4973 = vmatpush1.bf16.msra.mxu0 0
    %4974 = vmatprep.subr.bf16.mxu0 0
    %4975 = vmatpush1.bf16.msra.mxu0 0
    %4976 = vmatprep.mubr.bf16.mxu0 0
    %4977 = vmatmul.mubr.bf16.gmra.mrb[0].mxu0 %v4939
    %v4978 = vpop.f32.mrb[0].mxu0
    %v4979 = vadd.f32 0.0, %v4978
    %v4980 = vpop.f32.mrb[0].mxu0
    %v4981 = vpop.f32.mrb[0].mxu0
    %v4982 = vpop.f32.mrb[0].mxu0
    %4983 = vdwg.mxu0
    %4985 = vrot.lane.b32.xlu0 %v4759, 32
    %v4986 = vpop.permute.xlu0 %4985
    %4989 = vrot.lane.b32.xlu0 %v4869, 64
    %v4990 = vpop.permute.xlu0 %4989
    %4993 = vrot.lane.b32.xlu0 %v4979, 96
    %v4994 = vpop.permute.xlu0 %4993
    %v4996 = vsel %vm470, %v4646, %v4986
    %v4997 = vsel %vm159, %v4996, %v4990
    %v4998 = vsel %vm924, %v4997, %v4994
    %v4999 = vmul.f32 %v4498, 0.17677669
    %v5000 = vpack.c.bf16 %v4999, %v4999
    %v5001 = vpack.c.bf16 %v4500, %v4500
    %v5002 = vpack.c.bf16 %v4540, %v4540
    %v5004 = vsel %vm470, %v5000, 0
    %v5007 = vsel %vm470, %v5001, 0
    %5009 = vmatprep.subr.bf16.mxu0 0
    %5010 = vmatpush1.bf16.xpose.msra.mxu0 %v5007
    %5011 = vmatprep.subr.bf16.mxu0 0
    %5012 = vmatpush1.bf16.xpose.msra.mxu0 0
    %5013 = vmatprep.subr.bf16.mxu0 0
    %5014 = vmatpush1.bf16.xpose.msra.mxu0 0
    %5015 = vmatprep.subr.bf16.mxu0 0
    %5016 = vmatpush1.bf16.xpose.msra.mxu0 0
    %5017 = vmatprep.subr.bf16.mxu0 0
    %5018 = vmatpush1.bf16.xpose.msra.mxu0 0
    %5019 = vmatprep.subr.bf16.mxu0 0
    %5020 = vmatpush1.bf16.xpose.msra.mxu0 0
    %5021 = vmatprep.subr.bf16.mxu0 0
    %5022 = vmatpush1.bf16.xpose.msra.mxu0 0
    %5023 = vmatprep.subr.bf16.mxu0 0
    %5024 = vmatpush1.bf16.xpose.msra.mxu0 0
    %5025 = vmatprep.subr.bf16.mxu0 0
    %5026 = vmatpush1.bf16.xpose.msra.mxu0 0
    %5027 = vmatprep.subr.bf16.mxu0 0
    %5028 = vmatpush1.bf16.xpose.msra.mxu0 0
    %5029 = vmatprep.subr.bf16.mxu0 0
    %5030 = vmatpush1.bf16.xpose.msra.mxu0 0
    %5031 = vmatprep.subr.bf16.mxu0 0
    %5032 = vmatpush1.bf16.xpose.msra.mxu0 0
    %5033 = vmatprep.subr.bf16.mxu0 0
    %5034 = vmatpush1.bf16.xpose.msra.mxu0 0
    %5035 = vmatprep.subr.bf16.mxu0 0
    %5036 = vmatpush1.bf16.xpose.msra.mxu0 0
    %5037 = vmatprep.subr.bf16.mxu0 0
    %5038 = vmatpush1.bf16.xpose.msra.mxu0 0
    %5039 = vmatprep.subr.bf16.mxu0 0
    %5040 = vmatpush1.bf16.xpose.msra.mxu0 0
    %5041 = vmatprep.mubr.bf16.mxu0 0
    %5042 = vmatmul.mubr.bf16.gmra.mrb[0].mxu0 %v5004
    %v5043 = vpop.f32.mrb[0].mxu0
    %v5044 = vadd.f32 0.0, %v5043
    %v5045 = vpop.f32.mrb[0].mxu0
    %v5046 = vpop.f32.mrb[0].mxu0
    %v5047 = vpop.f32.mrb[0].mxu0
    %5048 = vdwg.mxu0
    %v5049 = vsel %vm517, %v5044, -inf
    %5050 = vmax.xlane.f32.xlu0 %v5049
    %v5051 = vpop.xlane.xlu0 %5050
    %v5052 = vsub.f32 %v5044, %v5051
    %v5053 = vmul.f32 %v5052, 1.442695
    %v5054 = vpow.pop %v5053
    %v5055 = vsel %vm517, %v5054, 0.0
    %5056 = vadd.xlane.f32.xlu0 %v5055
    %v5057 = vpop.xlane.xlu0 %5056
    %v5058 = vrcp.pop %v5057
    %v5059 = vmul.f32 %v5054, %v5058
    %v5060 = vpack.c.bf16 %v5059, %v5059
    %v5062 = vsel %vm517, %v5060, 0
    %v5065 = vsel %vm533, %v5002, 0
    %5067 = vmatprep.subr.bf16.mxu0 0
    %5068 = vmatpush1.bf16.msra.mxu0 %v5065
    %5069 = vmatprep.subr.bf16.mxu0 0
    %5070 = vmatpush1.bf16.msra.mxu0 0
    %5071 = vmatprep.subr.bf16.mxu0 0
    %5072 = vmatpush1.bf16.msra.mxu0 0
    %5073 = vmatprep.subr.bf16.mxu0 0
    %5074 = vmatpush1.bf16.msra.mxu0 0
    %5075 = vmatprep.subr.bf16.mxu0 0
    %5076 = vmatpush1.bf16.msra.mxu0 0
    %5077 = vmatprep.subr.bf16.mxu0 0
    %5078 = vmatpush1.bf16.msra.mxu0 0
    %5079 = vmatprep.subr.bf16.mxu0 0
    %5080 = vmatpush1.bf16.msra.mxu0 0
    %5081 = vmatprep.subr.bf16.mxu0 0
    %5082 = vmatpush1.bf16.msra.mxu0 0
    %5083 = vmatprep.subr.bf16.mxu0 0
    %5084 = vmatpush1.bf16.msra.mxu0 0
    %5085 = vmatprep.subr.bf16.mxu0 0
    %5086 = vmatpush1.bf16.msra.mxu0 0
    %5087 = vmatprep.subr.bf16.mxu0 0
    %5088 = vmatpush1.bf16.msra.mxu0 0
    %5089 = vmatprep.subr.bf16.mxu0 0
    %5090 = vmatpush1.bf16.msra.mxu0 0
    %5091 = vmatprep.subr.bf16.mxu0 0
    %5092 = vmatpush1.bf16.msra.mxu0 0
    %5093 = vmatprep.subr.bf16.mxu0 0
    %5094 = vmatpush1.bf16.msra.mxu0 0
    %5095 = vmatprep.subr.bf16.mxu0 0
    %5096 = vmatpush1.bf16.msra.mxu0 0
    %5097 = vmatprep.subr.bf16.mxu0 0
    %5098 = vmatpush1.bf16.msra.mxu0 0
    %5099 = vmatprep.mubr.bf16.mxu0 0
    %5100 = vmatmul.mubr.bf16.gmra.mrb[0].mxu0 %v5062
    %v5101 = vpop.f32.mrb[0].mxu0
    %v5102 = vadd.f32 0.0, %v5101
    %v5103 = vpop.f32.mrb[0].mxu0
    %v5104 = vpop.f32.mrb[0].mxu0
    %v5105 = vpop.f32.mrb[0].mxu0
    %5106 = vdwg.mxu0
    %5108 = vrot.lane.b32.xlu0 %v5000, 96
    %v5109 = vpop.permute.xlu0 %5108
    %5111 = vrot.lane.b32.xlu0 %v5001, 96
    %v5112 = vpop.permute.xlu0 %5111
    %v5114 = vsel %vm470, %v5109, 0
    %v5117 = vsel %vm470, %v5112, 0
    %5119 = vmatprep.subr.bf16.mxu0 0
    %5120 = vmatpush1.bf16.xpose.msra.mxu0 %v5117
    %5121 = vmatprep.subr.bf16.mxu0 0
    %5122 = vmatpush1.bf16.xpose.msra.mxu0 0
    %5123 = vmatprep.subr.bf16.mxu0 0
    %5124 = vmatpush1.bf16.xpose.msra.mxu0 0
    %5125 = vmatprep.subr.bf16.mxu0 0
    %5126 = vmatpush1.bf16.xpose.msra.mxu0 0
    %5127 = vmatprep.subr.bf16.mxu0 0
    %5128 = vmatpush1.bf16.xpose.msra.mxu0 0
    %5129 = vmatprep.subr.bf16.mxu0 0
    %5130 = vmatpush1.bf16.xpose.msra.mxu0 0
    %5131 = vmatprep.subr.bf16.mxu0 0
    %5132 = vmatpush1.bf16.xpose.msra.mxu0 0
    %5133 = vmatprep.subr.bf16.mxu0 0
    %5134 = vmatpush1.bf16.xpose.msra.mxu0 0
    %5135 = vmatprep.subr.bf16.mxu0 0
    %5136 = vmatpush1.bf16.xpose.msra.mxu0 0
    %5137 = vmatprep.subr.bf16.mxu0 0
    %5138 = vmatpush1.bf16.xpose.msra.mxu0 0
    %5139 = vmatprep.subr.bf16.mxu0 0
    %5140 = vmatpush1.bf16.xpose.msra.mxu0 0
    %5141 = vmatprep.subr.bf16.mxu0 0
    %5142 = vmatpush1.bf16.xpose.msra.mxu0 0
    %5143 = vmatprep.subr.bf16.mxu0 0
    %5144 = vmatpush1.bf16.xpose.msra.mxu0 0
    %5145 = vmatprep.subr.bf16.mxu0 0
    %5146 = vmatpush1.bf16.xpose.msra.mxu0 0
    %5147 = vmatprep.subr.bf16.mxu0 0
    %5148 = vmatpush1.bf16.xpose.msra.mxu0 0
    %5149 = vmatprep.subr.bf16.mxu0 0
    %5150 = vmatpush1.bf16.xpose.msra.mxu0 0
    %5151 = vmatprep.mubr.bf16.mxu0 0
    %5152 = vmatmul.mubr.bf16.gmra.mrb[0].mxu0 %v5114
    %v5153 = vpop.f32.mrb[0].mxu0
    %v5154 = vadd.f32 0.0, %v5153
    %v5155 = vpop.f32.mrb[0].mxu0
    %v5156 = vpop.f32.mrb[0].mxu0
    %v5157 = vpop.f32.mrb[0].mxu0
    %5158 = vdwg.mxu0
    %v5159 = vsel %vm517, %v5154, -inf
    %5160 = vmax.xlane.f32.xlu0 %v5159
    %v5161 = vpop.xlane.xlu0 %5160
    %v5162 = vsub.f32 %v5154, %v5161
    %v5163 = vmul.f32 %v5162, 1.442695
    %v5164 = vpow.pop %v5163
    %v5165 = vsel %vm517, %v5164, 0.0
    %5166 = vadd.xlane.f32.xlu0 %v5165
    %v5167 = vpop.xlane.xlu0 %5166
    %v5168 = vrcp.pop %v5167
    %v5169 = vmul.f32 %v5164, %v5168
    %v5170 = vpack.c.bf16 %v5169, %v5169
    %5172 = vrot.lane.b32.xlu0 %v5002, 96
    %v5173 = vpop.permute.xlu0 %5172
    %v5175 = vsel %vm517, %v5170, 0
    %v5178 = vsel %vm533, %v5173, 0
    %5180 = vmatprep.subr.bf16.mxu0 0
    %5181 = vmatpush1.bf16.msra.mxu0 %v5178
    %5182 = vmatprep.subr.bf16.mxu0 0
    %5183 = vmatpush1.bf16.msra.mxu0 0
    %5184 = vmatprep.subr.bf16.mxu0 0
    %5185 = vmatpush1.bf16.msra.mxu0 0
    %5186 = vmatprep.subr.bf16.mxu0 0
    %5187 = vmatpush1.bf16.msra.mxu0 0
    %5188 = vmatprep.subr.bf16.mxu0 0
    %5189 = vmatpush1.bf16.msra.mxu0 0
    %5190 = vmatprep.subr.bf16.mxu0 0
    %5191 = vmatpush1.bf16.msra.mxu0 0
    %5192 = vmatprep.subr.bf16.mxu0 0
    %5193 = vmatpush1.bf16.msra.mxu0 0
    %5194 = vmatprep.subr.bf16.mxu0 0
    %5195 = vmatpush1.bf16.msra.mxu0 0
    %5196 = vmatprep.subr.bf16.mxu0 0
    %5197 = vmatpush1.bf16.msra.mxu0 0
    %5198 = vmatprep.subr.bf16.mxu0 0
    %5199 = vmatpush1.bf16.msra.mxu0 0
    %5200 = vmatprep.subr.bf16.mxu0 0
    %5201 = vmatpush1.bf16.msra.mxu0 0
    %5202 = vmatprep.subr.bf16.mxu0 0
    %5203 = vmatpush1.bf16.msra.mxu0 0
    %5204 = vmatprep.subr.bf16.mxu0 0
    %5205 = vmatpush1.bf16.msra.mxu0 0
    %5206 = vmatprep.subr.bf16.mxu0 0
    %5207 = vmatpush1.bf16.msra.mxu0 0
    %5208 = vmatprep.subr.bf16.mxu0 0
    %5209 = vmatpush1.bf16.msra.mxu0 0
    %5210 = vmatprep.subr.bf16.mxu0 0
    %5211 = vmatpush1.bf16.msra.mxu0 0
    %5212 = vmatprep.mubr.bf16.mxu0 0
    %5213 = vmatmul.mubr.bf16.gmra.mrb[0].mxu0 %v5175
    %v5214 = vpop.f32.mrb[0].mxu0
    %v5215 = vadd.f32 0.0, %v5214
    %v5216 = vpop.f32.mrb[0].mxu0
    %v5217 = vpop.f32.mrb[0].mxu0
    %v5218 = vpop.f32.mrb[0].mxu0
    %5219 = vdwg.mxu0
    %5220 = vrot.lane.b32.xlu0 %v5000, 64
    %v5221 = vpop.permute.xlu0 %5220
    %5222 = vrot.lane.b32.xlu0 %v5001, 64
    %v5223 = vpop.permute.xlu0 %5222
    %v5225 = vsel %vm470, %v5221, 0
    %v5228 = vsel %vm470, %v5223, 0
    %5230 = vmatprep.subr.bf16.mxu0 0
    %5231 = vmatpush1.bf16.xpose.msra.mxu0 %v5228
    %5232 = vmatprep.subr.bf16.mxu0 0
    %5233 = vmatpush1.bf16.xpose.msra.mxu0 0
    %5234 = vmatprep.subr.bf16.mxu0 0
    %5235 = vmatpush1.bf16.xpose.msra.mxu0 0
    %5236 = vmatprep.subr.bf16.mxu0 0
    %5237 = vmatpush1.bf16.xpose.msra.mxu0 0
    %5238 = vmatprep.subr.bf16.mxu0 0
    %5239 = vmatpush1.bf16.xpose.msra.mxu0 0
    %5240 = vmatprep.subr.bf16.mxu0 0
    %5241 = vmatpush1.bf16.xpose.msra.mxu0 0
    %5242 = vmatprep.subr.bf16.mxu0 0
    %5243 = vmatpush1.bf16.xpose.msra.mxu0 0
    %5244 = vmatprep.subr.bf16.mxu0 0
    %5245 = vmatpush1.bf16.xpose.msra.mxu0 0
    %5246 = vmatprep.subr.bf16.mxu0 0
    %5247 = vmatpush1.bf16.xpose.msra.mxu0 0
    %5248 = vmatprep.subr.bf16.mxu0 0
    %5249 = vmatpush1.bf16.xpose.msra.mxu0 0
    %5250 = vmatprep.subr.bf16.mxu0 0
    %5251 = vmatpush1.bf16.xpose.msra.mxu0 0
    %5252 = vmatprep.subr.bf16.mxu0 0
    %5253 = vmatpush1.bf16.xpose.msra.mxu0 0
    %5254 = vmatprep.subr.bf16.mxu0 0
    %5255 = vmatpush1.bf16.xpose.msra.mxu0 0
    %5256 = vmatprep.subr.bf16.mxu0 0
    %5257 = vmatpush1.bf16.xpose.msra.mxu0 0
    %5258 = vmatprep.subr.bf16.mxu0 0
    %5259 = vmatpush1.bf16.xpose.msra.mxu0 0
    %5260 = vmatprep.subr.bf16.mxu0 0
    %5261 = vmatpush1.bf16.xpose.msra.mxu0 0
    %5262 = vmatprep.mubr.bf16.mxu0 0
    %5263 = vmatmul.mubr.bf16.gmra.mrb[0].mxu0 %v5225
    %v5264 = vpop.f32.mrb[0].mxu0
    %v5265 = vadd.f32 0.0, %v5264
    %v5266 = vpop.f32.mrb[0].mxu0
    %v5267 = vpop.f32.mrb[0].mxu0
    %v5268 = vpop.f32.mrb[0].mxu0
    %5269 = vdwg.mxu0
    %v5270 = vsel %vm517, %v5265, -inf
    %5271 = vmax.xlane.f32.xlu0 %v5270
    %v5272 = vpop.xlane.xlu0 %5271
    %v5273 = vsub.f32 %v5265, %v5272
    %v5274 = vmul.f32 %v5273, 1.442695
    %v5275 = vpow.pop %v5274
    %v5276 = vsel %vm517, %v5275, 0.0
    %5277 = vadd.xlane.f32.xlu0 %v5276
    %v5278 = vpop.xlane.xlu0 %5277
    %v5279 = vrcp.pop %v5278
    %v5280 = vmul.f32 %v5275, %v5279
    %v5281 = vpack.c.bf16 %v5280, %v5280
    %5282 = vrot.lane.b32.xlu0 %v5002, 64
    %v5283 = vpop.permute.xlu0 %5282
    %v5285 = vsel %vm517, %v5281, 0
    %v5288 = vsel %vm533, %v5283, 0
    %5290 = vmatprep.subr.bf16.mxu0 0
    %5291 = vmatpush1.bf16.msra.mxu0 %v5288
    %5292 = vmatprep.subr.bf16.mxu0 0
    %5293 = vmatpush1.bf16.msra.mxu0 0
    %5294 = vmatprep.subr.bf16.mxu0 0
    %5295 = vmatpush1.bf16.msra.mxu0 0
    %5296 = vmatprep.subr.bf16.mxu0 0
    %5297 = vmatpush1.bf16.msra.mxu0 0
    %5298 = vmatprep.subr.bf16.mxu0 0
    %5299 = vmatpush1.bf16.msra.mxu0 0
    %5300 = vmatprep.subr.bf16.mxu0 0
    %5301 = vmatpush1.bf16.msra.mxu0 0
    %5302 = vmatprep.subr.bf16.mxu0 0
    %5303 = vmatpush1.bf16.msra.mxu0 0
    %5304 = vmatprep.subr.bf16.mxu0 0
    %5305 = vmatpush1.bf16.msra.mxu0 0
    %5306 = vmatprep.subr.bf16.mxu0 0
    %5307 = vmatpush1.bf16.msra.mxu0 0
    %5308 = vmatprep.subr.bf16.mxu0 0
    %5309 = vmatpush1.bf16.msra.mxu0 0
    %5310 = vmatprep.subr.bf16.mxu0 0
    %5311 = vmatpush1.bf16.msra.mxu0 0
    %5312 = vmatprep.subr.bf16.mxu0 0
    %5313 = vmatpush1.bf16.msra.mxu0 0
    %5314 = vmatprep.subr.bf16.mxu0 0
    %5315 = vmatpush1.bf16.msra.mxu0 0
    %5316 = vmatprep.subr.bf16.mxu0 0
    %5317 = vmatpush1.bf16.msra.mxu0 0
    %5318 = vmatprep.subr.bf16.mxu0 0
    %5319 = vmatpush1.bf16.msra.mxu0 0
    %5320 = vmatprep.subr.bf16.mxu0 0
    %5321 = vmatpush1.bf16.msra.mxu0 0
    %5322 = vmatprep.mubr.bf16.mxu0 0
    %5323 = vmatmul.mubr.bf16.gmra.mrb[0].mxu0 %v5285
    %v5324 = vpop.f32.mrb[0].mxu0
    %v5325 = vadd.f32 0.0, %v5324
    %v5326 = vpop.f32.mrb[0].mxu0
    %v5327 = vpop.f32.mrb[0].mxu0
    %v5328 = vpop.f32.mrb[0].mxu0
    %5329 = vdwg.mxu0
    %5330 = vrot.lane.b32.xlu0 %v5000, 32
    %v5331 = vpop.permute.xlu0 %5330
    %5332 = vrot.lane.b32.xlu0 %v5001, 32
    %v5333 = vpop.permute.xlu0 %5332
    %v5335 = vsel %vm470, %v5331, 0
    %v5338 = vsel %vm470, %v5333, 0
    %5340 = vmatprep.subr.bf16.mxu0 0
    %5341 = vmatpush1.bf16.xpose.msra.mxu0 %v5338
    %5342 = vmatprep.subr.bf16.mxu0 0
    %5343 = vmatpush1.bf16.xpose.msra.mxu0 0
    %5344 = vmatprep.subr.bf16.mxu0 0
    %5345 = vmatpush1.bf16.xpose.msra.mxu0 0
    %5346 = vmatprep.subr.bf16.mxu0 0
    %5347 = vmatpush1.bf16.xpose.msra.mxu0 0
    %5348 = vmatprep.subr.bf16.mxu0 0
    %5349 = vmatpush1.bf16.xpose.msra.mxu0 0
    %5350 = vmatprep.subr.bf16.mxu0 0
    %5351 = vmatpush1.bf16.xpose.msra.mxu0 0
    %5352 = vmatprep.subr.bf16.mxu0 0
    %5353 = vmatpush1.bf16.xpose.msra.mxu0 0
    %5354 = vmatprep.subr.bf16.mxu0 0
    %5355 = vmatpush1.bf16.xpose.msra.mxu0 0
    %5356 = vmatprep.subr.bf16.mxu0 0
    %5357 = vmatpush1.bf16.xpose.msra.mxu0 0
    %5358 = vmatprep.subr.bf16.mxu0 0
    %5359 = vmatpush1.bf16.xpose.msra.mxu0 0
    %5360 = vmatprep.subr.bf16.mxu0 0
    %5361 = vmatpush1.bf16.xpose.msra.mxu0 0
    %5362 = vmatprep.subr.bf16.mxu0 0
    %5363 = vmatpush1.bf16.xpose.msra.mxu0 0
    %5364 = vmatprep.subr.bf16.mxu0 0
    %5365 = vmatpush1.bf16.xpose.msra.mxu0 0
    %5366 = vmatprep.subr.bf16.mxu0 0
    %5367 = vmatpush1.bf16.xpose.msra.mxu0 0
    %5368 = vmatprep.subr.bf16.mxu0 0
    %5369 = vmatpush1.bf16.xpose.msra.mxu0 0
    %5370 = vmatprep.subr.bf16.mxu0 0
    %5371 = vmatpush1.bf16.xpose.msra.mxu0 0
    %5372 = vmatprep.mubr.bf16.mxu0 0
    %5373 = vmatmul.mubr.bf16.gmra.mrb[0].mxu0 %v5335
    %v5374 = vpop.f32.mrb[0].mxu0
    %v5375 = vadd.f32 0.0, %v5374
    %v5376 = vpop.f32.mrb[0].mxu0
    %v5377 = vpop.f32.mrb[0].mxu0
    %v5378 = vpop.f32.mrb[0].mxu0
    %5379 = vdwg.mxu0
    %v5380 = vsel %vm517, %v5375, -inf
    %5381 = vmax.xlane.f32.xlu0 %v5380
    %v5382 = vpop.xlane.xlu0 %5381
    %v5383 = vsub.f32 %v5375, %v5382
    %v5384 = vmul.f32 %v5383, 1.442695
    %v5385 = vpow.pop %v5384
    %v5386 = vsel %vm517, %v5385, 0.0
    %5387 = vadd.xlane.f32.xlu0 %v5386
    %v5388 = vpop.xlane.xlu0 %5387
    %v5389 = vrcp.pop %v5388
    %v5390 = vmul.f32 %v5385, %v5389
    %v5391 = vpack.c.bf16 %v5390, %v5390
    %5392 = vrot.lane.b32.xlu0 %v5002, 32
    %v5393 = vpop.permute.xlu0 %5392
    %v5395 = vsel %vm517, %v5391, 0
    %v5398 = vsel %vm533, %v5393, 0
    %5400 = vmatprep.subr.bf16.mxu0 0
    %5401 = vmatpush1.bf16.msra.mxu0 %v5398
    %5402 = vmatprep.subr.bf16.mxu0 0
    %5403 = vmatpush1.bf16.msra.mxu0 0
    %5404 = vmatprep.subr.bf16.mxu0 0
    %5405 = vmatpush1.bf16.msra.mxu0 0
    %5406 = vmatprep.subr.bf16.mxu0 0
    %5407 = vmatpush1.bf16.msra.mxu0 0
    %5408 = vmatprep.subr.bf16.mxu0 0
    %5409 = vmatpush1.bf16.msra.mxu0 0
    %5410 = vmatprep.subr.bf16.mxu0 0
    %5411 = vmatpush1.bf16.msra.mxu0 0
    %5412 = vmatprep.subr.bf16.mxu0 0
    %5413 = vmatpush1.bf16.msra.mxu0 0
    %5414 = vmatprep.subr.bf16.mxu0 0
    %5415 = vmatpush1.bf16.msra.mxu0 0
    %5416 = vmatprep.subr.bf16.mxu0 0
    %5417 = vmatpush1.bf16.msra.mxu0 0
    %5418 = vmatprep.subr.bf16.mxu0 0
    %5419 = vmatpush1.bf16.msra.mxu0 0
    %5420 = vmatprep.subr.bf16.mxu0 0
    %5421 = vmatpush1.bf16.msra.mxu0 0
    %5422 = vmatprep.subr.bf16.mxu0 0
    %5423 = vmatpush1.bf16.msra.mxu0 0
    %5424 = vmatprep.subr.bf16.mxu0 0
    %5425 = vmatpush1.bf16.msra.mxu0 0
    %5426 = vmatprep.subr.bf16.mxu0 0
    %5427 = vmatpush1.bf16.msra.mxu0 0
    %5428 = vmatprep.subr.bf16.mxu0 0
    %5429 = vmatpush1.bf16.msra.mxu0 0
    %5430 = vmatprep.subr.bf16.mxu0 0
    %5431 = vmatpush1.bf16.msra.mxu0 0
    %5432 = vmatprep.mubr.bf16.mxu0 0
    %5433 = vmatmul.mubr.bf16.gmra.mrb[0].mxu0 %v5395
    %v5434 = vpop.f32.mrb[0].mxu0
    %v5435 = vadd.f32 0.0, %v5434
    %v5436 = vpop.f32.mrb[0].mxu0
    %v5437 = vpop.f32.mrb[0].mxu0
    %v5438 = vpop.f32.mrb[0].mxu0
    %5439 = vdwg.mxu0
    %5441 = vrot.lane.b32.xlu0 %v5215, 32
    %v5442 = vpop.permute.xlu0 %5441
    %5445 = vrot.lane.b32.xlu0 %v5325, 64
    %v5446 = vpop.permute.xlu0 %5445
    %5449 = vrot.lane.b32.xlu0 %v5435, 96
    %v5450 = vpop.permute.xlu0 %5449
    %v5452 = vsel %vm470, %v5102, %v5442
    %v5453 = vsel %vm159, %v5452, %v5446
    %v5454 = vsel %vm924, %v5453, %v5450
    %s5455 = scalar_lea.vmem [#allocation5], 128
    %v5456 = vld [vmem:[%s5455] sm:$0xf]
    %v5457 = vld [vmem:[%s5455 + $0x4] sm:$0xf]
    %v5458 = vld [vmem:[%s5455 + $0x8] sm:$0xf]
    %v5459 = vld [vmem:[%s5455 + $0xc] sm:$0xf]
    %v5460 = vld [vmem:[%s5455 + $0x10] sm:$0xf]
    %v5461 = vld [vmem:[%s5455 + $0x14] sm:$0xf]
    %v5462 = vld [vmem:[%s5455 + $0x18] sm:$0xf]
    %v5463 = vld [vmem:[%s5455 + $0x1c] sm:$0xf]
    %v5464 = vld [vmem:[%s5455 + $0x20] sm:$0xf]
    %v5465 = vld [vmem:[%s5455 + $0x24] sm:$0xf]
    %v5466 = vld [vmem:[%s5455 + $0x28] sm:$0xf]
    %v5467 = vld [vmem:[%s5455 + $0x2c] sm:$0xf]
    %v5468 = vld [vmem:[%s5455 + $0x30] sm:$0xf]
    %v5469 = vld [vmem:[%s5455 + $0x34] sm:$0xf]
    %v5470 = vld [vmem:[%s5455 + $0x38] sm:$0xf]
    %v5471 = vld [vmem:[%s5455 + $0x3c] sm:$0xf]
    %s5472 = scalar_lea.vmem %s6, 2
    %v5473 = vld [vmem:[%s5472] sm:$0x1]
    %v5474 = vpack.c.bf16 %v5454, %v4998
    %v5476 = vlaneseq
    %v5477 = vshrl.u32 %v5476, 7
    %v5478 = vsub.s32 0, %v5477
    %v5479 = vrot.slane %v5473, %v5478
    %v5497 = vunpack.c.l.b16 %v5456
    %v5498 = vunpack.c.l.b16 %v5457
    %v5499 = vunpack.c.l.b16 %v5458
    %v5500 = vunpack.c.l.b16 %v5459
    %v5501 = vunpack.c.l.b16 %v5460
    %v5502 = vunpack.c.l.b16 %v5461
    %v5503 = vunpack.c.l.b16 %v5462
    %v5504 = vunpack.c.l.b16 %v5463
    %v5505 = vunpack.c.l.b16 %v5464
    %v5506 = vunpack.c.l.b16 %v5465
    %v5507 = vunpack.c.l.b16 %v5466
    %v5508 = vunpack.c.l.b16 %v5467
    %v5509 = vunpack.c.l.b16 %v5468
    %v5510 = vunpack.c.l.b16 %v5469
    %v5511 = vunpack.c.l.b16 %v5470
    %v5512 = vunpack.c.l.b16 %v5471
    %v5513 = vpack.c.b16 %v5498, %v5497
    %v5514 = vpack.c.b16 %v5500, %v5499
    %v5515 = vpack.c.b16 %v5502, %v5501
    %v5516 = vpack.c.b16 %v5504, %v5503
    %v5517 = vpack.c.b16 %v5506, %v5505
    %v5518 = vpack.c.b16 %v5508, %v5507
    %v5519 = vpack.c.b16 %v5510, %v5509
    %v5520 = vpack.c.b16 %v5512, %v5511
    %5529 = vmatprep.subr.bf16.mxu0 0
    %5530 = vmatpush1.bf16.msra.mxu0 %v5513
    %5531 = vmatprep.subr.bf16.mxu0 0
    %5532 = vmatpush1.bf16.msra.mxu0 %v5514
    %5533 = vmatprep.subr.bf16.mxu0 0
    %5534 = vmatpush1.bf16.msra.mxu0 %v5515
    %5535 = vmatprep.subr.bf16.mxu0 0
    %5536 = vmatpush1.bf16.msra.mxu0 %v5516
    %5537 = vmatprep.subr.bf16.mxu0 0
    %5538 = vmatpush1.bf16.msra.mxu0 %v5517
    %5539 = vmatprep.subr.bf16.mxu0 0
    %5540 = vmatpush1.bf16.msra.mxu0 %v5518
    %5541 = vmatprep.subr.bf16.mxu0 0
    %5542 = vmatpush1.bf16.msra.mxu0 %v5519
    %5543 = vmatprep.subr.bf16.mxu0 0
    %5544 = vmatpush1.bf16.msra.mxu0 %v5520
    %5545 = vmatprep.subr.bf16.mxu0 0
    %5546 = vmatpush1.bf16.msra.mxu0 0
    %5547 = vmatprep.subr.bf16.mxu0 0
    %5548 = vmatpush1.bf16.msra.mxu0 0
    %5549 = vmatprep.subr.bf16.mxu0 0
    %5550 = vmatpush1.bf16.msra.mxu0 0
    %5551 = vmatprep.subr.bf16.mxu0 0
    %5552 = vmatpush1.bf16.msra.mxu0 0
    %5553 = vmatprep.subr.bf16.mxu0 0
    %5554 = vmatpush1.bf16.msra.mxu0 0
    %5555 = vmatprep.subr.bf16.mxu0 0
    %5556 = vmatpush1.bf16.msra.mxu0 0
    %5557 = vmatprep.subr.bf16.mxu0 0
    %5558 = vmatpush1.bf16.msra.mxu0 0
    %5559 = vmatprep.subr.bf16.mxu0 0
    %5560 = vmatpush1.bf16.msra.mxu0 0
    %5561 = vmatprep.mubr.bf16.mxu0 0
    %5562 = vmatmul.mubr.bf16.gmra.mrb[0].mxu0 %v5474
    %v5563 = vpop.f32.mrb[0].mxu0
    %v5564 = vadd.f32 %v5479, %v5563
    %v5565 = vpop.f32.mrb[0].mxu0
    %v5566 = vpop.f32.mrb[0].mxu0
    %v5567 = vadd.f32 %v5479, %v5566
    %v5568 = vpop.f32.mrb[0].mxu0
    %5569 = vdwg.mxu0
    %v5570 = vadd.f32 %v4277, %v5564
    %v5571 = vadd.f32 %v4278, %v5567
    %s5572 = scalar_lea.vmem %s7, 2
    %v5573 = vld [vmem:[%s5572] sm:$0x1]
    %s5574 = scalar_lea.vmem %s8, 2
    %v5575 = vld [vmem:[%s5574] sm:$0x1]
    %5576 = vadd.xlane.f32.xlu0 %v5570
    %v5577 = vpop.xlane.xlu0 %5576
    %5578 = vadd.xlane.f32.xlu0 %v5571
    %v5579 = vpop.xlane.xlu0 %5578
    %v5580 = vmul.f32 %v5577, %v1503
    %v5581 = vmul.f32 %v5579, %v1503
    %v5582 = vsub.f32 %v5570, %v5580
    %v5583 = vsub.f32 %v5571, %v5581
    %v5584 = vmul.f32 %v5582, %v5582
    %v5585 = vmul.f32 %v5583, %v5583
    %5586 = vadd.xlane.f32.xlu0 %v5584
    %v5587 = vpop.xlane.xlu0 %5586
    %5588 = vadd.xlane.f32.xlu0 %v5585
    %v5589 = vpop.xlane.xlu0 %5588
    %v5590 = vmul.f32 %v5587, %v1503
    %v5591 = vmul.f32 %v5589, %v1503
    %v5592 = vadd.f32 %v5590, 1e-05
    %v5593 = vadd.f32 %v5591, 1e-05
    %v5594 = vrsqrt.pop %v5592
    %v5595 = vrsqrt.pop %v5593
    %v5596 = vmul.f32 %v5582, %v5594
    %v5597 = vmul.f32 %v5583, %v5595
    %v5599 = vlaneseq
    %v5600 = vshrl.u32 %v5599, 7
    %v5601 = vsub.s32 0, %v5600
    %v5602 = vrot.slane %v5573, %v5601
    %v5604 = vmul.f32 %v5596, %v5602
    %v5605 = vmul.f32 %v5597, %v5602
    %v5607 = vlaneseq
    %v5608 = vshrl.u32 %v5607, 7
    %v5609 = vsub.s32 0, %v5608
    %v5610 = vrot.slane %v5575, %v5609
    %v5612 = vadd.f32 %v5604, %v5610
    %v5613 = vadd.f32 %v5605, %v5610
    %s5614 = scalar_lea.vmem [#allocation7], 512
    %v5615 = vld [vmem:[%s5614] sm:$0xff]
    %v5616 = vld [vmem:[%s5614 + $0x8] sm:$0xff]
    %v5617 = vld [vmem:[%s5614 + $0x10] sm:$0xff]
    %v5618 = vld [vmem:[%s5614 + $0x18] sm:$0xff]
    %v5619 = vld [vmem:[%s5614 + $0x20] sm:$0xff]
    %v5620 = vld [vmem:[%s5614 + $0x28] sm:$0xff]
    %v5621 = vld [vmem:[%s5614 + $0x30] sm:$0xff]
    %v5622 = vld [vmem:[%s5614 + $0x38] sm:$0xff]
    %v5623 = vld [vmem:[%s5614 + $0x40] sm:$0xff]
    %v5624 = vld [vmem:[%s5614 + $0x48] sm:$0xff]
    %v5625 = vld [vmem:[%s5614 + $0x50] sm:$0xff]
    %v5626 = vld [vmem:[%s5614 + $0x58] sm:$0xff]
    %v5627 = vld [vmem:[%s5614 + $0x60] sm:$0xff]
    %v5628 = vld [vmem:[%s5614 + $0x68] sm:$0xff]
    %v5629 = vld [vmem:[%s5614 + $0x70] sm:$0xff]
    %v5630 = vld [vmem:[%s5614 + $0x78] sm:$0xff]
    %v5631 = vld [vmem:[%s5614 + $0x80] sm:$0xff]
    %v5632 = vld [vmem:[%s5614 + $0x88] sm:$0xff]
    %v5633 = vld [vmem:[%s5614 + $0x90] sm:$0xff]
    %v5634 = vld [vmem:[%s5614 + $0x98] sm:$0xff]
    %v5635 = vld [vmem:[%s5614 + $0xa0] sm:$0xff]
    %v5636 = vld [vmem:[%s5614 + $0xa8] sm:$0xff]
    %v5637 = vld [vmem:[%s5614 + $0xb0] sm:$0xff]
    %v5638 = vld [vmem:[%s5614 + $0xb8] sm:$0xff]
    %v5639 = vld [vmem:[%s5614 + $0xc0] sm:$0xff]
    %v5640 = vld [vmem:[%s5614 + $0xc8] sm:$0xff]
    %v5641 = vld [vmem:[%s5614 + $0xd0] sm:$0xff]
    %v5642 = vld [vmem:[%s5614 + $0xd8] sm:$0xff]
    %v5643 = vld [vmem:[%s5614 + $0xe0] sm:$0xff]
    %v5644 = vld [vmem:[%s5614 + $0xe8] sm:$0xff]
    %v5645 = vld [vmem:[%s5614 + $0xf0] sm:$0xff]
    %v5646 = vld [vmem:[%s5614 + $0xf8] sm:$0xff]
    %s5647 = scalar_lea.vmem %s10, 8
    %v5648 = vld [vmem:[%s5647] sm:$0xf]
    %v5649 = vpack.c.bf16 %v5613, %v5612
    %v5651 = vlaneseq
    %v5652 = vshrl.u32 %v5651, 7
    %v5653 = vsub.s32 0, %v5652
    %v5654 = vrot.slane %v5648, %v5653
    %v5655 = vlaneseq
    %v5656 = vshrl.u32 %v5655, 7
    %v5657 = vsub.s32 1, %v5656
    %v5658 = vrot.slane %v5648, %v5657
    %v5659 = vlaneseq
    %v5660 = vshrl.u32 %v5659, 7
    %v5661 = vsub.s32 2, %v5660
    %v5662 = vrot.slane %v5648, %v5661
    %v5663 = vlaneseq
    %v5664 = vshrl.u32 %v5663, 7
    %v5665 = vsub.s32 3, %v5664
    %v5666 = vrot.slane %v5648, %v5665
    %v5703 = vunpack.c.l.b16 %v5615
    %v5704 = vunpack.c.h.b16 %v5615
    %v5705 = vunpack.c.l.b16 %v5616
    %v5706 = vunpack.c.h.b16 %v5616
    %v5707 = vunpack.c.l.b16 %v5617
    %v5708 = vunpack.c.h.b16 %v5617
    %v5709 = vunpack.c.l.b16 %v5618
    %v5710 = vunpack.c.h.b16 %v5618
    %v5711 = vunpack.c.l.b16 %v5619
    %v5712 = vunpack.c.h.b16 %v5619
    %v5713 = vunpack.c.l.b16 %v5620
    %v5714 = vunpack.c.h.b16 %v5620
    %v5715 = vunpack.c.l.b16 %v5621
    %v5716 = vunpack.c.h.b16 %v5621
    %v5717 = vunpack.c.l.b16 %v5622
    %v5718 = vunpack.c.h.b16 %v5622
    %v5719 = vunpack.c.l.b16 %v5623
    %v5720 = vunpack.c.h.b16 %v5623
    %v5721 = vunpack.c.l.b16 %v5624
    %v5722 = vunpack.c.h.b16 %v5624
    %v5723 = vunpack.c.l.b16 %v5625
    %v5724 = vunpack.c.h.b16 %v5625
    %v5725 = vunpack.c.l.b16 %v5626
    %v5726 = vunpack.c.h.b16 %v5626
    %v5727 = vunpack.c.l.b16 %v5627
    %v5728 = vunpack.c.h.b16 %v5627
    %v5729 = vunpack.c.l.b16 %v5628
    %v5730 = vunpack.c.h.b16 %v5628
    %v5731 = vunpack.c.l.b16 %v5629
    %v5732 = vunpack.c.h.b16 %v5629
    %v5733 = vunpack.c.l.b16 %v5630
    %v5734 = vunpack.c.h.b16 %v5630
    %v5735 = vunpack.c.l.b16 %v5631
    %v5736 = vunpack.c.h.b16 %v5631
    %v5737 = vunpack.c.l.b16 %v5632
    %v5738 = vunpack.c.h.b16 %v5632
    %v5739 = vunpack.c.l.b16 %v5633
    %v5740 = vunpack.c.h.b16 %v5633
    %v5741 = vunpack.c.l.b16 %v5634
    %v5742 = vunpack.c.h.b16 %v5634
    %v5743 = vunpack.c.l.b16 %v5635
    %v5744 = vunpack.c.h.b16 %v5635
    %v5745 = vunpack.c.l.b16 %v5636
    %v5746 = vunpack.c.h.b16 %v5636
    %v5747 = vunpack.c.l.b16 %v5637
    %v5748 = vunpack.c.h.b16 %v5637
    %v5749 = vunpack.c.l.b16 %v5638
    %v5750 = vunpack.c.h.b16 %v5638
    %v5751 = vunpack.c.l.b16 %v5639
    %v5752 = vunpack.c.h.b16 %v5639
    %v5753 = vunpack.c.l.b16 %v5640
    %v5754 = vunpack.c.h.b16 %v5640
    %v5755 = vunpack.c.l.b16 %v5641
    %v5756 = vunpack.c.h.b16 %v5641
    %v5757 = vunpack.c.l.b16 %v5642
    %v5758 = vunpack.c.h.b16 %v5642
    %v5759 = vunpack.c.l.b16 %v5643
    %v5760 = vunpack.c.h.b16 %v5643
    %v5761 = vunpack.c.l.b16 %v5644
    %v5762 = vunpack.c.h.b16 %v5644
    %v5763 = vunpack.c.l.b16 %v5645
    %v5764 = vunpack.c.h.b16 %v5645
    %v5765 = vunpack.c.l.b16 %v5646
    %v5766 = vunpack.c.h.b16 %v5646
    %v5767 = vpack.c.b16 %v5707, %v5703
    %v5768 = vpack.c.b16 %v5708, %v5704
    %v5769 = vpack.c.b16 %v5709, %v5705
    %v5770 = vpack.c.b16 %v5710, %v5706
    %v5771 = vpack.c.b16 %v5715, %v5711
    %v5772 = vpack.c.b16 %v5716, %v5712
    %v5773 = vpack.c.b16 %v5717, %v5713
    %v5774 = vpack.c.b16 %v5718, %v5714
    %v5775 = vpack.c.b16 %v5723, %v5719
    %v5776 = vpack.c.b16 %v5724, %v5720
    %v5777 = vpack.c.b16 %v5725, %v5721
    %v5778 = vpack.c.b16 %v5726, %v5722
    %v5779 = vpack.c.b16 %v5731, %v5727
    %v5780 = vpack.c.b16 %v5732, %v5728
    %v5781 = vpack.c.b16 %v5733, %v5729
    %v5782 = vpack.c.b16 %v5734, %v5730
    %v5783 = vpack.c.b16 %v5739, %v5735
    %v5784 = vpack.c.b16 %v5740, %v5736
    %v5785 = vpack.c.b16 %v5741, %v5737
    %v5786 = vpack.c.b16 %v5742, %v5738
    %v5787 = vpack.c.b16 %v5747, %v5743
    %v5788 = vpack.c.b16 %v5748, %v5744
    %v5789 = vpack.c.b16 %v5749, %v5745
    %v5790 = vpack.c.b16 %v5750, %v5746
    %v5791 = vpack.c.b16 %v5755, %v5751
    %v5792 = vpack.c.b16 %v5756, %v5752
    %v5793 = vpack.c.b16 %v5757, %v5753
    %v5794 = vpack.c.b16 %v5758, %v5754
    %v5795 = vpack.c.b16 %v5763, %v5759
    %v5796 = vpack.c.b16 %v5764, %v5760
    %v5797 = vpack.c.b16 %v5765, %v5761
    %v5798 = vpack.c.b16 %v5766, %v5762
    %5831 = vmatprep.subr.bf16.mxu0 %v5768
    %5832 = vmatpush1.bf16.msra.mxu0 %v5767
    %5833 = vmatprep.subr.bf16.mxu0 %v5772
    %5834 = vmatpush1.bf16.msra.mxu0 %v5771
    %5835 = vmatprep.subr.bf16.mxu0 %v5776
    %5836 = vmatpush1.bf16.msra.mxu0 %v5775
    %5837 = vmatprep.subr.bf16.mxu0 %v5780
    %5838 = vmatpush1.bf16.msra.mxu0 %v5779
    %5839 = vmatprep.subr.bf16.mxu0 %v5784
    %5840 = vmatpush1.bf16.msra.mxu0 %v5783
    %5841 = vmatprep.subr.bf16.mxu0 %v5788
    %5842 = vmatpush1.bf16.msra.mxu0 %v5787
    %5843 = vmatprep.subr.bf16.mxu0 %v5792
    %5844 = vmatpush1.bf16.msra.mxu0 %v5791
    %5845 = vmatprep.subr.bf16.mxu0 %v5796
    %5846 = vmatpush1.bf16.msra.mxu0 %v5795
    %5847 = vmatprep.subr.bf16.mxu0 0
    %5848 = vmatpush1.bf16.msra.mxu0 0
    %5849 = vmatprep.subr.bf16.mxu0 0
    %5850 = vmatpush1.bf16.msra.mxu0 0
    %5851 = vmatprep.subr.bf16.mxu0 0
    %5852 = vmatpush1.bf16.msra.mxu0 0
    %5853 = vmatprep.subr.bf16.mxu0 0
    %5854 = vmatpush1.bf16.msra.mxu0 0
    %5855 = vmatprep.subr.bf16.mxu0 0
    %5856 = vmatpush1.bf16.msra.mxu0 0
    %5857 = vmatprep.subr.bf16.mxu0 0
    %5858 = vmatpush1.bf16.msra.mxu0 0
    %5859 = vmatprep.subr.bf16.mxu0 0
    %5860 = vmatpush1.bf16.msra.mxu0 0
    %5861 = vmatprep.subr.bf16.mxu0 0
    %5862 = vmatpush1.bf16.msra.mxu0 0
    %5863 = vmatprep.mubr.bf16.mxu0 0
    %5864 = vmatmul.mubr.bf16.gmra.mrb[0].mxu0 %v5649
    %v5865 = vpop.f32.mrb[0].mxu0
    %v5866 = vadd.f32 %v5654, %v5865
    %v5867 = vpop.f32.mrb[0].mxu0
    %v5868 = vadd.f32 %v5658, %v5867
    %v5869 = vpop.f32.mrb[0].mxu0
    %v5870 = vadd.f32 %v5654, %v5869
    %v5871 = vpop.f32.mrb[0].mxu0
    %v5872 = vadd.f32 %v5658, %v5871
    %5873 = vdwg.mxu0
    %5874 = vmatprep.subr.bf16.mxu0 %v5770
    %5875 = vmatpush1.bf16.msra.mxu0 %v5769
    %5876 = vmatprep.subr.bf16.mxu0 %v5774
    %5877 = vmatpush1.bf16.msra.mxu0 %v5773
    %5878 = vmatprep.subr.bf16.mxu0 %v5778
    %5879 = vmatpush1.bf16.msra.mxu0 %v5777
    %5880 = vmatprep.subr.bf16.mxu0 %v5782
    %5881 = vmatpush1.bf16.msra.mxu0 %v5781
    %5882 = vmatprep.subr.bf16.mxu0 %v5786
    %5883 = vmatpush1.bf16.msra.mxu0 %v5785
    %5884 = vmatprep.subr.bf16.mxu0 %v5790
    %5885 = vmatpush1.bf16.msra.mxu0 %v5789
    %5886 = vmatprep.subr.bf16.mxu0 %v5794
    %5887 = vmatpush1.bf16.msra.mxu0 %v5793
    %5888 = vmatprep.subr.bf16.mxu0 %v5798
    %5889 = vmatpush1.bf16.msra.mxu0 %v5797
    %5890 = vmatprep.subr.bf16.mxu0 0
    %5891 = vmatpush1.bf16.msra.mxu0 0
    %5892 = vmatprep.subr.bf16.mxu0 0
    %5893 = vmatpush1.bf16.msra.mxu0 0
    %5894 = vmatprep.subr.bf16.mxu0 0
    %5895 = vmatpush1.bf16.msra.mxu0 0
    %5896 = vmatprep.subr.bf16.mxu0 0
    %5897 = vmatpush1.bf16.msra.mxu0 0
    %5898 = vmatprep.subr.bf16.mxu0 0
    %5899 = vmatpush1.bf16.msra.mxu0 0
    %5900 = vmatprep.subr.bf16.mxu0 0
    %5901 = vmatpush1.bf16.msra.mxu0 0
    %5902 = vmatprep.subr.bf16.mxu0 0
    %5903 = vmatpush1.bf16.msra.mxu0 0
    %5904 = vmatprep.subr.bf16.mxu0 0
    %5905 = vmatpush1.bf16.msra.mxu0 0
    %5906 = vmatprep.mubr.bf16.mxu0 0
    %5907 = vmatmul.mubr.bf16.gmra.mrb[0].mxu0 %v5649
    %v5908 = vpop.f32.mrb[0].mxu0
    %v5909 = vadd.f32 %v5662, %v5908
    %v5910 = vpop.f32.mrb[0].mxu0
    %v5911 = vadd.f32 %v5666, %v5910
    %v5912 = vpop.f32.mrb[0].mxu0
    %v5913 = vadd.f32 %v5662, %v5912
    %v5914 = vpop.f32.mrb[0].mxu0
    %v5915 = vadd.f32 %v5666, %v5914
    %5916 = vdwg.mxu0
    %v5917 = vmax.f32 %v5866, 0.0
    %v5918 = vmax.f32 %v5868, 0.0
    %v5919 = vmax.f32 %v5909, 0.0
    %v5920 = vmax.f32 %v5911, 0.0
    %v5921 = vmax.f32 %v5870, 0.0
    %v5922 = vmax.f32 %v5872, 0.0
    %v5923 = vmax.f32 %v5913, 0.0
    %v5924 = vmax.f32 %v5915, 0.0
    %s5925 = scalar_lea.vmem [#allocation8], 512
    %v5926 = vld [vmem:[%s5925] sm:$0xf]
    %v5927 = vld [vmem:[%s5925 + $0x4] sm:$0xf]
    %v5928 = vld [vmem:[%s5925 + $0x8] sm:$0xf]
    %v5929 = vld [vmem:[%s5925 + $0xc] sm:$0xf]
    %v5930 = vld [vmem:[%s5925 + $0x10] sm:$0xf]
    %v5931 = vld [vmem:[%s5925 + $0x14] sm:$0xf]
    %v5932 = vld [vmem:[%s5925 + $0x18] sm:$0xf]
    %v5933 = vld [vmem:[%s5925 + $0x1c] sm:$0xf]
    %v5934 = vld [vmem:[%s5925 + $0x20] sm:$0xf]
    %v5935 = vld [vmem:[%s5925 + $0x24] sm:$0xf]
    %v5936 = vld [vmem:[%s5925 + $0x28] sm:$0xf]
    %v5937 = vld [vmem:[%s5925 + $0x2c] sm:$0xf]
    %v5938 = vld [vmem:[%s5925 + $0x30] sm:$0xf]
    %v5939 = vld [vmem:[%s5925 + $0x34] sm:$0xf]
    %v5940 = vld [vmem:[%s5925 + $0x38] sm:$0xf]
    %v5941 = vld [vmem:[%s5925 + $0x3c] sm:$0xf]
    %v5942 = vld [vmem:[%s5925 + $0x40] sm:$0xf]
    %v5943 = vld [vmem:[%s5925 + $0x44] sm:$0xf]
    %v5944 = vld [vmem:[%s5925 + $0x48] sm:$0xf]
    %v5945 = vld [vmem:[%s5925 + $0x4c] sm:$0xf]
    %v5946 = vld [vmem:[%s5925 + $0x50] sm:$0xf]
    %v5947 = vld [vmem:[%s5925 + $0x54] sm:$0xf]
    %v5948 = vld [vmem:[%s5925 + $0x58] sm:$0xf]
    %v5949 = vld [vmem:[%s5925 + $0x5c] sm:$0xf]
    %v5950 = vld [vmem:[%s5925 + $0x60] sm:$0xf]
    %v5951 = vld [vmem:[%s5925 + $0x64] sm:$0xf]
    %v5952 = vld [vmem:[%s5925 + $0x68] sm:$0xf]
    %v5953 = vld [vmem:[%s5925 + $0x6c] sm:$0xf]
    %v5954 = vld [vmem:[%s5925 + $0x70] sm:$0xf]
    %v5955 = vld [vmem:[%s5925 + $0x74] sm:$0xf]
    %v5956 = vld [vmem:[%s5925 + $0x78] sm:$0xf]
    %v5957 = vld [vmem:[%s5925 + $0x7c] sm:$0xf]
    %v5958 = vld [vmem:[%s5925 + $0x80] sm:$0xf]
    %v5959 = vld [vmem:[%s5925 + $0x84] sm:$0xf]
    %v5960 = vld [vmem:[%s5925 + $0x88] sm:$0xf]
    %v5961 = vld [vmem:[%s5925 + $0x8c] sm:$0xf]
    %v5962 = vld [vmem:[%s5925 + $0x90] sm:$0xf]
    %v5963 = vld [vmem:[%s5925 + $0x94] sm:$0xf]
    %v5964 = vld [vmem:[%s5925 + $0x98] sm:$0xf]
    %v5965 = vld [vmem:[%s5925 + $0x9c] sm:$0xf]
    %v5966 = vld [vmem:[%s5925 + $0xa0] sm:$0xf]
    %v5967 = vld [vmem:[%s5925 + $0xa4] sm:$0xf]
    %v5968 = vld [vmem:[%s5925 + $0xa8] sm:$0xf]
    %v5969 = vld [vmem:[%s5925 + $0xac] sm:$0xf]
    %v5970 = vld [vmem:[%s5925 + $0xb0] sm:$0xf]
    %v5971 = vld [vmem:[%s5925 + $0xb4] sm:$0xf]
    %v5972 = vld [vmem:[%s5925 + $0xb8] sm:$0xf]
    %v5973 = vld [vmem:[%s5925 + $0xbc] sm:$0xf]
    %v5974 = vld [vmem:[%s5925 + $0xc0] sm:$0xf]
    %v5975 = vld [vmem:[%s5925 + $0xc4] sm:$0xf]
    %v5976 = vld [vmem:[%s5925 + $0xc8] sm:$0xf]
    %v5977 = vld [vmem:[%s5925 + $0xcc] sm:$0xf]
    %v5978 = vld [vmem:[%s5925 + $0xd0] sm:$0xf]
    %v5979 = vld [vmem:[%s5925 + $0xd4] sm:$0xf]
    %v5980 = vld [vmem:[%s5925 + $0xd8] sm:$0xf]
    %v5981 = vld [vmem:[%s5925 + $0xdc] sm:$0xf]
    %v5982 = vld [vmem:[%s5925 + $0xe0] sm:$0xf]
    %v5983 = vld [vmem:[%s5925 + $0xe4] sm:$0xf]
    %v5984 = vld [vmem:[%s5925 + $0xe8] sm:$0xf]
    %v5985 = vld [vmem:[%s5925 + $0xec] sm:$0xf]
    %v5986 = vld [vmem:[%s5925 + $0xf0] sm:$0xf]
    %v5987 = vld [vmem:[%s5925 + $0xf4] sm:$0xf]
    %v5988 = vld [vmem:[%s5925 + $0xf8] sm:$0xf]
    %v5989 = vld [vmem:[%s5925 + $0xfc] sm:$0xf]
    %s5990 = scalar_lea.vmem %s12, 2
    %v5991 = vld [vmem:[%s5990] sm:$0x1]
    %v5992 = vpack.c.bf16 %v5921, %v5917
    %v5993 = vpack.c.bf16 %v5922, %v5918
    %v5994 = vpack.c.bf16 %v5923, %v5919
    %v5995 = vpack.c.bf16 %v5924, %v5920
    %v5997 = vlaneseq
    %v5998 = vshrl.u32 %v5997, 7
    %v5999 = vsub.s32 0, %v5998
    %v6000 = vrot.slane %v5991, %v5999
    %v6066 = vunpack.c.l.b16 %v5926
    %v6067 = vunpack.c.l.b16 %v5927
    %v6068 = vunpack.c.l.b16 %v5928
    %v6069 = vunpack.c.l.b16 %v5929
    %v6070 = vunpack.c.l.b16 %v5930
    %v6071 = vunpack.c.l.b16 %v5931
    %v6072 = vunpack.c.l.b16 %v5932
    %v6073 = vunpack.c.l.b16 %v5933
    %v6074 = vunpack.c.l.b16 %v5934
    %v6075 = vunpack.c.l.b16 %v5935
    %v6076 = vunpack.c.l.b16 %v5936
    %v6077 = vunpack.c.l.b16 %v5937
    %v6078 = vunpack.c.l.b16 %v5938
    %v6079 = vunpack.c.l.b16 %v5939
    %v6080 = vunpack.c.l.b16 %v5940
    %v6081 = vunpack.c.l.b16 %v5941
    %v6082 = vunpack.c.l.b16 %v5942
    %v6083 = vunpack.c.l.b16 %v5943
    %v6084 = vunpack.c.l.b16 %v5944
    %v6085 = vunpack.c.l.b16 %v5945
    %v6086 = vunpack.c.l.b16 %v5946
    %v6087 = vunpack.c.l.b16 %v5947
    %v6088 = vunpack.c.l.b16 %v5948
    %v6089 = vunpack.c.l.b16 %v5949
    %v6090 = vunpack.c.l.b16 %v5950
    %v6091 = vunpack.c.l.b16 %v5951
    %v6092 = vunpack.c.l.b16 %v5952
    %v6093 = vunpack.c.l.b16 %v5953
    %v6094 = vunpack.c.l.b16 %v5954
    %v6095 = vunpack.c.l.b16 %v5955
    %v6096 = vunpack.c.l.b16 %v5956
    %v6097 = vunpack.c.l.b16 %v5957
    %v6098 = vunpack.c.l.b16 %v5958
    %v6099 = vunpack.c.l.b16 %v5959
    %v6100 = vunpack.c.l.b16 %v5960
    %v6101 = vunpack.c.l.b16 %v5961
    %v6102 = vunpack.c.l.b16 %v5962
    %v6103 = vunpack.c.l.b16 %v5963
    %v6104 = vunpack.c.l.b16 %v5964
    %v6105 = vunpack.c.l.b16 %v5965
    %v6106 = vunpack.c.l.b16 %v5966
    %v6107 = vunpack.c.l.b16 %v5967
    %v6108 = vunpack.c.l.b16 %v5968
    %v6109 = vunpack.c.l.b16 %v5969
    %v6110 = vunpack.c.l.b16 %v5970
    %v6111 = vunpack.c.l.b16 %v5971
    %v6112 = vunpack.c.l.b16 %v5972
    %v6113 = vunpack.c.l.b16 %v5973
    %v6114 = vunpack.c.l.b16 %v5974
    %v6115 = vunpack.c.l.b16 %v5975
    %v6116 = vunpack.c.l.b16 %v5976
    %v6117 = vunpack.c.l.b16 %v5977
    %v6118 = vunpack.c.l.b16 %v5978
    %v6119 = vunpack.c.l.b16 %v5979
    %v6120 = vunpack.c.l.b16 %v5980
    %v6121 = vunpack.c.l.b16 %v5981
    %v6122 = vunpack.c.l.b16 %v5982
    %v6123 = vunpack.c.l.b16 %v5983
    %v6124 = vunpack.c.l.b16 %v5984
    %v6125 = vunpack.c.l.b16 %v5985
    %v6126 = vunpack.c.l.b16 %v5986
    %v6127 = vunpack.c.l.b16 %v5987
    %v6128 = vunpack.c.l.b16 %v5988
    %v6129 = vunpack.c.l.b16 %v5989
    %v6130 = vpack.c.b16 %v6067, %v6066
    %v6131 = vpack.c.b16 %v6069, %v6068
    %v6132 = vpack.c.b16 %v6071, %v6070
    %v6133 = vpack.c.b16 %v6073, %v6072
    %v6134 = vpack.c.b16 %v6075, %v6074
    %v6135 = vpack.c.b16 %v6077, %v6076
    %v6136 = vpack.c.b16 %v6079, %v6078
    %v6137 = vpack.c.b16 %v6081, %v6080
    %v6138 = vpack.c.b16 %v6083, %v6082
    %v6139 = vpack.c.b16 %v6085, %v6084
    %v6140 = vpack.c.b16 %v6087, %v6086
    %v6141 = vpack.c.b16 %v6089, %v6088
    %v6142 = vpack.c.b16 %v6091, %v6090
    %v6143 = vpack.c.b16 %v6093, %v6092
    %v6144 = vpack.c.b16 %v6095, %v6094
    %v6145 = vpack.c.b16 %v6097, %v6096
    %v6146 = vpack.c.b16 %v6099, %v6098
    %v6147 = vpack.c.b16 %v6101, %v6100
    %v6148 = vpack.c.b16 %v6103, %v6102
    %v6149 = vpack.c.b16 %v6105, %v6104
    %v6150 = vpack.c.b16 %v6107, %v6106
    %v6151 = vpack.c.b16 %v6109, %v6108
    %v6152 = vpack.c.b16 %v6111, %v6110
    %v6153 = vpack.c.b16 %v6113, %v6112
    %v6154 = vpack.c.b16 %v6115, %v6114
    %v6155 = vpack.c.b16 %v6117, %v6116
    %v6156 = vpack.c.b16 %v6119, %v6118
    %v6157 = vpack.c.b16 %v6121, %v6120
    %v6158 = vpack.c.b16 %v6123, %v6122
    %v6159 = vpack.c.b16 %v6125, %v6124
    %v6160 = vpack.c.b16 %v6127, %v6126
    %v6161 = vpack.c.b16 %v6129, %v6128
    %6194 = vmatprep.subr.bf16.mxu0 0
    %6195 = vmatpush1.bf16.msra.mxu0 %v6130
    %6196 = vmatprep.subr.bf16.mxu0 0
    %6197 = vmatpush1.bf16.msra.mxu0 %v6131
    %6198 = vmatprep.subr.bf16.mxu0 0
    %6199 = vmatpush1.bf16.msra.mxu0 %v6132
    %6200 = vmatprep.subr.bf16.mxu0 0
    %6201 = vmatpush1.bf16.msra.mxu0 %v6133
    %6202 = vmatprep.subr.bf16.mxu0 0
    %6203 = vmatpush1.bf16.msra.mxu0 %v6134
    %6204 = vmatprep.subr.bf16.mxu0 0
    %6205 = vmatpush1.bf16.msra.mxu0 %v6135
    %6206 = vmatprep.subr.bf16.mxu0 0
    %6207 = vmatpush1.bf16.msra.mxu0 %v6136
    %6208 = vmatprep.subr.bf16.mxu0 0
    %6209 = vmatpush1.bf16.msra.mxu0 %v6137
    %6210 = vmatprep.subr.bf16.mxu0 0
    %6211 = vmatpush1.bf16.msra.mxu0 %v6138
    %6212 = vmatprep.subr.bf16.mxu0 0
    %6213 = vmatpush1.bf16.msra.mxu0 %v6139
    %6214 = vmatprep.subr.bf16.mxu0 0
    %6215 = vmatpush1.bf16.msra.mxu0 %v6140
    %6216 = vmatprep.subr.bf16.mxu0 0
    %6217 = vmatpush1.bf16.msra.mxu0 %v6141
    %6218 = vmatprep.subr.bf16.mxu0 0
    %6219 = vmatpush1.bf16.msra.mxu0 %v6142
    %6220 = vmatprep.subr.bf16.mxu0 0
    %6221 = vmatpush1.bf16.msra.mxu0 %v6143
    %6222 = vmatprep.subr.bf16.mxu0 0
    %6223 = vmatpush1.bf16.msra.mxu0 %v6144
    %6224 = vmatprep.subr.bf16.mxu0 0
    %6225 = vmatpush1.bf16.msra.mxu0 %v6145
    %6226 = vmatprep.mubr.bf16.mxu0 %v5993
    %6227 = vmatmul.mubr.bf16.gmra.mrb[0].mxu0 %v5992
    %v6228 = vpop.f32.mrb[0].mxu0
    %v6229 = vadd.f32 %v6000, %v6228
    %v6230 = vpop.f32.mrb[0].mxu0
    %v6231 = vpop.f32.mrb[0].mxu0
    %v6232 = vadd.f32 %v6000, %v6231
    %v6233 = vpop.f32.mrb[0].mxu0
    %6234 = vdwg.mxu0
    %6235 = vmatprep.subr.bf16.mxu0 0
    %6236 = vmatpush1.bf16.msra.mxu0 %v6146
    %6237 = vmatprep.subr.bf16.mxu0 0
    %6238 = vmatpush1.bf16.msra.mxu0 %v6147
    %6239 = vmatprep.subr.bf16.mxu0 0
    %6240 = vmatpush1.bf16.msra.mxu0 %v6148
    %6241 = vmatprep.subr.bf16.mxu0 0
    %6242 = vmatpush1.bf16.msra.mxu0 %v6149
    %6243 = vmatprep.subr.bf16.mxu0 0
    %6244 = vmatpush1.bf16.msra.mxu0 %v6150
    %6245 = vmatprep.subr.bf16.mxu0 0
    %6246 = vmatpush1.bf16.msra.mxu0 %v6151
    %6247 = vmatprep.subr.bf16.mxu0 0
    %6248 = vmatpush1.bf16.msra.mxu0 %v6152
    %6249 = vmatprep.subr.bf16.mxu0 0
    %6250 = vmatpush1.bf16.msra.mxu0 %v6153
    %6251 = vmatprep.subr.bf16.mxu0 0
    %6252 = vmatpush1.bf16.msra.mxu0 %v6154
    %6253 = vmatprep.subr.bf16.mxu0 0
    %6254 = vmatpush1.bf16.msra.mxu0 %v6155
    %6255 = vmatprep.subr.bf16.mxu0 0
    %6256 = vmatpush1.bf16.msra.mxu0 %v6156
    %6257 = vmatprep.subr.bf16.mxu0 0
    %6258 = vmatpush1.bf16.msra.mxu0 %v6157
    %6259 = vmatprep.subr.bf16.mxu0 0
    %6260 = vmatpush1.bf16.msra.mxu0 %v6158
    %6261 = vmatprep.subr.bf16.mxu0 0
    %6262 = vmatpush1.bf16.msra.mxu0 %v6159
    %6263 = vmatprep.subr.bf16.mxu0 0
    %6264 = vmatpush1.bf16.msra.mxu0 %v6160
    %6265 = vmatprep.subr.bf16.mxu0 0
    %6266 = vmatpush1.bf16.msra.mxu0 %v6161
    %6267 = vmatprep.mubr.bf16.mxu0 %v5995
    %6268 = vmatmul.mubr.bf16.gmra.mrb[0].mxu0 %v5994
    %v6269 = vpop.f32.mrb[0].mxu0
    %v6270 = vadd.f32 %v6229, %v6269
    %v6271 = vpop.f32.mrb[0].mxu0
    %v6272 = vpop.f32.mrb[0].mxu0
    %v6273 = vadd.f32 %v6232, %v6272
    %v6274 = vpop.f32.mrb[0].mxu0
    %6275 = vdwg.mxu0
    %v6276 = vadd.f32 %v5612, %v6270
    %v6277 = vadd.f32 %v5613, %v6273
    %s6278 = scalar_lea.vmem %s13, 2
    %v6279 = vld [vmem:[%s6278] sm:$0x1]
    %s6280 = scalar_lea.vmem %s14, 2
    %v6281 = vld [vmem:[%s6280] sm:$0x1]
    %6282 = vadd.xlane.f32.xlu0 %v6276
    %v6283 = vpop.xlane.xlu0 %6282
    %6284 = vadd.xlane.f32.xlu0 %v6277
    %v6285 = vpop.xlane.xlu0 %6284
    %v6286 = vmul.f32 %v6283, %v1503
    %v6287 = vmul.f32 %v6285, %v1503
    %v6288 = vsub.f32 %v6276, %v6286
    %v6289 = vsub.f32 %v6277, %v6287
    %v6290 = vmul.f32 %v6288, %v6288
    %v6291 = vmul.f32 %v6289, %v6289
    %6292 = vadd.xlane.f32.xlu0 %v6290
    %v6293 = vpop.xlane.xlu0 %6292
    %6294 = vadd.xlane.f32.xlu0 %v6291
    %v6295 = vpop.xlane.xlu0 %6294
    %v6296 = vmul.f32 %v6293, %v1503
    %v6297 = vmul.f32 %v6295, %v1503
    %v6298 = vadd.f32 %v6296, 1e-05
    %v6299 = vadd.f32 %v6297, 1e-05
    %v6300 = vrsqrt.pop %v6298
    %v6301 = vrsqrt.pop %v6299
    %v6302 = vmul.f32 %v6288, %v6300
    %v6303 = vmul.f32 %v6289, %v6301
    %v6305 = vlaneseq
    %v6306 = vshrl.u32 %v6305, 7
    %v6307 = vsub.s32 0, %v6306
    %v6308 = vrot.slane %v6279, %v6307
    %v6310 = vmul.f32 %v6302, %v6308
    %v6311 = vmul.f32 %v6303, %v6308
    %v6313 = vlaneseq
    %v6314 = vshrl.u32 %v6313, 7
    %v6315 = vsub.s32 0, %v6314
    %v6316 = vrot.slane %v6281, %v6315
    %v6318 = vadd.f32 %v6310, %v6316
    %v6319 = vadd.f32 %v6311, %v6316
    %s6320 = scalar_lea.vmem [#allocation2], 576
    %v6321 = vld [vmem:[%s6320] sm:$0xff]
    %v6322 = vld [vmem:[%s6320 + $0x8] sm:$0xf]
    %v6323 = vld [vmem:[%s6320 + $0xc] sm:$0xff]
    %v6324 = vld [vmem:[%s6320 + $0x14] sm:$0xf]
    %v6325 = vld [vmem:[%s6320 + $0x18] sm:$0xff]
    %v6326 = vld [vmem:[%s6320 + $0x20] sm:$0xf]
    %v6327 = vld [vmem:[%s6320 + $0x24] sm:$0xff]
    %v6328 = vld [vmem:[%s6320 + $0x2c] sm:$0xf]
    %v6329 = vld [vmem:[%s6320 + $0x30] sm:$0xff]
    %v6330 = vld [vmem:[%s6320 + $0x38] sm:$0xf]
    %v6331 = vld [vmem:[%s6320 + $0x3c] sm:$0xff]
    %v6332 = vld [vmem:[%s6320 + $0x44] sm:$0xf]
    %v6333 = vld [vmem:[%s6320 + $0x48] sm:$0xff]
    %v6334 = vld [vmem:[%s6320 + $0x50] sm:$0xf]
    %v6335 = vld [vmem:[%s6320 + $0x54] sm:$0xff]
    %v6336 = vld [vmem:[%s6320 + $0x5c] sm:$0xf]
    %v6337 = vld [vmem:[%s6320 + $0x60] sm:$0xff]
    %v6338 = vld [vmem:[%s6320 + $0x68] sm:$0xf]
    %v6339 = vld [vmem:[%s6320 + $0x6c] sm:$0xff]
    %v6340 = vld [vmem:[%s6320 + $0x74] sm:$0xf]
    %v6341 = vld [vmem:[%s6320 + $0x78] sm:$0xff]
    %v6342 = vld [vmem:[%s6320 + $0x80] sm:$0xf]
    %v6343 = vld [vmem:[%s6320 + $0x84] sm:$0xff]
    %v6344 = vld [vmem:[%s6320 + $0x8c] sm:$0xf]
    %v6345 = vld [vmem:[%s6320 + $0x90] sm:$0xff]
    %v6346 = vld [vmem:[%s6320 + $0x98] sm:$0xf]
    %v6347 = vld [vmem:[%s6320 + $0x9c] sm:$0xff]
    %v6348 = vld [vmem:[%s6320 + $0xa4] sm:$0xf]
    %v6349 = vld [vmem:[%s6320 + $0xa8] sm:$0xff]
    %v6350 = vld [vmem:[%s6320 + $0xb0] sm:$0xf]
    %v6351 = vld [vmem:[%s6320 + $0xb4] sm:$0xff]
    %v6352 = vld [vmem:[%s6320 + $0xbc] sm:$0xf]
    %s6353 = scalar_lea.vmem %s4, 9
    %v6354 = vld [vmem:[%s6353] sm:$0x7]
    %v6355 = vpack.c.bf16 %v6319, %v6318
    %v6357 = vlaneseq
    %v6358 = vshrl.u32 %v6357, 7
    %v6359 = vsub.s32 0, %v6358
    %v6360 = vrot.slane %v6354, %v6359
    %v6361 = vlaneseq
    %v6362 = vshrl.u32 %v6361, 7
    %v6363 = vsub.s32 1, %v6362
    %v6364 = vrot.slane %v6354, %v6363
    %v6365 = vlaneseq
    %v6366 = vshrl.u32 %v6365, 7
    %v6367 = vsub.s32 2, %v6366
    %v6368 = vrot.slane %v6354, %v6367
    %v6404 = vunpack.c.l.b16 %v6321
    %v6405 = vunpack.c.h.b16 %v6321
    %v6406 = vunpack.c.l.b16 %v6322
    %v6407 = vunpack.c.l.b16 %v6323
    %v6408 = vunpack.c.h.b16 %v6323
    %v6409 = vunpack.c.l.b16 %v6324
    %v6410 = vunpack.c.l.b16 %v6325
    %v6411 = vunpack.c.h.b16 %v6325
    %v6412 = vunpack.c.l.b16 %v6326
    %v6413 = vunpack.c.l.b16 %v6327
    %v6414 = vunpack.c.h.b16 %v6327
    %v6415 = vunpack.c.l.b16 %v6328
    %v6416 = vunpack.c.l.b16 %v6329
    %v6417 = vunpack.c.h.b16 %v6329
    %v6418 = vunpack.c.l.b16 %v6330
    %v6419 = vunpack.c.l.b16 %v6331
    %v6420 = vunpack.c.h.b16 %v6331
    %v6421 = vunpack.c.l.b16 %v6332
    %v6422 = vunpack.c.l.b16 %v6333
    %v6423 = vunpack.c.h.b16 %v6333
    %v6424 = vunpack.c.l.b16 %v6334
    %v6425 = vunpack.c.l.b16 %v6335
    %v6426 = vunpack.c.h.b16 %v6335
    %v6427 = vunpack.c.l.b16 %v6336
    %v6428 = vunpack.c.l.b16 %v6337
    %v6429 = vunpack.c.h.b16 %v6337
    %v6430 = vunpack.c.l.b16 %v6338
    %v6431 = vunpack.c.l.b16 %v6339
    %v6432 = vunpack.c.h.b16 %v6339
    %v6433 = vunpack.c.l.b16 %v6340
    %v6434 = vunpack.c.l.b16 %v6341
    %v6435 = vunpack.c.h.b16 %v6341
    %v6436 = vunpack.c.l.b16 %v6342
    %v6437 = vunpack.c.l.b16 %v6343
    %v6438 = vunpack.c.h.b16 %v6343
    %v6439 = vunpack.c.l.b16 %v6344
    %v6440 = vunpack.c.l.b16 %v6345
    %v6441 = vunpack.c.h.b16 %v6345
    %v6442 = vunpack.c.l.b16 %v6346
    %v6443 = vunpack.c.l.b16 %v6347
    %v6444 = vunpack.c.h.b16 %v6347
    %v6445 = vunpack.c.l.b16 %v6348
    %v6446 = vunpack.c.l.b16 %v6349
    %v6447 = vunpack.c.h.b16 %v6349
    %v6448 = vunpack.c.l.b16 %v6350
    %v6449 = vunpack.c.l.b16 %v6351
    %v6450 = vunpack.c.h.b16 %v6351
    %v6451 = vunpack.c.l.b16 %v6352
    %v6452 = vpack.c.b16 %v6407, %v6404
    %v6453 = vpack.c.b16 %v6408, %v6405
    %v6454 = vpack.c.b16 %v6409, %v6406
    %v6455 = vpack.c.b16 %v6413, %v6410
    %v6456 = vpack.c.b16 %v6414, %v6411
    %v6457 = vpack.c.b16 %v6415, %v6412
    %v6458 = vpack.c.b16 %v6419, %v6416
    %v6459 = vpack.c.b16 %v6420, %v6417
    %v6460 = vpack.c.b16 %v6421, %v6418
    %v6461 = vpack.c.b16 %v6425, %v6422
    %v6462 = vpack.c.b16 %v6426, %v6423
    %v6463 = vpack.c.b16 %v6427, %v6424
    %v6464 = vpack.c.b16 %v6431, %v6428
    %v6465 = vpack.c.b16 %v6432, %v6429
    %v6466 = vpack.c.b16 %v6433, %v6430
    %v6467 = vpack.c.b16 %v6437, %v6434
    %v6468 = vpack.c.b16 %v6438, %v6435
    %v6469 = vpack.c.b16 %v6439, %v6436
    %v6470 = vpack.c.b16 %v6443, %v6440
    %v6471 = vpack.c.b16 %v6444, %v6441
    %v6472 = vpack.c.b16 %v6445, %v6442
    %v6473 = vpack.c.b16 %v6449, %v6446
    %v6474 = vpack.c.b16 %v6450, %v6447
    %v6475 = vpack.c.b16 %v6451, %v6448
    %6500 = vmatprep.subr.bf16.mxu0 %v6453
    %6501 = vmatpush1.bf16.msra.mxu0 %v6452
    %6502 = vmatprep.subr.bf16.mxu0 %v6456
    %6503 = vmatpush1.bf16.msra.mxu0 %v6455
    %6504 = vmatprep.subr.bf16.mxu0 %v6459
    %6505 = vmatpush1.bf16.msra.mxu0 %v6458
    %6506 = vmatprep.subr.bf16.mxu0 %v6462
    %6507 = vmatpush1.bf16.msra.mxu0 %v6461
    %6508 = vmatprep.subr.bf16.mxu0 %v6465
    %6509 = vmatpush1.bf16.msra.mxu0 %v6464
    %6510 = vmatprep.subr.bf16.mxu0 %v6468
    %6511 = vmatpush1.bf16.msra.mxu0 %v6467
    %6512 = vmatprep.subr.bf16.mxu0 %v6471
    %6513 = vmatpush1.bf16.msra.mxu0 %v6470
    %6514 = vmatprep.subr.bf16.mxu0 %v6474
    %6515 = vmatpush1.bf16.msra.mxu0 %v6473
    %6516 = vmatprep.subr.bf16.mxu0 0
    %6517 = vmatpush1.bf16.msra.mxu0 0
    %6518 = vmatprep.subr.bf16.mxu0 0
    %6519 = vmatpush1.bf16.msra.mxu0 0
    %6520 = vmatprep.subr.bf16.mxu0 0
    %6521 = vmatpush1.bf16.msra.mxu0 0
    %6522 = vmatprep.subr.bf16.mxu0 0
    %6523 = vmatpush1.bf16.msra.mxu0 0
    %6524 = vmatprep.subr.bf16.mxu0 0
    %6525 = vmatpush1.bf16.msra.mxu0 0
    %6526 = vmatprep.subr.bf16.mxu0 0
    %6527 = vmatpush1.bf16.msra.mxu0 0
    %6528 = vmatprep.subr.bf16.mxu0 0
    %6529 = vmatpush1.bf16.msra.mxu0 0
    %6530 = vmatprep.subr.bf16.mxu0 0
    %6531 = vmatpush1.bf16.msra.mxu0 0
    %6532 = vmatprep.mubr.bf16.mxu0 0
    %6533 = vmatmul.mubr.bf16.gmra.mrb[0].mxu0 %v6355
    %v6534 = vpop.f32.mrb[0].mxu0
    %v6535 = vadd.f32 %v6360, %v6534
    %v6536 = vpop.f32.mrb[0].mxu0
    %v6537 = vadd.f32 %v6364, %v6536
    %v6538 = vpop.f32.mrb[0].mxu0
    %v6539 = vadd.f32 %v6360, %v6538
    %v6540 = vpop.f32.mrb[0].mxu0
    %v6541 = vadd.f32 %v6364, %v6540
    %6542 = vdwg.mxu0
    %6543 = vmatprep.subr.bf16.mxu0 0
    %6544 = vmatpush1.bf16.msra.mxu0 %v6454
    %6545 = vmatprep.subr.bf16.mxu0 0
    %6546 = vmatpush1.bf16.msra.mxu0 %v6457
    %6547 = vmatprep.subr.bf16.mxu0 0
    %6548 = vmatpush1.bf16.msra.mxu0 %v6460
    %6549 = vmatprep.subr.bf16.mxu0 0
    %6550 = vmatpush1.bf16.msra.mxu0 %v6463
    %6551 = vmatprep.subr.bf16.mxu0 0
    %6552 = vmatpush1.bf16.msra.mxu0 %v6466
    %6553 = vmatprep.subr.bf16.mxu0 0
    %6554 = vmatpush1.bf16.msra.mxu0 %v6469
    %6555 = vmatprep.subr.bf16.mxu0 0
    %6556 = vmatpush1.bf16.msra.mxu0 %v6472
    %6557 = vmatprep.subr.bf16.mxu0 0
    %6558 = vmatpush1.bf16.msra.mxu0 %v6475
    %6559 = vmatprep.subr.bf16.mxu0 0
    %6560 = vmatpush1.bf16.msra.mxu0 0
    %6561 = vmatprep.subr.bf16.mxu0 0
    %6562 = vmatpush1.bf16.msra.mxu0 0
    %6563 = vmatprep.subr.bf16.mxu0 0
    %6564 = vmatpush1.bf16.msra.mxu0 0
    %6565 = vmatprep.subr.bf16.mxu0 0
    %6566 = vmatpush1.bf16.msra.mxu0 0
    %6567 = vmatprep.subr.bf16.mxu0 0
    %6568 = vmatpush1.bf16.msra.mxu0 0
    %6569 = vmatprep.subr.bf16.mxu0 0
    %6570 = vmatpush1.bf16.msra.mxu0 0
    %6571 = vmatprep.subr.bf16.mxu0 0
    %6572 = vmatpush1.bf16.msra.mxu0 0
    %6573 = vmatprep.subr.bf16.mxu0 0
    %6574 = vmatpush1.bf16.msra.mxu0 0
    %6575 = vmatprep.mubr.bf16.mxu0 0
    %6576 = vmatmul.mubr.bf16.gmra.mrb[0].mxu0 %v6355
    %v6577 = vpop.f32.mrb[0].mxu0
    %v6578 = vadd.f32 %v6368, %v6577
    %v6579 = vpop.f32.mrb[0].mxu0
    %v6580 = vpop.f32.mrb[0].mxu0
    %v6581 = vadd.f32 %v6368, %v6580
    %v6582 = vpop.f32.mrb[0].mxu0
    %6583 = vdwg.mxu0
    %v6584 = vmul.f32 %v6535, 0.17677669
    %v6585 = vpack.c.bf16 %v6584, %v6584
    %v6586 = vpack.c.bf16 %v6537, %v6537
    %v6587 = vpack.c.bf16 %v6578, %v6578
    %v6589 = vsel %vm470, %v6585, 0
    %v6592 = vsel %vm470, %v6586, 0
    %6594 = vmatprep.subr.bf16.mxu0 0
    %6595 = vmatpush1.bf16.xpose.msra.mxu0 %v6592
    %6596 = vmatprep.subr.bf16.mxu0 0
    %6597 = vmatpush1.bf16.xpose.msra.mxu0 0
    %6598 = vmatprep.subr.bf16.mxu0 0
    %6599 = vmatpush1.bf16.xpose.msra.mxu0 0
    %6600 = vmatprep.subr.bf16.mxu0 0
    %6601 = vmatpush1.bf16.xpose.msra.mxu0 0
    %6602 = vmatprep.subr.bf16.mxu0 0
    %6603 = vmatpush1.bf16.xpose.msra.mxu0 0
    %6604 = vmatprep.subr.bf16.mxu0 0
    %6605 = vmatpush1.bf16.xpose.msra.mxu0 0
    %6606 = vmatprep.subr.bf16.mxu0 0
    %6607 = vmatpush1.bf16.xpose.msra.mxu0 0
    %6608 = vmatprep.subr.bf16.mxu0 0
    %6609 = vmatpush1.bf16.xpose.msra.mxu0 0
    %6610 = vmatprep.subr.bf16.mxu0 0
    %6611 = vmatpush1.bf16.xpose.msra.mxu0 0
    %6612 = vmatprep.subr.bf16.mxu0 0
    %6613 = vmatpush1.bf16.xpose.msra.mxu0 0
    %6614 = vmatprep.subr.bf16.mxu0 0
    %6615 = vmatpush1.bf16.xpose.msra.mxu0 0
    %6616 = vmatprep.subr.bf16.mxu0 0
    %6617 = vmatpush1.bf16.xpose.msra.mxu0 0
    %6618 = vmatprep.subr.bf16.mxu0 0
    %6619 = vmatpush1.bf16.xpose.msra.mxu0 0
    %6620 = vmatprep.subr.bf16.mxu0 0
    %6621 = vmatpush1.bf16.xpose.msra.mxu0 0
    %6622 = vmatprep.subr.bf16.mxu0 0
    %6623 = vmatpush1.bf16.xpose.msra.mxu0 0
    %6624 = vmatprep.subr.bf16.mxu0 0
    %6625 = vmatpush1.bf16.xpose.msra.mxu0 0
    %6626 = vmatprep.mubr.bf16.mxu0 0
    %6627 = vmatmul.mubr.bf16.gmra.mrb[0].mxu0 %v6589
    %v6628 = vpop.f32.mrb[0].mxu0
    %v6629 = vadd.f32 0.0, %v6628
    %v6630 = vpop.f32.mrb[0].mxu0
    %v6631 = vpop.f32.mrb[0].mxu0
    %v6632 = vpop.f32.mrb[0].mxu0
    %6633 = vdwg.mxu0
    %v6634 = vsel %vm517, %v6629, -inf
    %6635 = vmax.xlane.f32.xlu0 %v6634
    %v6636 = vpop.xlane.xlu0 %6635
    %v6637 = vsub.f32 %v6629, %v6636
    %v6638 = vmul.f32 %v6637, 1.442695
    %v6639 = vpow.pop %v6638
    %v6640 = vsel %vm517, %v6639, 0.0
    %6641 = vadd.xlane.f32.xlu0 %v6640
    %v6642 = vpop.xlane.xlu0 %6641
    %v6643 = vrcp.pop %v6642
    %v6644 = vmul.f32 %v6639, %v6643
    %v6645 = vpack.c.bf16 %v6644, %v6644
    %v6647 = vsel %vm517, %v6645, 0
    %v6650 = vsel %vm533, %v6587, 0
    %6652 = vmatprep.subr.bf16.mxu0 0
    %6653 = vmatpush1.bf16.msra.mxu0 %v6650
    %6654 = vmatprep.subr.bf16.mxu0 0
    %6655 = vmatpush1.bf16.msra.mxu0 0
    %6656 = vmatprep.subr.bf16.mxu0 0
    %6657 = vmatpush1.bf16.msra.mxu0 0
    %6658 = vmatprep.subr.bf16.mxu0 0
    %6659 = vmatpush1.bf16.msra.mxu0 0
    %6660 = vmatprep.subr.bf16.mxu0 0
    %6661 = vmatpush1.bf16.msra.mxu0 0
    %6662 = vmatprep.subr.bf16.mxu0 0
    %6663 = vmatpush1.bf16.msra.mxu0 0
    %6664 = vmatprep.subr.bf16.mxu0 0
    %6665 = vmatpush1.bf16.msra.mxu0 0
    %6666 = vmatprep.subr.bf16.mxu0 0
    %6667 = vmatpush1.bf16.msra.mxu0 0
    %6668 = vmatprep.subr.bf16.mxu0 0
    %6669 = vmatpush1.bf16.msra.mxu0 0
    %6670 = vmatprep.subr.bf16.mxu0 0
    %6671 = vmatpush1.bf16.msra.mxu0 0
    %6672 = vmatprep.subr.bf16.mxu0 0
    %6673 = vmatpush1.bf16.msra.mxu0 0
    %6674 = vmatprep.subr.bf16.mxu0 0
    %6675 = vmatpush1.bf16.msra.mxu0 0
    %6676 = vmatprep.subr.bf16.mxu0 0
    %6677 = vmatpush1.bf16.msra.mxu0 0
    %6678 = vmatprep.subr.bf16.mxu0 0
    %6679 = vmatpush1.bf16.msra.mxu0 0
    %6680 = vmatprep.subr.bf16.mxu0 0
    %6681 = vmatpush1.bf16.msra.mxu0 0
    %6682 = vmatprep.subr.bf16.mxu0 0
    %6683 = vmatpush1.bf16.msra.mxu0 0
    %6684 = vmatprep.mubr.bf16.mxu0 0
    %6685 = vmatmul.mubr.bf16.gmra.mrb[0].mxu0 %v6647
    %v6686 = vpop.f32.mrb[0].mxu0
    %v6687 = vadd.f32 0.0, %v6686
    %v6688 = vpop.f32.mrb[0].mxu0
    %v6689 = vpop.f32.mrb[0].mxu0
    %v6690 = vpop.f32.mrb[0].mxu0
    %6691 = vdwg.mxu0
    %6693 = vrot.lane.b32.xlu0 %v6585, 96
    %v6694 = vpop.permute.xlu0 %6693
    %6696 = vrot.lane.b32.xlu0 %v6586, 96
    %v6697 = vpop.permute.xlu0 %6696
    %v6699 = vsel %vm470, %v6694, 0
    %v6702 = vsel %vm470, %v6697, 0
    %6704 = vmatprep.subr.bf16.mxu0 0
    %6705 = vmatpush1.bf16.xpose.msra.mxu0 %v6702
    %6706 = vmatprep.subr.bf16.mxu0 0
    %6707 = vmatpush1.bf16.xpose.msra.mxu0 0
    %6708 = vmatprep.subr.bf16.mxu0 0
    %6709 = vmatpush1.bf16.xpose.msra.mxu0 0
    %6710 = vmatprep.subr.bf16.mxu0 0
    %6711 = vmatpush1.bf16.xpose.msra.mxu0 0
    %6712 = vmatprep.subr.bf16.mxu0 0
    %6713 = vmatpush1.bf16.xpose.msra.mxu0 0
    %6714 = vmatprep.subr.bf16.mxu0 0
    %6715 = vmatpush1.bf16.xpose.msra.mxu0 0
    %6716 = vmatprep.subr.bf16.mxu0 0
    %6717 = vmatpush1.bf16.xpose.msra.mxu0 0
    %6718 = vmatprep.subr.bf16.mxu0 0
    %6719 = vmatpush1.bf16.xpose.msra.mxu0 0
    %6720 = vmatprep.subr.bf16.mxu0 0
    %6721 = vmatpush1.bf16.xpose.msra.mxu0 0
    %6722 = vmatprep.subr.bf16.mxu0 0
    %6723 = vmatpush1.bf16.xpose.msra.mxu0 0
    %6724 = vmatprep.subr.bf16.mxu0 0
    %6725 = vmatpush1.bf16.xpose.msra.mxu0 0
    %6726 = vmatprep.subr.bf16.mxu0 0
    %6727 = vmatpush1.bf16.xpose.msra.mxu0 0
    %6728 = vmatprep.subr.bf16.mxu0 0
    %6729 = vmatpush1.bf16.xpose.msra.mxu0 0
    %6730 = vmatprep.subr.bf16.mxu0 0
    %6731 = vmatpush1.bf16.xpose.msra.mxu0 0
    %6732 = vmatprep.subr.bf16.mxu0 0
    %6733 = vmatpush1.bf16.xpose.msra.mxu0 0
    %6734 = vmatprep.subr.bf16.mxu0 0
    %6735 = vmatpush1.bf16.xpose.msra.mxu0 0
    %6736 = vmatprep.mubr.bf16.mxu0 0
    %6737 = vmatmul.mubr.bf16.gmra.mrb[0].mxu0 %v6699
    %v6738 = vpop.f32.mrb[0].mxu0
    %v6739 = vadd.f32 0.0, %v6738
    %v6740 = vpop.f32.mrb[0].mxu0
    %v6741 = vpop.f32.mrb[0].mxu0
    %v6742 = vpop.f32.mrb[0].mxu0
    %6743 = vdwg.mxu0
    %v6744 = vsel %vm517, %v6739, -inf
    %6745 = vmax.xlane.f32.xlu0 %v6744
    %v6746 = vpop.xlane.xlu0 %6745
    %v6747 = vsub.f32 %v6739, %v6746
    %v6748 = vmul.f32 %v6747, 1.442695
    %v6749 = vpow.pop %v6748
    %v6750 = vsel %vm517, %v6749, 0.0
    %6751 = vadd.xlane.f32.xlu0 %v6750
    %v6752 = vpop.xlane.xlu0 %6751
    %v6753 = vrcp.pop %v6752
    %v6754 = vmul.f32 %v6749, %v6753
    %v6755 = vpack.c.bf16 %v6754, %v6754
    %6757 = vrot.lane.b32.xlu0 %v6587, 96
    %v6758 = vpop.permute.xlu0 %6757
    %v6760 = vsel %vm517, %v6755, 0
    %v6763 = vsel %vm533, %v6758, 0
    %6765 = vmatprep.subr.bf16.mxu0 0
    %6766 = vmatpush1.bf16.msra.mxu0 %v6763
    %6767 = vmatprep.subr.bf16.mxu0 0
    %6768 = vmatpush1.bf16.msra.mxu0 0
    %6769 = vmatprep.subr.bf16.mxu0 0
    %6770 = vmatpush1.bf16.msra.mxu0 0
    %6771 = vmatprep.subr.bf16.mxu0 0
    %6772 = vmatpush1.bf16.msra.mxu0 0
    %6773 = vmatprep.subr.bf16.mxu0 0
    %6774 = vmatpush1.bf16.msra.mxu0 0
    %6775 = vmatprep.subr.bf16.mxu0 0
    %6776 = vmatpush1.bf16.msra.mxu0 0
    %6777 = vmatprep.subr.bf16.mxu0 0
    %6778 = vmatpush1.bf16.msra.mxu0 0
    %6779 = vmatprep.subr.bf16.mxu0 0
    %6780 = vmatpush1.bf16.msra.mxu0 0
    %6781 = vmatprep.subr.bf16.mxu0 0
    %6782 = vmatpush1.bf16.msra.mxu0 0
    %6783 = vmatprep.subr.bf16.mxu0 0
    %6784 = vmatpush1.bf16.msra.mxu0 0
    %6785 = vmatprep.subr.bf16.mxu0 0
    %6786 = vmatpush1.bf16.msra.mxu0 0
    %6787 = vmatprep.subr.bf16.mxu0 0
    %6788 = vmatpush1.bf16.msra.mxu0 0
    %6789 = vmatprep.subr.bf16.mxu0 0
    %6790 = vmatpush1.bf16.msra.mxu0 0
    %6791 = vmatprep.subr.bf16.mxu0 0
    %6792 = vmatpush1.bf16.msra.mxu0 0
    %6793 = vmatprep.subr.bf16.mxu0 0
    %6794 = vmatpush1.bf16.msra.mxu0 0
    %6795 = vmatprep.subr.bf16.mxu0 0
    %6796 = vmatpush1.bf16.msra.mxu0 0
    %6797 = vmatprep.mubr.bf16.mxu0 0
    %6798 = vmatmul.mubr.bf16.gmra.mrb[0].mxu0 %v6760
    %v6799 = vpop.f32.mrb[0].mxu0
    %v6800 = vadd.f32 0.0, %v6799
    %v6801 = vpop.f32.mrb[0].mxu0
    %v6802 = vpop.f32.mrb[0].mxu0
    %v6803 = vpop.f32.mrb[0].mxu0
    %6804 = vdwg.mxu0
    %6805 = vrot.lane.b32.xlu0 %v6585, 64
    %v6806 = vpop.permute.xlu0 %6805
    %6807 = vrot.lane.b32.xlu0 %v6586, 64
    %v6808 = vpop.permute.xlu0 %6807
    %v6810 = vsel %vm470, %v6806, 0
    %v6813 = vsel %vm470, %v6808, 0
    %6815 = vmatprep.subr.bf16.mxu0 0
    %6816 = vmatpush1.bf16.xpose.msra.mxu0 %v6813
    %6817 = vmatprep.subr.bf16.mxu0 0
    %6818 = vmatpush1.bf16.xpose.msra.mxu0 0
    %6819 = vmatprep.subr.bf16.mxu0 0
    %6820 = vmatpush1.bf16.xpose.msra.mxu0 0
    %6821 = vmatprep.subr.bf16.mxu0 0
    %6822 = vmatpush1.bf16.xpose.msra.mxu0 0
    %6823 = vmatprep.subr.bf16.mxu0 0
    %6824 = vmatpush1.bf16.xpose.msra.mxu0 0
    %6825 = vmatprep.subr.bf16.mxu0 0
    %6826 = vmatpush1.bf16.xpose.msra.mxu0 0
    %6827 = vmatprep.subr.bf16.mxu0 0
    %6828 = vmatpush1.bf16.xpose.msra.mxu0 0
    %6829 = vmatprep.subr.bf16.mxu0 0
    %6830 = vmatpush1.bf16.xpose.msra.mxu0 0
    %6831 = vmatprep.subr.bf16.mxu0 0
    %6832 = vmatpush1.bf16.xpose.msra.mxu0 0
    %6833 = vmatprep.subr.bf16.mxu0 0
    %6834 = vmatpush1.bf16.xpose.msra.mxu0 0
    %6835 = vmatprep.subr.bf16.mxu0 0
    %6836 = vmatpush1.bf16.xpose.msra.mxu0 0
    %6837 = vmatprep.subr.bf16.mxu0 0
    %6838 = vmatpush1.bf16.xpose.msra.mxu0 0
    %6839 = vmatprep.subr.bf16.mxu0 0
    %6840 = vmatpush1.bf16.xpose.msra.mxu0 0
    %6841 = vmatprep.subr.bf16.mxu0 0
    %6842 = vmatpush1.bf16.xpose.msra.mxu0 0
    %6843 = vmatprep.subr.bf16.mxu0 0
    %6844 = vmatpush1.bf16.xpose.msra.mxu0 0
    %6845 = vmatprep.subr.bf16.mxu0 0
    %6846 = vmatpush1.bf16.xpose.msra.mxu0 0
    %6847 = vmatprep.mubr.bf16.mxu0 0
    %6848 = vmatmul.mubr.bf16.gmra.mrb[0].mxu0 %v6810
    %v6849 = vpop.f32.mrb[0].mxu0
    %v6850 = vadd.f32 0.0, %v6849
    %v6851 = vpop.f32.mrb[0].mxu0
    %v6852 = vpop.f32.mrb[0].mxu0
    %v6853 = vpop.f32.mrb[0].mxu0
    %6854 = vdwg.mxu0
    %v6855 = vsel %vm517, %v6850, -inf
    %6856 = vmax.xlane.f32.xlu0 %v6855
    %v6857 = vpop.xlane.xlu0 %6856
    %v6858 = vsub.f32 %v6850, %v6857
    %v6859 = vmul.f32 %v6858, 1.442695
    %v6860 = vpow.pop %v6859
    %v6861 = vsel %vm517, %v6860, 0.0
    %6862 = vadd.xlane.f32.xlu0 %v6861
    %v6863 = vpop.xlane.xlu0 %6862
    %v6864 = vrcp.pop %v6863
    %v6865 = vmul.f32 %v6860, %v6864
    %v6866 = vpack.c.bf16 %v6865, %v6865
    %6867 = vrot.lane.b32.xlu0 %v6587, 64
    %v6868 = vpop.permute.xlu0 %6867
    %v6870 = vsel %vm517, %v6866, 0
    %v6873 = vsel %vm533, %v6868, 0
    %6875 = vmatprep.subr.bf16.mxu0 0
    %6876 = vmatpush1.bf16.msra.mxu0 %v6873
    %6877 = vmatprep.subr.bf16.mxu0 0
    %6878 = vmatpush1.bf16.msra.mxu0 0
    %6879 = vmatprep.subr.bf16.mxu0 0
    %6880 = vmatpush1.bf16.msra.mxu0 0
    %6881 = vmatprep.subr.bf16.mxu0 0
    %6882 = vmatpush1.bf16.msra.mxu0 0
    %6883 = vmatprep.subr.bf16.mxu0 0
    %6884 = vmatpush1.bf16.msra.mxu0 0
    %6885 = vmatprep.subr.bf16.mxu0 0
    %6886 = vmatpush1.bf16.msra.mxu0 0
    %6887 = vmatprep.subr.bf16.mxu0 0
    %6888 = vmatpush1.bf16.msra.mxu0 0
    %6889 = vmatprep.subr.bf16.mxu0 0
    %6890 = vmatpush1.bf16.msra.mxu0 0
    %6891 = vmatprep.subr.bf16.mxu0 0
    %6892 = vmatpush1.bf16.msra.mxu0 0
    %6893 = vmatprep.subr.bf16.mxu0 0
    %6894 = vmatpush1.bf16.msra.mxu0 0
    %6895 = vmatprep.subr.bf16.mxu0 0
    %6896 = vmatpush1.bf16.msra.mxu0 0
    %6897 = vmatprep.subr.bf16.mxu0 0
    %6898 = vmatpush1.bf16.msra.mxu0 0
    %6899 = vmatprep.subr.bf16.mxu0 0
    %6900 = vmatpush1.bf16.msra.mxu0 0
    %6901 = vmatprep.subr.bf16.mxu0 0
    %6902 = vmatpush1.bf16.msra.mxu0 0
    %6903 = vmatprep.subr.bf16.mxu0 0
    %6904 = vmatpush1.bf16.msra.mxu0 0
    %6905 = vmatprep.subr.bf16.mxu0 0
    %6906 = vmatpush1.bf16.msra.mxu0 0
    %6907 = vmatprep.mubr.bf16.mxu0 0
    %6908 = vmatmul.mubr.bf16.gmra.mrb[0].mxu0 %v6870
    %v6909 = vpop.f32.mrb[0].mxu0
    %v6910 = vadd.f32 0.0, %v6909
    %v6911 = vpop.f32.mrb[0].mxu0
    %v6912 = vpop.f32.mrb[0].mxu0
    %v6913 = vpop.f32.mrb[0].mxu0
    %6914 = vdwg.mxu0
    %6915 = vrot.lane.b32.xlu0 %v6585, 32
    %v6916 = vpop.permute.xlu0 %6915
    %6917 = vrot.lane.b32.xlu0 %v6586, 32
    %v6918 = vpop.permute.xlu0 %6917
    %v6920 = vsel %vm470, %v6916, 0
    %v6923 = vsel %vm470, %v6918, 0
    %6925 = vmatprep.subr.bf16.mxu0 0
    %6926 = vmatpush1.bf16.xpose.msra.mxu0 %v6923
    %6927 = vmatprep.subr.bf16.mxu0 0
    %6928 = vmatpush1.bf16.xpose.msra.mxu0 0
    %6929 = vmatprep.subr.bf16.mxu0 0
    %6930 = vmatpush1.bf16.xpose.msra.mxu0 0
    %6931 = vmatprep.subr.bf16.mxu0 0
    %6932 = vmatpush1.bf16.xpose.msra.mxu0 0
    %6933 = vmatprep.subr.bf16.mxu0 0
    %6934 = vmatpush1.bf16.xpose.msra.mxu0 0
    %6935 = vmatprep.subr.bf16.mxu0 0
    %6936 = vmatpush1.bf16.xpose.msra.mxu0 0
    %6937 = vmatprep.subr.bf16.mxu0 0
    %6938 = vmatpush1.bf16.xpose.msra.mxu0 0
    %6939 = vmatprep.subr.bf16.mxu0 0
    %6940 = vmatpush1.bf16.xpose.msra.mxu0 0
    %6941 = vmatprep.subr.bf16.mxu0 0
    %6942 = vmatpush1.bf16.xpose.msra.mxu0 0
    %6943 = vmatprep.subr.bf16.mxu0 0
    %6944 = vmatpush1.bf16.xpose.msra.mxu0 0
    %6945 = vmatprep.subr.bf16.mxu0 0
    %6946 = vmatpush1.bf16.xpose.msra.mxu0 0
    %6947 = vmatprep.subr.bf16.mxu0 0
    %6948 = vmatpush1.bf16.xpose.msra.mxu0 0
    %6949 = vmatprep.subr.bf16.mxu0 0
    %6950 = vmatpush1.bf16.xpose.msra.mxu0 0
    %6951 = vmatprep.subr.bf16.mxu0 0
    %6952 = vmatpush1.bf16.xpose.msra.mxu0 0
    %6953 = vmatprep.subr.bf16.mxu0 0
    %6954 = vmatpush1.bf16.xpose.msra.mxu0 0
    %6955 = vmatprep.subr.bf16.mxu0 0
    %6956 = vmatpush1.bf16.xpose.msra.mxu0 0
    %6957 = vmatprep.mubr.bf16.mxu0 0
    %6958 = vmatmul.mubr.bf16.gmra.mrb[0].mxu0 %v6920
    %v6959 = vpop.f32.mrb[0].mxu0
    %v6960 = vadd.f32 0.0, %v6959
    %v6961 = vpop.f32.mrb[0].mxu0
    %v6962 = vpop.f32.mrb[0].mxu0
    %v6963 = vpop.f32.mrb[0].mxu0
    %6964 = vdwg.mxu0
    %v6965 = vsel %vm517, %v6960, -inf
    %6966 = vmax.xlane.f32.xlu0 %v6965
    %v6967 = vpop.xlane.xlu0 %6966
    %v6968 = vsub.f32 %v6960, %v6967
    %v6969 = vmul.f32 %v6968, 1.442695
    %v6970 = vpow.pop %v6969
    %v6971 = vsel %vm517, %v6970, 0.0
    %6972 = vadd.xlane.f32.xlu0 %v6971
    %v6973 = vpop.xlane.xlu0 %6972
    %v6974 = vrcp.pop %v6973
    %v6975 = vmul.f32 %v6970, %v6974
    %v6976 = vpack.c.bf16 %v6975, %v6975
    %6977 = vrot.lane.b32.xlu0 %v6587, 32
    %v6978 = vpop.permute.xlu0 %6977
    %v6980 = vsel %vm517, %v6976, 0
    %v6983 = vsel %vm533, %v6978, 0
    %6985 = vmatprep.subr.bf16.mxu0 0
    %6986 = vmatpush1.bf16.msra.mxu0 %v6983
    %6987 = vmatprep.subr.bf16.mxu0 0
    %6988 = vmatpush1.bf16.msra.mxu0 0
    %6989 = vmatprep.subr.bf16.mxu0 0
    %6990 = vmatpush1.bf16.msra.mxu0 0
    %6991 = vmatprep.subr.bf16.mxu0 0
    %6992 = vmatpush1.bf16.msra.mxu0 0
    %6993 = vmatprep.subr.bf16.mxu0 0
    %6994 = vmatpush1.bf16.msra.mxu0 0
    %6995 = vmatprep.subr.bf16.mxu0 0
    %6996 = vmatpush1.bf16.msra.mxu0 0
    %6997 = vmatprep.subr.bf16.mxu0 0
    %6998 = vmatpush1.bf16.msra.mxu0 0
    %6999 = vmatprep.subr.bf16.mxu0 0
    %7000 = vmatpush1.bf16.msra.mxu0 0
    %7001 = vmatprep.subr.bf16.mxu0 0
    %7002 = vmatpush1.bf16.msra.mxu0 0
    %7003 = vmatprep.subr.bf16.mxu0 0
    %7004 = vmatpush1.bf16.msra.mxu0 0
    %7005 = vmatprep.subr.bf16.mxu0 0
    %7006 = vmatpush1.bf16.msra.mxu0 0
    %7007 = vmatprep.subr.bf16.mxu0 0
    %7008 = vmatpush1.bf16.msra.mxu0 0
    %7009 = vmatprep.subr.bf16.mxu0 0
    %7010 = vmatpush1.bf16.msra.mxu0 0
    %7011 = vmatprep.subr.bf16.mxu0 0
    %7012 = vmatpush1.bf16.msra.mxu0 0
    %7013 = vmatprep.subr.bf16.mxu0 0
    %7014 = vmatpush1.bf16.msra.mxu0 0
    %7015 = vmatprep.subr.bf16.mxu0 0
    %7016 = vmatpush1.bf16.msra.mxu0 0
    %7017 = vmatprep.mubr.bf16.mxu0 0
    %7018 = vmatmul.mubr.bf16.gmra.mrb[0].mxu0 %v6980
    %v7019 = vpop.f32.mrb[0].mxu0
    %v7020 = vadd.f32 0.0, %v7019
    %v7021 = vpop.f32.mrb[0].mxu0
    %v7022 = vpop.f32.mrb[0].mxu0
    %v7023 = vpop.f32.mrb[0].mxu0
    %7024 = vdwg.mxu0
    %7026 = vrot.lane.b32.xlu0 %v6800, 32
    %v7027 = vpop.permute.xlu0 %7026
    %7030 = vrot.lane.b32.xlu0 %v6910, 64
    %v7031 = vpop.permute.xlu0 %7030
    %7034 = vrot.lane.b32.xlu0 %v7020, 96
    %v7035 = vpop.permute.xlu0 %7034
    %v7037 = vsel %vm470, %v6687, %v7027
    %v7038 = vsel %vm159, %v7037, %v7031
    %v7039 = vsel %vm924, %v7038, %v7035
    %v7040 = vmul.f32 %v6539, 0.17677669
    %v7041 = vpack.c.bf16 %v7040, %v7040
    %v7042 = vpack.c.bf16 %v6541, %v6541
    %v7043 = vpack.c.bf16 %v6581, %v6581
    %v7045 = vsel %vm470, %v7041, 0
    %v7048 = vsel %vm470, %v7042, 0
    %7050 = vmatprep.subr.bf16.mxu0 0
    %7051 = vmatpush1.bf16.xpose.msra.mxu0 %v7048
    %7052 = vmatprep.subr.bf16.mxu0 0
    %7053 = vmatpush1.bf16.xpose.msra.mxu0 0
    %7054 = vmatprep.subr.bf16.mxu0 0
    %7055 = vmatpush1.bf16.xpose.msra.mxu0 0
    %7056 = vmatprep.subr.bf16.mxu0 0
    %7057 = vmatpush1.bf16.xpose.msra.mxu0 0
    %7058 = vmatprep.subr.bf16.mxu0 0
    %7059 = vmatpush1.bf16.xpose.msra.mxu0 0
    %7060 = vmatprep.subr.bf16.mxu0 0
    %7061 = vmatpush1.bf16.xpose.msra.mxu0 0
    %7062 = vmatprep.subr.bf16.mxu0 0
    %7063 = vmatpush1.bf16.xpose.msra.mxu0 0
    %7064 = vmatprep.subr.bf16.mxu0 0
    %7065 = vmatpush1.bf16.xpose.msra.mxu0 0
    %7066 = vmatprep.subr.bf16.mxu0 0
    %7067 = vmatpush1.bf16.xpose.msra.mxu0 0
    %7068 = vmatprep.subr.bf16.mxu0 0
    %7069 = vmatpush1.bf16.xpose.msra.mxu0 0
    %7070 = vmatprep.subr.bf16.mxu0 0
    %7071 = vmatpush1.bf16.xpose.msra.mxu0 0
    %7072 = vmatprep.subr.bf16.mxu0 0
    %7073 = vmatpush1.bf16.xpose.msra.mxu0 0
    %7074 = vmatprep.subr.bf16.mxu0 0
    %7075 = vmatpush1.bf16.xpose.msra.mxu0 0
    %7076 = vmatprep.subr.bf16.mxu0 0
    %7077 = vmatpush1.bf16.xpose.msra.mxu0 0
    %7078 = vmatprep.subr.bf16.mxu0 0
    %7079 = vmatpush1.bf16.xpose.msra.mxu0 0
    %7080 = vmatprep.subr.bf16.mxu0 0
    %7081 = vmatpush1.bf16.xpose.msra.mxu0 0
    %7082 = vmatprep.mubr.bf16.mxu0 0
    %7083 = vmatmul.mubr.bf16.gmra.mrb[0].mxu0 %v7045
    %v7084 = vpop.f32.mrb[0].mxu0
    %v7085 = vadd.f32 0.0, %v7084
    %v7086 = vpop.f32.mrb[0].mxu0
    %v7087 = vpop.f32.mrb[0].mxu0
    %v7088 = vpop.f32.mrb[0].mxu0
    %7089 = vdwg.mxu0
    %v7090 = vsel %vm517, %v7085, -inf
    %7091 = vmax.xlane.f32.xlu0 %v7090
    %v7092 = vpop.xlane.xlu0 %7091
    %v7093 = vsub.f32 %v7085, %v7092
    %v7094 = vmul.f32 %v7093, 1.442695
    %v7095 = vpow.pop %v7094
    %v7096 = vsel %vm517, %v7095, 0.0
    %7097 = vadd.xlane.f32.xlu0 %v7096
    %v7098 = vpop.xlane.xlu0 %7097
    %v7099 = vrcp.pop %v7098
    %v7100 = vmul.f32 %v7095, %v7099
    %v7101 = vpack.c.bf16 %v7100, %v7100
    %v7103 = vsel %vm517, %v7101, 0
    %v7106 = vsel %vm533, %v7043, 0
    %7108 = vmatprep.subr.bf16.mxu0 0
    %7109 = vmatpush1.bf16.msra.mxu0 %v7106
    %7110 = vmatprep.subr.bf16.mxu0 0
    %7111 = vmatpush1.bf16.msra.mxu0 0
    %7112 = vmatprep.subr.bf16.mxu0 0
    %7113 = vmatpush1.bf16.msra.mxu0 0
    %7114 = vmatprep.subr.bf16.mxu0 0
    %7115 = vmatpush1.bf16.msra.mxu0 0
    %7116 = vmatprep.subr.bf16.mxu0 0
    %7117 = vmatpush1.bf16.msra.mxu0 0
    %7118 = vmatprep.subr.bf16.mxu0 0
    %7119 = vmatpush1.bf16.msra.mxu0 0
    %7120 = vmatprep.subr.bf16.mxu0 0
    %7121 = vmatpush1.bf16.msra.mxu0 0
    %7122 = vmatprep.subr.bf16.mxu0 0
    %7123 = vmatpush1.bf16.msra.mxu0 0
    %7124 = vmatprep.subr.bf16.mxu0 0
    %7125 = vmatpush1.bf16.msra.mxu0 0
    %7126 = vmatprep.subr.bf16.mxu0 0
    %7127 = vmatpush1.bf16.msra.mxu0 0
    %7128 = vmatprep.subr.bf16.mxu0 0
    %7129 = vmatpush1.bf16.msra.mxu0 0
    %7130 = vmatprep.subr.bf16.mxu0 0
    %7131 = vmatpush1.bf16.msra.mxu0 0
    %7132 = vmatprep.subr.bf16.mxu0 0
    %7133 = vmatpush1.bf16.msra.mxu0 0
    %7134 = vmatprep.subr.bf16.mxu0 0
    %7135 = vmatpush1.bf16.msra.mxu0 0
    %7136 = vmatprep.subr.bf16.mxu0 0
    %7137 = vmatpush1.bf16.msra.mxu0 0
    %7138 = vmatprep.subr.bf16.mxu0 0
    %7139 = vmatpush1.bf16.msra.mxu0 0
    %7140 = vmatprep.mubr.bf16.mxu0 0
    %7141 = vmatmul.mubr.bf16.gmra.mrb[0].mxu0 %v7103
    %v7142 = vpop.f32.mrb[0].mxu0
    %v7143 = vadd.f32 0.0, %v7142
    %v7144 = vpop.f32.mrb[0].mxu0
    %v7145 = vpop.f32.mrb[0].mxu0
    %v7146 = vpop.f32.mrb[0].mxu0
    %7147 = vdwg.mxu0
    %7149 = vrot.lane.b32.xlu0 %v7041, 96
    %v7150 = vpop.permute.xlu0 %7149
    %7152 = vrot.lane.b32.xlu0 %v7042, 96
    %v7153 = vpop.permute.xlu0 %7152
    %v7155 = vsel %vm470, %v7150, 0
    %v7158 = vsel %vm470, %v7153, 0
    %7160 = vmatprep.subr.bf16.mxu0 0
    %7161 = vmatpush1.bf16.xpose.msra.mxu0 %v7158
    %7162 = vmatprep.subr.bf16.mxu0 0
    %7163 = vmatpush1.bf16.xpose.msra.mxu0 0
    %7164 = vmatprep.subr.bf16.mxu0 0
    %7165 = vmatpush1.bf16.xpose.msra.mxu0 0
    %7166 = vmatprep.subr.bf16.mxu0 0
    %7167 = vmatpush1.bf16.xpose.msra.mxu0 0
    %7168 = vmatprep.subr.bf16.mxu0 0
    %7169 = vmatpush1.bf16.xpose.msra.mxu0 0
    %7170 = vmatprep.subr.bf16.mxu0 0
    %7171 = vmatpush1.bf16.xpose.msra.mxu0 0
    %7172 = vmatprep.subr.bf16.mxu0 0
    %7173 = vmatpush1.bf16.xpose.msra.mxu0 0
    %7174 = vmatprep.subr.bf16.mxu0 0
    %7175 = vmatpush1.bf16.xpose.msra.mxu0 0
    %7176 = vmatprep.subr.bf16.mxu0 0
    %7177 = vmatpush1.bf16.xpose.msra.mxu0 0
    %7178 = vmatprep.subr.bf16.mxu0 0
    %7179 = vmatpush1.bf16.xpose.msra.mxu0 0
    %7180 = vmatprep.subr.bf16.mxu0 0
    %7181 = vmatpush1.bf16.xpose.msra.mxu0 0
    %7182 = vmatprep.subr.bf16.mxu0 0
    %7183 = vmatpush1.bf16.xpose.msra.mxu0 0
    %7184 = vmatprep.subr.bf16.mxu0 0
    %7185 = vmatpush1.bf16.xpose.msra.mxu0 0
    %7186 = vmatprep.subr.bf16.mxu0 0
    %7187 = vmatpush1.bf16.xpose.msra.mxu0 0
    %7188 = vmatprep.subr.bf16.mxu0 0
    %7189 = vmatpush1.bf16.xpose.msra.mxu0 0
    %7190 = vmatprep.subr.bf16.mxu0 0
    %7191 = vmatpush1.bf16.xpose.msra.mxu0 0
    %7192 = vmatprep.mubr.bf16.mxu0 0
    %7193 = vmatmul.mubr.bf16.gmra.mrb[0].mxu0 %v7155
    %v7194 = vpop.f32.mrb[0].mxu0
    %v7195 = vadd.f32 0.0, %v7194
    %v7196 = vpop.f32.mrb[0].mxu0
    %v7197 = vpop.f32.mrb[0].mxu0
    %v7198 = vpop.f32.mrb[0].mxu0
    %7199 = vdwg.mxu0
    %v7200 = vsel %vm517, %v7195, -inf
    %7201 = vmax.xlane.f32.xlu0 %v7200
    %v7202 = vpop.xlane.xlu0 %7201
    %v7203 = vsub.f32 %v7195, %v7202
    %v7204 = vmul.f32 %v7203, 1.442695
    %v7205 = vpow.pop %v7204
    %v7206 = vsel %vm517, %v7205, 0.0
    %7207 = vadd.xlane.f32.xlu0 %v7206
    %v7208 = vpop.xlane.xlu0 %7207
    %v7209 = vrcp.pop %v7208
    %v7210 = vmul.f32 %v7205, %v7209
    %v7211 = vpack.c.bf16 %v7210, %v7210
    %7213 = vrot.lane.b32.xlu0 %v7043, 96
    %v7214 = vpop.permute.xlu0 %7213
    %v7216 = vsel %vm517, %v7211, 0
    %v7219 = vsel %vm533, %v7214, 0
    %7221 = vmatprep.subr.bf16.mxu0 0
    %7222 = vmatpush1.bf16.msra.mxu0 %v7219
    %7223 = vmatprep.subr.bf16.mxu0 0
    %7224 = vmatpush1.bf16.msra.mxu0 0
    %7225 = vmatprep.subr.bf16.mxu0 0
    %7226 = vmatpush1.bf16.msra.mxu0 0
    %7227 = vmatprep.subr.bf16.mxu0 0
    %7228 = vmatpush1.bf16.msra.mxu0 0
    %7229 = vmatprep.subr.bf16.mxu0 0
    %7230 = vmatpush1.bf16.msra.mxu0 0
    %7231 = vmatprep.subr.bf16.mxu0 0
    %7232 = vmatpush1.bf16.msra.mxu0 0
    %7233 = vmatprep.subr.bf16.mxu0 0
    %7234 = vmatpush1.bf16.msra.mxu0 0
    %7235 = vmatprep.subr.bf16.mxu0 0
    %7236 = vmatpush1.bf16.msra.mxu0 0
    %7237 = vmatprep.subr.bf16.mxu0 0
    %7238 = vmatpush1.bf16.msra.mxu0 0
    %7239 = vmatprep.subr.bf16.mxu0 0
    %7240 = vmatpush1.bf16.msra.mxu0 0
    %7241 = vmatprep.subr.bf16.mxu0 0
    %7242 = vmatpush1.bf16.msra.mxu0 0
    %7243 = vmatprep.subr.bf16.mxu0 0
    %7244 = vmatpush1.bf16.msra.mxu0 0
    %7245 = vmatprep.subr.bf16.mxu0 0
    %7246 = vmatpush1.bf16.msra.mxu0 0
    %7247 = vmatprep.subr.bf16.mxu0 0
    %7248 = vmatpush1.bf16.msra.mxu0 0
    %7249 = vmatprep.subr.bf16.mxu0 0
    %7250 = vmatpush1.bf16.msra.mxu0 0
    %7251 = vmatprep.subr.bf16.mxu0 0
    %7252 = vmatpush1.bf16.msra.mxu0 0
    %7253 = vmatprep.mubr.bf16.mxu0 0
    %7254 = vmatmul.mubr.bf16.gmra.mrb[0].mxu0 %v7216
    %v7255 = vpop.f32.mrb[0].mxu0
    %v7256 = vadd.f32 0.0, %v7255
    %v7257 = vpop.f32.mrb[0].mxu0
    %v7258 = vpop.f32.mrb[0].mxu0
    %v7259 = vpop.f32.mrb[0].mxu0
    %7260 = vdwg.mxu0
    %7261 = vrot.lane.b32.xlu0 %v7041, 64
    %v7262 = vpop.permute.xlu0 %7261
    %7263 = vrot.lane.b32.xlu0 %v7042, 64
    %v7264 = vpop.permute.xlu0 %7263
    %v7266 = vsel %vm470, %v7262, 0
    %v7269 = vsel %vm470, %v7264, 0
    %7271 = vmatprep.subr.bf16.mxu0 0
    %7272 = vmatpush1.bf16.xpose.msra.mxu0 %v7269
    %7273 = vmatprep.subr.bf16.mxu0 0
    %7274 = vmatpush1.bf16.xpose.msra.mxu0 0
    %7275 = vmatprep.subr.bf16.mxu0 0
    %7276 = vmatpush1.bf16.xpose.msra.mxu0 0
    %7277 = vmatprep.subr.bf16.mxu0 0
    %7278 = vmatpush1.bf16.xpose.msra.mxu0 0
    %7279 = vmatprep.subr.bf16.mxu0 0
    %7280 = vmatpush1.bf16.xpose.msra.mxu0 0
    %7281 = vmatprep.subr.bf16.mxu0 0
    %7282 = vmatpush1.bf16.xpose.msra.mxu0 0
    %7283 = vmatprep.subr.bf16.mxu0 0
    %7284 = vmatpush1.bf16.xpose.msra.mxu0 0
    %7285 = vmatprep.subr.bf16.mxu0 0
    %7286 = vmatpush1.bf16.xpose.msra.mxu0 0
    %7287 = vmatprep.subr.bf16.mxu0 0
    %7288 = vmatpush1.bf16.xpose.msra.mxu0 0
    %7289 = vmatprep.subr.bf16.mxu0 0
    %7290 = vmatpush1.bf16.xpose.msra.mxu0 0
    %7291 = vmatprep.subr.bf16.mxu0 0
    %7292 = vmatpush1.bf16.xpose.msra.mxu0 0
    %7293 = vmatprep.subr.bf16.mxu0 0
    %7294 = vmatpush1.bf16.xpose.msra.mxu0 0
    %7295 = vmatprep.subr.bf16.mxu0 0
    %7296 = vmatpush1.bf16.xpose.msra.mxu0 0
    %7297 = vmatprep.subr.bf16.mxu0 0
    %7298 = vmatpush1.bf16.xpose.msra.mxu0 0
    %7299 = vmatprep.subr.bf16.mxu0 0
    %7300 = vmatpush1.bf16.xpose.msra.mxu0 0
    %7301 = vmatprep.subr.bf16.mxu0 0
    %7302 = vmatpush1.bf16.xpose.msra.mxu0 0
    %7303 = vmatprep.mubr.bf16.mxu0 0
    %7304 = vmatmul.mubr.bf16.gmra.mrb[0].mxu0 %v7266
    %v7305 = vpop.f32.mrb[0].mxu0
    %v7306 = vadd.f32 0.0, %v7305
    %v7307 = vpop.f32.mrb[0].mxu0
    %v7308 = vpop.f32.mrb[0].mxu0
    %v7309 = vpop.f32.mrb[0].mxu0
    %7310 = vdwg.mxu0
    %v7311 = vsel %vm517, %v7306, -inf
    %7312 = vmax.xlane.f32.xlu0 %v7311
    %v7313 = vpop.xlane.xlu0 %7312
    %v7314 = vsub.f32 %v7306, %v7313
    %v7315 = vmul.f32 %v7314, 1.442695
    %v7316 = vpow.pop %v7315
    %v7317 = vsel %vm517, %v7316, 0.0
    %7318 = vadd.xlane.f32.xlu0 %v7317
    %v7319 = vpop.xlane.xlu0 %7318
    %v7320 = vrcp.pop %v7319
    %v7321 = vmul.f32 %v7316, %v7320
    %v7322 = vpack.c.bf16 %v7321, %v7321
    %7323 = vrot.lane.b32.xlu0 %v7043, 64
    %v7324 = vpop.permute.xlu0 %7323
    %v7326 = vsel %vm517, %v7322, 0
    %v7329 = vsel %vm533, %v7324, 0
    %7331 = vmatprep.subr.bf16.mxu0 0
    %7332 = vmatpush1.bf16.msra.mxu0 %v7329
    %7333 = vmatprep.subr.bf16.mxu0 0
    %7334 = vmatpush1.bf16.msra.mxu0 0
    %7335 = vmatprep.subr.bf16.mxu0 0
    %7336 = vmatpush1.bf16.msra.mxu0 0
    %7337 = vmatprep.subr.bf16.mxu0 0
    %7338 = vmatpush1.bf16.msra.mxu0 0
    %7339 = vmatprep.subr.bf16.mxu0 0
    %7340 = vmatpush1.bf16.msra.mxu0 0
    %7341 = vmatprep.subr.bf16.mxu0 0
    %7342 = vmatpush1.bf16.msra.mxu0 0
    %7343 = vmatprep.subr.bf16.mxu0 0
    %7344 = vmatpush1.bf16.msra.mxu0 0
    %7345 = vmatprep.subr.bf16.mxu0 0
    %7346 = vmatpush1.bf16.msra.mxu0 0
    %7347 = vmatprep.subr.bf16.mxu0 0
    %7348 = vmatpush1.bf16.msra.mxu0 0
    %7349 = vmatprep.subr.bf16.mxu0 0
    %7350 = vmatpush1.bf16.msra.mxu0 0
    %7351 = vmatprep.subr.bf16.mxu0 0
    %7352 = vmatpush1.bf16.msra.mxu0 0
    %7353 = vmatprep.subr.bf16.mxu0 0
    %7354 = vmatpush1.bf16.msra.mxu0 0
    %7355 = vmatprep.subr.bf16.mxu0 0
    %7356 = vmatpush1.bf16.msra.mxu0 0
    %7357 = vmatprep.subr.bf16.mxu0 0
    %7358 = vmatpush1.bf16.msra.mxu0 0
    %7359 = vmatprep.subr.bf16.mxu0 0
    %7360 = vmatpush1.bf16.msra.mxu0 0
    %7361 = vmatprep.subr.bf16.mxu0 0
    %7362 = vmatpush1.bf16.msra.mxu0 0
    %7363 = vmatprep.mubr.bf16.mxu0 0
    %7364 = vmatmul.mubr.bf16.gmra.mrb[0].mxu0 %v7326
    %v7365 = vpop.f32.mrb[0].mxu0
    %v7366 = vadd.f32 0.0, %v7365
    %v7367 = vpop.f32.mrb[0].mxu0
    %v7368 = vpop.f32.mrb[0].mxu0
    %v7369 = vpop.f32.mrb[0].mxu0
    %7370 = vdwg.mxu0
    %7371 = vrot.lane.b32.xlu0 %v7041, 32
    %v7372 = vpop.permute.xlu0 %7371
    %7373 = vrot.lane.b32.xlu0 %v7042, 32
    %v7374 = vpop.permute.xlu0 %7373
    %v7376 = vsel %vm470, %v7372, 0
    %v7379 = vsel %vm470, %v7374, 0
    %7381 = vmatprep.subr.bf16.mxu0 0
    %7382 = vmatpush1.bf16.xpose.msra.mxu0 %v7379
    %7383 = vmatprep.subr.bf16.mxu0 0
    %7384 = vmatpush1.bf16.xpose.msra.mxu0 0
    %7385 = vmatprep.subr.bf16.mxu0 0
    %7386 = vmatpush1.bf16.xpose.msra.mxu0 0
    %7387 = vmatprep.subr.bf16.mxu0 0
    %7388 = vmatpush1.bf16.xpose.msra.mxu0 0
    %7389 = vmatprep.subr.bf16.mxu0 0
    %7390 = vmatpush1.bf16.xpose.msra.mxu0 0
    %7391 = vmatprep.subr.bf16.mxu0 0
    %7392 = vmatpush1.bf16.xpose.msra.mxu0 0
    %7393 = vmatprep.subr.bf16.mxu0 0
    %7394 = vmatpush1.bf16.xpose.msra.mxu0 0
    %7395 = vmatprep.subr.bf16.mxu0 0
    %7396 = vmatpush1.bf16.xpose.msra.mxu0 0
    %7397 = vmatprep.subr.bf16.mxu0 0
    %7398 = vmatpush1.bf16.xpose.msra.mxu0 0
    %7399 = vmatprep.subr.bf16.mxu0 0
    %7400 = vmatpush1.bf16.xpose.msra.mxu0 0
    %7401 = vmatprep.subr.bf16.mxu0 0
    %7402 = vmatpush1.bf16.xpose.msra.mxu0 0
    %7403 = vmatprep.subr.bf16.mxu0 0
    %7404 = vmatpush1.bf16.xpose.msra.mxu0 0
    %7405 = vmatprep.subr.bf16.mxu0 0
    %7406 = vmatpush1.bf16.xpose.msra.mxu0 0
    %7407 = vmatprep.subr.bf16.mxu0 0
    %7408 = vmatpush1.bf16.xpose.msra.mxu0 0
    %7409 = vmatprep.subr.bf16.mxu0 0
    %7410 = vmatpush1.bf16.xpose.msra.mxu0 0
    %7411 = vmatprep.subr.bf16.mxu0 0
    %7412 = vmatpush1.bf16.xpose.msra.mxu0 0
    %7413 = vmatprep.mubr.bf16.mxu0 0
    %7414 = vmatmul.mubr.bf16.gmra.mrb[0].mxu0 %v7376
    %v7415 = vpop.f32.mrb[0].mxu0
    %v7416 = vadd.f32 0.0, %v7415
    %v7417 = vpop.f32.mrb[0].mxu0
    %v7418 = vpop.f32.mrb[0].mxu0
    %v7419 = vpop.f32.mrb[0].mxu0
    %7420 = vdwg.mxu0
    %v7421 = vsel %vm517, %v7416, -inf
    %7422 = vmax.xlane.f32.xlu0 %v7421
    %v7423 = vpop.xlane.xlu0 %7422
    %v7424 = vsub.f32 %v7416, %v7423
    %v7425 = vmul.f32 %v7424, 1.442695
    %v7426 = vpow.pop %v7425
    %v7427 = vsel %vm517, %v7426, 0.0
    %7428 = vadd.xlane.f32.xlu0 %v7427
    %v7429 = vpop.xlane.xlu0 %7428
    %v7430 = vrcp.pop %v7429
    %v7431 = vmul.f32 %v7426, %v7430
    %v7432 = vpack.c.bf16 %v7431, %v7431
    %7433 = vrot.lane.b32.xlu0 %v7043, 32
    %v7434 = vpop.permute.xlu0 %7433
    %v7436 = vsel %vm517, %v7432, 0
    %v7439 = vsel %vm533, %v7434, 0
    %7441 = vmatprep.subr.bf16.mxu0 0
    %7442 = vmatpush1.bf16.msra.mxu0 %v7439
    %7443 = vmatprep.subr.bf16.mxu0 0
    %7444 = vmatpush1.bf16.msra.mxu0 0
    %7445 = vmatprep.subr.bf16.mxu0 0
    %7446 = vmatpush1.bf16.msra.mxu0 0
    %7447 = vmatprep.subr.bf16.mxu0 0
    %7448 = vmatpush1.bf16.msra.mxu0 0
    %7449 = vmatprep.subr.bf16.mxu0 0
    %7450 = vmatpush1.bf16.msra.mxu0 0
    %7451 = vmatprep.subr.bf16.mxu0 0
    %7452 = vmatpush1.bf16.msra.mxu0 0
    %7453 = vmatprep.subr.bf16.mxu0 0
    %7454 = vmatpush1.bf16.msra.mxu0 0
    %7455 = vmatprep.subr.bf16.mxu0 0
    %7456 = vmatpush1.bf16.msra.mxu0 0
    %7457 = vmatprep.subr.bf16.mxu0 0
    %7458 = vmatpush1.bf16.msra.mxu0 0
    %7459 = vmatprep.subr.bf16.mxu0 0
    %7460 = vmatpush1.bf16.msra.mxu0 0
    %7461 = vmatprep.subr.bf16.mxu0 0
    %7462 = vmatpush1.bf16.msra.mxu0 0
    %7463 = vmatprep.subr.bf16.mxu0 0
    %7464 = vmatpush1.bf16.msra.mxu0 0
    %7465 = vmatprep.subr.bf16.mxu0 0
    %7466 = vmatpush1.bf16.msra.mxu0 0
    %7467 = vmatprep.subr.bf16.mxu0 0
    %7468 = vmatpush1.bf16.msra.mxu0 0
    %7469 = vmatprep.subr.bf16.mxu0 0
    %7470 = vmatpush1.bf16.msra.mxu0 0
    %7471 = vmatprep.subr.bf16.mxu0 0
    %7472 = vmatpush1.bf16.msra.mxu0 0
    %7473 = vmatprep.mubr.bf16.mxu0 0
    %7474 = vmatmul.mubr.bf16.gmra.mrb[0].mxu0 %v7436
    %v7475 = vpop.f32.mrb[0].mxu0
    %v7476 = vadd.f32 0.0, %v7475
    %v7477 = vpop.f32.mrb[0].mxu0
    %v7478 = vpop.f32.mrb[0].mxu0
    %v7479 = vpop.f32.mrb[0].mxu0
    %7480 = vdwg.mxu0
    %7482 = vrot.lane.b32.xlu0 %v7256, 32
    %v7483 = vpop.permute.xlu0 %7482
    %7486 = vrot.lane.b32.xlu0 %v7366, 64
    %v7487 = vpop.permute.xlu0 %7486
    %7490 = vrot.lane.b32.xlu0 %v7476, 96
    %v7491 = vpop.permute.xlu0 %7490
    %v7493 = vsel %vm470, %v7143, %v7483
    %v7494 = vsel %vm159, %v7493, %v7487
    %v7495 = vsel %vm924, %v7494, %v7491
    %s7496 = scalar_lea.vmem [#allocation5], 192
    %v7497 = vld [vmem:[%s7496] sm:$0xf]
    %v7498 = vld [vmem:[%s7496 + $0x4] sm:$0xf]
    %v7499 = vld [vmem:[%s7496 + $0x8] sm:$0xf]
    %v7500 = vld [vmem:[%s7496 + $0xc] sm:$0xf]
    %v7501 = vld [vmem:[%s7496 + $0x10] sm:$0xf]
    %v7502 = vld [vmem:[%s7496 + $0x14] sm:$0xf]
    %v7503 = vld [vmem:[%s7496 + $0x18] sm:$0xf]
    %v7504 = vld [vmem:[%s7496 + $0x1c] sm:$0xf]
    %v7505 = vld [vmem:[%s7496 + $0x20] sm:$0xf]
    %v7506 = vld [vmem:[%s7496 + $0x24] sm:$0xf]
    %v7507 = vld [vmem:[%s7496 + $0x28] sm:$0xf]
    %v7508 = vld [vmem:[%s7496 + $0x2c] sm:$0xf]
    %v7509 = vld [vmem:[%s7496 + $0x30] sm:$0xf]
    %v7510 = vld [vmem:[%s7496 + $0x34] sm:$0xf]
    %v7511 = vld [vmem:[%s7496 + $0x38] sm:$0xf]
    %v7512 = vld [vmem:[%s7496 + $0x3c] sm:$0xf]
    %s7513 = scalar_lea.vmem %s6, 3
    %v7514 = vld [vmem:[%s7513] sm:$0x1]
    %v7515 = vpack.c.bf16 %v7495, %v7039
    %v7517 = vlaneseq
    %v7518 = vshrl.u32 %v7517, 7
    %v7519 = vsub.s32 0, %v7518
    %v7520 = vrot.slane %v7514, %v7519
    %v7538 = vunpack.c.l.b16 %v7497
    %v7539 = vunpack.c.l.b16 %v7498
    %v7540 = vunpack.c.l.b16 %v7499
    %v7541 = vunpack.c.l.b16 %v7500
    %v7542 = vunpack.c.l.b16 %v7501
    %v7543 = vunpack.c.l.b16 %v7502
    %v7544 = vunpack.c.l.b16 %v7503
    %v7545 = vunpack.c.l.b16 %v7504
    %v7546 = vunpack.c.l.b16 %v7505
    %v7547 = vunpack.c.l.b16 %v7506
    %v7548 = vunpack.c.l.b16 %v7507
    %v7549 = vunpack.c.l.b16 %v7508
    %v7550 = vunpack.c.l.b16 %v7509
    %v7551 = vunpack.c.l.b16 %v7510
    %v7552 = vunpack.c.l.b16 %v7511
    %v7553 = vunpack.c.l.b16 %v7512
    %v7554 = vpack.c.b16 %v7539, %v7538
    %v7555 = vpack.c.b16 %v7541, %v7540
    %v7556 = vpack.c.b16 %v7543, %v7542
    %v7557 = vpack.c.b16 %v7545, %v7544
    %v7558 = vpack.c.b16 %v7547, %v7546
    %v7559 = vpack.c.b16 %v7549, %v7548
    %v7560 = vpack.c.b16 %v7551, %v7550
    %v7561 = vpack.c.b16 %v7553, %v7552
    %7570 = vmatprep.subr.bf16.mxu0 0
    %7571 = vmatpush1.bf16.msra.mxu0 %v7554
    %7572 = vmatprep.subr.bf16.mxu0 0
    %7573 = vmatpush1.bf16.msra.mxu0 %v7555
    %7574 = vmatprep.subr.bf16.mxu0 0
    %7575 = vmatpush1.bf16.msra.mxu0 %v7556
    %7576 = vmatprep.subr.bf16.mxu0 0
    %7577 = vmatpush1.bf16.msra.mxu0 %v7557
    %7578 = vmatprep.subr.bf16.mxu0 0
    %7579 = vmatpush1.bf16.msra.mxu0 %v7558
    %7580 = vmatprep.subr.bf16.mxu0 0
    %7581 = vmatpush1.bf16.msra.mxu0 %v7559
    %7582 = vmatprep.subr.bf16.mxu0 0
    %7583 = vmatpush1.bf16.msra.mxu0 %v7560
    %7584 = vmatprep.subr.bf16.mxu0 0
    %7585 = vmatpush1.bf16.msra.mxu0 %v7561
    %7586 = vmatprep.subr.bf16.mxu0 0
    %7587 = vmatpush1.bf16.msra.mxu0 0
    %7588 = vmatprep.subr.bf16.mxu0 0
    %7589 = vmatpush1.bf16.msra.mxu0 0
    %7590 = vmatprep.subr.bf16.mxu0 0
    %7591 = vmatpush1.bf16.msra.mxu0 0
    %7592 = vmatprep.subr.bf16.mxu0 0
    %7593 = vmatpush1.bf16.msra.mxu0 0
    %7594 = vmatprep.subr.bf16.mxu0 0
    %7595 = vmatpush1.bf16.msra.mxu0 0
    %7596 = vmatprep.subr.bf16.mxu0 0
    %7597 = vmatpush1.bf16.msra.mxu0 0
    %7598 = vmatprep.subr.bf16.mxu0 0
    %7599 = vmatpush1.bf16.msra.mxu0 0
    %7600 = vmatprep.subr.bf16.mxu0 0
    %7601 = vmatpush1.bf16.msra.mxu0 0
    %7602 = vmatprep.mubr.bf16.mxu0 0
    %7603 = vmatmul.mubr.bf16.gmra.mrb[0].mxu0 %v7515
    %v7604 = vpop.f32.mrb[0].mxu0
    %v7605 = vadd.f32 %v7520, %v7604
    %v7606 = vpop.f32.mrb[0].mxu0
    %v7607 = vpop.f32.mrb[0].mxu0
    %v7608 = vadd.f32 %v7520, %v7607
    %v7609 = vpop.f32.mrb[0].mxu0
    %7610 = vdwg.mxu0
    %v7611 = vadd.f32 %v6318, %v7605
    %v7612 = vadd.f32 %v6319, %v7608
    %s7613 = scalar_lea.vmem %s7, 3
    %v7614 = vld [vmem:[%s7613] sm:$0x1]
    %s7615 = scalar_lea.vmem %s8, 3
    %v7616 = vld [vmem:[%s7615] sm:$0x1]
    %7617 = vadd.xlane.f32.xlu0 %v7611
    %v7618 = vpop.xlane.xlu0 %7617
    %7619 = vadd.xlane.f32.xlu0 %v7612
    %v7620 = vpop.xlane.xlu0 %7619
    %v7621 = vmul.f32 %v7618, %v1503
    %v7622 = vmul.f32 %v7620, %v1503
    %v7623 = vsub.f32 %v7611, %v7621
    %v7624 = vsub.f32 %v7612, %v7622
    %v7625 = vmul.f32 %v7623, %v7623
    %v7626 = vmul.f32 %v7624, %v7624
    %7627 = vadd.xlane.f32.xlu0 %v7625
    %v7628 = vpop.xlane.xlu0 %7627
    %7629 = vadd.xlane.f32.xlu0 %v7626
    %v7630 = vpop.xlane.xlu0 %7629
    %v7631 = vmul.f32 %v7628, %v1503
    %v7632 = vmul.f32 %v7630, %v1503
    %v7633 = vadd.f32 %v7631, 1e-05
    %v7634 = vadd.f32 %v7632, 1e-05
    %v7635 = vrsqrt.pop %v7633
    %v7636 = vrsqrt.pop %v7634
    %v7637 = vmul.f32 %v7623, %v7635
    %v7638 = vmul.f32 %v7624, %v7636
    %v7640 = vlaneseq
    %v7641 = vshrl.u32 %v7640, 7
    %v7642 = vsub.s32 0, %v7641
    %v7643 = vrot.slane %v7614, %v7642
    %v7645 = vmul.f32 %v7637, %v7643
    %v7646 = vmul.f32 %v7638, %v7643
    %v7648 = vlaneseq
    %v7649 = vshrl.u32 %v7648, 7
    %v7650 = vsub.s32 0, %v7649
    %v7651 = vrot.slane %v7616, %v7650
    %v7653 = vadd.f32 %v7645, %v7651
    %v7654 = vadd.f32 %v7646, %v7651
    %s7655 = scalar_lea.vmem [#allocation7], 768
    %v7656 = vld [vmem:[%s7655] sm:$0xff]
    %v7657 = vld [vmem:[%s7655 + $0x8] sm:$0xff]
    %v7658 = vld [vmem:[%s7655 + $0x10] sm:$0xff]
    %v7659 = vld [vmem:[%s7655 + $0x18] sm:$0xff]
    %v7660 = vld [vmem:[%s7655 + $0x20] sm:$0xff]
    %v7661 = vld [vmem:[%s7655 + $0x28] sm:$0xff]
    %v7662 = vld [vmem:[%s7655 + $0x30] sm:$0xff]
    %v7663 = vld [vmem:[%s7655 + $0x38] sm:$0xff]
    %v7664 = vld [vmem:[%s7655 + $0x40] sm:$0xff]
    %v7665 = vld [vmem:[%s7655 + $0x48] sm:$0xff]
    %v7666 = vld [vmem:[%s7655 + $0x50] sm:$0xff]
    %v7667 = vld [vmem:[%s7655 + $0x58] sm:$0xff]
    %v7668 = vld [vmem:[%s7655 + $0x60] sm:$0xff]
    %v7669 = vld [vmem:[%s7655 + $0x68] sm:$0xff]
    %v7670 = vld [vmem:[%s7655 + $0x70] sm:$0xff]
    %v7671 = vld [vmem:[%s7655 + $0x78] sm:$0xff]
    %v7672 = vld [vmem:[%s7655 + $0x80] sm:$0xff]
    %v7673 = vld [vmem:[%s7655 + $0x88] sm:$0xff]
    %v7674 = vld [vmem:[%s7655 + $0x90] sm:$0xff]
    %v7675 = vld [vmem:[%s7655 + $0x98] sm:$0xff]
    %v7676 = vld [vmem:[%s7655 + $0xa0] sm:$0xff]
    %v7677 = vld [vmem:[%s7655 + $0xa8] sm:$0xff]
    %v7678 = vld [vmem:[%s7655 + $0xb0] sm:$0xff]
    %v7679 = vld [vmem:[%s7655 + $0xb8] sm:$0xff]
    %v7680 = vld [vmem:[%s7655 + $0xc0] sm:$0xff]
    %v7681 = vld [vmem:[%s7655 + $0xc8] sm:$0xff]
    %v7682 = vld [vmem:[%s7655 + $0xd0] sm:$0xff]
    %v7683 = vld [vmem:[%s7655 + $0xd8] sm:$0xff]
    %v7684 = vld [vmem:[%s7655 + $0xe0] sm:$0xff]
    %v7685 = vld [vmem:[%s7655 + $0xe8] sm:$0xff]
    %v7686 = vld [vmem:[%s7655 + $0xf0] sm:$0xff]
    %v7687 = vld [vmem:[%s7655 + $0xf8] sm:$0xff]
    %s7688 = scalar_lea.vmem %s10, 12
    %v7689 = vld [vmem:[%s7688] sm:$0xf]
    %v7690 = vpack.c.bf16 %v7654, %v7653
    %v7692 = vlaneseq
    %v7693 = vshrl.u32 %v7692, 7
    %v7694 = vsub.s32 0, %v7693
    %v7695 = vrot.slane %v7689, %v7694
    %v7696 = vlaneseq
    %v7697 = vshrl.u32 %v7696, 7
    %v7698 = vsub.s32 1, %v7697
    %v7699 = vrot.slane %v7689, %v7698
    %v7700 = vlaneseq
    %v7701 = vshrl.u32 %v7700, 7
    %v7702 = vsub.s32 2, %v7701
    %v7703 = vrot.slane %v7689, %v7702
    %v7704 = vlaneseq
    %v7705 = vshrl.u32 %v7704, 7
    %v7706 = vsub.s32 3, %v7705
    %v7707 = vrot.slane %v7689, %v7706
    %v7744 = vunpack.c.l.b16 %v7656
    %v7745 = vunpack.c.h.b16 %v7656
    %v7746 = vunpack.c.l.b16 %v7657
    %v7747 = vunpack.c.h.b16 %v7657
    %v7748 = vunpack.c.l.b16 %v7658
    %v7749 = vunpack.c.h.b16 %v7658
    %v7750 = vunpack.c.l.b16 %v7659
    %v7751 = vunpack.c.h.b16 %v7659
    %v7752 = vunpack.c.l.b16 %v7660
    %v7753 = vunpack.c.h.b16 %v7660
    %v7754 = vunpack.c.l.b16 %v7661
    %v7755 = vunpack.c.h.b16 %v7661
    %v7756 = vunpack.c.l.b16 %v7662
    %v7757 = vunpack.c.h.b16 %v7662
    %v7758 = vunpack.c.l.b16 %v7663
    %v7759 = vunpack.c.h.b16 %v7663
    %v7760 = vunpack.c.l.b16 %v7664
    %v7761 = vunpack.c.h.b16 %v7664
    %v7762 = vunpack.c.l.b16 %v7665
    %v7763 = vunpack.c.h.b16 %v7665
    %v7764 = vunpack.c.l.b16 %v7666
    %v7765 = vunpack.c.h.b16 %v7666
    %v7766 = vunpack.c.l.b16 %v7667
    %v7767 = vunpack.c.h.b16 %v7667
    %v7768 = vunpack.c.l.b16 %v7668
    %v7769 = vunpack.c.h.b16 %v7668
    %v7770 = vunpack.c.l.b16 %v7669
    %v7771 = vunpack.c.h.b16 %v7669
    %v7772 = vunpack.c.l.b16 %v7670
    %v7773 = vunpack.c.h.b16 %v7670
    %v7774 = vunpack.c.l.b16 %v7671
    %v7775 = vunpack.c.h.b16 %v7671
    %v7776 = vunpack.c.l.b16 %v7672
    %v7777 = vunpack.c.h.b16 %v7672
    %v7778 = vunpack.c.l.b16 %v7673
    %v7779 = vunpack.c.h.b16 %v7673
    %v7780 = vunpack.c.l.b16 %v7674
    %v7781 = vunpack.c.h.b16 %v7674
    %v7782 = vunpack.c.l.b16 %v7675
    %v7783 = vunpack.c.h.b16 %v7675
    %v7784 = vunpack.c.l.b16 %v7676
    %v7785 = vunpack.c.h.b16 %v7676
    %v7786 = vunpack.c.l.b16 %v7677
    %v7787 = vunpack.c.h.b16 %v7677
    %v7788 = vunpack.c.l.b16 %v7678
    %v7789 = vunpack.c.h.b16 %v7678
    %v7790 = vunpack.c.l.b16 %v7679
    %v7791 = vunpack.c.h.b16 %v7679
    %v7792 = vunpack.c.l.b16 %v7680
    %v7793 = vunpack.c.h.b16 %v7680
    %v7794 = vunpack.c.l.b16 %v7681
    %v7795 = vunpack.c.h.b16 %v7681
    %v7796 = vunpack.c.l.b16 %v7682
    %v7797 = vunpack.c.h.b16 %v7682
    %v7798 = vunpack.c.l.b16 %v7683
    %v7799 = vunpack.c.h.b16 %v7683
    %v7800 = vunpack.c.l.b16 %v7684
    %v7801 = vunpack.c.h.b16 %v7684
    %v7802 = vunpack.c.l.b16 %v7685
    %v7803 = vunpack.c.h.b16 %v7685
    %v7804 = vunpack.c.l.b16 %v7686
    %v7805 = vunpack.c.h.b16 %v7686
    %v7806 = vunpack.c.l.b16 %v7687
    %v7807 = vunpack.c.h.b16 %v7687
    %v7808 = vpack.c.b16 %v7748, %v7744
    %v7809 = vpack.c.b16 %v7749, %v7745
    %v7810 = vpack.c.b16 %v7750, %v7746
    %v7811 = vpack.c.b16 %v7751, %v7747
    %v7812 = vpack.c.b16 %v7756, %v7752
    %v7813 = vpack.c.b16 %v7757, %v7753
    %v7814 = vpack.c.b16 %v7758, %v7754
    %v7815 = vpack.c.b16 %v7759, %v7755
    %v7816 = vpack.c.b16 %v7764, %v7760
    %v7817 = vpack.c.b16 %v7765, %v7761
    %v7818 = vpack.c.b16 %v7766, %v7762
    %v7819 = vpack.c.b16 %v7767, %v7763
    %v7820 = vpack.c.b16 %v7772, %v7768
    %v7821 = vpack.c.b16 %v7773, %v7769
    %v7822 = vpack.c.b16 %v7774, %v7770
    %v7823 = vpack.c.b16 %v7775, %v7771
    %v7824 = vpack.c.b16 %v7780, %v7776
    %v7825 = vpack.c.b16 %v7781, %v7777
    %v7826 = vpack.c.b16 %v7782, %v7778
    %v7827 = vpack.c.b16 %v7783, %v7779
    %v7828 = vpack.c.b16 %v7788, %v7784
    %v7829 = vpack.c.b16 %v7789, %v7785
    %v7830 = vpack.c.b16 %v7790, %v7786
    %v7831 = vpack.c.b16 %v7791, %v7787
    %v7832 = vpack.c.b16 %v7796, %v7792
    %v7833 = vpack.c.b16 %v7797, %v7793
    %v7834 = vpack.c.b16 %v7798, %v7794
    %v7835 = vpack.c.b16 %v7799, %v7795
    %v7836 = vpack.c.b16 %v7804, %v7800
    %v7837 = vpack.c.b16 %v7805, %v7801
    %v7838 = vpack.c.b16 %v7806, %v7802
    %v7839 = vpack.c.b16 %v7807, %v7803
    %7872 = vmatprep.subr.bf16.mxu0 %v7809
    %7873 = vmatpush1.bf16.msra.mxu0 %v7808
    %7874 = vmatprep.subr.bf16.mxu0 %v7813
    %7875 = vmatpush1.bf16.msra.mxu0 %v7812
    %7876 = vmatprep.subr.bf16.mxu0 %v7817
    %7877 = vmatpush1.bf16.msra.mxu0 %v7816
    %7878 = vmatprep.subr.bf16.mxu0 %v7821
    %7879 = vmatpush1.bf16.msra.mxu0 %v7820
    %7880 = vmatprep.subr.bf16.mxu0 %v7825
    %7881 = vmatpush1.bf16.msra.mxu0 %v7824
    %7882 = vmatprep.subr.bf16.mxu0 %v7829
    %7883 = vmatpush1.bf16.msra.mxu0 %v7828
    %7884 = vmatprep.subr.bf16.mxu0 %v7833
    %7885 = vmatpush1.bf16.msra.mxu0 %v7832
    %7886 = vmatprep.subr.bf16.mxu0 %v7837
    %7887 = vmatpush1.bf16.msra.mxu0 %v7836
    %7888 = vmatprep.subr.bf16.mxu0 0
    %7889 = vmatpush1.bf16.msra.mxu0 0
    %7890 = vmatprep.subr.bf16.mxu0 0
    %7891 = vmatpush1.bf16.msra.mxu0 0
    %7892 = vmatprep.subr.bf16.mxu0 0
    %7893 = vmatpush1.bf16.msra.mxu0 0
    %7894 = vmatprep.subr.bf16.mxu0 0
    %7895 = vmatpush1.bf16.msra.mxu0 0
    %7896 = vmatprep.subr.bf16.mxu0 0
    %7897 = vmatpush1.bf16.msra.mxu0 0
    %7898 = vmatprep.subr.bf16.mxu0 0
    %7899 = vmatpush1.bf16.msra.mxu0 0
    %7900 = vmatprep.subr.bf16.mxu0 0
    %7901 = vmatpush1.bf16.msra.mxu0 0
    %7902 = vmatprep.subr.bf16.mxu0 0
    %7903 = vmatpush1.bf16.msra.mxu0 0
    %7904 = vmatprep.mubr.bf16.mxu0 0
    %7905 = vmatmul.mubr.bf16.gmra.mrb[0].mxu0 %v7690
    %v7906 = vpop.f32.mrb[0].mxu0
    %v7907 = vadd.f32 %v7695, %v7906
    %v7908 = vpop.f32.mrb[0].mxu0
    %v7909 = vadd.f32 %v7699, %v7908
    %v7910 = vpop.f32.mrb[0].mxu0
    %v7911 = vadd.f32 %v7695, %v7910
    %v7912 = vpop.f32.mrb[0].mxu0
    %v7913 = vadd.f32 %v7699, %v7912
    %7914 = vdwg.mxu0
    %7915 = vmatprep.subr.bf16.mxu0 %v7811
    %7916 = vmatpush1.bf16.msra.mxu0 %v7810
    %7917 = vmatprep.subr.bf16.mxu0 %v7815
    %7918 = vmatpush1.bf16.msra.mxu0 %v7814
    %7919 = vmatprep.subr.bf16.mxu0 %v7819
    %7920 = vmatpush1.bf16.msra.mxu0 %v7818
    %7921 = vmatprep.subr.bf16.mxu0 %v7823
    %7922 = vmatpush1.bf16.msra.mxu0 %v7822
    %7923 = vmatprep.subr.bf16.mxu0 %v7827
    %7924 = vmatpush1.bf16.msra.mxu0 %v7826
    %7925 = vmatprep.subr.bf16.mxu0 %v7831
    %7926 = vmatpush1.bf16.msra.mxu0 %v7830
    %7927 = vmatprep.subr.bf16.mxu0 %v7835
    %7928 = vmatpush1.bf16.msra.mxu0 %v7834
    %7929 = vmatprep.subr.bf16.mxu0 %v7839
    %7930 = vmatpush1.bf16.msra.mxu0 %v7838
    %7931 = vmatprep.subr.bf16.mxu0 0
    %7932 = vmatpush1.bf16.msra.mxu0 0
    %7933 = vmatprep.subr.bf16.mxu0 0
    %7934 = vmatpush1.bf16.msra.mxu0 0
    %7935 = vmatprep.subr.bf16.mxu0 0
    %7936 = vmatpush1.bf16.msra.mxu0 0
    %7937 = vmatprep.subr.bf16.mxu0 0
    %7938 = vmatpush1.bf16.msra.mxu0 0
    %7939 = vmatprep.subr.bf16.mxu0 0
    %7940 = vmatpush1.bf16.msra.mxu0 0
    %7941 = vmatprep.subr.bf16.mxu0 0
    %7942 = vmatpush1.bf16.msra.mxu0 0
    %7943 = vmatprep.subr.bf16.mxu0 0
    %7944 = vmatpush1.bf16.msra.mxu0 0
    %7945 = vmatprep.subr.bf16.mxu0 0
    %7946 = vmatpush1.bf16.msra.mxu0 0
    %7947 = vmatprep.mubr.bf16.mxu0 0
    %7948 = vmatmul.mubr.bf16.gmra.mrb[0].mxu0 %v7690
    %v7949 = vpop.f32.mrb[0].mxu0
    %v7950 = vadd.f32 %v7703, %v7949
    %v7951 = vpop.f32.mrb[0].mxu0
    %v7952 = vadd.f32 %v7707, %v7951
    %v7953 = vpop.f32.mrb[0].mxu0
    %v7954 = vadd.f32 %v7703, %v7953
    %v7955 = vpop.f32.mrb[0].mxu0
    %v7956 = vadd.f32 %v7707, %v7955
    %7957 = vdwg.mxu0
    %v7958 = vmax.f32 %v7907, 0.0
    %v7959 = vmax.f32 %v7909, 0.0
    %v7960 = vmax.f32 %v7950, 0.0
    %v7961 = vmax.f32 %v7952, 0.0
    %v7962 = vmax.f32 %v7911, 0.0
    %v7963 = vmax.f32 %v7913, 0.0
    %v7964 = vmax.f32 %v7954, 0.0
    %v7965 = vmax.f32 %v7956, 0.0
    %s7966 = scalar_lea.vmem [#allocation8], 768
    %v7967 = vld [vmem:[%s7966] sm:$0xf]
    %v7968 = vld [vmem:[%s7966 + $0x4] sm:$0xf]
    %v7969 = vld [vmem:[%s7966 + $0x8] sm:$0xf]
    %v7970 = vld [vmem:[%s7966 + $0xc] sm:$0xf]
    %v7971 = vld [vmem:[%s7966 + $0x10] sm:$0xf]
    %v7972 = vld [vmem:[%s7966 + $0x14] sm:$0xf]
    %v7973 = vld [vmem:[%s7966 + $0x18] sm:$0xf]
    %v7974 = vld [vmem:[%s7966 + $0x1c] sm:$0xf]
    %v7975 = vld [vmem:[%s7966 + $0x20] sm:$0xf]
    %v7976 = vld [vmem:[%s7966 + $0x24] sm:$0xf]
    %v7977 = vld [vmem:[%s7966 + $0x28] sm:$0xf]
    %v7978 = vld [vmem:[%s7966 + $0x2c] sm:$0xf]
    %v7979 = vld [vmem:[%s7966 + $0x30] sm:$0xf]
    %v7980 = vld [vmem:[%s7966 + $0x34] sm:$0xf]
    %v7981 = vld [vmem:[%s7966 + $0x38] sm:$0xf]
    %v7982 = vld [vmem:[%s7966 + $0x3c] sm:$0xf]
    %v7983 = vld [vmem:[%s7966 + $0x40] sm:$0xf]
    %v7984 = vld [vmem:[%s7966 + $0x44] sm:$0xf]
    %v7985 = vld [vmem:[%s7966 + $0x48] sm:$0xf]
    %v7986 = vld [vmem:[%s7966 + $0x4c] sm:$0xf]
    %v7987 = vld [vmem:[%s7966 + $0x50] sm:$0xf]
    %v7988 = vld [vmem:[%s7966 + $0x54] sm:$0xf]
    %v7989 = vld [vmem:[%s7966 + $0x58] sm:$0xf]
    %v7990 = vld [vmem:[%s7966 + $0x5c] sm:$0xf]
    %v7991 = vld [vmem:[%s7966 + $0x60] sm:$0xf]
    %v7992 = vld [vmem:[%s7966 + $0x64] sm:$0xf]
    %v7993 = vld [vmem:[%s7966 + $0x68] sm:$0xf]
    %v7994 = vld [vmem:[%s7966 + $0x6c] sm:$0xf]
    %v7995 = vld [vmem:[%s7966 + $0x70] sm:$0xf]
    %v7996 = vld [vmem:[%s7966 + $0x74] sm:$0xf]
    %v7997 = vld [vmem:[%s7966 + $0x78] sm:$0xf]
    %v7998 = vld [vmem:[%s7966 + $0x7c] sm:$0xf]
    %v7999 = vld [vmem:[%s7966 + $0x80] sm:$0xf]
    %v8000 = vld [vmem:[%s7966 + $0x84] sm:$0xf]
    %v8001 = vld [vmem:[%s7966 + $0x88] sm:$0xf]
    %v8002 = vld [vmem:[%s7966 + $0x8c] sm:$0xf]
    %v8003 = vld [vmem:[%s7966 + $0x90] sm:$0xf]
    %v8004 = vld [vmem:[%s7966 + $0x94] sm:$0xf]
    %v8005 = vld [vmem:[%s7966 + $0x98] sm:$0xf]
    %v8006 = vld [vmem:[%s7966 + $0x9c] sm:$0xf]
    %v8007 = vld [vmem:[%s7966 + $0xa0] sm:$0xf]
    %v8008 = vld [vmem:[%s7966 + $0xa4] sm:$0xf]
    %v8009 = vld [vmem:[%s7966 + $0xa8] sm:$0xf]
    %v8010 = vld [vmem:[%s7966 + $0xac] sm:$0xf]
    %v8011 = vld [vmem:[%s7966 + $0xb0] sm:$0xf]
    %v8012 = vld [vmem:[%s7966 + $0xb4] sm:$0xf]
    %v8013 = vld [vmem:[%s7966 + $0xb8] sm:$0xf]
    %v8014 = vld [vmem:[%s7966 + $0xbc] sm:$0xf]
    %v8015 = vld [vmem:[%s7966 + $0xc0] sm:$0xf]
    %v8016 = vld [vmem:[%s7966 + $0xc4] sm:$0xf]
    %v8017 = vld [vmem:[%s7966 + $0xc8] sm:$0xf]
    %v8018 = vld [vmem:[%s7966 + $0xcc] sm:$0xf]
    %v8019 = vld [vmem:[%s7966 + $0xd0] sm:$0xf]
    %v8020 = vld [vmem:[%s7966 + $0xd4] sm:$0xf]
    %v8021 = vld [vmem:[%s7966 + $0xd8] sm:$0xf]
    %v8022 = vld [vmem:[%s7966 + $0xdc] sm:$0xf]
    %v8023 = vld [vmem:[%s7966 + $0xe0] sm:$0xf]
    %v8024 = vld [vmem:[%s7966 + $0xe4] sm:$0xf]
    %v8025 = vld [vmem:[%s7966 + $0xe8] sm:$0xf]
    %v8026 = vld [vmem:[%s7966 + $0xec] sm:$0xf]
    %v8027 = vld [vmem:[%s7966 + $0xf0] sm:$0xf]
    %v8028 = vld [vmem:[%s7966 + $0xf4] sm:$0xf]
    %v8029 = vld [vmem:[%s7966 + $0xf8] sm:$0xf]
    %v8030 = vld [vmem:[%s7966 + $0xfc] sm:$0xf]
    %s8031 = scalar_lea.vmem %s12, 3
    %v8032 = vld [vmem:[%s8031] sm:$0x1]
    %v8033 = vpack.c.bf16 %v7962, %v7958
    %v8034 = vpack.c.bf16 %v7963, %v7959
    %v8035 = vpack.c.bf16 %v7964, %v7960
    %v8036 = vpack.c.bf16 %v7965, %v7961
    %v8038 = vlaneseq
    %v8039 = vshrl.u32 %v8038, 7
    %v8040 = vsub.s32 0, %v8039
    %v8041 = vrot.slane %v8032, %v8040
    %v8107 = vunpack.c.l.b16 %v7967
    %v8108 = vunpack.c.l.b16 %v7968
    %v8109 = vunpack.c.l.b16 %v7969
    %v8110 = vunpack.c.l.b16 %v7970
    %v8111 = vunpack.c.l.b16 %v7971
    %v8112 = vunpack.c.l.b16 %v7972
    %v8113 = vunpack.c.l.b16 %v7973
    %v8114 = vunpack.c.l.b16 %v7974
    %v8115 = vunpack.c.l.b16 %v7975
    %v8116 = vunpack.c.l.b16 %v7976
    %v8117 = vunpack.c.l.b16 %v7977
    %v8118 = vunpack.c.l.b16 %v7978
    %v8119 = vunpack.c.l.b16 %v7979
    %v8120 = vunpack.c.l.b16 %v7980
    %v8121 = vunpack.c.l.b16 %v7981
    %v8122 = vunpack.c.l.b16 %v7982
    %v8123 = vunpack.c.l.b16 %v7983
    %v8124 = vunpack.c.l.b16 %v7984
    %v8125 = vunpack.c.l.b16 %v7985
    %v8126 = vunpack.c.l.b16 %v7986
    %v8127 = vunpack.c.l.b16 %v7987
    %v8128 = vunpack.c.l.b16 %v7988
    %v8129 = vunpack.c.l.b16 %v7989
    %v8130 = vunpack.c.l.b16 %v7990
    %v8131 = vunpack.c.l.b16 %v7991
    %v8132 = vunpack.c.l.b16 %v7992
    %v8133 = vunpack.c.l.b16 %v7993
    %v8134 = vunpack.c.l.b16 %v7994
    %v8135 = vunpack.c.l.b16 %v7995
    %v8136 = vunpack.c.l.b16 %v7996
    %v8137 = vunpack.c.l.b16 %v7997
    %v8138 = vunpack.c.l.b16 %v7998
    %v8139 = vunpack.c.l.b16 %v7999
    %v8140 = vunpack.c.l.b16 %v8000
    %v8141 = vunpack.c.l.b16 %v8001
    %v8142 = vunpack.c.l.b16 %v8002
    %v8143 = vunpack.c.l.b16 %v8003
    %v8144 = vunpack.c.l.b16 %v8004
    %v8145 = vunpack.c.l.b16 %v8005
    %v8146 = vunpack.c.l.b16 %v8006
    %v8147 = vunpack.c.l.b16 %v8007
    %v8148 = vunpack.c.l.b16 %v8008
    %v8149 = vunpack.c.l.b16 %v8009
    %v8150 = vunpack.c.l.b16 %v8010
    %v8151 = vunpack.c.l.b16 %v8011
    %v8152 = vunpack.c.l.b16 %v8012
    %v8153 = vunpack.c.l.b16 %v8013
    %v8154 = vunpack.c.l.b16 %v8014
    %v8155 = vunpack.c.l.b16 %v8015
    %v8156 = vunpack.c.l.b16 %v8016
    %v8157 = vunpack.c.l.b16 %v8017
    %v8158 = vunpack.c.l.b16 %v8018
    %v8159 = vunpack.c.l.b16 %v8019
    %v8160 = vunpack.c.l.b16 %v8020
    %v8161 = vunpack.c.l.b16 %v8021
    %v8162 = vunpack.c.l.b16 %v8022
    %v8163 = vunpack.c.l.b16 %v8023
    %v8164 = vunpack.c.l.b16 %v8024
    %v8165 = vunpack.c.l.b16 %v8025
    %v8166 = vunpack.c.l.b16 %v8026
    %v8167 = vunpack.c.l.b16 %v8027
    %v8168 = vunpack.c.l.b16 %v8028
    %v8169 = vunpack.c.l.b16 %v8029
    %v8170 = vunpack.c.l.b16 %v8030
    %v8171 = vpack.c.b16 %v8108, %v8107
    %v8172 = vpack.c.b16 %v8110, %v8109
    %v8173 = vpack.c.b16 %v8112, %v8111
    %v8174 = vpack.c.b16 %v8114, %v8113
    %v8175 = vpack.c.b16 %v8116, %v8115
    %v8176 = vpack.c.b16 %v8118, %v8117
    %v8177 = vpack.c.b16 %v8120, %v8119
    %v8178 = vpack.c.b16 %v8122, %v8121
    %v8179 = vpack.c.b16 %v8124, %v8123
    %v8180 = vpack.c.b16 %v8126, %v8125
    %v8181 = vpack.c.b16 %v8128, %v8127
    %v8182 = vpack.c.b16 %v8130, %v8129
    %v8183 = vpack.c.b16 %v8132, %v8131
    %v8184 = vpack.c.b16 %v8134, %v8133
    %v8185 = vpack.c.b16 %v8136, %v8135
    %v8186 = vpack.c.b16 %v8138, %v8137
    %v8187 = vpack.c.b16 %v8140, %v8139
    %v8188 = vpack.c.b16 %v8142, %v8141
    %v8189 = vpack.c.b16 %v8144, %v8143
    %v8190 = vpack.c.b16 %v8146, %v8145
    %v8191 = vpack.c.b16 %v8148, %v8147
    %v8192 = vpack.c.b16 %v8150, %v8149
    %v8193 = vpack.c.b16 %v8152, %v8151
    %v8194 = vpack.c.b16 %v8154, %v8153
    %v8195 = vpack.c.b16 %v8156, %v8155
    %v8196 = vpack.c.b16 %v8158, %v8157
    %v8197 = vpack.c.b16 %v8160, %v8159
    %v8198 = vpack.c.b16 %v8162, %v8161
    %v8199 = vpack.c.b16 %v8164, %v8163
    %v8200 = vpack.c.b16 %v8166, %v8165
    %v8201 = vpack.c.b16 %v8168, %v8167
    %v8202 = vpack.c.b16 %v8170, %v8169
    %8235 = vmatprep.subr.bf16.mxu0 0
    %8236 = vmatpush1.bf16.msra.mxu0 %v8171
    %8237 = vmatprep.subr.bf16.mxu0 0
    %8238 = vmatpush1.bf16.msra.mxu0 %v8172
    %8239 = vmatprep.subr.bf16.mxu0 0
    %8240 = vmatpush1.bf16.msra.mxu0 %v8173
    %8241 = vmatprep.subr.bf16.mxu0 0
    %8242 = vmatpush1.bf16.msra.mxu0 %v8174
    %8243 = vmatprep.subr.bf16.mxu0 0
    %8244 = vmatpush1.bf16.msra.mxu0 %v8175
    %8245 = vmatprep.subr.bf16.mxu0 0
    %8246 = vmatpush1.bf16.msra.mxu0 %v8176
    %8247 = vmatprep.subr.bf16.mxu0 0
    %8248 = vmatpush1.bf16.msra.mxu0 %v8177
    %8249 = vmatprep.subr.bf16.mxu0 0
    %8250 = vmatpush1.bf16.msra.mxu0 %v8178
    %8251 = vmatprep.subr.bf16.mxu0 0
    %8252 = vmatpush1.bf16.msra.mxu0 %v8179
    %8253 = vmatprep.subr.bf16.mxu0 0
    %8254 = vmatpush1.bf16.msra.mxu0 %v8180
    %8255 = vmatprep.subr.bf16.mxu0 0
    %8256 = vmatpush1.bf16.msra.mxu0 %v8181
    %8257 = vmatprep.subr.bf16.mxu0 0
    %8258 = vmatpush1.bf16.msra.mxu0 %v8182
    %8259 = vmatprep.subr.bf16.mxu0 0
    %8260 = vmatpush1.bf16.msra.mxu0 %v8183
    %8261 = vmatprep.subr.bf16.mxu0 0
    %8262 = vmatpush1.bf16.msra.mxu0 %v8184
    %8263 = vmatprep.subr.bf16.mxu0 0
    %8264 = vmatpush1.bf16.msra.mxu0 %v8185
    %8265 = vmatprep.subr.bf16.mxu0 0
    %8266 = vmatpush1.bf16.msra.mxu0 %v8186
    %8267 = vmatprep.mubr.bf16.mxu0 %v8034
    %8268 = vmatmul.mubr.bf16.gmra.mrb[0].mxu0 %v8033
    %v8269 = vpop.f32.mrb[0].mxu0
    %v8270 = vadd.f32 %v8041, %v8269
    %v8271 = vpop.f32.mrb[0].mxu0
    %v8272 = vpop.f32.mrb[0].mxu0
    %v8273 = vadd.f32 %v8041, %v8272
    %v8274 = vpop.f32.mrb[0].mxu0
    %8275 = vdwg.mxu0
    %8276 = vmatprep.subr.bf16.mxu0 0
    %8277 = vmatpush1.bf16.msra.mxu0 %v8187
    %8278 = vmatprep.subr.bf16.mxu0 0
    %8279 = vmatpush1.bf16.msra.mxu0 %v8188
    %8280 = vmatprep.subr.bf16.mxu0 0
    %8281 = vmatpush1.bf16.msra.mxu0 %v8189
    %8282 = vmatprep.subr.bf16.mxu0 0
    %8283 = vmatpush1.bf16.msra.mxu0 %v8190
    %8284 = vmatprep.subr.bf16.mxu0 0
    %8285 = vmatpush1.bf16.msra.mxu0 %v8191
    %8286 = vmatprep.subr.bf16.mxu0 0
    %8287 = vmatpush1.bf16.msra.mxu0 %v8192
    %8288 = vmatprep.subr.bf16.mxu0 0
    %8289 = vmatpush1.bf16.msra.mxu0 %v8193
    %8290 = vmatprep.subr.bf16.mxu0 0
    %8291 = vmatpush1.bf16.msra.mxu0 %v8194
    %8292 = vmatprep.subr.bf16.mxu0 0
    %8293 = vmatpush1.bf16.msra.mxu0 %v8195
    %8294 = vmatprep.subr.bf16.mxu0 0
    %8295 = vmatpush1.bf16.msra.mxu0 %v8196
    %8296 = vmatprep.subr.bf16.mxu0 0
    %8297 = vmatpush1.bf16.msra.mxu0 %v8197
    %8298 = vmatprep.subr.bf16.mxu0 0
    %8299 = vmatpush1.bf16.msra.mxu0 %v8198
    %8300 = vmatprep.subr.bf16.mxu0 0
    %8301 = vmatpush1.bf16.msra.mxu0 %v8199
    %8302 = vmatprep.subr.bf16.mxu0 0
    %8303 = vmatpush1.bf16.msra.mxu0 %v8200
    %8304 = vmatprep.subr.bf16.mxu0 0
    %8305 = vmatpush1.bf16.msra.mxu0 %v8201
    %8306 = vmatprep.subr.bf16.mxu0 0
    %8307 = vmatpush1.bf16.msra.mxu0 %v8202
    %8308 = vmatprep.mubr.bf16.mxu0 %v8036
    %8309 = vmatmul.mubr.bf16.gmra.mrb[0].mxu0 %v8035
    %v8310 = vpop.f32.mrb[0].mxu0
    %v8311 = vadd.f32 %v8270, %v8310
    %v8312 = vpop.f32.mrb[0].mxu0
    %v8313 = vpop.f32.mrb[0].mxu0
    %v8314 = vadd.f32 %v8273, %v8313
    %v8315 = vpop.f32.mrb[0].mxu0
    %8316 = vdwg.mxu0
    %v8317 = vadd.f32 %v7653, %v8311
    %v8318 = vadd.f32 %v7654, %v8314
    %s8319 = scalar_lea.vmem %s13, 3
    %v8320 = vld [vmem:[%s8319] sm:$0x1]
    %s8321 = scalar_lea.vmem %s14, 3
    %v8322 = vld [vmem:[%s8321] sm:$0x1]
    %8323 = vadd.xlane.f32.xlu0 %v8317
    %v8324 = vpop.xlane.xlu0 %8323
    %8325 = vadd.xlane.f32.xlu0 %v8318
    %v8326 = vpop.xlane.xlu0 %8325
    %v8327 = vmul.f32 %v8324, %v1503
    %v8328 = vmul.f32 %v8326, %v1503
    %v8329 = vsub.f32 %v8317, %v8327
    %v8330 = vsub.f32 %v8318, %v8328
    %v8331 = vmul.f32 %v8329, %v8329
    %v8332 = vmul.f32 %v8330, %v8330
    %8333 = vadd.xlane.f32.xlu0 %v8331
    %v8334 = vpop.xlane.xlu0 %8333
    %8335 = vadd.xlane.f32.xlu0 %v8332
    %v8336 = vpop.xlane.xlu0 %8335
    %v8337 = vmul.f32 %v8334, %v1503
    %v8338 = vmul.f32 %v8336, %v1503
    %v8339 = vadd.f32 %v8337, 1e-05
    %v8340 = vadd.f32 %v8338, 1e-05
    %v8341 = vrsqrt.pop %v8339
    %v8342 = vrsqrt.pop %v8340
    %v8343 = vmul.f32 %v8329, %v8341
    %v8344 = vmul.f32 %v8330, %v8342
    %v8346 = vlaneseq
    %v8347 = vshrl.u32 %v8346, 7
    %v8348 = vsub.s32 0, %v8347
    %v8349 = vrot.slane %v8320, %v8348
    %v8351 = vmul.f32 %v8343, %v8349
    %v8352 = vmul.f32 %v8344, %v8349
    %v8354 = vlaneseq
    %v8355 = vshrl.u32 %v8354, 7
    %v8356 = vsub.s32 0, %v8355
    %v8357 = vrot.slane %v8322, %v8356
    %v8359 = vadd.f32 %v8351, %v8357
    %v8360 = vadd.f32 %v8352, %v8357
    %v8361 = vlaneseq
    %v8362 = vshrl.u32 %v8361, 7
    %v8363 = vlaneseq
    %v8364 = vand.u32 %v8363, 127
    %v8365 = vmul.u32 %v8362, 8
    %vm8366 = vcmp.ge.s32.totalorder %v8364, %v8365
    %v8367 = vadd.s32 %v8362, 1
    %v8368 = vmul.u32 %v8367, 8
    %vm8369 = vcmp.lt.s32.totalorder %v8364, %v8368
    %vm8370 = vmand %vm8366, %vm8369
    %v8371 = vsel %vm8370, 0.125, 0.0
    %v8372 = vpack.c.bf16 %v8371, %v8371
    %v8373 = vpack.c.bf16 %v8360, %v8359
    %vm8374 = vcmask 130048
    %v8376 = vsel %vm8374, %v8372, 0
    %8378 = vmatprep.subr.bf16.mxu0 0
    %8379 = vmatpush1.bf16.msra.mxu0 %v8373
    %8380 = vmatprep.subr.bf16.mxu0 0
    %8381 = vmatpush1.bf16.msra.mxu0 0
    %8382 = vmatprep.subr.bf16.mxu0 0
    %8383 = vmatpush1.bf16.msra.mxu0 0
    %8384 = vmatprep.subr.bf16.mxu0 0
    %8385 = vmatpush1.bf16.msra.mxu0 0
    %8386 = vmatprep.subr.bf16.mxu0 0
    %8387 = vmatpush1.bf16.msra.mxu0 0
    %8388 = vmatprep.subr.bf16.mxu0 0
    %8389 = vmatpush1.bf16.msra.mxu0 0
    %8390 = vmatprep.subr.bf16.mxu0 0
    %8391 = vmatpush1.bf16.msra.mxu0 0
    %8392 = vmatprep.subr.bf16.mxu0 0
    %8393 = vmatpush1.bf16.msra.mxu0 0
    %8394 = vmatprep.subr.bf16.mxu0 0
    %8395 = vmatpush1.bf16.msra.mxu0 0
    %8396 = vmatprep.subr.bf16.mxu0 0
    %8397 = vmatpush1.bf16.msra.mxu0 0
    %8398 = vmatprep.subr.bf16.mxu0 0
    %8399 = vmatpush1.bf16.msra.mxu0 0
    %8400 = vmatprep.subr.bf16.mxu0 0
    %8401 = vmatpush1.bf16.msra.mxu0 0
    %8402 = vmatprep.subr.bf16.mxu0 0
    %8403 = vmatpush1.bf16.msra.mxu0 0
    %8404 = vmatprep.subr.bf16.mxu0 0
    %8405 = vmatpush1.bf16.msra.mxu0 0
    %8406 = vmatprep.subr.bf16.mxu0 0
    %8407 = vmatpush1.bf16.msra.mxu0 0
    %8408 = vmatprep.subr.bf16.mxu0 0
    %8409 = vmatpush1.bf16.msra.mxu0 0
    %8410 = vmatprep.mubr.bf16.mxu0 0
    %8411 = vmatmul.mubr.bf16.gmra.mrb[0].mxu0 %v8376
    %v8412 = vpop.f32.mrb[0].mxu0
    %v8413 = vadd.f32 0.0, %v8412
    %v8414 = vpop.f32.mrb[0].mxu0
    %v8415 = vpop.f32.mrb[0].mxu0
    %v8416 = vpop.f32.mrb[0].mxu0
    %8417 = vdwg.mxu0
    %v8418 = vld [vmem:[%s15] sm:$0xf]
    %v8419 = vld [vmem:[%s15 + $0x4] sm:$0xf]
    %v8420 = vld [vmem:[%s15 + $0x8] sm:$0xf]
    %v8421 = vld [vmem:[%s15 + $0xc] sm:$0xf]
    %v8422 = vld [vmem:[%s15 + $0x10] sm:$0xf]
    %v8423 = vld [vmem:[%s15 + $0x14] sm:$0xf]
    %v8424 = vld [vmem:[%s15 + $0x18] sm:$0xf]
    %v8425 = vld [vmem:[%s15 + $0x1c] sm:$0xf]
    %v8426 = vld [vmem:[%s15 + $0x20] sm:$0xf]
    %v8427 = vld [vmem:[%s15 + $0x24] sm:$0xf]
    %v8428 = vld [vmem:[%s15 + $0x28] sm:$0xf]
    %v8429 = vld [vmem:[%s15 + $0x2c] sm:$0xf]
    %v8430 = vld [vmem:[%s15 + $0x30] sm:$0xf]
    %v8431 = vld [vmem:[%s15 + $0x34] sm:$0xf]
    %v8432 = vld [vmem:[%s15 + $0x38] sm:$0xf]
    %v8433 = vld [vmem:[%s15 + $0x3c] sm:$0xf]
    %v8434 = vld [vmem:[%s16] sm:$0x1]
    %v8435 = vpack.c.bf16 %v8413, %v8413
    %v8437 = vlaneseq
    %v8438 = vshrl.u32 %v8437, 7
    %v8439 = vsub.s32 0, %v8438
    %v8440 = vrot.slane %v8434, %v8439
    %v8458 = vunpack.c.l.b16 %v8418
    %v8459 = vunpack.c.l.b16 %v8419
    %v8460 = vunpack.c.l.b16 %v8420
    %v8461 = vunpack.c.l.b16 %v8421
    %v8462 = vunpack.c.l.b16 %v8422
    %v8463 = vunpack.c.l.b16 %v8423
    %v8464 = vunpack.c.l.b16 %v8424
    %v8465 = vunpack.c.l.b16 %v8425
    %v8466 = vunpack.c.l.b16 %v8426
    %v8467 = vunpack.c.l.b16 %v8427
    %v8468 = vunpack.c.l.b16 %v8428
    %v8469 = vunpack.c.l.b16 %v8429
    %v8470 = vunpack.c.l.b16 %v8430
    %v8471 = vunpack.c.l.b16 %v8431
    %v8472 = vunpack.c.l.b16 %v8432
    %v8473 = vunpack.c.l.b16 %v8433
    %v8474 = vpack.c.b16 %v8459, %v8458
    %v8475 = vpack.c.b16 %v8461, %v8460
    %v8476 = vpack.c.b16 %v8463, %v8462
    %v8477 = vpack.c.b16 %v8465, %v8464
    %v8478 = vpack.c.b16 %v8467, %v8466
    %v8479 = vpack.c.b16 %v8469, %v8468
    %v8480 = vpack.c.b16 %v8471, %v8470
    %v8481 = vpack.c.b16 %v8473, %v8472
    %8490 = vmatprep.subr.bf16.mxu0 0
    %8491 = vmatpush1.bf16.msra.mxu0 %v8474
    %8492 = vmatprep.subr.bf16.mxu0 0
    %8493 = vmatpush1.bf16.msra.mxu0 %v8475
    %8494 = vmatprep.subr.bf16.mxu0 0
    %8495 = vmatpush1.bf16.msra.mxu0 %v8476
    %8496 = vmatprep.subr.bf16.mxu0 0
    %8497 = vmatpush1.bf16.msra.mxu0 %v8477
    %8498 = vmatprep.subr.bf16.mxu0 0
    %8499 = vmatpush1.bf16.msra.mxu0 %v8478
    %8500 = vmatprep.subr.bf16.mxu0 0
    %8501 = vmatpush1.bf16.msra.mxu0 %v8479
    %8502 = vmatprep.subr.bf16.mxu0 0
    %8503 = vmatpush1.bf16.msra.mxu0 %v8480
    %8504 = vmatprep.subr.bf16.mxu0 0
    %8505 = vmatpush1.bf16.msra.mxu0 %v8481
    %8506 = vmatprep.subr.bf16.mxu0 0
    %8507 = vmatpush1.bf16.msra.mxu0 0
    %8508 = vmatprep.subr.bf16.mxu0 0
    %8509 = vmatpush1.bf16.msra.mxu0 0
    %8510 = vmatprep.subr.bf16.mxu0 0
    %8511 = vmatpush1.bf16.msra.mxu0 0
    %8512 = vmatprep.subr.bf16.mxu0 0
    %8513 = vmatpush1.bf16.msra.mxu0 0
    %8514 = vmatprep.subr.bf16.mxu0 0
    %8515 = vmatpush1.bf16.msra.mxu0 0
    %8516 = vmatprep.subr.bf16.mxu0 0
    %8517 = vmatpush1.bf16.msra.mxu0 0
    %8518 = vmatprep.subr.bf16.mxu0 0
    %8519 = vmatpush1.bf16.msra.mxu0 0
    %8520 = vmatprep.subr.bf16.mxu0 0
    %8521 = vmatpush1.bf16.msra.mxu0 0
    %8522 = vmatprep.mubr.bf16.mxu0 0
    %8523 = vmatmul.mubr.bf16.gmra.mrb[0].mxu0 %v8435
    %v8524 = vpop.f32.mrb[0].mxu0
    %v8525 = vadd.f32 %v8440, %v8524
    %v8526 = vpop.f32.mrb[0].mxu0
    %v8527 = vpop.f32.mrb[0].mxu0
    %v8528 = vpop.f32.mrb[0].mxu0
    %8529 = vdwg.mxu0
    %vm8530 = vcmask 74752
    %8531 = vst.msk [vmem:[#allocation10] sm:$0x3] %vm8530, %v8525
    // Predicated region
    $region86: #{tiny_conformer_forward.1} parent=1 // pred_check
      _
    $region87: #{tiny_conformer_forward.1} parent=1 // pred_check_branch
      %8533 = sbr.rel (0) target = $region89
    $region88: #{tiny_conformer_forward.1} parent=1 // pred_region
      %s8535 = ssub.s32 32, 32
      %8536 = vsyncadd [#allocation4], %s8535
      %s8538 = sshll.u32 [#allocation10], 4
      %s8539 = int_to_ptr.vmem [resolvable:$true] %s8538
      %8541 = dma.vmem_to_hbm [thread:$0]  %s8539, 32, %s17, [#allocation4]
    $region89: #{tiny_conformer_forward.1} parent=1 // pred_fallthru
      _
    // Predicated region
    $region90: #{tiny_conformer_forward.1} parent=1 // pred_check
      _
    $region91: #{tiny_conformer_forward.1} parent=1 // pred_check_branch
      %8543 = sbr.rel (0) target = $region93
    $region92: #{tiny_conformer_forward.1} parent=1 // pred_region
      %8544 = dma.done [#allocation4], 32
    $region93: #{tiny_conformer_forward.1} parent=1 // pred_fallthru
      _
    %8545 = vsyncpa [#allocation3], 1
    %8546 = vsyncpa [#allocation6], 1
    %8547 = vsyncpa [#allocation9], 1
    %8548 = vsyncpa [#allocation4], 1

</llo_original>
